<compile_context>
chip_gen: v6e
topology: v6e:2x2x1
jax: 0.10.0
libtpu: 0.0.40
codegen_flags: <defaults>
</compile_context>

<pallas_src>
import functools

import jax
import jax.numpy as jnp
from jax import lax
from jax.experimental import pallas as pl
from jax.experimental.pallas import tpu as pltpu

EPS = 1e-5


# --------------------------------------------------------------------------
# Kernel 1: fused [optional BN+ReLU prologue] -> 3x3 conv -> BN-stats epilogue
# --------------------------------------------------------------------------
def _conv_kernel(*refs, H, W, apply_act):
    if apply_act:
        (xs_ref, w_ref, scale_ref, shift_ref, mask_ref,
         y_ref, sum_ref, sq_ref) = refs
    else:
        xs_ref, w_ref, y_ref, sum_ref, sq_ref = refs

    HW = H * W
    acc = None
    for dw in range(3):
        # (H+2)*W rows, Cin lanes; one of the 3 W-shifted copies (resident).
        xw = xs_ref[0, dw]
        if apply_act:
            # Fused BN+ReLU of the previous block; mask restores the zero
            # padding that the affine shift would otherwise destroy.
            xw = jnp.maximum(xw * scale_ref[...] + shift_ref[...], 0.0)
            xw = xw * mask_ref[dw]
        for dh in range(3):
            # Sublane-aligned static window (offset dh*W, W % 8 == 0).
            patch = xw[dh * W:dh * W + HW, :]
            d = jnp.dot(patch, w_ref[dh * 3 + dw],
                        preferred_element_type=jnp.float32)
            acc = d if acc is None else acc + d

    # Single store of the conv result (no per-tap writeback).
    y_ref[0] = acc

    # BN statistics straight from the in-register accumulator (no extra HBM
    # pass over y).  Two separate rows -> no concatenate.
    sum_ref[0] = jnp.sum(acc, axis=0, keepdims=True)
    sq_ref[0] = jnp.sum(acc * acc, axis=0, keepdims=True)


def conv3x3_bn_stats(x_shift3, w9, H, W,
                     in_scale=None, in_shift=None, in_mask=None):
    """Fused conv block.

    x_shift3: (N, 3, (H+2)*W, Cin) -- the 3 W-shifted, H-flattened copies of
              the zero-padded input.
    w9:       (9, Cin, Cout) -- taps ordered dh*3+dw.
    Returns y (N, H*W, Cout), per-batch channel sums (N, 1, Cout) and
    sums of squares (N, 1, Cout).
    """
    N, _, HpW, Cin = x_shift3.shape
    Cout = w9.shape[-1]
    HW = H * W
    apply_act = in_scale is not None

    kernel = functools.partial(_conv_kernel, H=H, W=W, apply_act=apply_act)

    in_specs = [
        pl.BlockSpec((1, 3, HpW, Cin), lambda n: (n, 0, 0, 0)),
        # Full 3x3 weight resident across the whole grid.
        pl.BlockSpec((9, Cin, Cout), lambda n: (0, 0, 0)),
    ]
    args = [x_shift3, w9]
    if apply_act:
        in_specs += [
            pl.BlockSpec((1, Cin), lambda n: (0, 0)),
            pl.BlockSpec((1, Cin), lambda n: (0, 0)),
            pl.BlockSpec((3, HpW, 1), lambda n: (0, 0, 0)),
        ]
        args += [in_scale.reshape(1, Cin), in_shift.reshape(1, Cin), in_mask]

    out_shape = (
        jax.ShapeDtypeStruct((N, HW, Cout), jnp.float32),
        jax.ShapeDtypeStruct((N, 1, Cout), jnp.float32),
        jax.ShapeDtypeStruct((N, 1, Cout), jnp.float32),
    )
    out_specs = (
        pl.BlockSpec((1, HW, Cout), lambda n: (n, 0, 0)),
        pl.BlockSpec((1, 1, Cout), lambda n: (n, 0, 0)),
        pl.BlockSpec((1, 1, Cout), lambda n: (n, 0, 0)),
    )

    y, ssum, ssq = pl.pallas_call(
        kernel,
        out_shape=out_shape,
        grid_spec=pltpu.PrefetchScalarGridSpec(
            num_scalar_prefetch=0,
            grid=(N,),
            in_specs=in_specs,
            out_specs=out_specs,
        ),
        compiler_params=pltpu.CompilerParams(
            dimension_semantics=("parallel",)),
    )(*args)
    return y, ssum, ssq


# --------------------------------------------------------------------------
# Kernel 2: final fused BN + ReLU, lane-dense ((N*H, W*Cout) view)
# --------------------------------------------------------------------------
def _bn_relu_kernel(y_ref, scale_ref, shift_ref, o_ref):
    o_ref[...] = jnp.maximum(y_ref[...] * scale_ref[...] + shift_ref[...], 0.0)


def bn_relu_lane_dense(y2d, scale_row, shift_row, row_tile=256):
    R, C = y2d.shape
    tr = R if R <= row_tile else row_tile
    return pl.pallas_call(
        _bn_relu_kernel,
        out_shape=jax.ShapeDtypeStruct((R, C), jnp.float32),
        grid_spec=pltpu.PrefetchScalarGridSpec(
            num_scalar_prefetch=0,
            grid=(pl.cdiv(R, tr),),
            in_specs=[
                pl.BlockSpec((tr, C), lambda i: (i, 0)),
                pl.BlockSpec((1, C), lambda i: (0, 0)),
                pl.BlockSpec((1, C), lambda i: (0, 0)),
            ],
            out_specs=pl.BlockSpec((tr, C), lambda i: (i, 0)),
        ),
        compiler_params=pltpu.CompilerParams(
            dimension_semantics=("parallel",)),
    )(y2d, scale_row, shift_row)


# --------------------------------------------------------------------------
# Wrapper glue
# --------------------------------------------------------------------------
def _shifted_slab(xpad):
    """(N, H+2, W+2, C) -> (N, 3, (H+2)*W, C): 3 W-shifted, H-flattened copies."""
    N, Hp, Wp, C = xpad.shape
    W = Wp - 2
    cols = [xpad[:, :, dw:dw + W, :].reshape(N, Hp * W, C) for dw in range(3)]
    return jnp.stack(cols, axis=1)


def _bn_affine(ssum, ssq, gamma, beta, count):
    """Training-mode batch-norm folded into a per-channel scale/shift."""
    mean = jnp.sum(ssum, axis=(0, 1)) / count
    var = jnp.sum(ssq, axis=(0, 1)) / count - mean * mean
    var = jnp.maximum(var, 0.0)               # guard E[x^2]-E[x]^2 cancellation
    scale = gamma * lax.rsqrt(var + EPS)
    shift = beta - mean * scale
    return scale, shift


def double_conv_forward(x_nchw, params):
    """Equivalent of DoubleConv(in_ch, out_ch).forward(x) with x in NCHW."""
    x = jnp.transpose(x_nchw, (0, 2, 3, 1)).astype(jnp.float32)   # -> NHWC
    N, H, W, Cin = x.shape
    HW = H * W

    w1 = params["w1"].reshape(9, Cin, -1)          # HWIO -> (9, Cin, Cmid)
    Cmid = w1.shape[-1]
    w2 = params["w2"].reshape(9, Cmid, -1)
    Cout = w2.shape[-1]
    cnt = jnp.float32(N * HW)

    # ---- block 1: conv + fused BN-stats -------------------------------
    xpad = jnp.pad(x, ((0, 0), (1, 1), (1, 1), (0, 0)))
    xs1 = _shifted_slab(xpad)                                     # (N,3,(H+2)W,Cin)
    y1, s1, ss1 = conv3x3_bn_stats(xs1, w1, H, W)                 # y1: (N,HW,Cmid)
    scale1, shift1 = _bn_affine(s1, ss1, params["gamma1"], params["beta1"], cnt)

    # ---- block 2: (BN1+ReLU fused into prologue) conv + fused BN-stats -
    y1pad = jnp.pad(y1.reshape(N, H, W, Cmid), ((0, 0), (1, 1), (1, 1), (0, 0)))
    xs2 = _shifted_slab(y1pad)                                    # raw (pre-BN) conv1 out
    interior = jnp.pad(jnp.ones((1, H, W, 1), jnp.float32),
                       ((0, 0), (1, 1), (1, 1), (0, 0)))
    mask2 = _shifted_slab(interior)[0]                            # (3,(H+2)W,1)
    y2, s2, ss2 = conv3x3_bn_stats(xs2, w2, H, W,
                                   in_scale=scale1, in_shift=shift1,
                                   in_mask=mask2)                 # y2: (N,HW,Cout)
    scale2, shift2 = _bn_affine(s2, ss2, params["gamma2"], params["beta2"], cnt)

    # ---- final BN + ReLU (lane-dense: last dim = W*Cout, multiple of 128
    #      for the test shapes) ------------------------------------------
    scale2_row = jnp.tile(scale2, W).reshape(1, W * Cout)
    shift2_row = jnp.tile(shift2, W).reshape(1, W * Cout)
    out2d = bn_relu_lane_dense(y2.reshape(N * H, W * Cout), scale2_row, shift2_row)

    out = out2d.reshape(N, H, W, Cout)
    return jnp.transpose(out, (0, 3, 1, 2))                        # -> NCHW


# --------------------------------------------------------------------------
# Pure-JAX reference (for correctness check)
# --------------------------------------------------------------------------
def _ref_double_conv(x_nchw, params):
    def conv(x, w):
        return lax.conv_general_dilated(
            x, w, window_strides=(1, 1), padding="SAME",
            dimension_numbers=("NHWC", "HWIO", "NHWC"))

    def bnr(y, g, b):
        mean = jnp.mean(y, axis=(0, 1, 2))
        var = jnp.mean((y - mean) ** 2, axis=(0, 1, 2))
        return jnp.maximum((y - mean) / jnp.sqrt(var + EPS) * g + b, 0.0)

    x = jnp.transpose(x_nchw, (0, 2, 3, 1)).astype(jnp.float32)
    x = bnr(conv(x, params["w1"]), params["gamma1"], params["beta1"])
    x = bnr(conv(x, params["w2"]), params["gamma2"], params["beta2"])
    return jnp.transpose(x, (0, 3, 1, 2))


if __name__ == "__main__":
    # Small shapes consistent with the module: N=2, in_ch=4, out_ch=8, 16x16.
    N, Cin, Cmid, Cout, H, W = 2, 4, 8, 8, 16, 16  # mid_channels defaults to out_channels

    key = jax.random.PRNGKey(0)
    k_x, k_w1, k_w2, k_g1, k_b1, k_g2, k_b2 = jax.random.split(key, 7)

    x = jax.random.normal(k_x, (N, Cin, H, W), dtype=jnp.float32)

    params = {
        # Conv2d weights kept in HWIO (PyTorch OIHW would be permuted to this).
        "w1": 0.1 * jax.random.normal(k_w1, (3, 3, Cin, Cmid), dtype=jnp.float32),
        "w2": 0.1 * jax.random.normal(k_w2, (3, 3, Cmid, Cout), dtype=jnp.float32),
        # BatchNorm affine params.
        "gamma1": 1.0 + 0.1 * jax.random.normal(k_g1, (Cmid,), dtype=jnp.float32),
        "beta1": 0.1 * jax.random.normal(k_b1, (Cmid,), dtype=jnp.float32),
        "gamma2": 1.0 + 0.1 * jax.random.normal(k_g2, (Cout,), dtype=jnp.float32),
        "beta2": 0.1 * jax.random.normal(k_b2, (Cout,), dtype=jnp.float32),
    }

    fwd = jax.jit(double_conv_forward)
    out = jax.block_until_ready(fwd(x, params))
    assert out.shape == (N, Cout, H, W), out.shape

    ref = jax.block_until_ready(_ref_double_conv(x, params))
    max_err = float(jnp.max(jnp.abs(out - ref)))
    assert jnp.allclose(out, ref, atol=1e-3, rtol=1e-3), max_err

    print("KERNEL_OK")
</pallas_src>

<mosaic_0001>
module attributes {stable_mosaic.version = 11 : i64} {
  func.func @_conv_kernel(%arg0: i32, %arg1: memref<1x3x288x4xf32, #tpu.memory_space<vmem>>, %arg2: memref<9x4x8xf32, #tpu.memory_space<vmem>>, %arg3: memref<1x256x8xf32, #tpu.memory_space<vmem>>, %arg4: memref<1x1x8xf32, #tpu.memory_space<vmem>>, %arg5: memref<1x1x8xf32, #tpu.memory_space<vmem>>) attributes {dimension_semantics = [#tpu.dimension_semantics<parallel>], iteration_bounds = array<i64: 2>, scalar_prefetch = 0 : i64, scratch_operands = 0 : i64, tpu.core_type = #tpu.core_type<tc>, window_params = [{transform_indices = @transform_0, window_bounds = array<i64: 1, 3, 288, 4>}, {pipeline_mode = #tpu.pipeline_mode<synchronous>, transform_indices = @transform_1, window_bounds = array<i64: 9, 4, 8>}, {transform_indices = @transform_2, window_bounds = array<i64: 1, 256, 8>}, {transform_indices = @transform_3, window_bounds = array<i64: 1, 1, 8>}, {transform_indices = @transform_4, window_bounds = array<i64: 1, 1, 8>}]} {
    %c0 = arith.constant 0 : index
    %c0_0 = arith.constant 0 : index
    %c0_1 = arith.constant 0 : index
    %c0_2 = arith.constant 0 : index
    %0 = vector.load %arg1[%c0, %c0_0, %c0_1, %c0_2] : memref<1x3x288x4xf32, #tpu.memory_space<vmem>>, vector<1x1x288x4xf32>
    %1 = vector.shape_cast %0 : vector<1x1x288x4xf32> to vector<288x4xf32>
    %2 = vector.extract_strided_slice %1 {offsets = [0, 0], sizes = [256, 4], strides = [1, 1]} : vector<288x4xf32> to vector<256x4xf32>
    %c0_3 = arith.constant 0 : index
    %c0_4 = arith.constant 0 : index
    %c0_5 = arith.constant 0 : index
    %3 = vector.load %arg2[%c0_3, %c0_4, %c0_5] : memref<9x4x8xf32, #tpu.memory_space<vmem>>, vector<1x4x8xf32>
    %4 = vector.shape_cast %3 : vector<1x4x8xf32> to vector<4x8xf32>
    %cst = arith.constant dense<0.000000e+00> : vector<256x8xf32>
    %5 = tpu.matmul %2, %4, %cst {dimension_numbers = #tpu.dot_dimension_numbers<[1], [0], [0], [1], [0, 0, 1, 1], [], []>} : vector<256x4xf32>, vector<4x8xf32>, vector<256x8xf32> -> vector<256x8xf32>
    %6 = vector.extract_strided_slice %1 {offsets = [16, 0], sizes = [256, 4], strides = [1, 1]} : vector<288x4xf32> to vector<256x4xf32>
    %c3 = arith.constant 3 : index
    %c0_6 = arith.constant 0 : index
    %c0_7 = arith.constant 0 : index
    %7 = vector.load %arg2[%c3, %c0_6, %c0_7] : memref<9x4x8xf32, #tpu.memory_space<vmem>>, vector<1x4x8xf32>
    %8 = vector.shape_cast %7 : vector<1x4x8xf32> to vector<4x8xf32>
    %cst_8 = arith.constant dense<0.000000e+00> : vector<256x8xf32>
    %9 = tpu.matmul %6, %8, %cst_8 {dimension_numbers = #tpu.dot_dimension_numbers<[1], [0], [0], [1], [0, 0, 1, 1], [], []>} : vector<256x4xf32>, vector<4x8xf32>, vector<256x8xf32> -> vector<256x8xf32>
    %10 = arith.addf %5, %9 : vector<256x8xf32>
    %11 = vector.extract_strided_slice %1 {offsets = [32, 0], sizes = [256, 4], strides = [1, 1]} : vector<288x4xf32> to vector<256x4xf32>
    %c6 = arith.constant 6 : index
    %c0_9 = arith.constant 0 : index
    %c0_10 = arith.constant 0 : index
    %12 = vector.load %arg2[%c6, %c0_9, %c0_10] : memref<9x4x8xf32, #tpu.memory_space<vmem>>, vector<1x4x8xf32>
    %13 = vector.shape_cast %12 : vector<1x4x8xf32> to vector<4x8xf32>
    %cst_11 = arith.constant dense<0.000000e+00> : vector<256x8xf32>
    %14 = tpu.matmul %11, %13, %cst_11 {dimension_numbers = #tpu.dot_dimension_numbers<[1], [0], [0], [1], [0, 0, 1, 1], [], []>} : vector<256x4xf32>, vector<4x8xf32>, vector<256x8xf32> -> vector<256x8xf32>
    %15 = arith.addf %10, %14 : vector<256x8xf32>
    %c0_12 = arith.constant 0 : index
    %c1 = arith.constant 1 : index
    %c0_13 = arith.constant 0 : index
    %c0_14 = arith.constant 0 : index
    %16 = vector.load %arg1[%c0_12, %c1, %c0_13, %c0_14] : memref<1x3x288x4xf32, #tpu.memory_space<vmem>>, vector<1x1x288x4xf32>
    %17 = vector.shape_cast %16 : vector<1x1x288x4xf32> to vector<288x4xf32>
    %18 = vector.extract_strided_slice %17 {offsets = [0, 0], sizes = [256, 4], strides = [1, 1]} : vector<288x4xf32> to vector<256x4xf32>
    %c1_15 = arith.constant 1 : index
    %c0_16 = arith.constant 0 : index
    %c0_17 = arith.constant 0 : index
    %19 = vector.load %arg2[%c1_15, %c0_16, %c0_17] : memref<9x4x8xf32, #tpu.memory_space<vmem>>, vector<1x4x8xf32>
    %20 = vector.shape_cast %19 : vector<1x4x8xf32> to vector<4x8xf32>
    %cst_18 = arith.constant dense<0.000000e+00> : vector<256x8xf32>
    %21 = tpu.matmul %18, %20, %cst_18 {dimension_numbers = #tpu.dot_dimension_numbers<[1], [0], [0], [1], [0, 0, 1, 1], [], []>} : vector<256x4xf32>, vector<4x8xf32>, vector<256x8xf32> -> vector<256x8xf32>
    %22 = arith.addf %15, %21 : vector<256x8xf32>
    %23 = vector.extract_strided_slice %17 {offsets = [16, 0], sizes = [256, 4], strides = [1, 1]} : vector<288x4xf32> to vector<256x4xf32>
    %c4 = arith.constant 4 : index
    %c0_19 = arith.constant 0 : index
    %c0_20 = arith.constant 0 : index
    %24 = vector.load %arg2[%c4, %c0_19, %c0_20] : memref<9x4x8xf32, #tpu.memory_space<vmem>>, vector<1x4x8xf32>
    %25 = vector.shape_cast %24 : vector<1x4x8xf32> to vector<4x8xf32>
    %cst_21 = arith.constant dense<0.000000e+00> : vector<256x8xf32>
    %26 = tpu.matmul %23, %25, %cst_21 {dimension_numbers = #tpu.dot_dimension_numbers<[1], [0], [0], [1], [0, 0, 1, 1], [], []>} : vector<256x4xf32>, vector<4x8xf32>, vector<256x8xf32> -> vector<256x8xf32>
    %27 = arith.addf %22, %26 : vector<256x8xf32>
    %28 = vector.extract_strided_slice %17 {offsets = [32, 0], sizes = [256, 4], strides = [1, 1]} : vector<288x4xf32> to vector<256x4xf32>
    %c7 = arith.constant 7 : index
    %c0_22 = arith.constant 0 : index
    %c0_23 = arith.constant 0 : index
    %29 = vector.load %arg2[%c7, %c0_22, %c0_23] : memref<9x4x8xf32, #tpu.memory_space<vmem>>, vector<1x4x8xf32>
    %30 = vector.shape_cast %29 : vector<1x4x8xf32> to vector<4x8xf32>
    %cst_24 = arith.constant dense<0.000000e+00> : vector<256x8xf32>
    %31 = tpu.matmul %28, %30, %cst_24 {dimension_numbers = #tpu.dot_dimension_numbers<[1], [0], [0], [1], [0, 0, 1, 1], [], []>} : vector<256x4xf32>, vector<4x8xf32>, vector<256x8xf32> -> vector<256x8xf32>
    %32 = arith.addf %27, %31 : vector<256x8xf32>
    %c0_25 = arith.constant 0 : index
    %c2 = arith.constant 2 : index
    %c0_26 = arith.constant 0 : index
    %c0_27 = arith.constant 0 : index
    %33 = vector.load %arg1[%c0_25, %c2, %c0_26, %c0_27] : memref<1x3x288x4xf32, #tpu.memory_space<vmem>>, vector<1x1x288x4xf32>
    %34 = vector.shape_cast %33 : vector<1x1x288x4xf32> to vector<288x4xf32>
    %35 = vector.extract_strided_slice %34 {offsets = [0, 0], sizes = [256, 4], strides = [1, 1]} : vector<288x4xf32> to vector<256x4xf32>
    %c2_28 = arith.constant 2 : index
    %c0_29 = arith.constant 0 : index
    %c0_30 = arith.constant 0 : index
    %36 = vector.load %arg2[%c2_28, %c0_29, %c0_30] : memref<9x4x8xf32, #tpu.memory_space<vmem>>, vector<1x4x8xf32>
    %37 = vector.shape_cast %36 : vector<1x4x8xf32> to vector<4x8xf32>
    %cst_31 = arith.constant dense<0.000000e+00> : vector<256x8xf32>
    %38 = tpu.matmul %35, %37, %cst_31 {dimension_numbers = #tpu.dot_dimension_numbers<[1], [0], [0], [1], [0, 0, 1, 1], [], []>} : vector<256x4xf32>, vector<4x8xf32>, vector<256x8xf32> -> vector<256x8xf32>
    %39 = arith.addf %32, %38 : vector<256x8xf32>
    %40 = vector.extract_strided_slice %34 {offsets = [16, 0], sizes = [256, 4], strides = [1, 1]} : vector<288x4xf32> to vector<256x4xf32>
    %c5 = arith.constant 5 : index
    %c0_32 = arith.constant 0 : index
    %c0_33 = arith.constant 0 : index
    %41 = vector.load %arg2[%c5, %c0_32, %c0_33] : memref<9x4x8xf32, #tpu.memory_space<vmem>>, vector<1x4x8xf32>
    %42 = vector.shape_cast %41 : vector<1x4x8xf32> to vector<4x8xf32>
    %cst_34 = arith.constant dense<0.000000e+00> : vector<256x8xf32>
    %43 = tpu.matmul %40, %42, %cst_34 {dimension_numbers = #tpu.dot_dimension_numbers<[1], [0], [0], [1], [0, 0, 1, 1], [], []>} : vector<256x4xf32>, vector<4x8xf32>, vector<256x8xf32> -> vector<256x8xf32>
    %44 = arith.addf %39, %43 : vector<256x8xf32>
    %45 = vector.extract_strided_slice %34 {offsets = [32, 0], sizes = [256, 4], strides = [1, 1]} : vector<288x4xf32> to vector<256x4xf32>
    %c8 = arith.constant 8 : index
    %c0_35 = arith.constant 0 : index
    %c0_36 = arith.constant 0 : index
    %46 = vector.load %arg2[%c8, %c0_35, %c0_36] : memref<9x4x8xf32, #tpu.memory_space<vmem>>, vector<1x4x8xf32>
    %47 = vector.shape_cast %46 : vector<1x4x8xf32> to vector<4x8xf32>
    %cst_37 = arith.constant dense<0.000000e+00> : vector<256x8xf32>
    %48 = tpu.matmul %45, %47, %cst_37 {dimension_numbers = #tpu.dot_dimension_numbers<[1], [0], [0], [1], [0, 0, 1, 1], [], []>} : vector<256x4xf32>, vector<4x8xf32>, vector<256x8xf32> -> vector<256x8xf32>
    %49 = arith.addf %44, %48 : vector<256x8xf32>
    %c0_38 = arith.constant 0 : index
    %c0_39 = arith.constant 0 : index
    %c0_40 = arith.constant 0 : index
    %50 = vector.load %arg3[%c0_38, %c0_39, %c0_40] : memref<1x256x8xf32, #tpu.memory_space<vmem>>, vector<1x256x8xf32>
    %51 = vector.shape_cast %50 : vector<1x256x8xf32> to vector<256x8xf32>
    %52 = vector.shape_cast %49 : vector<256x8xf32> to vector<1x256x8xf32>
    tpu.vector_store %arg3[%c0_38, %c0_39, %c0_40], %52 {strides = array<i32>} : memref<1x256x8xf32, #tpu.memory_space<vmem>>, vector<1x256x8xf32>,
    %cst_41 = arith.constant dense<0.000000e+00> : vector<8xf32>
    %53 = vector.multi_reduction <add>, %49, %cst_41 [0] : vector<256x8xf32> to vector<8xf32>
    %54 = vector.shape_cast %53 : vector<8xf32> to vector<1x8xf32>
    %c0_42 = arith.constant 0 : index
    %c0_43 = arith.constant 0 : index
    %c0_44 = arith.constant 0 : index
    %55 = vector.load %arg4[%c0_42, %c0_43, %c0_44] : memref<1x1x8xf32, #tpu.memory_space<vmem>>, vector<1x1x8xf32>
    %56 = vector.shape_cast %55 : vector<1x1x8xf32> to vector<1x8xf32>
    %57 = vector.shape_cast %54 : vector<1x8xf32> to vector<1x1x8xf32>
    tpu.vector_store %arg4[%c0_42, %c0_43, %c0_44], %57 {strides = array<i32>} : memref<1x1x8xf32, #tpu.memory_space<vmem>>, vector<1x1x8xf32>,
    %58 = arith.mulf %49, %49 : vector<256x8xf32>
    %cst_45 = arith.constant dense<0.000000e+00> : vector<8xf32>
    %59 = vector.multi_reduction <add>, %58, %cst_45 [0] : vector<256x8xf32> to vector<8xf32>
    %60 = vector.shape_cast %59 : vector<8xf32> to vector<1x8xf32>
    %c0_46 = arith.constant 0 : index
    %c0_47 = arith.constant 0 : index
    %c0_48 = arith.constant 0 : index
    %61 = vector.load %arg5[%c0_46, %c0_47, %c0_48] : memref<1x1x8xf32, #tpu.memory_space<vmem>>, vector<1x1x8xf32>
    %62 = vector.shape_cast %61 : vector<1x1x8xf32> to vector<1x8xf32>
    %63 = vector.shape_cast %60 : vector<1x8xf32> to vector<1x1x8xf32>
    tpu.vector_store %arg5[%c0_46, %c0_47, %c0_48], %63 {strides = array<i32>} : memref<1x1x8xf32, #tpu.memory_space<vmem>>, vector<1x1x8xf32>,
    return
  }
  func.func @transform_0(%arg0: i32) -> (i32, i32, i32, i32) {
    %c0_i32 = arith.constant 0 : i32
    %c0_i32_0 = arith.constant 0 : i32
    %c0_i32_1 = arith.constant 0 : i32
    %c0_i32_2 = arith.constant 0 : i32
    return %arg0, %c0_i32, %c0_i32_0, %c0_i32_1 : i32, i32, i32, i32
  }
  func.func @transform_1(%arg0: i32) -> (i32, i32, i32) {
    %c0_i32 = arith.constant 0 : i32
    %c0_i32_0 = arith.constant 0 : i32
    %c0_i32_1 = arith.constant 0 : i32
    %c0_i32_2 = arith.constant 0 : i32
    return %c0_i32, %c0_i32_0, %c0_i32_1 : i32, i32, i32
  }
  func.func @transform_2(%arg0: i32) -> (i32, i32, i32) {
    %c0_i32 = arith.constant 0 : i32
    %c0_i32_0 = arith.constant 0 : i32
    %c0_i32_1 = arith.constant 0 : i32
    return %arg0, %c0_i32, %c0_i32_0 : i32, i32, i32
  }
  func.func @transform_3(%arg0: i32) -> (i32, i32, i32) {
    %c0_i32 = arith.constant 0 : i32
    %c0_i32_0 = arith.constant 0 : i32
    %c0_i32_1 = arith.constant 0 : i32
    return %arg0, %c0_i32, %c0_i32_0 : i32, i32, i32
  }
  func.func @transform_4(%arg0: i32) -> (i32, i32, i32) {
    %c0_i32 = arith.constant 0 : i32
    %c0_i32_0 = arith.constant 0 : i32
    %c0_i32_1 = arith.constant 0 : i32
    return %arg0, %c0_i32, %c0_i32_0 : i32, i32, i32
  }
}

module attributes {stable_mosaic.version = 11 : i64} {
  func.func @_conv_kernel(%arg0: i32, %arg1: memref<1x3x288x8xf32, #tpu.memory_space<vmem>>, %arg2: memref<9x8x8xf32, #tpu.memory_space<vmem>>, %arg3: memref<1x8xf32, #tpu.memory_space<vmem>>, %arg4: memref<1x8xf32, #tpu.memory_space<vmem>>, %arg5: memref<3x288x1xf32, #tpu.memory_space<vmem>>, %arg6: memref<1x256x8xf32, #tpu.memory_space<vmem>>, %arg7: memref<1x1x8xf32, #tpu.memory_space<vmem>>, %arg8: memref<1x1x8xf32, #tpu.memory_space<vmem>>) attributes {dimension_semantics = [#tpu.dimension_semantics<parallel>], iteration_bounds = array<i64: 2>, scalar_prefetch = 0 : i64, scratch_operands = 0 : i64, tpu.core_type = #tpu.core_type<tc>, window_params = [{transform_indices = @transform_0, window_bounds = array<i64: 1, 3, 288, 8>}, {pipeline_mode = #tpu.pipeline_mode<synchronous>, transform_indices = @transform_1, window_bounds = array<i64: 9, 8, 8>}, {pipeline_mode = #tpu.pipeline_mode<synchronous>, transform_indices = @transform_2, window_bounds = array<i64: 1, 8>}, {pipeline_mode = #tpu.pipeline_mode<synchronous>, transform_indices = @transform_3, window_bounds = array<i64: 1, 8>}, {pipeline_mode = #tpu.pipeline_mode<synchronous>, transform_indices = @transform_4, window_bounds = array<i64: 3, 288, 1>}, {transform_indices = @transform_5, window_bounds = array<i64: 1, 256, 8>}, {transform_indices = @transform_6, window_bounds = array<i64: 1, 1, 8>}, {transform_indices = @transform_7, window_bounds = array<i64: 1, 1, 8>}]} {
    %c0 = arith.constant 0 : index
    %c0_0 = arith.constant 0 : index
    %c0_1 = arith.constant 0 : index
    %c0_2 = arith.constant 0 : index
    %0 = vector.load %arg1[%c0, %c0_0, %c0_1, %c0_2] : memref<1x3x288x8xf32, #tpu.memory_space<vmem>>, vector<1x1x288x8xf32>
    %1 = vector.shape_cast %0 : vector<1x1x288x8xf32> to vector<288x8xf32>
    %c0_3 = arith.constant 0 : index
    %c0_4 = arith.constant 0 : index
    %2 = vector.load %arg3[%c0_3, %c0_4] : memref<1x8xf32, #tpu.memory_space<vmem>>, vector<1x8xf32>
    %3 = vector.broadcast %2 : vector<1x8xf32> to vector<288x8xf32>
    %4 = arith.mulf %1, %3 : vector<288x8xf32>
    %c0_5 = arith.constant 0 : index
    %c0_6 = arith.constant 0 : index
    %5 = vector.load %arg4[%c0_5, %c0_6] : memref<1x8xf32, #tpu.memory_space<vmem>>, vector<1x8xf32>
    %6 = vector.broadcast %5 : vector<1x8xf32> to vector<288x8xf32>
    %7 = arith.addf %4, %6 : vector<288x8xf32>
    %cst = arith.constant 0.000000e+00 : f32
    %8 = vector.broadcast %cst : f32 to vector<288x8xf32>
    %9 = arith.maximumf %7, %8 : vector<288x8xf32>
    %c0_7 = arith.constant 0 : index
    %c0_8 = arith.constant 0 : index
    %c0_9 = arith.constant 0 : index
    %10 = vector.load %arg5[%c0_7, %c0_8, %c0_9] : memref<3x288x1xf32, #tpu.memory_space<vmem>>, vector<1x288x1xf32>
    %11 = vector.shape_cast %10 : vector<1x288x1xf32> to vector<288x1xf32>
    %12 = vector.broadcast %11 : vector<288x1xf32> to vector<288x8xf32>
    %13 = arith.mulf %9, %12 : vector<288x8xf32>
    %14 = vector.extract_strided_slice %13 {offsets = [0, 0], sizes = [256, 8], strides = [1, 1]} : vector<288x8xf32> to vector<256x8xf32>
    %c0_10 = arith.constant 0 : index
    %c0_11 = arith.constant 0 : index
    %c0_12 = arith.constant 0 : index
    %15 = vector.load %arg2[%c0_10, %c0_11, %c0_12] : memref<9x8x8xf32, #tpu.memory_space<vmem>>, vector<1x8x8xf32>
    %16 = vector.shape_cast %15 : vector<1x8x8xf32> to vector<8x8xf32>
    %cst_13 = arith.constant dense<0.000000e+00> : vector<256x8xf32>
    %17 = tpu.matmul %14, %16, %cst_13 {dimension_numbers = #tpu.dot_dimension_numbers<[1], [0], [0], [1], [0, 0, 1, 1], [], []>} : vector<256x8xf32>, vector<8x8xf32>, vector<256x8xf32> -> vector<256x8xf32>
    %18 = vector.extract_strided_slice %13 {offsets = [16, 0], sizes = [256, 8], strides = [1, 1]} : vector<288x8xf32> to vector<256x8xf32>
    %c3 = arith.constant 3 : index
    %c0_14 = arith.constant 0 : index
    %c0_15 = arith.constant 0 : index
    %19 = vector.load %arg2[%c3, %c0_14, %c0_15] : memref<9x8x8xf32, #tpu.memory_space<vmem>>, vector<1x8x8xf32>
    %20 = vector.shape_cast %19 : vector<1x8x8xf32> to vector<8x8xf32>
    %cst_16 = arith.constant dense<0.000000e+00> : vector<256x8xf32>
    %21 = tpu.matmul %18, %20, %cst_16 {dimension_numbers = #tpu.dot_dimension_numbers<[1], [0], [0], [1], [0, 0, 1, 1], [], []>} : vector<256x8xf32>, vector<8x8xf32>, vector<256x8xf32> -> vector<256x8xf32>
    %22 = arith.addf %17, %21 : vector<256x8xf32>
    %23 = vector.extract_strided_slice %13 {offsets = [32, 0], sizes = [256, 8], strides = [1, 1]} : vector<288x8xf32> to vector<256x8xf32>
    %c6 = arith.constant 6 : index
    %c0_17 = arith.constant 0 : index
    %c0_18 = arith.constant 0 : index
    %24 = vector.load %arg2[%c6, %c0_17, %c0_18] : memref<9x8x8xf32, #tpu.memory_space<vmem>>, vector<1x8x8xf32>
    %25 = vector.shape_cast %24 : vector<1x8x8xf32> to vector<8x8xf32>
    %cst_19 = arith.constant dense<0.000000e+00> : vector<256x8xf32>
    %26 = tpu.matmul %23, %25, %cst_19 {dimension_numbers = #tpu.dot_dimension_numbers<[1], [0], [0], [1], [0, 0, 1, 1], [], []>} : vector<256x8xf32>, vector<8x8xf32>, vector<256x8xf32> -> vector<256x8xf32>
    %27 = arith.addf %22, %26 : vector<256x8xf32>
    %c0_20 = arith.constant 0 : index
    %c1 = arith.constant 1 : index
    %c0_21 = arith.constant 0 : index
    %c0_22 = arith.constant 0 : index
    %28 = vector.load %arg1[%c0_20, %c1, %c0_21, %c0_22] : memref<1x3x288x8xf32, #tpu.memory_space<vmem>>, vector<1x1x288x8xf32>
    %29 = vector.shape_cast %28 : vector<1x1x288x8xf32> to vector<288x8xf32>
    %c0_23 = arith.constant 0 : index
    %c0_24 = arith.constant 0 : index
    %30 = vector.load %arg3[%c0_23, %c0_24] : memref<1x8xf32, #tpu.memory_space<vmem>>, vector<1x8xf32>
    %31 = vector.broadcast %30 : vector<1x8xf32> to vector<288x8xf32>
    %32 = arith.mulf %29, %31 : vector<288x8xf32>
    %c0_25 = arith.constant 0 : index
    %c0_26 = arith.constant 0 : index
    %33 = vector.load %arg4[%c0_25, %c0_26] : memref<1x8xf32, #tpu.memory_space<vmem>>, vector<1x8xf32>
    %34 = vector.broadcast %33 : vector<1x8xf32> to vector<288x8xf32>
    %35 = arith.addf %32, %34 : vector<288x8xf32>
    %cst_27 = arith.constant 0.000000e+00 : f32
    %36 = vector.broadcast %cst_27 : f32 to vector<288x8xf32>
    %37 = arith.maximumf %35, %36 : vector<288x8xf32>
    %c1_28 = arith.constant 1 : index
    %c0_29 = arith.constant 0 : index
    %c0_30 = arith.constant 0 : index
    %38 = vector.load %arg5[%c1_28, %c0_29, %c0_30] : memref<3x288x1xf32, #tpu.memory_space<vmem>>, vector<1x288x1xf32>
    %39 = vector.shape_cast %38 : vector<1x288x1xf32> to vector<288x1xf32>
    %40 = vector.broadcast %39 : vector<288x1xf32> to vector<288x8xf32>
    %41 = arith.mulf %37, %40 : vector<288x8xf32>
    %42 = vector.extract_strided_slice %41 {offsets = [0, 0], sizes = [256, 8], strides = [1, 1]} : vector<288x8xf32> to vector<256x8xf32>
    %c1_31 = arith.constant 1 : index
    %c0_32 = arith.constant 0 : index
    %c0_33 = arith.constant 0 : index
    %43 = vector.load %arg2[%c1_31, %c0_32, %c0_33] : memref<9x8x8xf32, #tpu.memory_space<vmem>>, vector<1x8x8xf32>
    %44 = vector.shape_cast %43 : vector<1x8x8xf32> to vector<8x8xf32>
    %cst_34 = arith.constant dense<0.000000e+00> : vector<256x8xf32>
    %45 = tpu.matmul %42, %44, %cst_34 {dimension_numbers = #tpu.dot_dimension_numbers<[1], [0], [0], [1], [0, 0, 1, 1], [], []>} : vector<256x8xf32>, vector<8x8xf32>, vector<256x8xf32> -> vector<256x8xf32>
    %46 = arith.addf %27, %45 : vector<256x8xf32>
    %47 = vector.extract_strided_slice %41 {offsets = [16, 0], sizes = [256, 8], strides = [1, 1]} : vector<288x8xf32> to vector<256x8xf32>
    %c4 = arith.constant 4 : index
    %c0_35 = arith.constant 0 : index
    %c0_36 = arith.constant 0 : index
    %48 = vector.load %arg2[%c4, %c0_35, %c0_36] : memref<9x8x8xf32, #tpu.memory_space<vmem>>, vector<1x8x8xf32>
    %49 = vector.shape_cast %48 : vector<1x8x8xf32> to vector<8x8xf32>
    %cst_37 = arith.constant dense<0.000000e+00> : vector<256x8xf32>
    %50 = tpu.matmul %47, %49, %cst_37 {dimension_numbers = #tpu.dot_dimension_numbers<[1], [0], [0], [1], [0, 0, 1, 1], [], []>} : vector<256x8xf32>, vector<8x8xf32>, vector<256x8xf32> -> vector<256x8xf32>
    %51 = arith.addf %46, %50 : vector<256x8xf32>
    %52 = vector.extract_strided_slice %41 {offsets = [32, 0], sizes = [256, 8], strides = [1, 1]} : vector<288x8xf32> to vector<256x8xf32>
    %c7 = arith.constant 7 : index
    %c0_38 = arith.constant 0 : index
    %c0_39 = arith.constant 0 : index
    %53 = vector.load %arg2[%c7, %c0_38, %c0_39] : memref<9x8x8xf32, #tpu.memory_space<vmem>>, vector<1x8x8xf32>
    %54 = vector.shape_cast %53 : vector<1x8x8xf32> to vector<8x8xf32>
    %cst_40 = arith.constant dense<0.000000e+00> : vector<256x8xf32>
    %55 = tpu.matmul %52, %54, %cst_40 {dimension_numbers = #tpu.dot_dimension_numbers<[1], [0], [0], [1], [0, 0, 1, 1], [], []>} : vector<256x8xf32>, vector<8x8xf32>, vector<256x8xf32> -> vector<256x8xf32>
    %56 = arith.addf %51, %55 : vector<256x8xf32>
    %c0_41 = arith.constant 0 : index
    %c2 = arith.constant 2 : index
    %c0_42 = arith.constant 0 : index
    %c0_43 = arith.constant 0 : index
    %57 = vector.load %arg1[%c0_41, %c2, %c0_42, %c0_43] : memref<1x3x288x8xf32, #tpu.memory_space<vmem>>, vector<1x1x288x8xf32>
    %58 = vector.shape_cast %57 : vector<1x1x288x8xf32> to vector<288x8xf32>
    %c0_44 = arith.constant 0 : index
    %c0_45 = arith.constant 0 : index
    %59 = vector.load %arg3[%c0_44, %c0_45] : memref<1x8xf32, #tpu.memory_space<vmem>>, vector<1x8xf32>
    %60 = vector.broadcast %59 : vector<1x8xf32> to vector<288x8xf32>
    %61 = arith.mulf %58, %60 : vector<288x8xf32>
    %c0_46 = arith.constant 0 : index
    %c0_47 = arith.constant 0 : index
    %62 = vector.load %arg4[%c0_46, %c0_47] : memref<1x8xf32, #tpu.memory_space<vmem>>, vector<1x8xf32>
    %63 = vector.broadcast %62 : vector<1x8xf32> to vector<288x8xf32>
    %64 = arith.addf %61, %63 : vector<288x8xf32>
    %cst_48 = arith.constant 0.000000e+00 : f32
    %65 = vector.broadcast %cst_48 : f32 to vector<288x8xf32>
    %66 = arith.maximumf %64, %65 : vector<288x8xf32>
    %c2_49 = arith.constant 2 : index
    %c0_50 = arith.constant 0 : index
    %c0_51 = arith.constant 0 : index
    %67 = vector.load %arg5[%c2_49, %c0_50, %c0_51] : memref<3x288x1xf32, #tpu.memory_space<vmem>>, vector<1x288x1xf32>
    %68 = vector.shape_cast %67 : vector<1x288x1xf32> to vector<288x1xf32>
    %69 = vector.broadcast %68 : vector<288x1xf32> to vector<288x8xf32>
    %70 = arith.mulf %66, %69 : vector<288x8xf32>
    %71 = vector.extract_strided_slice %70 {offsets = [0, 0], sizes = [256, 8], strides = [1, 1]} : vector<288x8xf32> to vector<256x8xf32>
    %c2_52 = arith.constant 2 : index
    %c0_53 = arith.constant 0 : index
    %c0_54 = arith.constant 0 : index
    %72 = vector.load %arg2[%c2_52, %c0_53, %c0_54] : memref<9x8x8xf32, #tpu.memory_space<vmem>>, vector<1x8x8xf32>
    %73 = vector.shape_cast %72 : vector<1x8x8xf32> to vector<8x8xf32>
    %cst_55 = arith.constant dense<0.000000e+00> : vector<256x8xf32>
    %74 = tpu.matmul %71, %73, %cst_55 {dimension_numbers = #tpu.dot_dimension_numbers<[1], [0], [0], [1], [0, 0, 1, 1], [], []>} : vector<256x8xf32>, vector<8x8xf32>, vector<256x8xf32> -> vector<256x8xf32>
    %75 = arith.addf %56, %74 : vector<256x8xf32>
    %76 = vector.extract_strided_slice %70 {offsets = [16, 0], sizes = [256, 8], strides = [1, 1]} : vector<288x8xf32> to vector<256x8xf32>
    %c5 = arith.constant 5 : index
    %c0_56 = arith.constant 0 : index
    %c0_57 = arith.constant 0 : index
    %77 = vector.load %arg2[%c5, %c0_56, %c0_57] : memref<9x8x8xf32, #tpu.memory_space<vmem>>, vector<1x8x8xf32>
    %78 = vector.shape_cast %77 : vector<1x8x8xf32> to vector<8x8xf32>
    %cst_58 = arith.constant dense<0.000000e+00> : vector<256x8xf32>
    %79 = tpu.matmul %76, %78, %cst_58 {dimension_numbers = #tpu.dot_dimension_numbers<[1], [0], [0], [1], [0, 0, 1, 1], [], []>} : vector<256x8xf32>, vector<8x8xf32>, vector<256x8xf32> -> vector<256x8xf32>
    %80 = arith.addf %75, %79 : vector<256x8xf32>
    %81 = vector.extract_strided_slice %70 {offsets = [32, 0], sizes = [256, 8], strides = [1, 1]} : vector<288x8xf32> to vector<256x8xf32>
    %c8 = arith.constant 8 : index
    %c0_59 = arith.constant 0 : index
    %c0_60 = arith.constant 0 : index
    %82 = vector.load %arg2[%c8, %c0_59, %c0_60] : memref<9x8x8xf32, #tpu.memory_space<vmem>>, vector<1x8x8xf32>
    %83 = vector.shape_cast %82 : vector<1x8x8xf32> to vector<8x8xf32>
    %cst_61 = arith.constant dense<0.000000e+00> : vector<256x8xf32>
    %84 = tpu.matmul %81, %83, %cst_61 {dimension_numbers = #tpu.dot_dimension_numbers<[1], [0], [0], [1], [0, 0, 1, 1], [], []>} : vector<256x8xf32>, vector<8x8xf32>, vector<256x8xf32> -> vector<256x8xf32>
    %85 = arith.addf %80, %84 : vector<256x8xf32>
    %c0_62 = arith.constant 0 : index
    %c0_63 = arith.constant 0 : index
    %c0_64 = arith.constant 0 : index
    %86 = vector.load %arg6[%c0_62, %c0_63, %c0_64] : memref<1x256x8xf32, #tpu.memory_space<vmem>>, vector<1x256x8xf32>
    %87 = vector.shape_cast %86 : vector<1x256x8xf32> to vector<256x8xf32>
    %88 = vector.shape_cast %85 : vector<256x8xf32> to vector<1x256x8xf32>
    tpu.vector_store %arg6[%c0_62, %c0_63, %c0_64], %88 {strides = array<i32>} : memref<1x256x8xf32, #tpu.memory_space<vmem>>, vector<1x256x8xf32>,
    %cst_65 = arith.constant dense<0.000000e+00> : vector<8xf32>
    %89 = vector.multi_reduction <add>, %85, %cst_65 [0] : vector<256x8xf32> to vector<8xf32>
    %90 = vector.shape_cast %89 : vector<8xf32> to vector<1x8xf32>
    %c0_66 = arith.constant 0 : index
    %c0_67 = arith.constant 0 : index
    %c0_68 = arith.constant 0 : index
    %91 = vector.load %arg7[%c0_66, %c0_67, %c0_68] : memref<1x1x8xf32, #tpu.memory_space<vmem>>, vector<1x1x8xf32>
    %92 = vector.shape_cast %91 : vector<1x1x8xf32> to vector<1x8xf32>
    %93 = vector.shape_cast %90 : vector<1x8xf32> to vector<1x1x8xf32>
    tpu.vector_store %arg7[%c0_66, %c0_67, %c0_68], %93 {strides = array<i32>} : memref<1x1x8xf32, #tpu.memory_space<vmem>>, vector<1x1x8xf32>,
    %94 = arith.mulf %85, %85 : vector<256x8xf32>
    %cst_69 = arith.constant dense<0.000000e+00> : vector<8xf32>
    %95 = vector.multi_reduction <add>, %94, %cst_69 [0] : vector<256x8xf32> to vector<8xf32>
    %96 = vector.shape_cast %95 : vector<8xf32> to vector<1x8xf32>
    %c0_70 = arith.constant 0 : index
    %c0_71 = arith.constant 0 : index
    %c0_72 = arith.constant 0 : index
    %97 = vector.load %arg8[%c0_70, %c0_71, %c0_72] : memref<1x1x8xf32, #tpu.memory_space<vmem>>, vector<1x1x8xf32>
    %98 = vector.shape_cast %97 : vector<1x1x8xf32> to vector<1x8xf32>
    %99 = vector.shape_cast %96 : vector<1x8xf32> to vector<1x1x8xf32>
    tpu.vector_store %arg8[%c0_70, %c0_71, %c0_72], %99 {strides = array<i32>} : memref<1x1x8xf32, #tpu.memory_space<vmem>>, vector<1x1x8xf32>,
    return
  }
  func.func @transform_0(%arg0: i32) -> (i32, i32, i32, i32) {
    %c0_i32 = arith.constant 0 : i32
    %c0_i32_0 = arith.constant 0 : i32
    %c0_i32_1 = arith.constant 0 : i32
    %c0_i32_2 = arith.constant 0 : i32
    return %arg0, %c0_i32, %c0_i32_0, %c0_i32_1 : i32, i32, i32, i32
  }
  func.func @transform_1(%arg0: i32) -> (i32, i32, i32) {
    %c0_i32 = arith.constant 0 : i32
    %c0_i32_0 = arith.constant 0 : i32
    %c0_i32_1 = arith.constant 0 : i32
    %c0_i32_2 = arith.constant 0 : i32
    return %c0_i32, %c0_i32_0, %c0_i32_1 : i32, i32, i32
  }
  func.func @transform_2(%arg0: i32) -> (i32, i32) {
    %c0_i32 = arith.constant 0 : i32
    %c0_i32_0 = arith.constant 0 : i32
    %c0_i32_1 = arith.constant 0 : i32
    return %c0_i32, %c0_i32_0 : i32, i32
  }
  func.func @transform_3(%arg0: i32) -> (i32, i32) {
    %c0_i32 = arith.constant 0 : i32
    %c0_i32_0 = arith.constant 0 : i32
    %c0_i32_1 = arith.constant 0 : i32
    return %c0_i32, %c0_i32_0 : i32, i32
  }
  func.func @transform_4(%arg0: i32) -> (i32, i32, i32) {
    %c0_i32 = arith.constant 0 : i32
    %c0_i32_0 = arith.constant 0 : i32
    %c0_i32_1 = arith.constant 0 : i32
    %c0_i32_2 = arith.constant 0 : i32
    return %c0_i32, %c0_i32_0, %c0_i32_1 : i32, i32, i32
  }
  func.func @transform_5(%arg0: i32) -> (i32, i32, i32) {
    %c0_i32 = arith.constant 0 : i32
    %c0_i32_0 = arith.constant 0 : i32
    %c0_i32_1 = arith.constant 0 : i32
    return %arg0, %c0_i32, %c0_i32_0 : i32, i32, i32
  }
  func.func @transform_6(%arg0: i32) -> (i32, i32, i32) {
    %c0_i32 = arith.constant 0 : i32
    %c0_i32_0 = arith.constant 0 : i32
    %c0_i32_1 = arith.constant 0 : i32
    return %arg0, %c0_i32, %c0_i32_0 : i32, i32, i32
  }
  func.func @transform_7(%arg0: i32) -> (i32, i32, i32) {
    %c0_i32 = arith.constant 0 : i32
    %c0_i32_0 = arith.constant 0 : i32
    %c0_i32_1 = arith.constant 0 : i32
    return %arg0, %c0_i32, %c0_i32_0 : i32, i32, i32
  }
}

module attributes {stable_mosaic.version = 11 : i64} {
  func.func @_bn_relu_kernel(%arg0: i32, %arg1: memref<32x128xf32, #tpu.memory_space<vmem>>, %arg2: memref<1x128xf32, #tpu.memory_space<vmem>>, %arg3: memref<1x128xf32, #tpu.memory_space<vmem>>, %arg4: memref<32x128xf32, #tpu.memory_space<vmem>>) attributes {dimension_semantics = [#tpu.dimension_semantics<parallel>], iteration_bounds = array<i64: 1>, scalar_prefetch = 0 : i64, scratch_operands = 0 : i64, tpu.core_type = #tpu.core_type<tc>, window_params = [{transform_indices = @transform_0, window_bounds = array<i64: 32, 128>}, {pipeline_mode = #tpu.pipeline_mode<synchronous>, transform_indices = @transform_1, window_bounds = array<i64: 1, 128>}, {pipeline_mode = #tpu.pipeline_mode<synchronous>, transform_indices = @transform_2, window_bounds = array<i64: 1, 128>}, {transform_indices = @transform_3, window_bounds = array<i64: 32, 128>}]} {
    %c0 = arith.constant 0 : index
    %c0_0 = arith.constant 0 : index
    %0 = vector.load %arg1[%c0, %c0_0] : memref<32x128xf32, #tpu.memory_space<vmem>>, vector<32x128xf32>
    %c0_1 = arith.constant 0 : index
    %c0_2 = arith.constant 0 : index
    %1 = vector.load %arg2[%c0_1, %c0_2] : memref<1x128xf32, #tpu.memory_space<vmem>>, vector<1x128xf32>
    %2 = vector.broadcast %1 : vector<1x128xf32> to vector<32x128xf32>
    %3 = arith.mulf %0, %2 : vector<32x128xf32>
    %c0_3 = arith.constant 0 : index
    %c0_4 = arith.constant 0 : index
    %4 = vector.load %arg3[%c0_3, %c0_4] : memref<1x128xf32, #tpu.memory_space<vmem>>, vector<1x128xf32>
    %5 = vector.broadcast %4 : vector<1x128xf32> to vector<32x128xf32>
    %6 = arith.addf %3, %5 : vector<32x128xf32>
    %cst = arith.constant 0.000000e+00 : f32
    %7 = vector.broadcast %cst : f32 to vector<32x128xf32>
    %8 = arith.maximumf %6, %7 : vector<32x128xf32>
    %c0_5 = arith.constant 0 : index
    %c0_6 = arith.constant 0 : index
    %9 = vector.load %arg4[%c0_5, %c0_6] : memref<32x128xf32, #tpu.memory_space<vmem>>, vector<32x128xf32>
    tpu.vector_store %arg4[%c0_5, %c0_6], %8 {strides = array<i32>} : memref<32x128xf32, #tpu.memory_space<vmem>>, vector<32x128xf32>,
    return
  }
  func.func @transform_0(%arg0: i32) -> (i32, i32) {
    %c0_i32 = arith.constant 0 : i32
    %c0_i32_0 = arith.constant 0 : i32
    return %arg0, %c0_i32 : i32, i32
  }
  func.func @transform_1(%arg0: i32) -> (i32, i32) {
    %c0_i32 = arith.constant 0 : i32
    %c0_i32_0 = arith.constant 0 : i32
    %c0_i32_1 = arith.constant 0 : i32
    return %c0_i32, %c0_i32_0 : i32, i32
  }
  func.func @transform_2(%arg0: i32) -> (i32, i32) {
    %c0_i32 = arith.constant 0 : i32
    %c0_i32_0 = arith.constant 0 : i32
    %c0_i32_1 = arith.constant 0 : i32
    return %c0_i32, %c0_i32_0 : i32, i32
  }
  func.func @transform_3(%arg0: i32) -> (i32, i32) {
    %c0_i32 = arith.constant 0 : i32
    %c0_i32_0 = arith.constant 0 : i32
    return %arg0, %c0_i32 : i32, i32
  }
}

</mosaic_0001>

<llo_original>
// kernel: tile.13
$region0: #{tile.13}
  #allocation0 [shape = 's32[1]{0}', space=sflag, size = 0x4, scoped, tag = 'scoped memory for tile.13']
  %s0 = inlined_call_operand.vmem [shape: f32[8], index: 0, kind: input, shape index: {}]
  %s1 = inlined_call_operand.vmem [shape: f32[16,8], index: 1, kind: output, shape index: {}]
  // Predicated region
  $region2: #{tile.13} parent=0 // pred_check
    _
  $region3: #{tile.13} parent=0 // pred_check_branch
    %3 = sbr.rel (0) target = $region5
  $region4: #{tile.13} parent=0 // pred_region
    _
  $region5: #{tile.13} parent=0 // pred_fallthru
    _
  %v4 = vld [vmem:[%s0] ss:$0 sm:$0xff]
  %5 = vst [vmem:[%s1] sm:$0xff] %v4
  %s6 = scalar_lea.vmem %s1, 8
  %7 = vst [vmem:[%s6] sm:$0xff] %v4

// kernel: tile.14
$region0: #{tile.14}
  %s0 = inlined_call_operand.vmem [shape: f32[16,8], index: 0, kind: input, shape index: {}]
  %s1 = inlined_call_operand.vmem [shape: f32[1,128], index: 1, kind: output, shape index: {}]
  $region1: #{tile.14} parent=0
    #allocation0 [shape = 'u8[4096]{0}', space=vmem, size = 0x1000, scoped, tag = 'scoped mem for output reshape']
    %v2 = vld [vmem:[%s0] sm:$0x1]
    %vm3 = vcmask 64512
    %4 = vst.msk [vmem:[#allocation0] sm:$0x1] %vm3, %v2
    %s5 = scalar_lea.vmem %s0, 15
    %v6 = vld [vmem:[%s5] sm:$0x1]
    %7 = vrot.lane.b32.xlu0 %v6, 120
    %v8 = vpop.permute.xlu0 %7
    %vm9 = vcmask 1048512
    %10 = vst.msk [vmem:[#allocation0] sm:$0x1] %vm9, %v8
    %s11 = scalar_lea.vmem %s0, 14
    %v12 = vld [vmem:[%s11] sm:$0x1]
    %13 = vrot.lane.b32.xlu0 %v12, 112
    %v14 = vpop.permute.xlu0 %13
    %vm15 = vcmask 982912
    %16 = vst.msk [vmem:[#allocation0] sm:$0x1] %vm15, %v14
    %s17 = scalar_lea.vmem %s0, 13
    %v18 = vld [vmem:[%s17] sm:$0x1]
    %19 = vrot.lane.b32.xlu0 %v18, 104
    %v20 = vpop.permute.xlu0 %19
    %vm21 = vcmask 917312
    %22 = vst.msk [vmem:[#allocation0] sm:$0x1] %vm21, %v20
    %s23 = scalar_lea.vmem %s0, 12
    %v24 = vld [vmem:[%s23] sm:$0x1]
    %25 = vrot.lane.b32.xlu0 %v24, 96
    %v26 = vpop.permute.xlu0 %25
    %vm27 = vcmask 851712
    %28 = vst.msk [vmem:[#allocation0] sm:$0x1] %vm27, %v26
    %s29 = scalar_lea.vmem %s0, 11
    %v30 = vld [vmem:[%s29] sm:$0x1]
    %31 = vrot.lane.b32.xlu0 %v30, 88
    %v32 = vpop.permute.xlu0 %31
    %vm33 = vcmask 786112
    %34 = vst.msk [vmem:[#allocation0] sm:$0x1] %vm33, %v32
    %s35 = scalar_lea.vmem %s0, 10
    %v36 = vld [vmem:[%s35] sm:$0x1]
    %37 = vrot.lane.b32.xlu0 %v36, 80
    %v38 = vpop.permute.xlu0 %37
    %vm39 = vcmask 720512
    %40 = vst.msk [vmem:[#allocation0] sm:$0x1] %vm39, %v38
    %s41 = scalar_lea.vmem %s0, 9
    %v42 = vld [vmem:[%s41] sm:$0x1]
    %43 = vrot.lane.b32.xlu0 %v42, 72
    %v44 = vpop.permute.xlu0 %43
    %vm45 = vcmask 654912
    %46 = vst.msk [vmem:[#allocation0] sm:$0x1] %vm45, %v44
    %s47 = scalar_lea.vmem %s0, 8
    %v48 = vld [vmem:[%s47] sm:$0x1]
    %49 = vrot.lane.b32.xlu0 %v48, 64
    %v50 = vpop.permute.xlu0 %49
    %vm51 = vcmask 589312
    %52 = vst.msk [vmem:[#allocation0] sm:$0x1] %vm51, %v50
    %s53 = scalar_lea.vmem %s0, 7
    %v54 = vld [vmem:[%s53] sm:$0x1]
    %55 = vrot.lane.b32.xlu0 %v54, 56
    %v56 = vpop.permute.xlu0 %55
    %vm57 = vcmask 523712
    %58 = vst.msk [vmem:[#allocation0] sm:$0x1] %vm57, %v56
    %s59 = scalar_lea.vmem %s0, 6
    %v60 = vld [vmem:[%s59] sm:$0x1]
    %61 = vrot.lane.b32.xlu0 %v60, 48
    %v62 = vpop.permute.xlu0 %61
    %vm63 = vcmask 458112
    %64 = vst.msk [vmem:[#allocation0] sm:$0x1] %vm63, %v62
    %s65 = scalar_lea.vmem %s0, 5
    %v66 = vld [vmem:[%s65] sm:$0x1]
    %67 = vrot.lane.b32.xlu0 %v66, 40
    %v68 = vpop.permute.xlu0 %67
    %vm69 = vcmask 392512
    %70 = vst.msk [vmem:[#allocation0] sm:$0x1] %vm69, %v68
    %s71 = scalar_lea.vmem %s0, 4
    %v72 = vld [vmem:[%s71] sm:$0x1]
    %73 = vrot.lane.b32.xlu0 %v72, 32
    %v74 = vpop.permute.xlu0 %73
    %vm75 = vcmask 326912
    %76 = vst.msk [vmem:[#allocation0] sm:$0x1] %vm75, %v74
    %s77 = scalar_lea.vmem %s0, 3
    %v78 = vld [vmem:[%s77] sm:$0x1]
    %79 = vrot.lane.b32.xlu0 %v78, 24
    %v80 = vpop.permute.xlu0 %79
    %vm81 = vcmask 261312
    %82 = vst.msk [vmem:[#allocation0] sm:$0x1] %vm81, %v80
    %s83 = scalar_lea.vmem %s0, 2
    %v84 = vld [vmem:[%s83] sm:$0x1]
    %85 = vrot.lane.b32.xlu0 %v84, 16
    %v86 = vpop.permute.xlu0 %85
    %vm87 = vcmask 195712
    %88 = vst.msk [vmem:[#allocation0] sm:$0x1] %vm87, %v86
    %s89 = scalar_lea.vmem %s0, 1
    %v90 = vld [vmem:[%s89] sm:$0x1]
    %91 = vrot.lane.b32.xlu0 %v90, 8
    %v92 = vpop.permute.xlu0 %91
    %vm93 = vcmask 130112
    %94 = vst.msk [vmem:[#allocation0] sm:$0x1] %vm93, %v92
    %s96 = sshll.u32 1, 1
    %s97 = ssub.s32 %s96, 1
    %v99 = vld [vmem:[#allocation0] sm:%s97]
    %s100 = sshll.u32 1, 1
    %s101 = ssub.s32 %s100, 1
    %102 = vst [vmem:[%s1] sm:%s101] %v99

// kernel: double_conv_forward.3
$region0: #{double_conv_forward.3}
  #allocation0 [shape = 'u32[]', space=smem, size = 0x4, offset = 0x4, fixed_abs, tag = 'smem constant byte address 0x4 - core index']
  #allocation1 [shape = 'u32[144,128]{1,0:T(1,128)}', space=vmem, size = 0x12000, scoped, tag = 'internal scratch']
  %s0 = inlined_call_operand.vmem [shape: f32[2,3,288,4], index: 0, kind: input, shape index: {}]
  %s1 = inlined_call_operand.vmem [shape: f32[9,4,8], index: 1, kind: input, shape index: {}]
  %s2 = inlined_call_operand.vmem [shape: f32[2,256,8], index: 2, kind: output, shape index: {0}]
  %s3 = inlined_call_operand.vmem [shape: f32[2,1,8], index: 3, kind: output, shape index: {1}]
  %s4 = inlined_call_operand.vmem [shape: f32[2,1,8], index: 4, kind: output, shape index: {2}]
  %5 = xla_tuple %s2, %s3, %s4
  %s6 = sld [smem:[#allocation0]]
  $region57: #{double_conv_forward.3} parent=0
    _
  %s8 = ssub.s32 1, %s6
  %s9 = scalar_select 0, %s8, %s6
  loop: start=0, step=1, limit=4
  $region2: #{double_conv_forward.3} parent=0 // loop_pre_header
    _
  $region3: #{double_conv_forward.3} parent=0 // loop_header
    %s11 = sphi 0, %s15
    %p12 = scmp.ge.s32.totalorder %s11, 4
    %s21 = sphi 0, %s23
    %s24 = sphi 0, %s21
    %s25 = sphi 0, %s24
    %s41 = sphi 0, %s25
    %s45 = sphi 0, %s45
    %s47 = sphi 0, %s45
    %s48 = sphi 0, %s47
    %s62 = sphi 0, %s48
    %s68 = sphi 0, %s70
    %s71 = sphi 0, %s68
    %s72 = sphi 0, %s71
    %s88 = sphi 0, %s72
    %s94 = sphi 0, %s96
    %s97 = sphi 0, %s94
    %s98 = sphi 0, %s97
    %s114 = sphi 0, %s98
    %s120 = sphi 0, %s122
    %s123 = sphi 0, %s120
    %s124 = sphi 0, %s123
    %s140 = sphi 0, %s124
  $region4: #{double_conv_forward.3} parent=0 // loop_header_branch
    %14 = sbr.rel (%p12) target = $region8
  $region5: #{double_conv_forward.3} parent=0 // loop_body
    %s16 = ssub.s32 %s11, 1
    %s17 = ssub.s32 %s11, 2
    %s18 = sadd.s32 %s11, 1
    %s19 = ssub.s32 %s11, %s18
    %p20 = scmp.eq.s32.totalorder %s19, 0
    %s22 = sadd.s32 %s21, 1
    %s23 = scalar_select %p20, %s21, %s22
    %p26 = pneg %p20
    %p27 = scmp.eq.s32.totalorder %s11, 1
    %p28 = por %p26, %p27
    %p29 = scmp.ne.s32.totalorder %s21, %s24
    %p30 = scmp.eq.s32.totalorder %s11, 0
    %p31 = por %p29, %p30
    %p32 = scmp.ne.s32.totalorder %s21, %s24
    %p33 = scmp.eq.s32.totalorder %s16, 1
    %p34 = por %p32, %p33
    %p35 = scmp.ne.s32.totalorder %s24, %s25
    %p36 = scmp.eq.s32.totalorder %s16, 0
    %p37 = por %p35, %p36
    %p38 = scmp.ne.s32.totalorder %s24, %s25
    %p39 = scmp.eq.s32.totalorder %s17, 1
    %p40 = por %p38, %p39
    %p42 = scmp.ne.s32.totalorder %s25, %s41
    %p43 = scmp.eq.s32.totalorder %s17, 0
    %p44 = por %p42, %p43
    %s46 = sadd.s32 %s45, 1
    %p49 = scmp.eq.s32.totalorder %s11, 1
    %p50 = scmp.ne.s32.totalorder %s45, %s47
    %p51 = scmp.eq.s32.totalorder %s11, 0
    %p52 = por %p50, %p51
    %p53 = scmp.ne.s32.totalorder %s45, %s47
    %p54 = scmp.eq.s32.totalorder %s16, 1
    %p55 = por %p53, %p54
    %p56 = scmp.ne.s32.totalorder %s47, %s48
    %p57 = scmp.eq.s32.totalorder %s16, 0
    %p58 = por %p56, %p57
    %p59 = scmp.ne.s32.totalorder %s47, %s48
    %p60 = scmp.eq.s32.totalorder %s17, 1
    %p61 = por %p59, %p60
    %p63 = scmp.ne.s32.totalorder %s48, %s62
    %p64 = scmp.eq.s32.totalorder %s17, 0
    %p65 = por %p63, %p64
    %s66 = ssub.s32 %s11, %s18
    %p67 = scmp.eq.s32.totalorder %s66, 0
    %s69 = sadd.s32 %s68, 1
    %s70 = scalar_select %p67, %s68, %s69
    %p73 = pneg %p67
    %p74 = scmp.eq.s32.totalorder %s11, 1
    %p75 = por %p73, %p74
    %p76 = scmp.ne.s32.totalorder %s68, %s71
    %p77 = scmp.eq.s32.totalorder %s11, 0
    %p78 = por %p76, %p77
    %p79 = scmp.ne.s32.totalorder %s68, %s71
    %p80 = scmp.eq.s32.totalorder %s16, 1
    %p81 = por %p79, %p80
    %p82 = scmp.ne.s32.totalorder %s71, %s72
    %p83 = scmp.eq.s32.totalorder %s16, 0
    %p84 = por %p82, %p83
    %p85 = scmp.ne.s32.totalorder %s71, %s72
    %p86 = scmp.eq.s32.totalorder %s17, 1
    %p87 = por %p85, %p86
    %p89 = scmp.ne.s32.totalorder %s72, %s88
    %p90 = scmp.eq.s32.totalorder %s17, 0
    %p91 = por %p89, %p90
    %s92 = ssub.s32 %s11, %s18
    %p93 = scmp.eq.s32.totalorder %s92, 0
    %s95 = sadd.s32 %s94, 1
    %s96 = scalar_select %p93, %s94, %s95
    %p99 = pneg %p93
    %p100 = scmp.eq.s32.totalorder %s11, 1
    %p101 = por %p99, %p100
    %p102 = scmp.ne.s32.totalorder %s94, %s97
    %p103 = scmp.eq.s32.totalorder %s11, 0
    %p104 = por %p102, %p103
    %p105 = scmp.ne.s32.totalorder %s94, %s97
    %p106 = scmp.eq.s32.totalorder %s16, 1
    %p107 = por %p105, %p106
    %p108 = scmp.ne.s32.totalorder %s97, %s98
    %p109 = scmp.eq.s32.totalorder %s16, 0
    %p110 = por %p108, %p109
    %p111 = scmp.ne.s32.totalorder %s97, %s98
    %p112 = scmp.eq.s32.totalorder %s17, 1
    %p113 = por %p111, %p112
    %p115 = scmp.ne.s32.totalorder %s98, %s114
    %p116 = scmp.eq.s32.totalorder %s17, 0
    %p117 = por %p115, %p116
    %s118 = ssub.s32 %s11, %s18
    %p119 = scmp.eq.s32.totalorder %s118, 0
    %s121 = sadd.s32 %s120, 1
    %s122 = scalar_select %p119, %s120, %s121
    %p125 = pneg %p119
    %p126 = scmp.eq.s32.totalorder %s11, 1
    %p127 = por %p125, %p126
    %p128 = scmp.ne.s32.totalorder %s120, %s123
    %p129 = scmp.eq.s32.totalorder %s11, 0
    %p130 = por %p128, %p129
    %p131 = scmp.ne.s32.totalorder %s120, %s123
    %p132 = scmp.eq.s32.totalorder %s16, 1
    %p133 = por %p131, %p132
    %p134 = scmp.ne.s32.totalorder %s123, %s124
    %p135 = scmp.eq.s32.totalorder %s16, 0
    %p136 = por %p134, %p135
    %p137 = scmp.ne.s32.totalorder %s123, %s124
    %p138 = scmp.eq.s32.totalorder %s17, 1
    %p139 = por %p137, %p138
    %p141 = scmp.ne.s32.totalorder %s124, %s140
    %p142 = scmp.eq.s32.totalorder %s17, 0
    %p143 = por %p141, %p142
    %p144 = scmp.le.s32.totalorder 1, %s11
    %p145 = scmp.lt.s32.totalorder %s11, 3
    %p146 = pnand %p144, %p145
    %p147 = pneg %p146
    // Predicated region
    $region9: #{double_conv_forward.3} parent=5 // pred_check
      _
    $region10: #{double_conv_forward.3} parent=5 // pred_check_branch
      %149 = sbr.rel (%p146) target = $region12
    $region11: #{double_conv_forward.3} parent=5 // pred_region
      %s150 = ssub.s32 %s11, 1
      // Predicated region
      $region13: #{double_conv_forward.3} parent=11 // pred_check
        %p151 = pneg %p58
      $region14: #{double_conv_forward.3} parent=11 // pred_check_branch
        %153 = sbr.rel (%p151) target = $region16
      $region15: #{double_conv_forward.3} parent=11 // pred_region
        _
      $region16: #{double_conv_forward.3} parent=11 // pred_fallthru
        _
    $region12: #{double_conv_forward.3} parent=5 // pred_fallthru
      _
    %p154 = scmp.lt.s32.totalorder %s11, 2
    // Predicated region
    $region17: #{double_conv_forward.3} parent=5 // pred_check
      %p155 = pneg %p154
    $region18: #{double_conv_forward.3} parent=5 // pred_check_branch
      %157 = sbr.rel (%p155) target = $region20
    $region19: #{double_conv_forward.3} parent=5 // pred_region
      // Predicated region
      $region21: #{double_conv_forward.3} parent=19 // pred_check
        %p158 = pneg %p31
      $region22: #{double_conv_forward.3} parent=19 // pred_check_branch
        %160 = sbr.rel (%p158) target = $region24
      $region23: #{double_conv_forward.3} parent=19 // pred_region
        %p161 = scmp.lt.s32.totalorder %s11, 1
        %s162 = scalar_select %p161, %s11, 1
        %s163 = smul.addr %s162, 108
        %s164 = smul.addr %s163, 8
        %s165 = scalar_lea.vmem %s0, %s164
      $region24: #{double_conv_forward.3} parent=19 // pred_fallthru
        _
    $region20: #{double_conv_forward.3} parent=5 // pred_fallthru
      _
    %p166 = scmp.le.s32.totalorder 1, %s11
    %p167 = scmp.lt.s32.totalorder %s11, 3
    %p168 = pnand %p166, %p167
    %p169 = pneg %p168
    // Predicated region
    $region25: #{double_conv_forward.3} parent=5 // pred_check
      _
    $region26: #{double_conv_forward.3} parent=5 // pred_check_branch
      %171 = sbr.rel (%p168) target = $region28
    $region27: #{double_conv_forward.3} parent=5 // pred_region
      %s172 = ssub.s32 %s11, 1
      %p173 = scmp.lt.s32.totalorder %s16, 1
      %s174 = scalar_select %p173, %s16, 1
      %s175 = smul.addr %s174, 108
      %s176 = smul.addr %s175, 8
      %s177 = scalar_lea.vmem %s0, %s176
      %p178 = pneg %p37
      %p179 = pneg %p34
      %p180 = pneg %p58
      %p181 = pneg %p55
      %p182 = pneg %p84
      %p183 = pneg %p81
      %p184 = scmp.lt.s32.totalorder %s16, 1
      %s185 = scalar_select %p184, %s16, 1
      %s186 = smul.addr %s185, 32
      %s187 = smul.addr %s186, 8
      %s188 = scalar_lea.vmem %s2, %s187
      %p189 = pneg %p110
      %p190 = pneg %p107
      %p191 = scmp.lt.s32.totalorder %s16, 1
      %s192 = scalar_select %p191, %s16, 1
      %s193 = scalar_lea.vmem %s3, %s192
      %p194 = pneg %p136
      %p195 = pneg %p133
      %p196 = scmp.lt.s32.totalorder %s16, 1
      %s197 = scalar_select %p196, %s16, 1
      %s198 = scalar_lea.vmem %s4, %s197
      %p199 = scmp.lt.s32.totalorder %s16, 1
      %s200 = scalar_select %p199, %s16, 1
      %s201 = smul.addr %s200, 108
      %s202 = smul.addr %s201, 8
      %s203 = scalar_lea.vmem %s0, %s202
      %p204 = scmp.lt.s32.totalorder %s16, 1
      %s205 = scalar_select %p204, %s16, 1
      %s206 = smul.addr %s205, 32
      %s207 = smul.addr %s206, 8
      %s208 = scalar_lea.vmem %s2, %s207
      %p209 = scmp.lt.s32.totalorder %s16, 1
      %s210 = scalar_select %p209, %s16, 1
      %s211 = scalar_lea.vmem %s3, %s210
      %p212 = scmp.lt.s32.totalorder %s16, 1
      %s213 = scalar_select %p212, %s16, 1
      %s214 = scalar_lea.vmem %s4, %s213
      %v215 = vld [vmem:[%s203] sm:$0xff]
      %v216 = vld [vmem:[%s203 + $0x8] sm:$0xff]
      %v217 = vld [vmem:[%s203 + $0x10] sm:$0xff]
      %v218 = vld [vmem:[%s203 + $0x18] sm:$0xff]
      %v219 = vld [vmem:[%s203 + $0x20] sm:$0xff]
      %v220 = vld [vmem:[%s203 + $0x28] sm:$0xff]
      %v221 = vld [vmem:[%s203 + $0x30] sm:$0xff]
      %v222 = vld [vmem:[%s203 + $0x38] sm:$0xff]
      %v223 = vld [vmem:[%s203 + $0x40] sm:$0xff]
      %v224 = vld [vmem:[%s203 + $0x48] sm:$0xff]
      %v225 = vld [vmem:[%s203 + $0x50] sm:$0xff]
      %v226 = vld [vmem:[%s203 + $0x58] sm:$0xff]
      %v227 = vld [vmem:[%s203 + $0x60] sm:$0xff]
      %v228 = vld [vmem:[%s203 + $0x68] sm:$0xff]
      %v229 = vld [vmem:[%s203 + $0x70] sm:$0xff]
      %v230 = vld [vmem:[%s203 + $0x78] sm:$0xff]
      %v231 = vld [vmem:[%s203 + $0x80] sm:$0xff]
      %v232 = vld [vmem:[%s203 + $0x88] sm:$0xff]
      %v233 = vld [vmem:[%s203 + $0x90] sm:$0xff]
      %v234 = vld [vmem:[%s203 + $0x98] sm:$0xff]
      %v235 = vld [vmem:[%s203 + $0xa0] sm:$0xff]
      %v236 = vld [vmem:[%s203 + $0xa8] sm:$0xff]
      %v237 = vld [vmem:[%s203 + $0xb0] sm:$0xff]
      %v238 = vld [vmem:[%s203 + $0xb8] sm:$0xff]
      %v239 = vld [vmem:[%s203 + $0xc0] sm:$0xff]
      %v240 = vld [vmem:[%s203 + $0xc8] sm:$0xff]
      %v241 = vld [vmem:[%s203 + $0xd0] sm:$0xff]
      %v242 = vld [vmem:[%s203 + $0xd8] sm:$0xff]
      %v243 = vld [vmem:[%s203 + $0xe0] sm:$0xff]
      %v244 = vld [vmem:[%s203 + $0xe8] sm:$0xff]
      %v245 = vld [vmem:[%s203 + $0xf0] sm:$0xff]
      %v246 = vld [vmem:[%s203 + $0xf8] sm:$0xff]
      %v247 = vld [vmem:[%s203 + $0x100] sm:$0xff]
      %v248 = vld [vmem:[%s203 + $0x108] sm:$0xff]
      %v249 = vld [vmem:[%s203 + $0x110] sm:$0xff]
      %v250 = vld [vmem:[%s203 + $0x118] sm:$0xff]
      %v251 = vld [vmem:[%s1] sm:$0xf]
      %s252 = scalar_lea.vmem %s1, 12
      %v253 = vld [vmem:[%s252] sm:$0xf]
      %vm254 = vcmask 31744
      %v256 = vsel %vm254, %v217, 0
      %v259 = vsel %vm254, %v218, 0
      %v262 = vsel %vm254, %v219, 0
      %v265 = vsel %vm254, %v220, 0
      %v268 = vsel %vm254, %v221, 0
      %v271 = vsel %vm254, %v222, 0
      %v274 = vsel %vm254, %v223, 0
      %v277 = vsel %vm254, %v224, 0
      %v280 = vsel %vm254, %v225, 0
      %v283 = vsel %vm254, %v226, 0
      %v286 = vsel %vm254, %v227, 0
      %v289 = vsel %vm254, %v228, 0
      %v292 = vsel %vm254, %v229, 0
      %v295 = vsel %vm254, %v230, 0
      %v298 = vsel %vm254, %v231, 0
      %v301 = vsel %vm254, %v232, 0
      %v304 = vsel %vm254, %v233, 0
      %v307 = vsel %vm254, %v234, 0
      %v310 = vsel %vm254, %v235, 0
      %v313 = vsel %vm254, %v236, 0
      %v316 = vsel %vm254, %v237, 0
      %v319 = vsel %vm254, %v238, 0
      %v322 = vsel %vm254, %v239, 0
      %v325 = vsel %vm254, %v240, 0
      %v328 = vsel %vm254, %v241, 0
      %v331 = vsel %vm254, %v242, 0
      %v334 = vsel %vm254, %v243, 0
      %v337 = vsel %vm254, %v244, 0
      %v340 = vsel %vm254, %v245, 0
      %v343 = vsel %vm254, %v246, 0
      %v346 = vsel %vm254, %v247, 0
      %v349 = vsel %vm254, %v248, 0
      %vm351 = vcmask 1043456
      %v353 = vsel %vm351, %v253, 0
      %355 = vmatprep.subr.mxu0 0.0
      %356 = vmatpush1.msra.mxu0 0.0
      %357 = vmatprep.subr.mxu0 0.0
      %358 = vmatpush1.msra.mxu0 0.0
      %359 = vmatprep.subr.mxu0 0.0
      %360 = vmatpush1.msra.mxu0 0.0
      %361 = vmatprep.subr.mxu0 0.0
      %362 = vmatpush1.msra.mxu0 0.0
      %363 = vmatprep.subr.mxu0 0.0
      %364 = vmatpush1.msra.mxu0 0.0
      %365 = vmatprep.subr.mxu0 0.0
      %366 = vmatpush1.msra.mxu0 0.0
      %367 = vmatprep.subr.mxu0 0.0
      %368 = vmatpush1.msra.mxu0 0.0
      %369 = vmatprep.subr.mxu0 0.0
      %370 = vmatpush1.msra.mxu0 0.0
      %371 = vmatprep.subr.mxu0 0.0
      %372 = vmatpush1.msra.mxu0 0.0
      %373 = vmatprep.subr.mxu0 0.0
      %374 = vmatpush1.msra.mxu0 0.0
      %375 = vmatprep.subr.mxu0 0.0
      %376 = vmatpush1.msra.mxu0 0.0
      %377 = vmatprep.subr.mxu0 0.0
      %378 = vmatpush1.msra.mxu0 0.0
      %379 = vmatprep.subr.mxu0 0.0
      %380 = vmatpush1.msra.mxu0 0.0
      %381 = vmatprep.subr.mxu0 0.0
      %382 = vmatpush1.msra.mxu0 0.0
      %383 = vmatprep.subr.mxu0 0.0
      %384 = vmatpush1.msra.mxu0 0.0
      %385 = vmatprep.subr.mxu0 0.0
      %386 = vmatpush1.msra.mxu0 %v353
      %387 = vmatprep.subr.mxu0 0.0
      %388 = vmatpush2.msra.mxu0 0.0
      %389 = vmatprep.subr.mxu0 0.0
      %390 = vmatpush2.msra.mxu0 0.0
      %391 = vmatprep.subr.mxu0 0.0
      %392 = vmatpush2.msra.mxu0 0.0
      %393 = vmatprep.subr.mxu0 0.0
      %394 = vmatpush2.msra.mxu0 0.0
      %395 = vmatprep.subr.mxu0 0.0
      %396 = vmatpush2.msra.mxu0 0.0
      %397 = vmatprep.subr.mxu0 0.0
      %398 = vmatpush2.msra.mxu0 0.0
      %399 = vmatprep.subr.mxu0 0.0
      %400 = vmatpush2.msra.mxu0 0.0
      %401 = vmatprep.subr.mxu0 0.0
      %402 = vmatpush2.msra.mxu0 0.0
      %403 = vmatprep.subr.mxu0 0.0
      %404 = vmatpush2.msra.mxu0 0.0
      %405 = vmatprep.subr.mxu0 0.0
      %406 = vmatpush2.msra.mxu0 0.0
      %407 = vmatprep.subr.mxu0 0.0
      %408 = vmatpush2.msra.mxu0 0.0
      %409 = vmatprep.subr.mxu0 0.0
      %410 = vmatpush2.msra.mxu0 0.0
      %411 = vmatprep.subr.mxu0 0.0
      %412 = vmatpush2.msra.mxu0 0.0
      %413 = vmatprep.subr.mxu0 0.0
      %414 = vmatpush2.msra.mxu0 0.0
      %415 = vmatprep.subr.mxu0 0.0
      %416 = vmatpush2.msra.mxu0 0.0
      %417 = vmatprep.subr.mxu0 0.0
      %418 = vmatpush2.msra.mxu0 0.0
      %419 = vmatprep.mubr.f32.mxu0 0.0
      %420 = vmatmul.mubr.f32.gmra.mxu0 %v256
      %v421 = vpop.f32.mrf.mxu0
      %v422 = vadd.f32 0.0, %v421
      %v423 = vpop.f32.mrf.mxu0
      %424 = vmatprep.mubr.f32.mxu0 0.0
      %425 = vmatmul.mubr.f32.gmra.mxu0 %v259
      %v426 = vpop.f32.mrf.mxu0
      %v427 = vadd.f32 0.0, %v426
      %v428 = vpop.f32.mrf.mxu0
      %429 = vmatprep.mubr.f32.mxu0 0.0
      %430 = vmatmul.mubr.f32.gmra.mxu0 %v262
      %v431 = vpop.f32.mrf.mxu0
      %v432 = vadd.f32 0.0, %v431
      %v433 = vpop.f32.mrf.mxu0
      %434 = vmatprep.mubr.f32.mxu0 0.0
      %435 = vmatmul.mubr.f32.gmra.mxu0 %v265
      %v436 = vpop.f32.mrf.mxu0
      %v437 = vadd.f32 0.0, %v436
      %v438 = vpop.f32.mrf.mxu0
      %439 = vmatprep.mubr.f32.mxu0 0.0
      %440 = vmatmul.mubr.f32.gmra.mxu0 %v268
      %v441 = vpop.f32.mrf.mxu0
      %v442 = vadd.f32 0.0, %v441
      %v443 = vpop.f32.mrf.mxu0
      %444 = vmatprep.mubr.f32.mxu0 0.0
      %445 = vmatmul.mubr.f32.gmra.mxu0 %v271
      %v446 = vpop.f32.mrf.mxu0
      %v447 = vadd.f32 0.0, %v446
      %v448 = vpop.f32.mrf.mxu0
      %449 = vmatprep.mubr.f32.mxu0 0.0
      %450 = vmatmul.mubr.f32.gmra.mxu0 %v274
      %v451 = vpop.f32.mrf.mxu0
      %v452 = vadd.f32 0.0, %v451
      %v453 = vpop.f32.mrf.mxu0
      %454 = vmatprep.mubr.f32.mxu0 0.0
      %455 = vmatmul.mubr.f32.gmra.mxu0 %v277
      %v456 = vpop.f32.mrf.mxu0
      %v457 = vadd.f32 0.0, %v456
      %v458 = vpop.f32.mrf.mxu0
      %459 = vmatprep.mubr.f32.mxu0 0.0
      %460 = vmatmul.mubr.f32.gmra.mxu0 %v280
      %v461 = vpop.f32.mrf.mxu0
      %v462 = vadd.f32 0.0, %v461
      %v463 = vpop.f32.mrf.mxu0
      %464 = vmatprep.mubr.f32.mxu0 0.0
      %465 = vmatmul.mubr.f32.gmra.mxu0 %v283
      %v466 = vpop.f32.mrf.mxu0
      %v467 = vadd.f32 0.0, %v466
      %v468 = vpop.f32.mrf.mxu0
      %469 = vmatprep.mubr.f32.mxu0 0.0
      %470 = vmatmul.mubr.f32.gmra.mxu0 %v286
      %v471 = vpop.f32.mrf.mxu0
      %v472 = vadd.f32 0.0, %v471
      %v473 = vpop.f32.mrf.mxu0
      %474 = vmatprep.mubr.f32.mxu0 0.0
      %475 = vmatmul.mubr.f32.gmra.mxu0 %v289
      %v476 = vpop.f32.mrf.mxu0
      %v477 = vadd.f32 0.0, %v476
      %v478 = vpop.f32.mrf.mxu0
      %479 = vmatprep.mubr.f32.mxu0 0.0
      %480 = vmatmul.mubr.f32.gmra.mxu0 %v292
      %v481 = vpop.f32.mrf.mxu0
      %v482 = vadd.f32 0.0, %v481
      %v483 = vpop.f32.mrf.mxu0
      %484 = vmatprep.mubr.f32.mxu0 0.0
      %485 = vmatmul.mubr.f32.gmra.mxu0 %v295
      %v486 = vpop.f32.mrf.mxu0
      %v487 = vadd.f32 0.0, %v486
      %v488 = vpop.f32.mrf.mxu0
      %489 = vmatprep.mubr.f32.mxu0 0.0
      %490 = vmatmul.mubr.f32.gmra.mxu0 %v298
      %v491 = vpop.f32.mrf.mxu0
      %v492 = vadd.f32 0.0, %v491
      %v493 = vpop.f32.mrf.mxu0
      %494 = vmatprep.mubr.f32.mxu0 0.0
      %495 = vmatmul.mubr.f32.gmra.mxu0 %v301
      %v496 = vpop.f32.mrf.mxu0
      %v497 = vadd.f32 0.0, %v496
      %v498 = vpop.f32.mrf.mxu0
      %499 = vmatprep.mubr.f32.mxu0 0.0
      %500 = vmatmul.mubr.f32.gmra.mxu0 %v304
      %v501 = vpop.f32.mrf.mxu0
      %v502 = vadd.f32 0.0, %v501
      %v503 = vpop.f32.mrf.mxu0
      %504 = vmatprep.mubr.f32.mxu0 0.0
      %505 = vmatmul.mubr.f32.gmra.mxu0 %v307
      %v506 = vpop.f32.mrf.mxu0
      %v507 = vadd.f32 0.0, %v506
      %v508 = vpop.f32.mrf.mxu0
      %509 = vmatprep.mubr.f32.mxu0 0.0
      %510 = vmatmul.mubr.f32.gmra.mxu0 %v310
      %v511 = vpop.f32.mrf.mxu0
      %v512 = vadd.f32 0.0, %v511
      %v513 = vpop.f32.mrf.mxu0
      %514 = vmatprep.mubr.f32.mxu0 0.0
      %515 = vmatmul.mubr.f32.gmra.mxu0 %v313
      %v516 = vpop.f32.mrf.mxu0
      %v517 = vadd.f32 0.0, %v516
      %v518 = vpop.f32.mrf.mxu0
      %519 = vmatprep.mubr.f32.mxu0 0.0
      %520 = vmatmul.mubr.f32.gmra.mxu0 %v316
      %v521 = vpop.f32.mrf.mxu0
      %v522 = vadd.f32 0.0, %v521
      %v523 = vpop.f32.mrf.mxu0
      %524 = vmatprep.mubr.f32.mxu0 0.0
      %525 = vmatmul.mubr.f32.gmra.mxu0 %v319
      %v526 = vpop.f32.mrf.mxu0
      %v527 = vadd.f32 0.0, %v526
      %v528 = vpop.f32.mrf.mxu0
      %529 = vmatprep.mubr.f32.mxu0 0.0
      %530 = vmatmul.mubr.f32.gmra.mxu0 %v322
      %v531 = vpop.f32.mrf.mxu0
      %v532 = vadd.f32 0.0, %v531
      %v533 = vpop.f32.mrf.mxu0
      %534 = vmatprep.mubr.f32.mxu0 0.0
      %535 = vmatmul.mubr.f32.gmra.mxu0 %v325
      %v536 = vpop.f32.mrf.mxu0
      %v537 = vadd.f32 0.0, %v536
      %v538 = vpop.f32.mrf.mxu0
      %539 = vmatprep.mubr.f32.mxu0 0.0
      %540 = vmatmul.mubr.f32.gmra.mxu0 %v328
      %v541 = vpop.f32.mrf.mxu0
      %v542 = vadd.f32 0.0, %v541
      %v543 = vpop.f32.mrf.mxu0
      %544 = vmatprep.mubr.f32.mxu0 0.0
      %545 = vmatmul.mubr.f32.gmra.mxu0 %v331
      %v546 = vpop.f32.mrf.mxu0
      %v547 = vadd.f32 0.0, %v546
      %v548 = vpop.f32.mrf.mxu0
      %549 = vmatprep.mubr.f32.mxu0 0.0
      %550 = vmatmul.mubr.f32.gmra.mxu0 %v334
      %v551 = vpop.f32.mrf.mxu0
      %v552 = vadd.f32 0.0, %v551
      %v553 = vpop.f32.mrf.mxu0
      %554 = vmatprep.mubr.f32.mxu0 0.0
      %555 = vmatmul.mubr.f32.gmra.mxu0 %v337
      %v556 = vpop.f32.mrf.mxu0
      %v557 = vadd.f32 0.0, %v556
      %v558 = vpop.f32.mrf.mxu0
      %559 = vmatprep.mubr.f32.mxu0 0.0
      %560 = vmatmul.mubr.f32.gmra.mxu0 %v340
      %v561 = vpop.f32.mrf.mxu0
      %v562 = vadd.f32 0.0, %v561
      %v563 = vpop.f32.mrf.mxu0
      %564 = vmatprep.mubr.f32.mxu0 0.0
      %565 = vmatmul.mubr.f32.gmra.mxu0 %v343
      %v566 = vpop.f32.mrf.mxu0
      %v567 = vadd.f32 0.0, %v566
      %v568 = vpop.f32.mrf.mxu0
      %569 = vmatprep.mubr.f32.mxu0 0.0
      %570 = vmatmul.mubr.f32.gmra.mxu0 %v346
      %v571 = vpop.f32.mrf.mxu0
      %v572 = vadd.f32 0.0, %v571
      %v573 = vpop.f32.mrf.mxu0
      %574 = vmatprep.mubr.f32.mxu0 0.0
      %575 = vmatmul.mubr.f32.gmra.mxu0 %v349
      %v576 = vpop.f32.mrf.mxu0
      %v577 = vadd.f32 0.0, %v576
      %v578 = vpop.f32.mrf.mxu0
      %579 = vdwg.mxu0
      %v581 = vsel %vm254, %v215, 0
      %v584 = vsel %vm254, %v216, 0
      %v587 = vsel %vm351, %v251, 0
      %589 = vmatprep.subr.mxu0 0.0
      %590 = vmatpush1.msra.mxu0 0.0
      %591 = vmatprep.subr.mxu0 0.0
      %592 = vmatpush1.msra.mxu0 0.0
      %593 = vmatprep.subr.mxu0 0.0
      %594 = vmatpush1.msra.mxu0 0.0
      %595 = vmatprep.subr.mxu0 0.0
      %596 = vmatpush1.msra.mxu0 0.0
      %597 = vmatprep.subr.mxu0 0.0
      %598 = vmatpush1.msra.mxu0 0.0
      %599 = vmatprep.subr.mxu0 0.0
      %600 = vmatpush1.msra.mxu0 0.0
      %601 = vmatprep.subr.mxu0 0.0
      %602 = vmatpush1.msra.mxu0 0.0
      %603 = vmatprep.subr.mxu0 0.0
      %604 = vmatpush1.msra.mxu0 0.0
      %605 = vmatprep.subr.mxu0 0.0
      %606 = vmatpush1.msra.mxu0 0.0
      %607 = vmatprep.subr.mxu0 0.0
      %608 = vmatpush1.msra.mxu0 0.0
      %609 = vmatprep.subr.mxu0 0.0
      %610 = vmatpush1.msra.mxu0 0.0
      %611 = vmatprep.subr.mxu0 0.0
      %612 = vmatpush1.msra.mxu0 0.0
      %613 = vmatprep.subr.mxu0 0.0
      %614 = vmatpush1.msra.mxu0 0.0
      %615 = vmatprep.subr.mxu0 0.0
      %616 = vmatpush1.msra.mxu0 0.0
      %617 = vmatprep.subr.mxu0 0.0
      %618 = vmatpush1.msra.mxu0 0.0
      %619 = vmatprep.subr.mxu0 0.0
      %620 = vmatpush1.msra.mxu0 %v587
      %621 = vmatprep.subr.mxu0 0.0
      %622 = vmatpush2.msra.mxu0 0.0
      %623 = vmatprep.subr.mxu0 0.0
      %624 = vmatpush2.msra.mxu0 0.0
      %625 = vmatprep.subr.mxu0 0.0
      %626 = vmatpush2.msra.mxu0 0.0
      %627 = vmatprep.subr.mxu0 0.0
      %628 = vmatpush2.msra.mxu0 0.0
      %629 = vmatprep.subr.mxu0 0.0
      %630 = vmatpush2.msra.mxu0 0.0
      %631 = vmatprep.subr.mxu0 0.0
      %632 = vmatpush2.msra.mxu0 0.0
      %633 = vmatprep.subr.mxu0 0.0
      %634 = vmatpush2.msra.mxu0 0.0
      %635 = vmatprep.subr.mxu0 0.0
      %636 = vmatpush2.msra.mxu0 0.0
      %637 = vmatprep.subr.mxu0 0.0
      %638 = vmatpush2.msra.mxu0 0.0
      %639 = vmatprep.subr.mxu0 0.0
      %640 = vmatpush2.msra.mxu0 0.0
      %641 = vmatprep.subr.mxu0 0.0
      %642 = vmatpush2.msra.mxu0 0.0
      %643 = vmatprep.subr.mxu0 0.0
      %644 = vmatpush2.msra.mxu0 0.0
      %645 = vmatprep.subr.mxu0 0.0
      %646 = vmatpush2.msra.mxu0 0.0
      %647 = vmatprep.subr.mxu0 0.0
      %648 = vmatpush2.msra.mxu0 0.0
      %649 = vmatprep.subr.mxu0 0.0
      %650 = vmatpush2.msra.mxu0 0.0
      %651 = vmatprep.subr.mxu0 0.0
      %652 = vmatpush2.msra.mxu0 0.0
      %653 = vmatprep.mubr.f32.mxu0 0.0
      %654 = vmatmul.mubr.f32.gmra.mxu0 %v581
      %v655 = vpop.f32.mrf.mxu0
      %v656 = vadd.f32 %v422, %v655
      %v657 = vpop.f32.mrf.mxu0
      %658 = vmatprep.mubr.f32.mxu0 0.0
      %659 = vmatmul.mubr.f32.gmra.mxu0 %v584
      %v660 = vpop.f32.mrf.mxu0
      %v661 = vadd.f32 %v427, %v660
      %v662 = vpop.f32.mrf.mxu0
      %663 = vmatprep.mubr.f32.mxu0 0.0
      %664 = vmatmul.mubr.f32.gmra.mxu0 %v256
      %v665 = vpop.f32.mrf.mxu0
      %v666 = vadd.f32 %v432, %v665
      %v667 = vpop.f32.mrf.mxu0
      %668 = vmatprep.mubr.f32.mxu0 0.0
      %669 = vmatmul.mubr.f32.gmra.mxu0 %v259
      %v670 = vpop.f32.mrf.mxu0
      %v671 = vadd.f32 %v437, %v670
      %v672 = vpop.f32.mrf.mxu0
      %673 = vmatprep.mubr.f32.mxu0 0.0
      %674 = vmatmul.mubr.f32.gmra.mxu0 %v262
      %v675 = vpop.f32.mrf.mxu0
      %v676 = vadd.f32 %v442, %v675
      %v677 = vpop.f32.mrf.mxu0
      %678 = vmatprep.mubr.f32.mxu0 0.0
      %679 = vmatmul.mubr.f32.gmra.mxu0 %v265
      %v680 = vpop.f32.mrf.mxu0
      %v681 = vadd.f32 %v447, %v680
      %v682 = vpop.f32.mrf.mxu0
      %683 = vmatprep.mubr.f32.mxu0 0.0
      %684 = vmatmul.mubr.f32.gmra.mxu0 %v268
      %v685 = vpop.f32.mrf.mxu0
      %v686 = vadd.f32 %v452, %v685
      %v687 = vpop.f32.mrf.mxu0
      %688 = vmatprep.mubr.f32.mxu0 0.0
      %689 = vmatmul.mubr.f32.gmra.mxu0 %v271
      %v690 = vpop.f32.mrf.mxu0
      %v691 = vadd.f32 %v457, %v690
      %v692 = vpop.f32.mrf.mxu0
      %693 = vmatprep.mubr.f32.mxu0 0.0
      %694 = vmatmul.mubr.f32.gmra.mxu0 %v274
      %v695 = vpop.f32.mrf.mxu0
      %v696 = vadd.f32 %v462, %v695
      %v697 = vpop.f32.mrf.mxu0
      %698 = vmatprep.mubr.f32.mxu0 0.0
      %699 = vmatmul.mubr.f32.gmra.mxu0 %v277
      %v700 = vpop.f32.mrf.mxu0
      %v701 = vadd.f32 %v467, %v700
      %v702 = vpop.f32.mrf.mxu0
      %703 = vmatprep.mubr.f32.mxu0 0.0
      %704 = vmatmul.mubr.f32.gmra.mxu0 %v280
      %v705 = vpop.f32.mrf.mxu0
      %v706 = vadd.f32 %v472, %v705
      %v707 = vpop.f32.mrf.mxu0
      %708 = vmatprep.mubr.f32.mxu0 0.0
      %709 = vmatmul.mubr.f32.gmra.mxu0 %v283
      %v710 = vpop.f32.mrf.mxu0
      %v711 = vadd.f32 %v477, %v710
      %v712 = vpop.f32.mrf.mxu0
      %713 = vmatprep.mubr.f32.mxu0 0.0
      %714 = vmatmul.mubr.f32.gmra.mxu0 %v286
      %v715 = vpop.f32.mrf.mxu0
      %v716 = vadd.f32 %v482, %v715
      %v717 = vpop.f32.mrf.mxu0
      %718 = vmatprep.mubr.f32.mxu0 0.0
      %719 = vmatmul.mubr.f32.gmra.mxu0 %v289
      %v720 = vpop.f32.mrf.mxu0
      %v721 = vadd.f32 %v487, %v720
      %v722 = vpop.f32.mrf.mxu0
      %723 = vmatprep.mubr.f32.mxu0 0.0
      %724 = vmatmul.mubr.f32.gmra.mxu0 %v292
      %v725 = vpop.f32.mrf.mxu0
      %v726 = vadd.f32 %v492, %v725
      %v727 = vpop.f32.mrf.mxu0
      %728 = vmatprep.mubr.f32.mxu0 0.0
      %729 = vmatmul.mubr.f32.gmra.mxu0 %v295
      %v730 = vpop.f32.mrf.mxu0
      %v731 = vadd.f32 %v497, %v730
      %v732 = vpop.f32.mrf.mxu0
      %733 = vmatprep.mubr.f32.mxu0 0.0
      %734 = vmatmul.mubr.f32.gmra.mxu0 %v298
      %v735 = vpop.f32.mrf.mxu0
      %v736 = vadd.f32 %v502, %v735
      %v737 = vpop.f32.mrf.mxu0
      %738 = vmatprep.mubr.f32.mxu0 0.0
      %739 = vmatmul.mubr.f32.gmra.mxu0 %v301
      %v740 = vpop.f32.mrf.mxu0
      %v741 = vadd.f32 %v507, %v740
      %v742 = vpop.f32.mrf.mxu0
      %743 = vmatprep.mubr.f32.mxu0 0.0
      %744 = vmatmul.mubr.f32.gmra.mxu0 %v304
      %v745 = vpop.f32.mrf.mxu0
      %v746 = vadd.f32 %v512, %v745
      %v747 = vpop.f32.mrf.mxu0
      %748 = vmatprep.mubr.f32.mxu0 0.0
      %749 = vmatmul.mubr.f32.gmra.mxu0 %v307
      %v750 = vpop.f32.mrf.mxu0
      %v751 = vadd.f32 %v517, %v750
      %v752 = vpop.f32.mrf.mxu0
      %753 = vmatprep.mubr.f32.mxu0 0.0
      %754 = vmatmul.mubr.f32.gmra.mxu0 %v310
      %v755 = vpop.f32.mrf.mxu0
      %v756 = vadd.f32 %v522, %v755
      %v757 = vpop.f32.mrf.mxu0
      %758 = vmatprep.mubr.f32.mxu0 0.0
      %759 = vmatmul.mubr.f32.gmra.mxu0 %v313
      %v760 = vpop.f32.mrf.mxu0
      %v761 = vadd.f32 %v527, %v760
      %v762 = vpop.f32.mrf.mxu0
      %763 = vmatprep.mubr.f32.mxu0 0.0
      %764 = vmatmul.mubr.f32.gmra.mxu0 %v316
      %v765 = vpop.f32.mrf.mxu0
      %v766 = vadd.f32 %v532, %v765
      %v767 = vpop.f32.mrf.mxu0
      %768 = vmatprep.mubr.f32.mxu0 0.0
      %769 = vmatmul.mubr.f32.gmra.mxu0 %v319
      %v770 = vpop.f32.mrf.mxu0
      %v771 = vadd.f32 %v537, %v770
      %v772 = vpop.f32.mrf.mxu0
      %773 = vmatprep.mubr.f32.mxu0 0.0
      %774 = vmatmul.mubr.f32.gmra.mxu0 %v322
      %v775 = vpop.f32.mrf.mxu0
      %v776 = vadd.f32 %v542, %v775
      %v777 = vpop.f32.mrf.mxu0
      %778 = vmatprep.mubr.f32.mxu0 0.0
      %779 = vmatmul.mubr.f32.gmra.mxu0 %v325
      %v780 = vpop.f32.mrf.mxu0
      %v781 = vadd.f32 %v547, %v780
      %v782 = vpop.f32.mrf.mxu0
      %783 = vmatprep.mubr.f32.mxu0 0.0
      %784 = vmatmul.mubr.f32.gmra.mxu0 %v328
      %v785 = vpop.f32.mrf.mxu0
      %v786 = vadd.f32 %v552, %v785
      %v787 = vpop.f32.mrf.mxu0
      %788 = vmatprep.mubr.f32.mxu0 0.0
      %789 = vmatmul.mubr.f32.gmra.mxu0 %v331
      %v790 = vpop.f32.mrf.mxu0
      %v791 = vadd.f32 %v557, %v790
      %v792 = vpop.f32.mrf.mxu0
      %793 = vmatprep.mubr.f32.mxu0 0.0
      %794 = vmatmul.mubr.f32.gmra.mxu0 %v334
      %v795 = vpop.f32.mrf.mxu0
      %v796 = vadd.f32 %v562, %v795
      %v797 = vpop.f32.mrf.mxu0
      %798 = vmatprep.mubr.f32.mxu0 0.0
      %799 = vmatmul.mubr.f32.gmra.mxu0 %v337
      %v800 = vpop.f32.mrf.mxu0
      %v801 = vadd.f32 %v567, %v800
      %v802 = vpop.f32.mrf.mxu0
      %803 = vmatprep.mubr.f32.mxu0 0.0
      %804 = vmatmul.mubr.f32.gmra.mxu0 %v340
      %v805 = vpop.f32.mrf.mxu0
      %v806 = vadd.f32 %v572, %v805
      %v807 = vpop.f32.mrf.mxu0
      %808 = vmatprep.mubr.f32.mxu0 0.0
      %809 = vmatmul.mubr.f32.gmra.mxu0 %v343
      %v810 = vpop.f32.mrf.mxu0
      %v811 = vadd.f32 %v577, %v810
      %v812 = vpop.f32.mrf.mxu0
      %813 = vdwg.mxu0
      %s814 = scalar_lea.vmem %s1, 24
      %v815 = vld [vmem:[%s814] sm:$0xf]
      %v817 = vsel %vm254, %v249, 0
      %v820 = vsel %vm254, %v250, 0
      %v823 = vsel %vm351, %v815, 0
      %825 = vmatprep.subr.mxu0 0.0
      %826 = vmatpush1.msra.mxu0 0.0
      %827 = vmatprep.subr.mxu0 0.0
      %828 = vmatpush1.msra.mxu0 0.0
      %829 = vmatprep.subr.mxu0 0.0
      %830 = vmatpush1.msra.mxu0 0.0
      %831 = vmatprep.subr.mxu0 0.0
      %832 = vmatpush1.msra.mxu0 0.0
      %833 = vmatprep.subr.mxu0 0.0
      %834 = vmatpush1.msra.mxu0 0.0
      %835 = vmatprep.subr.mxu0 0.0
      %836 = vmatpush1.msra.mxu0 0.0
      %837 = vmatprep.subr.mxu0 0.0
      %838 = vmatpush1.msra.mxu0 0.0
      %839 = vmatprep.subr.mxu0 0.0
      %840 = vmatpush1.msra.mxu0 0.0
      %841 = vmatprep.subr.mxu0 0.0
      %842 = vmatpush1.msra.mxu0 0.0
      %843 = vmatprep.subr.mxu0 0.0
      %844 = vmatpush1.msra.mxu0 0.0
      %845 = vmatprep.subr.mxu0 0.0
      %846 = vmatpush1.msra.mxu0 0.0
      %847 = vmatprep.subr.mxu0 0.0
      %848 = vmatpush1.msra.mxu0 0.0
      %849 = vmatprep.subr.mxu0 0.0
      %850 = vmatpush1.msra.mxu0 0.0
      %851 = vmatprep.subr.mxu0 0.0
      %852 = vmatpush1.msra.mxu0 0.0
      %853 = vmatprep.subr.mxu0 0.0
      %854 = vmatpush1.msra.mxu0 0.0
      %855 = vmatprep.subr.mxu0 0.0
      %856 = vmatpush1.msra.mxu0 %v823
      %857 = vmatprep.subr.mxu0 0.0
      %858 = vmatpush2.msra.mxu0 0.0
      %859 = vmatprep.subr.mxu0 0.0
      %860 = vmatpush2.msra.mxu0 0.0
      %861 = vmatprep.subr.mxu0 0.0
      %862 = vmatpush2.msra.mxu0 0.0
      %863 = vmatprep.subr.mxu0 0.0
      %864 = vmatpush2.msra.mxu0 0.0
      %865 = vmatprep.subr.mxu0 0.0
      %866 = vmatpush2.msra.mxu0 0.0
      %867 = vmatprep.subr.mxu0 0.0
      %868 = vmatpush2.msra.mxu0 0.0
      %869 = vmatprep.subr.mxu0 0.0
      %870 = vmatpush2.msra.mxu0 0.0
      %871 = vmatprep.subr.mxu0 0.0
      %872 = vmatpush2.msra.mxu0 0.0
      %873 = vmatprep.subr.mxu0 0.0
      %874 = vmatpush2.msra.mxu0 0.0
      %875 = vmatprep.subr.mxu0 0.0
      %876 = vmatpush2.msra.mxu0 0.0
      %877 = vmatprep.subr.mxu0 0.0
      %878 = vmatpush2.msra.mxu0 0.0
      %879 = vmatprep.subr.mxu0 0.0
      %880 = vmatpush2.msra.mxu0 0.0
      %881 = vmatprep.subr.mxu0 0.0
      %882 = vmatpush2.msra.mxu0 0.0
      %883 = vmatprep.subr.mxu0 0.0
      %884 = vmatpush2.msra.mxu0 0.0
      %885 = vmatprep.subr.mxu0 0.0
      %886 = vmatpush2.msra.mxu0 0.0
      %887 = vmatprep.subr.mxu0 0.0
      %888 = vmatpush2.msra.mxu0 0.0
      %889 = vmatprep.mubr.f32.mxu0 0.0
      %890 = vmatmul.mubr.f32.gmra.mxu0 %v262
      %v891 = vpop.f32.mrf.mxu0
      %v892 = vadd.f32 0.0, %v891
      %v893 = vpop.f32.mrf.mxu0
      %894 = vmatprep.mubr.f32.mxu0 0.0
      %895 = vmatmul.mubr.f32.gmra.mxu0 %v265
      %v896 = vpop.f32.mrf.mxu0
      %v897 = vadd.f32 0.0, %v896
      %v898 = vpop.f32.mrf.mxu0
      %899 = vmatprep.mubr.f32.mxu0 0.0
      %900 = vmatmul.mubr.f32.gmra.mxu0 %v268
      %v901 = vpop.f32.mrf.mxu0
      %v902 = vadd.f32 0.0, %v901
      %v903 = vpop.f32.mrf.mxu0
      %904 = vmatprep.mubr.f32.mxu0 0.0
      %905 = vmatmul.mubr.f32.gmra.mxu0 %v271
      %v906 = vpop.f32.mrf.mxu0
      %v907 = vadd.f32 0.0, %v906
      %v908 = vpop.f32.mrf.mxu0
      %909 = vmatprep.mubr.f32.mxu0 0.0
      %910 = vmatmul.mubr.f32.gmra.mxu0 %v274
      %v911 = vpop.f32.mrf.mxu0
      %v912 = vadd.f32 0.0, %v911
      %v913 = vpop.f32.mrf.mxu0
      %914 = vmatprep.mubr.f32.mxu0 0.0
      %915 = vmatmul.mubr.f32.gmra.mxu0 %v277
      %v916 = vpop.f32.mrf.mxu0
      %v917 = vadd.f32 0.0, %v916
      %v918 = vpop.f32.mrf.mxu0
      %919 = vmatprep.mubr.f32.mxu0 0.0
      %920 = vmatmul.mubr.f32.gmra.mxu0 %v280
      %v921 = vpop.f32.mrf.mxu0
      %v922 = vadd.f32 0.0, %v921
      %v923 = vpop.f32.mrf.mxu0
      %924 = vmatprep.mubr.f32.mxu0 0.0
      %925 = vmatmul.mubr.f32.gmra.mxu0 %v283
      %v926 = vpop.f32.mrf.mxu0
      %v927 = vadd.f32 0.0, %v926
      %v928 = vpop.f32.mrf.mxu0
      %929 = vmatprep.mubr.f32.mxu0 0.0
      %930 = vmatmul.mubr.f32.gmra.mxu0 %v286
      %v931 = vpop.f32.mrf.mxu0
      %v932 = vadd.f32 0.0, %v931
      %v933 = vpop.f32.mrf.mxu0
      %934 = vmatprep.mubr.f32.mxu0 0.0
      %935 = vmatmul.mubr.f32.gmra.mxu0 %v289
      %v936 = vpop.f32.mrf.mxu0
      %v937 = vadd.f32 0.0, %v936
      %v938 = vpop.f32.mrf.mxu0
      %939 = vmatprep.mubr.f32.mxu0 0.0
      %940 = vmatmul.mubr.f32.gmra.mxu0 %v292
      %v941 = vpop.f32.mrf.mxu0
      %v942 = vadd.f32 0.0, %v941
      %v943 = vpop.f32.mrf.mxu0
      %944 = vmatprep.mubr.f32.mxu0 0.0
      %945 = vmatmul.mubr.f32.gmra.mxu0 %v295
      %v946 = vpop.f32.mrf.mxu0
      %v947 = vadd.f32 0.0, %v946
      %v948 = vpop.f32.mrf.mxu0
      %949 = vmatprep.mubr.f32.mxu0 0.0
      %950 = vmatmul.mubr.f32.gmra.mxu0 %v298
      %v951 = vpop.f32.mrf.mxu0
      %v952 = vadd.f32 0.0, %v951
      %v953 = vpop.f32.mrf.mxu0
      %954 = vmatprep.mubr.f32.mxu0 0.0
      %955 = vmatmul.mubr.f32.gmra.mxu0 %v301
      %v956 = vpop.f32.mrf.mxu0
      %v957 = vadd.f32 0.0, %v956
      %v958 = vpop.f32.mrf.mxu0
      %959 = vmatprep.mubr.f32.mxu0 0.0
      %960 = vmatmul.mubr.f32.gmra.mxu0 %v304
      %v961 = vpop.f32.mrf.mxu0
      %v962 = vadd.f32 0.0, %v961
      %v963 = vpop.f32.mrf.mxu0
      %964 = vmatprep.mubr.f32.mxu0 0.0
      %965 = vmatmul.mubr.f32.gmra.mxu0 %v307
      %v966 = vpop.f32.mrf.mxu0
      %v967 = vadd.f32 0.0, %v966
      %v968 = vpop.f32.mrf.mxu0
      %969 = vmatprep.mubr.f32.mxu0 0.0
      %970 = vmatmul.mubr.f32.gmra.mxu0 %v310
      %v971 = vpop.f32.mrf.mxu0
      %v972 = vadd.f32 0.0, %v971
      %v973 = vpop.f32.mrf.mxu0
      %974 = vmatprep.mubr.f32.mxu0 0.0
      %975 = vmatmul.mubr.f32.gmra.mxu0 %v313
      %v976 = vpop.f32.mrf.mxu0
      %v977 = vadd.f32 0.0, %v976
      %v978 = vpop.f32.mrf.mxu0
      %979 = vmatprep.mubr.f32.mxu0 0.0
      %980 = vmatmul.mubr.f32.gmra.mxu0 %v316
      %v981 = vpop.f32.mrf.mxu0
      %v982 = vadd.f32 0.0, %v981
      %v983 = vpop.f32.mrf.mxu0
      %984 = vmatprep.mubr.f32.mxu0 0.0
      %985 = vmatmul.mubr.f32.gmra.mxu0 %v319
      %v986 = vpop.f32.mrf.mxu0
      %v987 = vadd.f32 0.0, %v986
      %v988 = vpop.f32.mrf.mxu0
      %989 = vmatprep.mubr.f32.mxu0 0.0
      %990 = vmatmul.mubr.f32.gmra.mxu0 %v322
      %v991 = vpop.f32.mrf.mxu0
      %v992 = vadd.f32 0.0, %v991
      %v993 = vpop.f32.mrf.mxu0
      %994 = vmatprep.mubr.f32.mxu0 0.0
      %995 = vmatmul.mubr.f32.gmra.mxu0 %v325
      %v996 = vpop.f32.mrf.mxu0
      %v997 = vadd.f32 0.0, %v996
      %v998 = vpop.f32.mrf.mxu0
      %999 = vmatprep.mubr.f32.mxu0 0.0
      %1000 = vmatmul.mubr.f32.gmra.mxu0 %v328
      %v1001 = vpop.f32.mrf.mxu0
      %v1002 = vadd.f32 0.0, %v1001
      %v1003 = vpop.f32.mrf.mxu0
      %1004 = vmatprep.mubr.f32.mxu0 0.0
      %1005 = vmatmul.mubr.f32.gmra.mxu0 %v331
      %v1006 = vpop.f32.mrf.mxu0
      %v1007 = vadd.f32 0.0, %v1006
      %v1008 = vpop.f32.mrf.mxu0
      %1009 = vmatprep.mubr.f32.mxu0 0.0
      %1010 = vmatmul.mubr.f32.gmra.mxu0 %v334
      %v1011 = vpop.f32.mrf.mxu0
      %v1012 = vadd.f32 0.0, %v1011
      %v1013 = vpop.f32.mrf.mxu0
      %1014 = vmatprep.mubr.f32.mxu0 0.0
      %1015 = vmatmul.mubr.f32.gmra.mxu0 %v337
      %v1016 = vpop.f32.mrf.mxu0
      %v1017 = vadd.f32 0.0, %v1016
      %v1018 = vpop.f32.mrf.mxu0
      %1019 = vmatprep.mubr.f32.mxu0 0.0
      %1020 = vmatmul.mubr.f32.gmra.mxu0 %v340
      %v1021 = vpop.f32.mrf.mxu0
      %v1022 = vadd.f32 0.0, %v1021
      %v1023 = vpop.f32.mrf.mxu0
      %1024 = vmatprep.mubr.f32.mxu0 0.0
      %1025 = vmatmul.mubr.f32.gmra.mxu0 %v343
      %v1026 = vpop.f32.mrf.mxu0
      %v1027 = vadd.f32 0.0, %v1026
      %v1028 = vpop.f32.mrf.mxu0
      %1029 = vmatprep.mubr.f32.mxu0 0.0
      %1030 = vmatmul.mubr.f32.gmra.mxu0 %v346
      %v1031 = vpop.f32.mrf.mxu0
      %v1032 = vadd.f32 0.0, %v1031
      %v1033 = vpop.f32.mrf.mxu0
      %1034 = vmatprep.mubr.f32.mxu0 0.0
      %1035 = vmatmul.mubr.f32.gmra.mxu0 %v349
      %v1036 = vpop.f32.mrf.mxu0
      %v1037 = vadd.f32 0.0, %v1036
      %v1038 = vpop.f32.mrf.mxu0
      %1039 = vmatprep.mubr.f32.mxu0 0.0
      %1040 = vmatmul.mubr.f32.gmra.mxu0 %v817
      %v1041 = vpop.f32.mrf.mxu0
      %v1042 = vadd.f32 0.0, %v1041
      %v1043 = vpop.f32.mrf.mxu0
      %1044 = vmatprep.mubr.f32.mxu0 0.0
      %1045 = vmatmul.mubr.f32.gmra.mxu0 %v820
      %v1046 = vpop.f32.mrf.mxu0
      %v1047 = vadd.f32 0.0, %v1046
      %v1048 = vpop.f32.mrf.mxu0
      %1049 = vdwg.mxu0
      %v1050 = vadd.f32 %v656, %v892
      %v1051 = vadd.f32 %v661, %v897
      %v1052 = vadd.f32 %v666, %v902
      %v1053 = vadd.f32 %v671, %v907
      %v1054 = vadd.f32 %v676, %v912
      %v1055 = vadd.f32 %v681, %v917
      %v1056 = vadd.f32 %v686, %v922
      %v1057 = vadd.f32 %v691, %v927
      %v1058 = vadd.f32 %v696, %v932
      %v1059 = vadd.f32 %v701, %v937
      %v1060 = vadd.f32 %v706, %v942
      %v1061 = vadd.f32 %v711, %v947
      %v1062 = vadd.f32 %v716, %v952
      %v1063 = vadd.f32 %v721, %v957
      %v1064 = vadd.f32 %v726, %v962
      %v1065 = vadd.f32 %v731, %v967
      %v1066 = vadd.f32 %v736, %v972
      %v1067 = vadd.f32 %v741, %v977
      %v1068 = vadd.f32 %v746, %v982
      %v1069 = vadd.f32 %v751, %v987
      %v1070 = vadd.f32 %v756, %v992
      %v1071 = vadd.f32 %v761, %v997
      %v1072 = vadd.f32 %v766, %v1002
      %v1073 = vadd.f32 %v771, %v1007
      %v1074 = vadd.f32 %v776, %v1012
      %v1075 = vadd.f32 %v781, %v1017
      %v1076 = vadd.f32 %v786, %v1022
      %v1077 = vadd.f32 %v791, %v1027
      %v1078 = vadd.f32 %v796, %v1032
      %v1079 = vadd.f32 %v801, %v1037
      %v1080 = vadd.f32 %v806, %v1042
      %v1081 = vadd.f32 %v811, %v1047
      %s1082 = scalar_lea.vmem %s203, 288
      %v1083 = vld [vmem:[%s1082] sm:$0xff]
      %v1084 = vld [vmem:[%s1082 + $0x8] sm:$0xff]
      %v1085 = vld [vmem:[%s1082 + $0x10] sm:$0xff]
      %v1086 = vld [vmem:[%s1082 + $0x18] sm:$0xff]
      %v1087 = vld [vmem:[%s1082 + $0x20] sm:$0xff]
      %v1088 = vld [vmem:[%s1082 + $0x28] sm:$0xff]
      %v1089 = vld [vmem:[%s1082 + $0x30] sm:$0xff]
      %v1090 = vld [vmem:[%s1082 + $0x38] sm:$0xff]
      %v1091 = vld [vmem:[%s1082 + $0x40] sm:$0xff]
      %v1092 = vld [vmem:[%s1082 + $0x48] sm:$0xff]
      %v1093 = vld [vmem:[%s1082 + $0x50] sm:$0xff]
      %v1094 = vld [vmem:[%s1082 + $0x58] sm:$0xff]
      %v1095 = vld [vmem:[%s1082 + $0x60] sm:$0xff]
      %v1096 = vld [vmem:[%s1082 + $0x68] sm:$0xff]
      %v1097 = vld [vmem:[%s1082 + $0x70] sm:$0xff]
      %v1098 = vld [vmem:[%s1082 + $0x78] sm:$0xff]
      %v1099 = vld [vmem:[%s1082 + $0x80] sm:$0xff]
      %v1100 = vld [vmem:[%s1082 + $0x88] sm:$0xff]
      %v1101 = vld [vmem:[%s1082 + $0x90] sm:$0xff]
      %v1102 = vld [vmem:[%s1082 + $0x98] sm:$0xff]
      %v1103 = vld [vmem:[%s1082 + $0xa0] sm:$0xff]
      %v1104 = vld [vmem:[%s1082 + $0xa8] sm:$0xff]
      %v1105 = vld [vmem:[%s1082 + $0xb0] sm:$0xff]
      %v1106 = vld [vmem:[%s1082 + $0xb8] sm:$0xff]
      %v1107 = vld [vmem:[%s1082 + $0xc0] sm:$0xff]
      %v1108 = vld [vmem:[%s1082 + $0xc8] sm:$0xff]
      %v1109 = vld [vmem:[%s1082 + $0xd0] sm:$0xff]
      %v1110 = vld [vmem:[%s1082 + $0xd8] sm:$0xff]
      %v1111 = vld [vmem:[%s1082 + $0xe0] sm:$0xff]
      %v1112 = vld [vmem:[%s1082 + $0xe8] sm:$0xff]
      %v1113 = vld [vmem:[%s1082 + $0xf0] sm:$0xff]
      %v1114 = vld [vmem:[%s1082 + $0xf8] sm:$0xff]
      %v1115 = vld [vmem:[%s1082 + $0x100] sm:$0xff]
      %v1116 = vld [vmem:[%s1082 + $0x108] sm:$0xff]
      %v1117 = vld [vmem:[%s1082 + $0x110] sm:$0xff]
      %v1118 = vld [vmem:[%s1082 + $0x118] sm:$0xff]
      %s1119 = scalar_lea.vmem %s1, 4
      %v1120 = vld [vmem:[%s1119] sm:$0xf]
      %v1122 = vsel %vm254, %v1083, 0
      %v1125 = vsel %vm254, %v1084, 0
      %v1128 = vsel %vm254, %v1085, 0
      %v1131 = vsel %vm254, %v1086, 0
      %v1134 = vsel %vm254, %v1087, 0
      %v1137 = vsel %vm254, %v1088, 0
      %v1140 = vsel %vm254, %v1089, 0
      %v1143 = vsel %vm254, %v1090, 0
      %v1146 = vsel %vm254, %v1091, 0
      %v1149 = vsel %vm254, %v1092, 0
      %v1152 = vsel %vm254, %v1093, 0
      %v1155 = vsel %vm254, %v1094, 0
      %v1158 = vsel %vm254, %v1095, 0
      %v1161 = vsel %vm254, %v1096, 0
      %v1164 = vsel %vm254, %v1097, 0
      %v1167 = vsel %vm254, %v1098, 0
      %v1170 = vsel %vm254, %v1099, 0
      %v1173 = vsel %vm254, %v1100, 0
      %v1176 = vsel %vm254, %v1101, 0
      %v1179 = vsel %vm254, %v1102, 0
      %v1182 = vsel %vm254, %v1103, 0
      %v1185 = vsel %vm254, %v1104, 0
      %v1188 = vsel %vm254, %v1105, 0
      %v1191 = vsel %vm254, %v1106, 0
      %v1194 = vsel %vm254, %v1107, 0
      %v1197 = vsel %vm254, %v1108, 0
      %v1200 = vsel %vm254, %v1109, 0
      %v1203 = vsel %vm254, %v1110, 0
      %v1206 = vsel %vm254, %v1111, 0
      %v1209 = vsel %vm254, %v1112, 0
      %v1212 = vsel %vm254, %v1113, 0
      %v1215 = vsel %vm254, %v1114, 0
      %v1218 = vsel %vm351, %v1120, 0
      %1220 = vmatprep.subr.mxu0 0.0
      %1221 = vmatpush1.msra.mxu0 0.0
      %1222 = vmatprep.subr.mxu0 0.0
      %1223 = vmatpush1.msra.mxu0 0.0
      %1224 = vmatprep.subr.mxu0 0.0
      %1225 = vmatpush1.msra.mxu0 0.0
      %1226 = vmatprep.subr.mxu0 0.0
      %1227 = vmatpush1.msra.mxu0 0.0
      %1228 = vmatprep.subr.mxu0 0.0
      %1229 = vmatpush1.msra.mxu0 0.0
      %1230 = vmatprep.subr.mxu0 0.0
      %1231 = vmatpush1.msra.mxu0 0.0
      %1232 = vmatprep.subr.mxu0 0.0
      %1233 = vmatpush1.msra.mxu0 0.0
      %1234 = vmatprep.subr.mxu0 0.0
      %1235 = vmatpush1.msra.mxu0 0.0
      %1236 = vmatprep.subr.mxu0 0.0
      %1237 = vmatpush1.msra.mxu0 0.0
      %1238 = vmatprep.subr.mxu0 0.0
      %1239 = vmatpush1.msra.mxu0 0.0
      %1240 = vmatprep.subr.mxu0 0.0
      %1241 = vmatpush1.msra.mxu0 0.0
      %1242 = vmatprep.subr.mxu0 0.0
      %1243 = vmatpush1.msra.mxu0 0.0
      %1244 = vmatprep.subr.mxu0 0.0
      %1245 = vmatpush1.msra.mxu0 0.0
      %1246 = vmatprep.subr.mxu0 0.0
      %1247 = vmatpush1.msra.mxu0 0.0
      %1248 = vmatprep.subr.mxu0 0.0
      %1249 = vmatpush1.msra.mxu0 0.0
      %1250 = vmatprep.subr.mxu0 0.0
      %1251 = vmatpush1.msra.mxu0 %v1218
      %1252 = vmatprep.subr.mxu0 0.0
      %1253 = vmatpush2.msra.mxu0 0.0
      %1254 = vmatprep.subr.mxu0 0.0
      %1255 = vmatpush2.msra.mxu0 0.0
      %1256 = vmatprep.subr.mxu0 0.0
      %1257 = vmatpush2.msra.mxu0 0.0
      %1258 = vmatprep.subr.mxu0 0.0
      %1259 = vmatpush2.msra.mxu0 0.0
      %1260 = vmatprep.subr.mxu0 0.0
      %1261 = vmatpush2.msra.mxu0 0.0
      %1262 = vmatprep.subr.mxu0 0.0
      %1263 = vmatpush2.msra.mxu0 0.0
      %1264 = vmatprep.subr.mxu0 0.0
      %1265 = vmatpush2.msra.mxu0 0.0
      %1266 = vmatprep.subr.mxu0 0.0
      %1267 = vmatpush2.msra.mxu0 0.0
      %1268 = vmatprep.subr.mxu0 0.0
      %1269 = vmatpush2.msra.mxu0 0.0
      %1270 = vmatprep.subr.mxu0 0.0
      %1271 = vmatpush2.msra.mxu0 0.0
      %1272 = vmatprep.subr.mxu0 0.0
      %1273 = vmatpush2.msra.mxu0 0.0
      %1274 = vmatprep.subr.mxu0 0.0
      %1275 = vmatpush2.msra.mxu0 0.0
      %1276 = vmatprep.subr.mxu0 0.0
      %1277 = vmatpush2.msra.mxu0 0.0
      %1278 = vmatprep.subr.mxu0 0.0
      %1279 = vmatpush2.msra.mxu0 0.0
      %1280 = vmatprep.subr.mxu0 0.0
      %1281 = vmatpush2.msra.mxu0 0.0
      %1282 = vmatprep.subr.mxu0 0.0
      %1283 = vmatpush2.msra.mxu0 0.0
      %1284 = vmatprep.mubr.f32.mxu0 0.0
      %1285 = vmatmul.mubr.f32.gmra.mxu0 %v1122
      %v1286 = vpop.f32.mrf.mxu0
      %v1287 = vadd.f32 0.0, %v1286
      %v1288 = vpop.f32.mrf.mxu0
      %1289 = vmatprep.mubr.f32.mxu0 0.0
      %1290 = vmatmul.mubr.f32.gmra.mxu0 %v1125
      %v1291 = vpop.f32.mrf.mxu0
      %v1292 = vadd.f32 0.0, %v1291
      %v1293 = vpop.f32.mrf.mxu0
      %1294 = vmatprep.mubr.f32.mxu0 0.0
      %1295 = vmatmul.mubr.f32.gmra.mxu0 %v1128
      %v1296 = vpop.f32.mrf.mxu0
      %v1297 = vadd.f32 0.0, %v1296
      %v1298 = vpop.f32.mrf.mxu0
      %1299 = vmatprep.mubr.f32.mxu0 0.0
      %1300 = vmatmul.mubr.f32.gmra.mxu0 %v1131
      %v1301 = vpop.f32.mrf.mxu0
      %v1302 = vadd.f32 0.0, %v1301
      %v1303 = vpop.f32.mrf.mxu0
      %1304 = vmatprep.mubr.f32.mxu0 0.0
      %1305 = vmatmul.mubr.f32.gmra.mxu0 %v1134
      %v1306 = vpop.f32.mrf.mxu0
      %v1307 = vadd.f32 0.0, %v1306
      %v1308 = vpop.f32.mrf.mxu0
      %1309 = vmatprep.mubr.f32.mxu0 0.0
      %1310 = vmatmul.mubr.f32.gmra.mxu0 %v1137
      %v1311 = vpop.f32.mrf.mxu0
      %v1312 = vadd.f32 0.0, %v1311
      %v1313 = vpop.f32.mrf.mxu0
      %1314 = vmatprep.mubr.f32.mxu0 0.0
      %1315 = vmatmul.mubr.f32.gmra.mxu0 %v1140
      %v1316 = vpop.f32.mrf.mxu0
      %v1317 = vadd.f32 0.0, %v1316
      %v1318 = vpop.f32.mrf.mxu0
      %1319 = vmatprep.mubr.f32.mxu0 0.0
      %1320 = vmatmul.mubr.f32.gmra.mxu0 %v1143
      %v1321 = vpop.f32.mrf.mxu0
      %v1322 = vadd.f32 0.0, %v1321
      %v1323 = vpop.f32.mrf.mxu0
      %1324 = vmatprep.mubr.f32.mxu0 0.0
      %1325 = vmatmul.mubr.f32.gmra.mxu0 %v1146
      %v1326 = vpop.f32.mrf.mxu0
      %v1327 = vadd.f32 0.0, %v1326
      %v1328 = vpop.f32.mrf.mxu0
      %1329 = vmatprep.mubr.f32.mxu0 0.0
      %1330 = vmatmul.mubr.f32.gmra.mxu0 %v1149
      %v1331 = vpop.f32.mrf.mxu0
      %v1332 = vadd.f32 0.0, %v1331
      %v1333 = vpop.f32.mrf.mxu0
      %1334 = vmatprep.mubr.f32.mxu0 0.0
      %1335 = vmatmul.mubr.f32.gmra.mxu0 %v1152
      %v1336 = vpop.f32.mrf.mxu0
      %v1337 = vadd.f32 0.0, %v1336
      %v1338 = vpop.f32.mrf.mxu0
      %1339 = vmatprep.mubr.f32.mxu0 0.0
      %1340 = vmatmul.mubr.f32.gmra.mxu0 %v1155
      %v1341 = vpop.f32.mrf.mxu0
      %v1342 = vadd.f32 0.0, %v1341
      %v1343 = vpop.f32.mrf.mxu0
      %1344 = vmatprep.mubr.f32.mxu0 0.0
      %1345 = vmatmul.mubr.f32.gmra.mxu0 %v1158
      %v1346 = vpop.f32.mrf.mxu0
      %v1347 = vadd.f32 0.0, %v1346
      %v1348 = vpop.f32.mrf.mxu0
      %1349 = vmatprep.mubr.f32.mxu0 0.0
      %1350 = vmatmul.mubr.f32.gmra.mxu0 %v1161
      %v1351 = vpop.f32.mrf.mxu0
      %v1352 = vadd.f32 0.0, %v1351
      %v1353 = vpop.f32.mrf.mxu0
      %1354 = vmatprep.mubr.f32.mxu0 0.0
      %1355 = vmatmul.mubr.f32.gmra.mxu0 %v1164
      %v1356 = vpop.f32.mrf.mxu0
      %v1357 = vadd.f32 0.0, %v1356
      %v1358 = vpop.f32.mrf.mxu0
      %1359 = vmatprep.mubr.f32.mxu0 0.0
      %1360 = vmatmul.mubr.f32.gmra.mxu0 %v1167
      %v1361 = vpop.f32.mrf.mxu0
      %v1362 = vadd.f32 0.0, %v1361
      %v1363 = vpop.f32.mrf.mxu0
      %1364 = vmatprep.mubr.f32.mxu0 0.0
      %1365 = vmatmul.mubr.f32.gmra.mxu0 %v1170
      %v1366 = vpop.f32.mrf.mxu0
      %v1367 = vadd.f32 0.0, %v1366
      %v1368 = vpop.f32.mrf.mxu0
      %1369 = vmatprep.mubr.f32.mxu0 0.0
      %1370 = vmatmul.mubr.f32.gmra.mxu0 %v1173
      %v1371 = vpop.f32.mrf.mxu0
      %v1372 = vadd.f32 0.0, %v1371
      %v1373 = vpop.f32.mrf.mxu0
      %1374 = vmatprep.mubr.f32.mxu0 0.0
      %1375 = vmatmul.mubr.f32.gmra.mxu0 %v1176
      %v1376 = vpop.f32.mrf.mxu0
      %v1377 = vadd.f32 0.0, %v1376
      %v1378 = vpop.f32.mrf.mxu0
      %1379 = vmatprep.mubr.f32.mxu0 0.0
      %1380 = vmatmul.mubr.f32.gmra.mxu0 %v1179
      %v1381 = vpop.f32.mrf.mxu0
      %v1382 = vadd.f32 0.0, %v1381
      %v1383 = vpop.f32.mrf.mxu0
      %1384 = vmatprep.mubr.f32.mxu0 0.0
      %1385 = vmatmul.mubr.f32.gmra.mxu0 %v1182
      %v1386 = vpop.f32.mrf.mxu0
      %v1387 = vadd.f32 0.0, %v1386
      %v1388 = vpop.f32.mrf.mxu0
      %1389 = vmatprep.mubr.f32.mxu0 0.0
      %1390 = vmatmul.mubr.f32.gmra.mxu0 %v1185
      %v1391 = vpop.f32.mrf.mxu0
      %v1392 = vadd.f32 0.0, %v1391
      %v1393 = vpop.f32.mrf.mxu0
      %1394 = vmatprep.mubr.f32.mxu0 0.0
      %1395 = vmatmul.mubr.f32.gmra.mxu0 %v1188
      %v1396 = vpop.f32.mrf.mxu0
      %v1397 = vadd.f32 0.0, %v1396
      %v1398 = vpop.f32.mrf.mxu0
      %1399 = vmatprep.mubr.f32.mxu0 0.0
      %1400 = vmatmul.mubr.f32.gmra.mxu0 %v1191
      %v1401 = vpop.f32.mrf.mxu0
      %v1402 = vadd.f32 0.0, %v1401
      %v1403 = vpop.f32.mrf.mxu0
      %1404 = vmatprep.mubr.f32.mxu0 0.0
      %1405 = vmatmul.mubr.f32.gmra.mxu0 %v1194
      %v1406 = vpop.f32.mrf.mxu0
      %v1407 = vadd.f32 0.0, %v1406
      %v1408 = vpop.f32.mrf.mxu0
      %1409 = vmatprep.mubr.f32.mxu0 0.0
      %1410 = vmatmul.mubr.f32.gmra.mxu0 %v1197
      %v1411 = vpop.f32.mrf.mxu0
      %v1412 = vadd.f32 0.0, %v1411
      %v1413 = vpop.f32.mrf.mxu0
      %1414 = vmatprep.mubr.f32.mxu0 0.0
      %1415 = vmatmul.mubr.f32.gmra.mxu0 %v1200
      %v1416 = vpop.f32.mrf.mxu0
      %v1417 = vadd.f32 0.0, %v1416
      %v1418 = vpop.f32.mrf.mxu0
      %1419 = vmatprep.mubr.f32.mxu0 0.0
      %1420 = vmatmul.mubr.f32.gmra.mxu0 %v1203
      %v1421 = vpop.f32.mrf.mxu0
      %v1422 = vadd.f32 0.0, %v1421
      %v1423 = vpop.f32.mrf.mxu0
      %1424 = vmatprep.mubr.f32.mxu0 0.0
      %1425 = vmatmul.mubr.f32.gmra.mxu0 %v1206
      %v1426 = vpop.f32.mrf.mxu0
      %v1427 = vadd.f32 0.0, %v1426
      %v1428 = vpop.f32.mrf.mxu0
      %1429 = vmatprep.mubr.f32.mxu0 0.0
      %1430 = vmatmul.mubr.f32.gmra.mxu0 %v1209
      %v1431 = vpop.f32.mrf.mxu0
      %v1432 = vadd.f32 0.0, %v1431
      %v1433 = vpop.f32.mrf.mxu0
      %1434 = vmatprep.mubr.f32.mxu0 0.0
      %1435 = vmatmul.mubr.f32.gmra.mxu0 %v1212
      %v1436 = vpop.f32.mrf.mxu0
      %v1437 = vadd.f32 0.0, %v1436
      %v1438 = vpop.f32.mrf.mxu0
      %1439 = vmatprep.mubr.f32.mxu0 0.0
      %1440 = vmatmul.mubr.f32.gmra.mxu0 %v1215
      %v1441 = vpop.f32.mrf.mxu0
      %v1442 = vadd.f32 0.0, %v1441
      %v1443 = vpop.f32.mrf.mxu0
      %1444 = vdwg.mxu0
      %v1445 = vadd.f32 %v1050, %v1287
      %v1446 = vadd.f32 %v1051, %v1292
      %v1447 = vadd.f32 %v1052, %v1297
      %v1448 = vadd.f32 %v1053, %v1302
      %v1449 = vadd.f32 %v1054, %v1307
      %v1450 = vadd.f32 %v1055, %v1312
      %v1451 = vadd.f32 %v1056, %v1317
      %v1452 = vadd.f32 %v1057, %v1322
      %v1453 = vadd.f32 %v1058, %v1327
      %v1454 = vadd.f32 %v1059, %v1332
      %v1455 = vadd.f32 %v1060, %v1337
      %v1456 = vadd.f32 %v1061, %v1342
      %v1457 = vadd.f32 %v1062, %v1347
      %v1458 = vadd.f32 %v1063, %v1352
      %v1459 = vadd.f32 %v1064, %v1357
      %v1460 = vadd.f32 %v1065, %v1362
      %v1461 = vadd.f32 %v1066, %v1367
      %v1462 = vadd.f32 %v1067, %v1372
      %v1463 = vadd.f32 %v1068, %v1377
      %v1464 = vadd.f32 %v1069, %v1382
      %v1465 = vadd.f32 %v1070, %v1387
      %v1466 = vadd.f32 %v1071, %v1392
      %v1467 = vadd.f32 %v1072, %v1397
      %v1468 = vadd.f32 %v1073, %v1402
      %v1469 = vadd.f32 %v1074, %v1407
      %v1470 = vadd.f32 %v1075, %v1412
      %v1471 = vadd.f32 %v1076, %v1417
      %v1472 = vadd.f32 %v1077, %v1422
      %v1473 = vadd.f32 %v1078, %v1427
      %v1474 = vadd.f32 %v1079, %v1432
      %v1475 = vadd.f32 %v1080, %v1437
      %v1476 = vadd.f32 %v1081, %v1442
      %s1477 = scalar_lea.vmem %s1, 16
      %v1478 = vld [vmem:[%s1477] sm:$0xf]
      %v1480 = vsel %vm254, %v1115, 0
      %v1483 = vsel %vm254, %v1116, 0
      %v1486 = vsel %vm351, %v1478, 0
      %1488 = vmatprep.subr.mxu0 0.0
      %1489 = vmatpush1.msra.mxu0 0.0
      %1490 = vmatprep.subr.mxu0 0.0
      %1491 = vmatpush1.msra.mxu0 0.0
      %1492 = vmatprep.subr.mxu0 0.0
      %1493 = vmatpush1.msra.mxu0 0.0
      %1494 = vmatprep.subr.mxu0 0.0
      %1495 = vmatpush1.msra.mxu0 0.0
      %1496 = vmatprep.subr.mxu0 0.0
      %1497 = vmatpush1.msra.mxu0 0.0
      %1498 = vmatprep.subr.mxu0 0.0
      %1499 = vmatpush1.msra.mxu0 0.0
      %1500 = vmatprep.subr.mxu0 0.0
      %1501 = vmatpush1.msra.mxu0 0.0
      %1502 = vmatprep.subr.mxu0 0.0
      %1503 = vmatpush1.msra.mxu0 0.0
      %1504 = vmatprep.subr.mxu0 0.0
      %1505 = vmatpush1.msra.mxu0 0.0
      %1506 = vmatprep.subr.mxu0 0.0
      %1507 = vmatpush1.msra.mxu0 0.0
      %1508 = vmatprep.subr.mxu0 0.0
      %1509 = vmatpush1.msra.mxu0 0.0
      %1510 = vmatprep.subr.mxu0 0.0
      %1511 = vmatpush1.msra.mxu0 0.0
      %1512 = vmatprep.subr.mxu0 0.0
      %1513 = vmatpush1.msra.mxu0 0.0
      %1514 = vmatprep.subr.mxu0 0.0
      %1515 = vmatpush1.msra.mxu0 0.0
      %1516 = vmatprep.subr.mxu0 0.0
      %1517 = vmatpush1.msra.mxu0 0.0
      %1518 = vmatprep.subr.mxu0 0.0
      %1519 = vmatpush1.msra.mxu0 %v1486
      %1520 = vmatprep.subr.mxu0 0.0
      %1521 = vmatpush2.msra.mxu0 0.0
      %1522 = vmatprep.subr.mxu0 0.0
      %1523 = vmatpush2.msra.mxu0 0.0
      %1524 = vmatprep.subr.mxu0 0.0
      %1525 = vmatpush2.msra.mxu0 0.0
      %1526 = vmatprep.subr.mxu0 0.0
      %1527 = vmatpush2.msra.mxu0 0.0
      %1528 = vmatprep.subr.mxu0 0.0
      %1529 = vmatpush2.msra.mxu0 0.0
      %1530 = vmatprep.subr.mxu0 0.0
      %1531 = vmatpush2.msra.mxu0 0.0
      %1532 = vmatprep.subr.mxu0 0.0
      %1533 = vmatpush2.msra.mxu0 0.0
      %1534 = vmatprep.subr.mxu0 0.0
      %1535 = vmatpush2.msra.mxu0 0.0
      %1536 = vmatprep.subr.mxu0 0.0
      %1537 = vmatpush2.msra.mxu0 0.0
      %1538 = vmatprep.subr.mxu0 0.0
      %1539 = vmatpush2.msra.mxu0 0.0
      %1540 = vmatprep.subr.mxu0 0.0
      %1541 = vmatpush2.msra.mxu0 0.0
      %1542 = vmatprep.subr.mxu0 0.0
      %1543 = vmatpush2.msra.mxu0 0.0
      %1544 = vmatprep.subr.mxu0 0.0
      %1545 = vmatpush2.msra.mxu0 0.0
      %1546 = vmatprep.subr.mxu0 0.0
      %1547 = vmatpush2.msra.mxu0 0.0
      %1548 = vmatprep.subr.mxu0 0.0
      %1549 = vmatpush2.msra.mxu0 0.0
      %1550 = vmatprep.subr.mxu0 0.0
      %1551 = vmatpush2.msra.mxu0 0.0
      %1552 = vmatprep.mubr.f32.mxu0 0.0
      %1553 = vmatmul.mubr.f32.gmra.mxu0 %v1128
      %v1554 = vpop.f32.mrf.mxu0
      %v1555 = vadd.f32 0.0, %v1554
      %v1556 = vpop.f32.mrf.mxu0
      %1557 = vmatprep.mubr.f32.mxu0 0.0
      %1558 = vmatmul.mubr.f32.gmra.mxu0 %v1131
      %v1559 = vpop.f32.mrf.mxu0
      %v1560 = vadd.f32 0.0, %v1559
      %v1561 = vpop.f32.mrf.mxu0
      %1562 = vmatprep.mubr.f32.mxu0 0.0
      %1563 = vmatmul.mubr.f32.gmra.mxu0 %v1134
      %v1564 = vpop.f32.mrf.mxu0
      %v1565 = vadd.f32 0.0, %v1564
      %v1566 = vpop.f32.mrf.mxu0
      %1567 = vmatprep.mubr.f32.mxu0 0.0
      %1568 = vmatmul.mubr.f32.gmra.mxu0 %v1137
      %v1569 = vpop.f32.mrf.mxu0
      %v1570 = vadd.f32 0.0, %v1569
      %v1571 = vpop.f32.mrf.mxu0
      %1572 = vmatprep.mubr.f32.mxu0 0.0
      %1573 = vmatmul.mubr.f32.gmra.mxu0 %v1140
      %v1574 = vpop.f32.mrf.mxu0
      %v1575 = vadd.f32 0.0, %v1574
      %v1576 = vpop.f32.mrf.mxu0
      %1577 = vmatprep.mubr.f32.mxu0 0.0
      %1578 = vmatmul.mubr.f32.gmra.mxu0 %v1143
      %v1579 = vpop.f32.mrf.mxu0
      %v1580 = vadd.f32 0.0, %v1579
      %v1581 = vpop.f32.mrf.mxu0
      %1582 = vmatprep.mubr.f32.mxu0 0.0
      %1583 = vmatmul.mubr.f32.gmra.mxu0 %v1146
      %v1584 = vpop.f32.mrf.mxu0
      %v1585 = vadd.f32 0.0, %v1584
      %v1586 = vpop.f32.mrf.mxu0
      %1587 = vmatprep.mubr.f32.mxu0 0.0
      %1588 = vmatmul.mubr.f32.gmra.mxu0 %v1149
      %v1589 = vpop.f32.mrf.mxu0
      %v1590 = vadd.f32 0.0, %v1589
      %v1591 = vpop.f32.mrf.mxu0
      %1592 = vmatprep.mubr.f32.mxu0 0.0
      %1593 = vmatmul.mubr.f32.gmra.mxu0 %v1152
      %v1594 = vpop.f32.mrf.mxu0
      %v1595 = vadd.f32 0.0, %v1594
      %v1596 = vpop.f32.mrf.mxu0
      %1597 = vmatprep.mubr.f32.mxu0 0.0
      %1598 = vmatmul.mubr.f32.gmra.mxu0 %v1155
      %v1599 = vpop.f32.mrf.mxu0
      %v1600 = vadd.f32 0.0, %v1599
      %v1601 = vpop.f32.mrf.mxu0
      %1602 = vmatprep.mubr.f32.mxu0 0.0
      %1603 = vmatmul.mubr.f32.gmra.mxu0 %v1158
      %v1604 = vpop.f32.mrf.mxu0
      %v1605 = vadd.f32 0.0, %v1604
      %v1606 = vpop.f32.mrf.mxu0
      %1607 = vmatprep.mubr.f32.mxu0 0.0
      %1608 = vmatmul.mubr.f32.gmra.mxu0 %v1161
      %v1609 = vpop.f32.mrf.mxu0
      %v1610 = vadd.f32 0.0, %v1609
      %v1611 = vpop.f32.mrf.mxu0
      %1612 = vmatprep.mubr.f32.mxu0 0.0
      %1613 = vmatmul.mubr.f32.gmra.mxu0 %v1164
      %v1614 = vpop.f32.mrf.mxu0
      %v1615 = vadd.f32 0.0, %v1614
      %v1616 = vpop.f32.mrf.mxu0
      %1617 = vmatprep.mubr.f32.mxu0 0.0
      %1618 = vmatmul.mubr.f32.gmra.mxu0 %v1167
      %v1619 = vpop.f32.mrf.mxu0
      %v1620 = vadd.f32 0.0, %v1619
      %v1621 = vpop.f32.mrf.mxu0
      %1622 = vmatprep.mubr.f32.mxu0 0.0
      %1623 = vmatmul.mubr.f32.gmra.mxu0 %v1170
      %v1624 = vpop.f32.mrf.mxu0
      %v1625 = vadd.f32 0.0, %v1624
      %v1626 = vpop.f32.mrf.mxu0
      %1627 = vmatprep.mubr.f32.mxu0 0.0
      %1628 = vmatmul.mubr.f32.gmra.mxu0 %v1173
      %v1629 = vpop.f32.mrf.mxu0
      %v1630 = vadd.f32 0.0, %v1629
      %v1631 = vpop.f32.mrf.mxu0
      %1632 = vmatprep.mubr.f32.mxu0 0.0
      %1633 = vmatmul.mubr.f32.gmra.mxu0 %v1176
      %v1634 = vpop.f32.mrf.mxu0
      %v1635 = vadd.f32 0.0, %v1634
      %v1636 = vpop.f32.mrf.mxu0
      %1637 = vmatprep.mubr.f32.mxu0 0.0
      %1638 = vmatmul.mubr.f32.gmra.mxu0 %v1179
      %v1639 = vpop.f32.mrf.mxu0
      %v1640 = vadd.f32 0.0, %v1639
      %v1641 = vpop.f32.mrf.mxu0
      %1642 = vmatprep.mubr.f32.mxu0 0.0
      %1643 = vmatmul.mubr.f32.gmra.mxu0 %v1182
      %v1644 = vpop.f32.mrf.mxu0
      %v1645 = vadd.f32 0.0, %v1644
      %v1646 = vpop.f32.mrf.mxu0
      %1647 = vmatprep.mubr.f32.mxu0 0.0
      %1648 = vmatmul.mubr.f32.gmra.mxu0 %v1185
      %v1649 = vpop.f32.mrf.mxu0
      %v1650 = vadd.f32 0.0, %v1649
      %v1651 = vpop.f32.mrf.mxu0
      %1652 = vmatprep.mubr.f32.mxu0 0.0
      %1653 = vmatmul.mubr.f32.gmra.mxu0 %v1188
      %v1654 = vpop.f32.mrf.mxu0
      %v1655 = vadd.f32 0.0, %v1654
      %v1656 = vpop.f32.mrf.mxu0
      %1657 = vmatprep.mubr.f32.mxu0 0.0
      %1658 = vmatmul.mubr.f32.gmra.mxu0 %v1191
      %v1659 = vpop.f32.mrf.mxu0
      %v1660 = vadd.f32 0.0, %v1659
      %v1661 = vpop.f32.mrf.mxu0
      %1662 = vmatprep.mubr.f32.mxu0 0.0
      %1663 = vmatmul.mubr.f32.gmra.mxu0 %v1194
      %v1664 = vpop.f32.mrf.mxu0
      %v1665 = vadd.f32 0.0, %v1664
      %v1666 = vpop.f32.mrf.mxu0
      %1667 = vmatprep.mubr.f32.mxu0 0.0
      %1668 = vmatmul.mubr.f32.gmra.mxu0 %v1197
      %v1669 = vpop.f32.mrf.mxu0
      %v1670 = vadd.f32 0.0, %v1669
      %v1671 = vpop.f32.mrf.mxu0
      %1672 = vmatprep.mubr.f32.mxu0 0.0
      %1673 = vmatmul.mubr.f32.gmra.mxu0 %v1200
      %v1674 = vpop.f32.mrf.mxu0
      %v1675 = vadd.f32 0.0, %v1674
      %v1676 = vpop.f32.mrf.mxu0
      %1677 = vmatprep.mubr.f32.mxu0 0.0
      %1678 = vmatmul.mubr.f32.gmra.mxu0 %v1203
      %v1679 = vpop.f32.mrf.mxu0
      %v1680 = vadd.f32 0.0, %v1679
      %v1681 = vpop.f32.mrf.mxu0
      %1682 = vmatprep.mubr.f32.mxu0 0.0
      %1683 = vmatmul.mubr.f32.gmra.mxu0 %v1206
      %v1684 = vpop.f32.mrf.mxu0
      %v1685 = vadd.f32 0.0, %v1684
      %v1686 = vpop.f32.mrf.mxu0
      %1687 = vmatprep.mubr.f32.mxu0 0.0
      %1688 = vmatmul.mubr.f32.gmra.mxu0 %v1209
      %v1689 = vpop.f32.mrf.mxu0
      %v1690 = vadd.f32 0.0, %v1689
      %v1691 = vpop.f32.mrf.mxu0
      %1692 = vmatprep.mubr.f32.mxu0 0.0
      %1693 = vmatmul.mubr.f32.gmra.mxu0 %v1212
      %v1694 = vpop.f32.mrf.mxu0
      %v1695 = vadd.f32 0.0, %v1694
      %v1696 = vpop.f32.mrf.mxu0
      %1697 = vmatprep.mubr.f32.mxu0 0.0
      %1698 = vmatmul.mubr.f32.gmra.mxu0 %v1215
      %v1699 = vpop.f32.mrf.mxu0
      %v1700 = vadd.f32 0.0, %v1699
      %v1701 = vpop.f32.mrf.mxu0
      %1702 = vmatprep.mubr.f32.mxu0 0.0
      %1703 = vmatmul.mubr.f32.gmra.mxu0 %v1480
      %v1704 = vpop.f32.mrf.mxu0
      %v1705 = vadd.f32 0.0, %v1704
      %v1706 = vpop.f32.mrf.mxu0
      %1707 = vmatprep.mubr.f32.mxu0 0.0
      %1708 = vmatmul.mubr.f32.gmra.mxu0 %v1483
      %v1709 = vpop.f32.mrf.mxu0
      %v1710 = vadd.f32 0.0, %v1709
      %v1711 = vpop.f32.mrf.mxu0
      %1712 = vdwg.mxu0
      %v1713 = vadd.f32 %v1445, %v1555
      %v1714 = vadd.f32 %v1446, %v1560
      %v1715 = vadd.f32 %v1447, %v1565
      %v1716 = vadd.f32 %v1448, %v1570
      %v1717 = vadd.f32 %v1449, %v1575
      %v1718 = vadd.f32 %v1450, %v1580
      %v1719 = vadd.f32 %v1451, %v1585
      %v1720 = vadd.f32 %v1452, %v1590
      %v1721 = vadd.f32 %v1453, %v1595
      %v1722 = vadd.f32 %v1454, %v1600
      %v1723 = vadd.f32 %v1455, %v1605
      %v1724 = vadd.f32 %v1456, %v1610
      %v1725 = vadd.f32 %v1457, %v1615
      %v1726 = vadd.f32 %v1458, %v1620
      %v1727 = vadd.f32 %v1459, %v1625
      %v1728 = vadd.f32 %v1460, %v1630
      %v1729 = vadd.f32 %v1461, %v1635
      %v1730 = vadd.f32 %v1462, %v1640
      %v1731 = vadd.f32 %v1463, %v1645
      %v1732 = vadd.f32 %v1464, %v1650
      %v1733 = vadd.f32 %v1465, %v1655
      %v1734 = vadd.f32 %v1466, %v1660
      %v1735 = vadd.f32 %v1467, %v1665
      %v1736 = vadd.f32 %v1468, %v1670
      %v1737 = vadd.f32 %v1469, %v1675
      %v1738 = vadd.f32 %v1470, %v1680
      %v1739 = vadd.f32 %v1471, %v1685
      %v1740 = vadd.f32 %v1472, %v1690
      %v1741 = vadd.f32 %v1473, %v1695
      %v1742 = vadd.f32 %v1474, %v1700
      %v1743 = vadd.f32 %v1475, %v1705
      %v1744 = vadd.f32 %v1476, %v1710
      %s1745 = scalar_lea.vmem %s1, 28
      %v1746 = vld [vmem:[%s1745] sm:$0xf]
      %v1748 = vsel %vm254, %v1117, 0
      %v1751 = vsel %vm254, %v1118, 0
      %v1754 = vsel %vm351, %v1746, 0
      %1756 = vmatprep.subr.mxu0 0.0
      %1757 = vmatpush1.msra.mxu0 0.0
      %1758 = vmatprep.subr.mxu0 0.0
      %1759 = vmatpush1.msra.mxu0 0.0
      %1760 = vmatprep.subr.mxu0 0.0
      %1761 = vmatpush1.msra.mxu0 0.0
      %1762 = vmatprep.subr.mxu0 0.0
      %1763 = vmatpush1.msra.mxu0 0.0
      %1764 = vmatprep.subr.mxu0 0.0
      %1765 = vmatpush1.msra.mxu0 0.0
      %1766 = vmatprep.subr.mxu0 0.0
      %1767 = vmatpush1.msra.mxu0 0.0
      %1768 = vmatprep.subr.mxu0 0.0
      %1769 = vmatpush1.msra.mxu0 0.0
      %1770 = vmatprep.subr.mxu0 0.0
      %1771 = vmatpush1.msra.mxu0 0.0
      %1772 = vmatprep.subr.mxu0 0.0
      %1773 = vmatpush1.msra.mxu0 0.0
      %1774 = vmatprep.subr.mxu0 0.0
      %1775 = vmatpush1.msra.mxu0 0.0
      %1776 = vmatprep.subr.mxu0 0.0
      %1777 = vmatpush1.msra.mxu0 0.0
      %1778 = vmatprep.subr.mxu0 0.0
      %1779 = vmatpush1.msra.mxu0 0.0
      %1780 = vmatprep.subr.mxu0 0.0
      %1781 = vmatpush1.msra.mxu0 0.0
      %1782 = vmatprep.subr.mxu0 0.0
      %1783 = vmatpush1.msra.mxu0 0.0
      %1784 = vmatprep.subr.mxu0 0.0
      %1785 = vmatpush1.msra.mxu0 0.0
      %1786 = vmatprep.subr.mxu0 0.0
      %1787 = vmatpush1.msra.mxu0 %v1754
      %1788 = vmatprep.subr.mxu0 0.0
      %1789 = vmatpush2.msra.mxu0 0.0
      %1790 = vmatprep.subr.mxu0 0.0
      %1791 = vmatpush2.msra.mxu0 0.0
      %1792 = vmatprep.subr.mxu0 0.0
      %1793 = vmatpush2.msra.mxu0 0.0
      %1794 = vmatprep.subr.mxu0 0.0
      %1795 = vmatpush2.msra.mxu0 0.0
      %1796 = vmatprep.subr.mxu0 0.0
      %1797 = vmatpush2.msra.mxu0 0.0
      %1798 = vmatprep.subr.mxu0 0.0
      %1799 = vmatpush2.msra.mxu0 0.0
      %1800 = vmatprep.subr.mxu0 0.0
      %1801 = vmatpush2.msra.mxu0 0.0
      %1802 = vmatprep.subr.mxu0 0.0
      %1803 = vmatpush2.msra.mxu0 0.0
      %1804 = vmatprep.subr.mxu0 0.0
      %1805 = vmatpush2.msra.mxu0 0.0
      %1806 = vmatprep.subr.mxu0 0.0
      %1807 = vmatpush2.msra.mxu0 0.0
      %1808 = vmatprep.subr.mxu0 0.0
      %1809 = vmatpush2.msra.mxu0 0.0
      %1810 = vmatprep.subr.mxu0 0.0
      %1811 = vmatpush2.msra.mxu0 0.0
      %1812 = vmatprep.subr.mxu0 0.0
      %1813 = vmatpush2.msra.mxu0 0.0
      %1814 = vmatprep.subr.mxu0 0.0
      %1815 = vmatpush2.msra.mxu0 0.0
      %1816 = vmatprep.subr.mxu0 0.0
      %1817 = vmatpush2.msra.mxu0 0.0
      %1818 = vmatprep.subr.mxu0 0.0
      %1819 = vmatpush2.msra.mxu0 0.0
      %1820 = vmatprep.mubr.f32.mxu0 0.0
      %1821 = vmatmul.mubr.f32.gmra.mxu0 %v1134
      %v1822 = vpop.f32.mrf.mxu0
      %v1823 = vadd.f32 0.0, %v1822
      %v1824 = vpop.f32.mrf.mxu0
      %1825 = vmatprep.mubr.f32.mxu0 0.0
      %1826 = vmatmul.mubr.f32.gmra.mxu0 %v1137
      %v1827 = vpop.f32.mrf.mxu0
      %v1828 = vadd.f32 0.0, %v1827
      %v1829 = vpop.f32.mrf.mxu0
      %1830 = vmatprep.mubr.f32.mxu0 0.0
      %1831 = vmatmul.mubr.f32.gmra.mxu0 %v1140
      %v1832 = vpop.f32.mrf.mxu0
      %v1833 = vadd.f32 0.0, %v1832
      %v1834 = vpop.f32.mrf.mxu0
      %1835 = vmatprep.mubr.f32.mxu0 0.0
      %1836 = vmatmul.mubr.f32.gmra.mxu0 %v1143
      %v1837 = vpop.f32.mrf.mxu0
      %v1838 = vadd.f32 0.0, %v1837
      %v1839 = vpop.f32.mrf.mxu0
      %1840 = vmatprep.mubr.f32.mxu0 0.0
      %1841 = vmatmul.mubr.f32.gmra.mxu0 %v1146
      %v1842 = vpop.f32.mrf.mxu0
      %v1843 = vadd.f32 0.0, %v1842
      %v1844 = vpop.f32.mrf.mxu0
      %1845 = vmatprep.mubr.f32.mxu0 0.0
      %1846 = vmatmul.mubr.f32.gmra.mxu0 %v1149
      %v1847 = vpop.f32.mrf.mxu0
      %v1848 = vadd.f32 0.0, %v1847
      %v1849 = vpop.f32.mrf.mxu0
      %1850 = vmatprep.mubr.f32.mxu0 0.0
      %1851 = vmatmul.mubr.f32.gmra.mxu0 %v1152
      %v1852 = vpop.f32.mrf.mxu0
      %v1853 = vadd.f32 0.0, %v1852
      %v1854 = vpop.f32.mrf.mxu0
      %1855 = vmatprep.mubr.f32.mxu0 0.0
      %1856 = vmatmul.mubr.f32.gmra.mxu0 %v1155
      %v1857 = vpop.f32.mrf.mxu0
      %v1858 = vadd.f32 0.0, %v1857
      %v1859 = vpop.f32.mrf.mxu0
      %1860 = vmatprep.mubr.f32.mxu0 0.0
      %1861 = vmatmul.mubr.f32.gmra.mxu0 %v1158
      %v1862 = vpop.f32.mrf.mxu0
      %v1863 = vadd.f32 0.0, %v1862
      %v1864 = vpop.f32.mrf.mxu0
      %1865 = vmatprep.mubr.f32.mxu0 0.0
      %1866 = vmatmul.mubr.f32.gmra.mxu0 %v1161
      %v1867 = vpop.f32.mrf.mxu0
      %v1868 = vadd.f32 0.0, %v1867
      %v1869 = vpop.f32.mrf.mxu0
      %1870 = vmatprep.mubr.f32.mxu0 0.0
      %1871 = vmatmul.mubr.f32.gmra.mxu0 %v1164
      %v1872 = vpop.f32.mrf.mxu0
      %v1873 = vadd.f32 0.0, %v1872
      %v1874 = vpop.f32.mrf.mxu0
      %1875 = vmatprep.mubr.f32.mxu0 0.0
      %1876 = vmatmul.mubr.f32.gmra.mxu0 %v1167
      %v1877 = vpop.f32.mrf.mxu0
      %v1878 = vadd.f32 0.0, %v1877
      %v1879 = vpop.f32.mrf.mxu0
      %1880 = vmatprep.mubr.f32.mxu0 0.0
      %1881 = vmatmul.mubr.f32.gmra.mxu0 %v1170
      %v1882 = vpop.f32.mrf.mxu0
      %v1883 = vadd.f32 0.0, %v1882
      %v1884 = vpop.f32.mrf.mxu0
      %1885 = vmatprep.mubr.f32.mxu0 0.0
      %1886 = vmatmul.mubr.f32.gmra.mxu0 %v1173
      %v1887 = vpop.f32.mrf.mxu0
      %v1888 = vadd.f32 0.0, %v1887
      %v1889 = vpop.f32.mrf.mxu0
      %1890 = vmatprep.mubr.f32.mxu0 0.0
      %1891 = vmatmul.mubr.f32.gmra.mxu0 %v1176
      %v1892 = vpop.f32.mrf.mxu0
      %v1893 = vadd.f32 0.0, %v1892
      %v1894 = vpop.f32.mrf.mxu0
      %1895 = vmatprep.mubr.f32.mxu0 0.0
      %1896 = vmatmul.mubr.f32.gmra.mxu0 %v1179
      %v1897 = vpop.f32.mrf.mxu0
      %v1898 = vadd.f32 0.0, %v1897
      %v1899 = vpop.f32.mrf.mxu0
      %1900 = vmatprep.mubr.f32.mxu0 0.0
      %1901 = vmatmul.mubr.f32.gmra.mxu0 %v1182
      %v1902 = vpop.f32.mrf.mxu0
      %v1903 = vadd.f32 0.0, %v1902
      %v1904 = vpop.f32.mrf.mxu0
      %1905 = vmatprep.mubr.f32.mxu0 0.0
      %1906 = vmatmul.mubr.f32.gmra.mxu0 %v1185
      %v1907 = vpop.f32.mrf.mxu0
      %v1908 = vadd.f32 0.0, %v1907
      %v1909 = vpop.f32.mrf.mxu0
      %1910 = vmatprep.mubr.f32.mxu0 0.0
      %1911 = vmatmul.mubr.f32.gmra.mxu0 %v1188
      %v1912 = vpop.f32.mrf.mxu0
      %v1913 = vadd.f32 0.0, %v1912
      %v1914 = vpop.f32.mrf.mxu0
      %1915 = vmatprep.mubr.f32.mxu0 0.0
      %1916 = vmatmul.mubr.f32.gmra.mxu0 %v1191
      %v1917 = vpop.f32.mrf.mxu0
      %v1918 = vadd.f32 0.0, %v1917
      %v1919 = vpop.f32.mrf.mxu0
      %1920 = vmatprep.mubr.f32.mxu0 0.0
      %1921 = vmatmul.mubr.f32.gmra.mxu0 %v1194
      %v1922 = vpop.f32.mrf.mxu0
      %v1923 = vadd.f32 0.0, %v1922
      %v1924 = vpop.f32.mrf.mxu0
      %1925 = vmatprep.mubr.f32.mxu0 0.0
      %1926 = vmatmul.mubr.f32.gmra.mxu0 %v1197
      %v1927 = vpop.f32.mrf.mxu0
      %v1928 = vadd.f32 0.0, %v1927
      %v1929 = vpop.f32.mrf.mxu0
      %1930 = vmatprep.mubr.f32.mxu0 0.0
      %1931 = vmatmul.mubr.f32.gmra.mxu0 %v1200
      %v1932 = vpop.f32.mrf.mxu0
      %v1933 = vadd.f32 0.0, %v1932
      %v1934 = vpop.f32.mrf.mxu0
      %1935 = vmatprep.mubr.f32.mxu0 0.0
      %1936 = vmatmul.mubr.f32.gmra.mxu0 %v1203
      %v1937 = vpop.f32.mrf.mxu0
      %v1938 = vadd.f32 0.0, %v1937
      %v1939 = vpop.f32.mrf.mxu0
      %1940 = vmatprep.mubr.f32.mxu0 0.0
      %1941 = vmatmul.mubr.f32.gmra.mxu0 %v1206
      %v1942 = vpop.f32.mrf.mxu0
      %v1943 = vadd.f32 0.0, %v1942
      %v1944 = vpop.f32.mrf.mxu0
      %1945 = vmatprep.mubr.f32.mxu0 0.0
      %1946 = vmatmul.mubr.f32.gmra.mxu0 %v1209
      %v1947 = vpop.f32.mrf.mxu0
      %v1948 = vadd.f32 0.0, %v1947
      %v1949 = vpop.f32.mrf.mxu0
      %1950 = vmatprep.mubr.f32.mxu0 0.0
      %1951 = vmatmul.mubr.f32.gmra.mxu0 %v1212
      %v1952 = vpop.f32.mrf.mxu0
      %v1953 = vadd.f32 0.0, %v1952
      %v1954 = vpop.f32.mrf.mxu0
      %1955 = vmatprep.mubr.f32.mxu0 0.0
      %1956 = vmatmul.mubr.f32.gmra.mxu0 %v1215
      %v1957 = vpop.f32.mrf.mxu0
      %v1958 = vadd.f32 0.0, %v1957
      %v1959 = vpop.f32.mrf.mxu0
      %1960 = vmatprep.mubr.f32.mxu0 0.0
      %1961 = vmatmul.mubr.f32.gmra.mxu0 %v1480
      %v1962 = vpop.f32.mrf.mxu0
      %v1963 = vadd.f32 0.0, %v1962
      %v1964 = vpop.f32.mrf.mxu0
      %1965 = vmatprep.mubr.f32.mxu0 0.0
      %1966 = vmatmul.mubr.f32.gmra.mxu0 %v1483
      %v1967 = vpop.f32.mrf.mxu0
      %v1968 = vadd.f32 0.0, %v1967
      %v1969 = vpop.f32.mrf.mxu0
      %1970 = vmatprep.mubr.f32.mxu0 0.0
      %1971 = vmatmul.mubr.f32.gmra.mxu0 %v1748
      %v1972 = vpop.f32.mrf.mxu0
      %v1973 = vadd.f32 0.0, %v1972
      %v1974 = vpop.f32.mrf.mxu0
      %1975 = vmatprep.mubr.f32.mxu0 0.0
      %1976 = vmatmul.mubr.f32.gmra.mxu0 %v1751
      %v1977 = vpop.f32.mrf.mxu0
      %v1978 = vadd.f32 0.0, %v1977
      %v1979 = vpop.f32.mrf.mxu0
      %1980 = vdwg.mxu0
      %v1981 = vadd.f32 %v1713, %v1823
      %v1982 = vadd.f32 %v1714, %v1828
      %v1983 = vadd.f32 %v1715, %v1833
      %v1984 = vadd.f32 %v1716, %v1838
      %v1985 = vadd.f32 %v1717, %v1843
      %v1986 = vadd.f32 %v1718, %v1848
      %v1987 = vadd.f32 %v1719, %v1853
      %v1988 = vadd.f32 %v1720, %v1858
      %v1989 = vadd.f32 %v1721, %v1863
      %v1990 = vadd.f32 %v1722, %v1868
      %v1991 = vadd.f32 %v1723, %v1873
      %v1992 = vadd.f32 %v1724, %v1878
      %v1993 = vadd.f32 %v1725, %v1883
      %v1994 = vadd.f32 %v1726, %v1888
      %v1995 = vadd.f32 %v1727, %v1893
      %v1996 = vadd.f32 %v1728, %v1898
      %v1997 = vadd.f32 %v1729, %v1903
      %v1998 = vadd.f32 %v1730, %v1908
      %v1999 = vadd.f32 %v1731, %v1913
      %v2000 = vadd.f32 %v1732, %v1918
      %v2001 = vadd.f32 %v1733, %v1923
      %v2002 = vadd.f32 %v1734, %v1928
      %v2003 = vadd.f32 %v1735, %v1933
      %v2004 = vadd.f32 %v1736, %v1938
      %v2005 = vadd.f32 %v1737, %v1943
      %v2006 = vadd.f32 %v1738, %v1948
      %v2007 = vadd.f32 %v1739, %v1953
      %v2008 = vadd.f32 %v1740, %v1958
      %v2009 = vadd.f32 %v1741, %v1963
      %v2010 = vadd.f32 %v1742, %v1968
      %v2011 = vadd.f32 %v1743, %v1973
      %v2012 = vadd.f32 %v1744, %v1978
      %s2013 = scalar_lea.vmem %s203, 576
      %v2014 = vld [vmem:[%s2013] sm:$0xff]
      %v2015 = vld [vmem:[%s2013 + $0x8] sm:$0xff]
      %v2016 = vld [vmem:[%s2013 + $0x10] sm:$0xff]
      %v2017 = vld [vmem:[%s2013 + $0x18] sm:$0xff]
      %v2018 = vld [vmem:[%s2013 + $0x20] sm:$0xff]
      %v2019 = vld [vmem:[%s2013 + $0x28] sm:$0xff]
      %v2020 = vld [vmem:[%s2013 + $0x30] sm:$0xff]
      %v2021 = vld [vmem:[%s2013 + $0x38] sm:$0xff]
      %v2022 = vld [vmem:[%s2013 + $0x40] sm:$0xff]
      %v2023 = vld [vmem:[%s2013 + $0x48] sm:$0xff]
      %v2024 = vld [vmem:[%s2013 + $0x50] sm:$0xff]
      %v2025 = vld [vmem:[%s2013 + $0x58] sm:$0xff]
      %v2026 = vld [vmem:[%s2013 + $0x60] sm:$0xff]
      %v2027 = vld [vmem:[%s2013 + $0x68] sm:$0xff]
      %v2028 = vld [vmem:[%s2013 + $0x70] sm:$0xff]
      %v2029 = vld [vmem:[%s2013 + $0x78] sm:$0xff]
      %v2030 = vld [vmem:[%s2013 + $0x80] sm:$0xff]
      %v2031 = vld [vmem:[%s2013 + $0x88] sm:$0xff]
      %v2032 = vld [vmem:[%s2013 + $0x90] sm:$0xff]
      %v2033 = vld [vmem:[%s2013 + $0x98] sm:$0xff]
      %v2034 = vld [vmem:[%s2013 + $0xa0] sm:$0xff]
      %v2035 = vld [vmem:[%s2013 + $0xa8] sm:$0xff]
      %v2036 = vld [vmem:[%s2013 + $0xb0] sm:$0xff]
      %v2037 = vld [vmem:[%s2013 + $0xb8] sm:$0xff]
      %v2038 = vld [vmem:[%s2013 + $0xc0] sm:$0xff]
      %v2039 = vld [vmem:[%s2013 + $0xc8] sm:$0xff]
      %v2040 = vld [vmem:[%s2013 + $0xd0] sm:$0xff]
      %v2041 = vld [vmem:[%s2013 + $0xd8] sm:$0xff]
      %v2042 = vld [vmem:[%s2013 + $0xe0] sm:$0xff]
      %v2043 = vld [vmem:[%s2013 + $0xe8] sm:$0xff]
      %v2044 = vld [vmem:[%s2013 + $0xf0] sm:$0xff]
      %v2045 = vld [vmem:[%s2013 + $0xf8] sm:$0xff]
      %v2046 = vld [vmem:[%s2013 + $0x100] sm:$0xff]
      %v2047 = vld [vmem:[%s2013 + $0x108] sm:$0xff]
      %v2048 = vld [vmem:[%s2013 + $0x110] sm:$0xff]
      %v2049 = vld [vmem:[%s2013 + $0x118] sm:$0xff]
      %s2050 = scalar_lea.vmem %s1, 8
      %v2051 = vld [vmem:[%s2050] sm:$0xf]
      %v2053 = vsel %vm254, %v2014, 0
      %v2056 = vsel %vm254, %v2015, 0
      %v2059 = vsel %vm254, %v2016, 0
      %v2062 = vsel %vm254, %v2017, 0
      %v2065 = vsel %vm254, %v2018, 0
      %v2068 = vsel %vm254, %v2019, 0
      %v2071 = vsel %vm254, %v2020, 0
      %v2074 = vsel %vm254, %v2021, 0
      %v2077 = vsel %vm254, %v2022, 0
      %v2080 = vsel %vm254, %v2023, 0
      %v2083 = vsel %vm254, %v2024, 0
      %v2086 = vsel %vm254, %v2025, 0
      %v2089 = vsel %vm254, %v2026, 0
      %v2092 = vsel %vm254, %v2027, 0
      %v2095 = vsel %vm254, %v2028, 0
      %v2098 = vsel %vm254, %v2029, 0
      %v2101 = vsel %vm254, %v2030, 0
      %v2104 = vsel %vm254, %v2031, 0
      %v2107 = vsel %vm254, %v2032, 0
      %v2110 = vsel %vm254, %v2033, 0
      %v2113 = vsel %vm254, %v2034, 0
      %v2116 = vsel %vm254, %v2035, 0
      %v2119 = vsel %vm254, %v2036, 0
      %v2122 = vsel %vm254, %v2037, 0
      %v2125 = vsel %vm254, %v2038, 0
      %v2128 = vsel %vm254, %v2039, 0
      %v2131 = vsel %vm254, %v2040, 0
      %v2134 = vsel %vm254, %v2041, 0
      %v2137 = vsel %vm254, %v2042, 0
      %v2140 = vsel %vm254, %v2043, 0
      %v2143 = vsel %vm254, %v2044, 0
      %v2146 = vsel %vm254, %v2045, 0
      %v2149 = vsel %vm351, %v2051, 0
      %2151 = vmatprep.subr.mxu0 0.0
      %2152 = vmatpush1.msra.mxu0 0.0
      %2153 = vmatprep.subr.mxu0 0.0
      %2154 = vmatpush1.msra.mxu0 0.0
      %2155 = vmatprep.subr.mxu0 0.0
      %2156 = vmatpush1.msra.mxu0 0.0
      %2157 = vmatprep.subr.mxu0 0.0
      %2158 = vmatpush1.msra.mxu0 0.0
      %2159 = vmatprep.subr.mxu0 0.0
      %2160 = vmatpush1.msra.mxu0 0.0
      %2161 = vmatprep.subr.mxu0 0.0
      %2162 = vmatpush1.msra.mxu0 0.0
      %2163 = vmatprep.subr.mxu0 0.0
      %2164 = vmatpush1.msra.mxu0 0.0
      %2165 = vmatprep.subr.mxu0 0.0
      %2166 = vmatpush1.msra.mxu0 0.0
      %2167 = vmatprep.subr.mxu0 0.0
      %2168 = vmatpush1.msra.mxu0 0.0
      %2169 = vmatprep.subr.mxu0 0.0
      %2170 = vmatpush1.msra.mxu0 0.0
      %2171 = vmatprep.subr.mxu0 0.0
      %2172 = vmatpush1.msra.mxu0 0.0
      %2173 = vmatprep.subr.mxu0 0.0
      %2174 = vmatpush1.msra.mxu0 0.0
      %2175 = vmatprep.subr.mxu0 0.0
      %2176 = vmatpush1.msra.mxu0 0.0
      %2177 = vmatprep.subr.mxu0 0.0
      %2178 = vmatpush1.msra.mxu0 0.0
      %2179 = vmatprep.subr.mxu0 0.0
      %2180 = vmatpush1.msra.mxu0 0.0
      %2181 = vmatprep.subr.mxu0 0.0
      %2182 = vmatpush1.msra.mxu0 %v2149
      %2183 = vmatprep.subr.mxu0 0.0
      %2184 = vmatpush2.msra.mxu0 0.0
      %2185 = vmatprep.subr.mxu0 0.0
      %2186 = vmatpush2.msra.mxu0 0.0
      %2187 = vmatprep.subr.mxu0 0.0
      %2188 = vmatpush2.msra.mxu0 0.0
      %2189 = vmatprep.subr.mxu0 0.0
      %2190 = vmatpush2.msra.mxu0 0.0
      %2191 = vmatprep.subr.mxu0 0.0
      %2192 = vmatpush2.msra.mxu0 0.0
      %2193 = vmatprep.subr.mxu0 0.0
      %2194 = vmatpush2.msra.mxu0 0.0
      %2195 = vmatprep.subr.mxu0 0.0
      %2196 = vmatpush2.msra.mxu0 0.0
      %2197 = vmatprep.subr.mxu0 0.0
      %2198 = vmatpush2.msra.mxu0 0.0
      %2199 = vmatprep.subr.mxu0 0.0
      %2200 = vmatpush2.msra.mxu0 0.0
      %2201 = vmatprep.subr.mxu0 0.0
      %2202 = vmatpush2.msra.mxu0 0.0
      %2203 = vmatprep.subr.mxu0 0.0
      %2204 = vmatpush2.msra.mxu0 0.0
      %2205 = vmatprep.subr.mxu0 0.0
      %2206 = vmatpush2.msra.mxu0 0.0
      %2207 = vmatprep.subr.mxu0 0.0
      %2208 = vmatpush2.msra.mxu0 0.0
      %2209 = vmatprep.subr.mxu0 0.0
      %2210 = vmatpush2.msra.mxu0 0.0
      %2211 = vmatprep.subr.mxu0 0.0
      %2212 = vmatpush2.msra.mxu0 0.0
      %2213 = vmatprep.subr.mxu0 0.0
      %2214 = vmatpush2.msra.mxu0 0.0
      %2215 = vmatprep.mubr.f32.mxu0 0.0
      %2216 = vmatmul.mubr.f32.gmra.mxu0 %v2053
      %v2217 = vpop.f32.mrf.mxu0
      %v2218 = vadd.f32 0.0, %v2217
      %v2219 = vpop.f32.mrf.mxu0
      %2220 = vmatprep.mubr.f32.mxu0 0.0
      %2221 = vmatmul.mubr.f32.gmra.mxu0 %v2056
      %v2222 = vpop.f32.mrf.mxu0
      %v2223 = vadd.f32 0.0, %v2222
      %v2224 = vpop.f32.mrf.mxu0
      %2225 = vmatprep.mubr.f32.mxu0 0.0
      %2226 = vmatmul.mubr.f32.gmra.mxu0 %v2059
      %v2227 = vpop.f32.mrf.mxu0
      %v2228 = vadd.f32 0.0, %v2227
      %v2229 = vpop.f32.mrf.mxu0
      %2230 = vmatprep.mubr.f32.mxu0 0.0
      %2231 = vmatmul.mubr.f32.gmra.mxu0 %v2062
      %v2232 = vpop.f32.mrf.mxu0
      %v2233 = vadd.f32 0.0, %v2232
      %v2234 = vpop.f32.mrf.mxu0
      %2235 = vmatprep.mubr.f32.mxu0 0.0
      %2236 = vmatmul.mubr.f32.gmra.mxu0 %v2065
      %v2237 = vpop.f32.mrf.mxu0
      %v2238 = vadd.f32 0.0, %v2237
      %v2239 = vpop.f32.mrf.mxu0
      %2240 = vmatprep.mubr.f32.mxu0 0.0
      %2241 = vmatmul.mubr.f32.gmra.mxu0 %v2068
      %v2242 = vpop.f32.mrf.mxu0
      %v2243 = vadd.f32 0.0, %v2242
      %v2244 = vpop.f32.mrf.mxu0
      %2245 = vmatprep.mubr.f32.mxu0 0.0
      %2246 = vmatmul.mubr.f32.gmra.mxu0 %v2071
      %v2247 = vpop.f32.mrf.mxu0
      %v2248 = vadd.f32 0.0, %v2247
      %v2249 = vpop.f32.mrf.mxu0
      %2250 = vmatprep.mubr.f32.mxu0 0.0
      %2251 = vmatmul.mubr.f32.gmra.mxu0 %v2074
      %v2252 = vpop.f32.mrf.mxu0
      %v2253 = vadd.f32 0.0, %v2252
      %v2254 = vpop.f32.mrf.mxu0
      %2255 = vmatprep.mubr.f32.mxu0 0.0
      %2256 = vmatmul.mubr.f32.gmra.mxu0 %v2077
      %v2257 = vpop.f32.mrf.mxu0
      %v2258 = vadd.f32 0.0, %v2257
      %v2259 = vpop.f32.mrf.mxu0
      %2260 = vmatprep.mubr.f32.mxu0 0.0
      %2261 = vmatmul.mubr.f32.gmra.mxu0 %v2080
      %v2262 = vpop.f32.mrf.mxu0
      %v2263 = vadd.f32 0.0, %v2262
      %v2264 = vpop.f32.mrf.mxu0
      %2265 = vmatprep.mubr.f32.mxu0 0.0
      %2266 = vmatmul.mubr.f32.gmra.mxu0 %v2083
      %v2267 = vpop.f32.mrf.mxu0
      %v2268 = vadd.f32 0.0, %v2267
      %v2269 = vpop.f32.mrf.mxu0
      %2270 = vmatprep.mubr.f32.mxu0 0.0
      %2271 = vmatmul.mubr.f32.gmra.mxu0 %v2086
      %v2272 = vpop.f32.mrf.mxu0
      %v2273 = vadd.f32 0.0, %v2272
      %v2274 = vpop.f32.mrf.mxu0
      %2275 = vmatprep.mubr.f32.mxu0 0.0
      %2276 = vmatmul.mubr.f32.gmra.mxu0 %v2089
      %v2277 = vpop.f32.mrf.mxu0
      %v2278 = vadd.f32 0.0, %v2277
      %v2279 = vpop.f32.mrf.mxu0
      %2280 = vmatprep.mubr.f32.mxu0 0.0
      %2281 = vmatmul.mubr.f32.gmra.mxu0 %v2092
      %v2282 = vpop.f32.mrf.mxu0
      %v2283 = vadd.f32 0.0, %v2282
      %v2284 = vpop.f32.mrf.mxu0
      %2285 = vmatprep.mubr.f32.mxu0 0.0
      %2286 = vmatmul.mubr.f32.gmra.mxu0 %v2095
      %v2287 = vpop.f32.mrf.mxu0
      %v2288 = vadd.f32 0.0, %v2287
      %v2289 = vpop.f32.mrf.mxu0
      %2290 = vmatprep.mubr.f32.mxu0 0.0
      %2291 = vmatmul.mubr.f32.gmra.mxu0 %v2098
      %v2292 = vpop.f32.mrf.mxu0
      %v2293 = vadd.f32 0.0, %v2292
      %v2294 = vpop.f32.mrf.mxu0
      %2295 = vmatprep.mubr.f32.mxu0 0.0
      %2296 = vmatmul.mubr.f32.gmra.mxu0 %v2101
      %v2297 = vpop.f32.mrf.mxu0
      %v2298 = vadd.f32 0.0, %v2297
      %v2299 = vpop.f32.mrf.mxu0
      %2300 = vmatprep.mubr.f32.mxu0 0.0
      %2301 = vmatmul.mubr.f32.gmra.mxu0 %v2104
      %v2302 = vpop.f32.mrf.mxu0
      %v2303 = vadd.f32 0.0, %v2302
      %v2304 = vpop.f32.mrf.mxu0
      %2305 = vmatprep.mubr.f32.mxu0 0.0
      %2306 = vmatmul.mubr.f32.gmra.mxu0 %v2107
      %v2307 = vpop.f32.mrf.mxu0
      %v2308 = vadd.f32 0.0, %v2307
      %v2309 = vpop.f32.mrf.mxu0
      %2310 = vmatprep.mubr.f32.mxu0 0.0
      %2311 = vmatmul.mubr.f32.gmra.mxu0 %v2110
      %v2312 = vpop.f32.mrf.mxu0
      %v2313 = vadd.f32 0.0, %v2312
      %v2314 = vpop.f32.mrf.mxu0
      %2315 = vmatprep.mubr.f32.mxu0 0.0
      %2316 = vmatmul.mubr.f32.gmra.mxu0 %v2113
      %v2317 = vpop.f32.mrf.mxu0
      %v2318 = vadd.f32 0.0, %v2317
      %v2319 = vpop.f32.mrf.mxu0
      %2320 = vmatprep.mubr.f32.mxu0 0.0
      %2321 = vmatmul.mubr.f32.gmra.mxu0 %v2116
      %v2322 = vpop.f32.mrf.mxu0
      %v2323 = vadd.f32 0.0, %v2322
      %v2324 = vpop.f32.mrf.mxu0
      %2325 = vmatprep.mubr.f32.mxu0 0.0
      %2326 = vmatmul.mubr.f32.gmra.mxu0 %v2119
      %v2327 = vpop.f32.mrf.mxu0
      %v2328 = vadd.f32 0.0, %v2327
      %v2329 = vpop.f32.mrf.mxu0
      %2330 = vmatprep.mubr.f32.mxu0 0.0
      %2331 = vmatmul.mubr.f32.gmra.mxu0 %v2122
      %v2332 = vpop.f32.mrf.mxu0
      %v2333 = vadd.f32 0.0, %v2332
      %v2334 = vpop.f32.mrf.mxu0
      %2335 = vmatprep.mubr.f32.mxu0 0.0
      %2336 = vmatmul.mubr.f32.gmra.mxu0 %v2125
      %v2337 = vpop.f32.mrf.mxu0
      %v2338 = vadd.f32 0.0, %v2337
      %v2339 = vpop.f32.mrf.mxu0
      %2340 = vmatprep.mubr.f32.mxu0 0.0
      %2341 = vmatmul.mubr.f32.gmra.mxu0 %v2128
      %v2342 = vpop.f32.mrf.mxu0
      %v2343 = vadd.f32 0.0, %v2342
      %v2344 = vpop.f32.mrf.mxu0
      %2345 = vmatprep.mubr.f32.mxu0 0.0
      %2346 = vmatmul.mubr.f32.gmra.mxu0 %v2131
      %v2347 = vpop.f32.mrf.mxu0
      %v2348 = vadd.f32 0.0, %v2347
      %v2349 = vpop.f32.mrf.mxu0
      %2350 = vmatprep.mubr.f32.mxu0 0.0
      %2351 = vmatmul.mubr.f32.gmra.mxu0 %v2134
      %v2352 = vpop.f32.mrf.mxu0
      %v2353 = vadd.f32 0.0, %v2352
      %v2354 = vpop.f32.mrf.mxu0
      %2355 = vmatprep.mubr.f32.mxu0 0.0
      %2356 = vmatmul.mubr.f32.gmra.mxu0 %v2137
      %v2357 = vpop.f32.mrf.mxu0
      %v2358 = vadd.f32 0.0, %v2357
      %v2359 = vpop.f32.mrf.mxu0
      %2360 = vmatprep.mubr.f32.mxu0 0.0
      %2361 = vmatmul.mubr.f32.gmra.mxu0 %v2140
      %v2362 = vpop.f32.mrf.mxu0
      %v2363 = vadd.f32 0.0, %v2362
      %v2364 = vpop.f32.mrf.mxu0
      %2365 = vmatprep.mubr.f32.mxu0 0.0
      %2366 = vmatmul.mubr.f32.gmra.mxu0 %v2143
      %v2367 = vpop.f32.mrf.mxu0
      %v2368 = vadd.f32 0.0, %v2367
      %v2369 = vpop.f32.mrf.mxu0
      %2370 = vmatprep.mubr.f32.mxu0 0.0
      %2371 = vmatmul.mubr.f32.gmra.mxu0 %v2146
      %v2372 = vpop.f32.mrf.mxu0
      %v2373 = vadd.f32 0.0, %v2372
      %v2374 = vpop.f32.mrf.mxu0
      %2375 = vdwg.mxu0
      %v2376 = vadd.f32 %v1981, %v2218
      %v2377 = vadd.f32 %v1982, %v2223
      %v2378 = vadd.f32 %v1983, %v2228
      %v2379 = vadd.f32 %v1984, %v2233
      %v2380 = vadd.f32 %v1985, %v2238
      %v2381 = vadd.f32 %v1986, %v2243
      %v2382 = vadd.f32 %v1987, %v2248
      %v2383 = vadd.f32 %v1988, %v2253
      %v2384 = vadd.f32 %v1989, %v2258
      %v2385 = vadd.f32 %v1990, %v2263
      %v2386 = vadd.f32 %v1991, %v2268
      %v2387 = vadd.f32 %v1992, %v2273
      %v2388 = vadd.f32 %v1993, %v2278
      %v2389 = vadd.f32 %v1994, %v2283
      %v2390 = vadd.f32 %v1995, %v2288
      %v2391 = vadd.f32 %v1996, %v2293
      %v2392 = vadd.f32 %v1997, %v2298
      %v2393 = vadd.f32 %v1998, %v2303
      %v2394 = vadd.f32 %v1999, %v2308
      %v2395 = vadd.f32 %v2000, %v2313
      %v2396 = vadd.f32 %v2001, %v2318
      %v2397 = vadd.f32 %v2002, %v2323
      %v2398 = vadd.f32 %v2003, %v2328
      %v2399 = vadd.f32 %v2004, %v2333
      %v2400 = vadd.f32 %v2005, %v2338
      %v2401 = vadd.f32 %v2006, %v2343
      %v2402 = vadd.f32 %v2007, %v2348
      %v2403 = vadd.f32 %v2008, %v2353
      %v2404 = vadd.f32 %v2009, %v2358
      %v2405 = vadd.f32 %v2010, %v2363
      %v2406 = vadd.f32 %v2011, %v2368
      %v2407 = vadd.f32 %v2012, %v2373
      %s2408 = scalar_lea.vmem %s1, 20
      %v2409 = vld [vmem:[%s2408] sm:$0xf]
      %v2411 = vsel %vm254, %v2046, 0
      %v2414 = vsel %vm254, %v2047, 0
      %v2417 = vsel %vm351, %v2409, 0
      %2419 = vmatprep.subr.mxu0 0.0
      %2420 = vmatpush1.msra.mxu0 0.0
      %2421 = vmatprep.subr.mxu0 0.0
      %2422 = vmatpush1.msra.mxu0 0.0
      %2423 = vmatprep.subr.mxu0 0.0
      %2424 = vmatpush1.msra.mxu0 0.0
      %2425 = vmatprep.subr.mxu0 0.0
      %2426 = vmatpush1.msra.mxu0 0.0
      %2427 = vmatprep.subr.mxu0 0.0
      %2428 = vmatpush1.msra.mxu0 0.0
      %2429 = vmatprep.subr.mxu0 0.0
      %2430 = vmatpush1.msra.mxu0 0.0
      %2431 = vmatprep.subr.mxu0 0.0
      %2432 = vmatpush1.msra.mxu0 0.0
      %2433 = vmatprep.subr.mxu0 0.0
      %2434 = vmatpush1.msra.mxu0 0.0
      %2435 = vmatprep.subr.mxu0 0.0
      %2436 = vmatpush1.msra.mxu0 0.0
      %2437 = vmatprep.subr.mxu0 0.0
      %2438 = vmatpush1.msra.mxu0 0.0
      %2439 = vmatprep.subr.mxu0 0.0
      %2440 = vmatpush1.msra.mxu0 0.0
      %2441 = vmatprep.subr.mxu0 0.0
      %2442 = vmatpush1.msra.mxu0 0.0
      %2443 = vmatprep.subr.mxu0 0.0
      %2444 = vmatpush1.msra.mxu0 0.0
      %2445 = vmatprep.subr.mxu0 0.0
      %2446 = vmatpush1.msra.mxu0 0.0
      %2447 = vmatprep.subr.mxu0 0.0
      %2448 = vmatpush1.msra.mxu0 0.0
      %2449 = vmatprep.subr.mxu0 0.0
      %2450 = vmatpush1.msra.mxu0 %v2417
      %2451 = vmatprep.subr.mxu0 0.0
      %2452 = vmatpush2.msra.mxu0 0.0
      %2453 = vmatprep.subr.mxu0 0.0
      %2454 = vmatpush2.msra.mxu0 0.0
      %2455 = vmatprep.subr.mxu0 0.0
      %2456 = vmatpush2.msra.mxu0 0.0
      %2457 = vmatprep.subr.mxu0 0.0
      %2458 = vmatpush2.msra.mxu0 0.0
      %2459 = vmatprep.subr.mxu0 0.0
      %2460 = vmatpush2.msra.mxu0 0.0
      %2461 = vmatprep.subr.mxu0 0.0
      %2462 = vmatpush2.msra.mxu0 0.0
      %2463 = vmatprep.subr.mxu0 0.0
      %2464 = vmatpush2.msra.mxu0 0.0
      %2465 = vmatprep.subr.mxu0 0.0
      %2466 = vmatpush2.msra.mxu0 0.0
      %2467 = vmatprep.subr.mxu0 0.0
      %2468 = vmatpush2.msra.mxu0 0.0
      %2469 = vmatprep.subr.mxu0 0.0
      %2470 = vmatpush2.msra.mxu0 0.0
      %2471 = vmatprep.subr.mxu0 0.0
      %2472 = vmatpush2.msra.mxu0 0.0
      %2473 = vmatprep.subr.mxu0 0.0
      %2474 = vmatpush2.msra.mxu0 0.0
      %2475 = vmatprep.subr.mxu0 0.0
      %2476 = vmatpush2.msra.mxu0 0.0
      %2477 = vmatprep.subr.mxu0 0.0
      %2478 = vmatpush2.msra.mxu0 0.0
      %2479 = vmatprep.subr.mxu0 0.0
      %2480 = vmatpush2.msra.mxu0 0.0
      %2481 = vmatprep.subr.mxu0 0.0
      %2482 = vmatpush2.msra.mxu0 0.0
      %2483 = vmatprep.mubr.f32.mxu0 0.0
      %2484 = vmatmul.mubr.f32.gmra.mxu0 %v2059
      %v2485 = vpop.f32.mrf.mxu0
      %v2486 = vadd.f32 0.0, %v2485
      %v2487 = vpop.f32.mrf.mxu0
      %2488 = vmatprep.mubr.f32.mxu0 0.0
      %2489 = vmatmul.mubr.f32.gmra.mxu0 %v2062
      %v2490 = vpop.f32.mrf.mxu0
      %v2491 = vadd.f32 0.0, %v2490
      %v2492 = vpop.f32.mrf.mxu0
      %2493 = vmatprep.mubr.f32.mxu0 0.0
      %2494 = vmatmul.mubr.f32.gmra.mxu0 %v2065
      %v2495 = vpop.f32.mrf.mxu0
      %v2496 = vadd.f32 0.0, %v2495
      %v2497 = vpop.f32.mrf.mxu0
      %2498 = vmatprep.mubr.f32.mxu0 0.0
      %2499 = vmatmul.mubr.f32.gmra.mxu0 %v2068
      %v2500 = vpop.f32.mrf.mxu0
      %v2501 = vadd.f32 0.0, %v2500
      %v2502 = vpop.f32.mrf.mxu0
      %2503 = vmatprep.mubr.f32.mxu0 0.0
      %2504 = vmatmul.mubr.f32.gmra.mxu0 %v2071
      %v2505 = vpop.f32.mrf.mxu0
      %v2506 = vadd.f32 0.0, %v2505
      %v2507 = vpop.f32.mrf.mxu0
      %2508 = vmatprep.mubr.f32.mxu0 0.0
      %2509 = vmatmul.mubr.f32.gmra.mxu0 %v2074
      %v2510 = vpop.f32.mrf.mxu0
      %v2511 = vadd.f32 0.0, %v2510
      %v2512 = vpop.f32.mrf.mxu0
      %2513 = vmatprep.mubr.f32.mxu0 0.0
      %2514 = vmatmul.mubr.f32.gmra.mxu0 %v2077
      %v2515 = vpop.f32.mrf.mxu0
      %v2516 = vadd.f32 0.0, %v2515
      %v2517 = vpop.f32.mrf.mxu0
      %2518 = vmatprep.mubr.f32.mxu0 0.0
      %2519 = vmatmul.mubr.f32.gmra.mxu0 %v2080
      %v2520 = vpop.f32.mrf.mxu0
      %v2521 = vadd.f32 0.0, %v2520
      %v2522 = vpop.f32.mrf.mxu0
      %2523 = vmatprep.mubr.f32.mxu0 0.0
      %2524 = vmatmul.mubr.f32.gmra.mxu0 %v2083
      %v2525 = vpop.f32.mrf.mxu0
      %v2526 = vadd.f32 0.0, %v2525
      %v2527 = vpop.f32.mrf.mxu0
      %2528 = vmatprep.mubr.f32.mxu0 0.0
      %2529 = vmatmul.mubr.f32.gmra.mxu0 %v2086
      %v2530 = vpop.f32.mrf.mxu0
      %v2531 = vadd.f32 0.0, %v2530
      %v2532 = vpop.f32.mrf.mxu0
      %2533 = vmatprep.mubr.f32.mxu0 0.0
      %2534 = vmatmul.mubr.f32.gmra.mxu0 %v2089
      %v2535 = vpop.f32.mrf.mxu0
      %v2536 = vadd.f32 0.0, %v2535
      %v2537 = vpop.f32.mrf.mxu0
      %2538 = vmatprep.mubr.f32.mxu0 0.0
      %2539 = vmatmul.mubr.f32.gmra.mxu0 %v2092
      %v2540 = vpop.f32.mrf.mxu0
      %v2541 = vadd.f32 0.0, %v2540
      %v2542 = vpop.f32.mrf.mxu0
      %2543 = vmatprep.mubr.f32.mxu0 0.0
      %2544 = vmatmul.mubr.f32.gmra.mxu0 %v2095
      %v2545 = vpop.f32.mrf.mxu0
      %v2546 = vadd.f32 0.0, %v2545
      %v2547 = vpop.f32.mrf.mxu0
      %2548 = vmatprep.mubr.f32.mxu0 0.0
      %2549 = vmatmul.mubr.f32.gmra.mxu0 %v2098
      %v2550 = vpop.f32.mrf.mxu0
      %v2551 = vadd.f32 0.0, %v2550
      %v2552 = vpop.f32.mrf.mxu0
      %2553 = vmatprep.mubr.f32.mxu0 0.0
      %2554 = vmatmul.mubr.f32.gmra.mxu0 %v2101
      %v2555 = vpop.f32.mrf.mxu0
      %v2556 = vadd.f32 0.0, %v2555
      %v2557 = vpop.f32.mrf.mxu0
      %2558 = vmatprep.mubr.f32.mxu0 0.0
      %2559 = vmatmul.mubr.f32.gmra.mxu0 %v2104
      %v2560 = vpop.f32.mrf.mxu0
      %v2561 = vadd.f32 0.0, %v2560
      %v2562 = vpop.f32.mrf.mxu0
      %2563 = vmatprep.mubr.f32.mxu0 0.0
      %2564 = vmatmul.mubr.f32.gmra.mxu0 %v2107
      %v2565 = vpop.f32.mrf.mxu0
      %v2566 = vadd.f32 0.0, %v2565
      %v2567 = vpop.f32.mrf.mxu0
      %2568 = vmatprep.mubr.f32.mxu0 0.0
      %2569 = vmatmul.mubr.f32.gmra.mxu0 %v2110
      %v2570 = vpop.f32.mrf.mxu0
      %v2571 = vadd.f32 0.0, %v2570
      %v2572 = vpop.f32.mrf.mxu0
      %2573 = vmatprep.mubr.f32.mxu0 0.0
      %2574 = vmatmul.mubr.f32.gmra.mxu0 %v2113
      %v2575 = vpop.f32.mrf.mxu0
      %v2576 = vadd.f32 0.0, %v2575
      %v2577 = vpop.f32.mrf.mxu0
      %2578 = vmatprep.mubr.f32.mxu0 0.0
      %2579 = vmatmul.mubr.f32.gmra.mxu0 %v2116
      %v2580 = vpop.f32.mrf.mxu0
      %v2581 = vadd.f32 0.0, %v2580
      %v2582 = vpop.f32.mrf.mxu0
      %2583 = vmatprep.mubr.f32.mxu0 0.0
      %2584 = vmatmul.mubr.f32.gmra.mxu0 %v2119
      %v2585 = vpop.f32.mrf.mxu0
      %v2586 = vadd.f32 0.0, %v2585
      %v2587 = vpop.f32.mrf.mxu0
      %2588 = vmatprep.mubr.f32.mxu0 0.0
      %2589 = vmatmul.mubr.f32.gmra.mxu0 %v2122
      %v2590 = vpop.f32.mrf.mxu0
      %v2591 = vadd.f32 0.0, %v2590
      %v2592 = vpop.f32.mrf.mxu0
      %2593 = vmatprep.mubr.f32.mxu0 0.0
      %2594 = vmatmul.mubr.f32.gmra.mxu0 %v2125
      %v2595 = vpop.f32.mrf.mxu0
      %v2596 = vadd.f32 0.0, %v2595
      %v2597 = vpop.f32.mrf.mxu0
      %2598 = vmatprep.mubr.f32.mxu0 0.0
      %2599 = vmatmul.mubr.f32.gmra.mxu0 %v2128
      %v2600 = vpop.f32.mrf.mxu0
      %v2601 = vadd.f32 0.0, %v2600
      %v2602 = vpop.f32.mrf.mxu0
      %2603 = vmatprep.mubr.f32.mxu0 0.0
      %2604 = vmatmul.mubr.f32.gmra.mxu0 %v2131
      %v2605 = vpop.f32.mrf.mxu0
      %v2606 = vadd.f32 0.0, %v2605
      %v2607 = vpop.f32.mrf.mxu0
      %2608 = vmatprep.mubr.f32.mxu0 0.0
      %2609 = vmatmul.mubr.f32.gmra.mxu0 %v2134
      %v2610 = vpop.f32.mrf.mxu0
      %v2611 = vadd.f32 0.0, %v2610
      %v2612 = vpop.f32.mrf.mxu0
      %2613 = vmatprep.mubr.f32.mxu0 0.0
      %2614 = vmatmul.mubr.f32.gmra.mxu0 %v2137
      %v2615 = vpop.f32.mrf.mxu0
      %v2616 = vadd.f32 0.0, %v2615
      %v2617 = vpop.f32.mrf.mxu0
      %2618 = vmatprep.mubr.f32.mxu0 0.0
      %2619 = vmatmul.mubr.f32.gmra.mxu0 %v2140
      %v2620 = vpop.f32.mrf.mxu0
      %v2621 = vadd.f32 0.0, %v2620
      %v2622 = vpop.f32.mrf.mxu0
      %2623 = vmatprep.mubr.f32.mxu0 0.0
      %2624 = vmatmul.mubr.f32.gmra.mxu0 %v2143
      %v2625 = vpop.f32.mrf.mxu0
      %v2626 = vadd.f32 0.0, %v2625
      %v2627 = vpop.f32.mrf.mxu0
      %2628 = vmatprep.mubr.f32.mxu0 0.0
      %2629 = vmatmul.mubr.f32.gmra.mxu0 %v2146
      %v2630 = vpop.f32.mrf.mxu0
      %v2631 = vadd.f32 0.0, %v2630
      %v2632 = vpop.f32.mrf.mxu0
      %2633 = vmatprep.mubr.f32.mxu0 0.0
      %2634 = vmatmul.mubr.f32.gmra.mxu0 %v2411
      %v2635 = vpop.f32.mrf.mxu0
      %v2636 = vadd.f32 0.0, %v2635
      %v2637 = vpop.f32.mrf.mxu0
      %2638 = vmatprep.mubr.f32.mxu0 0.0
      %2639 = vmatmul.mubr.f32.gmra.mxu0 %v2414
      %v2640 = vpop.f32.mrf.mxu0
      %v2641 = vadd.f32 0.0, %v2640
      %v2642 = vpop.f32.mrf.mxu0
      %2643 = vdwg.mxu0
      %v2644 = vadd.f32 %v2376, %v2486
      %v2645 = vadd.f32 %v2377, %v2491
      %v2646 = vadd.f32 %v2378, %v2496
      %v2647 = vadd.f32 %v2379, %v2501
      %v2648 = vadd.f32 %v2380, %v2506
      %v2649 = vadd.f32 %v2381, %v2511
      %v2650 = vadd.f32 %v2382, %v2516
      %v2651 = vadd.f32 %v2383, %v2521
      %v2652 = vadd.f32 %v2384, %v2526
      %v2653 = vadd.f32 %v2385, %v2531
      %v2654 = vadd.f32 %v2386, %v2536
      %v2655 = vadd.f32 %v2387, %v2541
      %v2656 = vadd.f32 %v2388, %v2546
      %v2657 = vadd.f32 %v2389, %v2551
      %v2658 = vadd.f32 %v2390, %v2556
      %v2659 = vadd.f32 %v2391, %v2561
      %v2660 = vadd.f32 %v2392, %v2566
      %v2661 = vadd.f32 %v2393, %v2571
      %v2662 = vadd.f32 %v2394, %v2576
      %v2663 = vadd.f32 %v2395, %v2581
      %v2664 = vadd.f32 %v2396, %v2586
      %v2665 = vadd.f32 %v2397, %v2591
      %v2666 = vadd.f32 %v2398, %v2596
      %v2667 = vadd.f32 %v2399, %v2601
      %v2668 = vadd.f32 %v2400, %v2606
      %v2669 = vadd.f32 %v2401, %v2611
      %v2670 = vadd.f32 %v2402, %v2616
      %v2671 = vadd.f32 %v2403, %v2621
      %v2672 = vadd.f32 %v2404, %v2626
      %v2673 = vadd.f32 %v2405, %v2631
      %v2674 = vadd.f32 %v2406, %v2636
      %v2675 = vadd.f32 %v2407, %v2641
      %s2676 = scalar_lea.vmem %s1, 32
      %v2677 = vld [vmem:[%s2676] sm:$0xf]
      %v2679 = vsel %vm254, %v2048, 0
      %v2682 = vsel %vm254, %v2049, 0
      %v2685 = vsel %vm351, %v2677, 0
      %2687 = vmatprep.subr.mxu0 0.0
      %2688 = vmatpush1.msra.mxu0 0.0
      %2689 = vmatprep.subr.mxu0 0.0
      %2690 = vmatpush1.msra.mxu0 0.0
      %2691 = vmatprep.subr.mxu0 0.0
      %2692 = vmatpush1.msra.mxu0 0.0
      %2693 = vmatprep.subr.mxu0 0.0
      %2694 = vmatpush1.msra.mxu0 0.0
      %2695 = vmatprep.subr.mxu0 0.0
      %2696 = vmatpush1.msra.mxu0 0.0
      %2697 = vmatprep.subr.mxu0 0.0
      %2698 = vmatpush1.msra.mxu0 0.0
      %2699 = vmatprep.subr.mxu0 0.0
      %2700 = vmatpush1.msra.mxu0 0.0
      %2701 = vmatprep.subr.mxu0 0.0
      %2702 = vmatpush1.msra.mxu0 0.0
      %2703 = vmatprep.subr.mxu0 0.0
      %2704 = vmatpush1.msra.mxu0 0.0
      %2705 = vmatprep.subr.mxu0 0.0
      %2706 = vmatpush1.msra.mxu0 0.0
      %2707 = vmatprep.subr.mxu0 0.0
      %2708 = vmatpush1.msra.mxu0 0.0
      %2709 = vmatprep.subr.mxu0 0.0
      %2710 = vmatpush1.msra.mxu0 0.0
      %2711 = vmatprep.subr.mxu0 0.0
      %2712 = vmatpush1.msra.mxu0 0.0
      %2713 = vmatprep.subr.mxu0 0.0
      %2714 = vmatpush1.msra.mxu0 0.0
      %2715 = vmatprep.subr.mxu0 0.0
      %2716 = vmatpush1.msra.mxu0 0.0
      %2717 = vmatprep.subr.mxu0 0.0
      %2718 = vmatpush1.msra.mxu0 %v2685
      %2719 = vmatprep.subr.mxu0 0.0
      %2720 = vmatpush2.msra.mxu0 0.0
      %2721 = vmatprep.subr.mxu0 0.0
      %2722 = vmatpush2.msra.mxu0 0.0
      %2723 = vmatprep.subr.mxu0 0.0
      %2724 = vmatpush2.msra.mxu0 0.0
      %2725 = vmatprep.subr.mxu0 0.0
      %2726 = vmatpush2.msra.mxu0 0.0
      %2727 = vmatprep.subr.mxu0 0.0
      %2728 = vmatpush2.msra.mxu0 0.0
      %2729 = vmatprep.subr.mxu0 0.0
      %2730 = vmatpush2.msra.mxu0 0.0
      %2731 = vmatprep.subr.mxu0 0.0
      %2732 = vmatpush2.msra.mxu0 0.0
      %2733 = vmatprep.subr.mxu0 0.0
      %2734 = vmatpush2.msra.mxu0 0.0
      %2735 = vmatprep.subr.mxu0 0.0
      %2736 = vmatpush2.msra.mxu0 0.0
      %2737 = vmatprep.subr.mxu0 0.0
      %2738 = vmatpush2.msra.mxu0 0.0
      %2739 = vmatprep.subr.mxu0 0.0
      %2740 = vmatpush2.msra.mxu0 0.0
      %2741 = vmatprep.subr.mxu0 0.0
      %2742 = vmatpush2.msra.mxu0 0.0
      %2743 = vmatprep.subr.mxu0 0.0
      %2744 = vmatpush2.msra.mxu0 0.0
      %2745 = vmatprep.subr.mxu0 0.0
      %2746 = vmatpush2.msra.mxu0 0.0
      %2747 = vmatprep.subr.mxu0 0.0
      %2748 = vmatpush2.msra.mxu0 0.0
      %2749 = vmatprep.subr.mxu0 0.0
      %2750 = vmatpush2.msra.mxu0 0.0
      %2751 = vmatprep.mubr.f32.mxu0 0.0
      %2752 = vmatmul.mubr.f32.gmra.mxu0 %v2065
      %v2753 = vpop.f32.mrf.mxu0
      %v2754 = vadd.f32 0.0, %v2753
      %v2755 = vpop.f32.mrf.mxu0
      %2756 = vmatprep.mubr.f32.mxu0 0.0
      %2757 = vmatmul.mubr.f32.gmra.mxu0 %v2068
      %v2758 = vpop.f32.mrf.mxu0
      %v2759 = vadd.f32 0.0, %v2758
      %v2760 = vpop.f32.mrf.mxu0
      %2761 = vmatprep.mubr.f32.mxu0 0.0
      %2762 = vmatmul.mubr.f32.gmra.mxu0 %v2071
      %v2763 = vpop.f32.mrf.mxu0
      %v2764 = vadd.f32 0.0, %v2763
      %v2765 = vpop.f32.mrf.mxu0
      %2766 = vmatprep.mubr.f32.mxu0 0.0
      %2767 = vmatmul.mubr.f32.gmra.mxu0 %v2074
      %v2768 = vpop.f32.mrf.mxu0
      %v2769 = vadd.f32 0.0, %v2768
      %v2770 = vpop.f32.mrf.mxu0
      %2771 = vmatprep.mubr.f32.mxu0 0.0
      %2772 = vmatmul.mubr.f32.gmra.mxu0 %v2077
      %v2773 = vpop.f32.mrf.mxu0
      %v2774 = vadd.f32 0.0, %v2773
      %v2775 = vpop.f32.mrf.mxu0
      %2776 = vmatprep.mubr.f32.mxu0 0.0
      %2777 = vmatmul.mubr.f32.gmra.mxu0 %v2080
      %v2778 = vpop.f32.mrf.mxu0
      %v2779 = vadd.f32 0.0, %v2778
      %v2780 = vpop.f32.mrf.mxu0
      %2781 = vmatprep.mubr.f32.mxu0 0.0
      %2782 = vmatmul.mubr.f32.gmra.mxu0 %v2083
      %v2783 = vpop.f32.mrf.mxu0
      %v2784 = vadd.f32 0.0, %v2783
      %v2785 = vpop.f32.mrf.mxu0
      %2786 = vmatprep.mubr.f32.mxu0 0.0
      %2787 = vmatmul.mubr.f32.gmra.mxu0 %v2086
      %v2788 = vpop.f32.mrf.mxu0
      %v2789 = vadd.f32 0.0, %v2788
      %v2790 = vpop.f32.mrf.mxu0
      %2791 = vmatprep.mubr.f32.mxu0 0.0
      %2792 = vmatmul.mubr.f32.gmra.mxu0 %v2089
      %v2793 = vpop.f32.mrf.mxu0
      %v2794 = vadd.f32 0.0, %v2793
      %v2795 = vpop.f32.mrf.mxu0
      %2796 = vmatprep.mubr.f32.mxu0 0.0
      %2797 = vmatmul.mubr.f32.gmra.mxu0 %v2092
      %v2798 = vpop.f32.mrf.mxu0
      %v2799 = vadd.f32 0.0, %v2798
      %v2800 = vpop.f32.mrf.mxu0
      %2801 = vmatprep.mubr.f32.mxu0 0.0
      %2802 = vmatmul.mubr.f32.gmra.mxu0 %v2095
      %v2803 = vpop.f32.mrf.mxu0
      %v2804 = vadd.f32 0.0, %v2803
      %v2805 = vpop.f32.mrf.mxu0
      %2806 = vmatprep.mubr.f32.mxu0 0.0
      %2807 = vmatmul.mubr.f32.gmra.mxu0 %v2098
      %v2808 = vpop.f32.mrf.mxu0
      %v2809 = vadd.f32 0.0, %v2808
      %v2810 = vpop.f32.mrf.mxu0
      %2811 = vmatprep.mubr.f32.mxu0 0.0
      %2812 = vmatmul.mubr.f32.gmra.mxu0 %v2101
      %v2813 = vpop.f32.mrf.mxu0
      %v2814 = vadd.f32 0.0, %v2813
      %v2815 = vpop.f32.mrf.mxu0
      %2816 = vmatprep.mubr.f32.mxu0 0.0
      %2817 = vmatmul.mubr.f32.gmra.mxu0 %v2104
      %v2818 = vpop.f32.mrf.mxu0
      %v2819 = vadd.f32 0.0, %v2818
      %v2820 = vpop.f32.mrf.mxu0
      %2821 = vmatprep.mubr.f32.mxu0 0.0
      %2822 = vmatmul.mubr.f32.gmra.mxu0 %v2107
      %v2823 = vpop.f32.mrf.mxu0
      %v2824 = vadd.f32 0.0, %v2823
      %v2825 = vpop.f32.mrf.mxu0
      %2826 = vmatprep.mubr.f32.mxu0 0.0
      %2827 = vmatmul.mubr.f32.gmra.mxu0 %v2110
      %v2828 = vpop.f32.mrf.mxu0
      %v2829 = vadd.f32 0.0, %v2828
      %v2830 = vpop.f32.mrf.mxu0
      %2831 = vmatprep.mubr.f32.mxu0 0.0
      %2832 = vmatmul.mubr.f32.gmra.mxu0 %v2113
      %v2833 = vpop.f32.mrf.mxu0
      %v2834 = vadd.f32 0.0, %v2833
      %v2835 = vpop.f32.mrf.mxu0
      %2836 = vmatprep.mubr.f32.mxu0 0.0
      %2837 = vmatmul.mubr.f32.gmra.mxu0 %v2116
      %v2838 = vpop.f32.mrf.mxu0
      %v2839 = vadd.f32 0.0, %v2838
      %v2840 = vpop.f32.mrf.mxu0
      %2841 = vmatprep.mubr.f32.mxu0 0.0
      %2842 = vmatmul.mubr.f32.gmra.mxu0 %v2119
      %v2843 = vpop.f32.mrf.mxu0
      %v2844 = vadd.f32 0.0, %v2843
      %v2845 = vpop.f32.mrf.mxu0
      %2846 = vmatprep.mubr.f32.mxu0 0.0
      %2847 = vmatmul.mubr.f32.gmra.mxu0 %v2122
      %v2848 = vpop.f32.mrf.mxu0
      %v2849 = vadd.f32 0.0, %v2848
      %v2850 = vpop.f32.mrf.mxu0
      %2851 = vmatprep.mubr.f32.mxu0 0.0
      %2852 = vmatmul.mubr.f32.gmra.mxu0 %v2125
      %v2853 = vpop.f32.mrf.mxu0
      %v2854 = vadd.f32 0.0, %v2853
      %v2855 = vpop.f32.mrf.mxu0
      %2856 = vmatprep.mubr.f32.mxu0 0.0
      %2857 = vmatmul.mubr.f32.gmra.mxu0 %v2128
      %v2858 = vpop.f32.mrf.mxu0
      %v2859 = vadd.f32 0.0, %v2858
      %v2860 = vpop.f32.mrf.mxu0
      %2861 = vmatprep.mubr.f32.mxu0 0.0
      %2862 = vmatmul.mubr.f32.gmra.mxu0 %v2131
      %v2863 = vpop.f32.mrf.mxu0
      %v2864 = vadd.f32 0.0, %v2863
      %v2865 = vpop.f32.mrf.mxu0
      %2866 = vmatprep.mubr.f32.mxu0 0.0
      %2867 = vmatmul.mubr.f32.gmra.mxu0 %v2134
      %v2868 = vpop.f32.mrf.mxu0
      %v2869 = vadd.f32 0.0, %v2868
      %v2870 = vpop.f32.mrf.mxu0
      %2871 = vmatprep.mubr.f32.mxu0 0.0
      %2872 = vmatmul.mubr.f32.gmra.mxu0 %v2137
      %v2873 = vpop.f32.mrf.mxu0
      %v2874 = vadd.f32 0.0, %v2873
      %v2875 = vpop.f32.mrf.mxu0
      %2876 = vmatprep.mubr.f32.mxu0 0.0
      %2877 = vmatmul.mubr.f32.gmra.mxu0 %v2140
      %v2878 = vpop.f32.mrf.mxu0
      %v2879 = vadd.f32 0.0, %v2878
      %v2880 = vpop.f32.mrf.mxu0
      %2881 = vmatprep.mubr.f32.mxu0 0.0
      %2882 = vmatmul.mubr.f32.gmra.mxu0 %v2143
      %v2883 = vpop.f32.mrf.mxu0
      %v2884 = vadd.f32 0.0, %v2883
      %v2885 = vpop.f32.mrf.mxu0
      %2886 = vmatprep.mubr.f32.mxu0 0.0
      %2887 = vmatmul.mubr.f32.gmra.mxu0 %v2146
      %v2888 = vpop.f32.mrf.mxu0
      %v2889 = vadd.f32 0.0, %v2888
      %v2890 = vpop.f32.mrf.mxu0
      %2891 = vmatprep.mubr.f32.mxu0 0.0
      %2892 = vmatmul.mubr.f32.gmra.mxu0 %v2411
      %v2893 = vpop.f32.mrf.mxu0
      %v2894 = vadd.f32 0.0, %v2893
      %v2895 = vpop.f32.mrf.mxu0
      %2896 = vmatprep.mubr.f32.mxu0 0.0
      %2897 = vmatmul.mubr.f32.gmra.mxu0 %v2414
      %v2898 = vpop.f32.mrf.mxu0
      %v2899 = vadd.f32 0.0, %v2898
      %v2900 = vpop.f32.mrf.mxu0
      %2901 = vmatprep.mubr.f32.mxu0 0.0
      %2902 = vmatmul.mubr.f32.gmra.mxu0 %v2679
      %v2903 = vpop.f32.mrf.mxu0
      %v2904 = vadd.f32 0.0, %v2903
      %v2905 = vpop.f32.mrf.mxu0
      %2906 = vmatprep.mubr.f32.mxu0 0.0
      %2907 = vmatmul.mubr.f32.gmra.mxu0 %v2682
      %v2908 = vpop.f32.mrf.mxu0
      %v2909 = vadd.f32 0.0, %v2908
      %v2910 = vpop.f32.mrf.mxu0
      %2911 = vdwg.mxu0
      %v2912 = vadd.f32 %v2644, %v2754
      %v2913 = vadd.f32 %v2645, %v2759
      %v2914 = vadd.f32 %v2646, %v2764
      %v2915 = vadd.f32 %v2647, %v2769
      %v2916 = vadd.f32 %v2648, %v2774
      %v2917 = vadd.f32 %v2649, %v2779
      %v2918 = vadd.f32 %v2650, %v2784
      %v2919 = vadd.f32 %v2651, %v2789
      %v2920 = vadd.f32 %v2652, %v2794
      %v2921 = vadd.f32 %v2653, %v2799
      %v2922 = vadd.f32 %v2654, %v2804
      %v2923 = vadd.f32 %v2655, %v2809
      %v2924 = vadd.f32 %v2656, %v2814
      %v2925 = vadd.f32 %v2657, %v2819
      %v2926 = vadd.f32 %v2658, %v2824
      %v2927 = vadd.f32 %v2659, %v2829
      %v2928 = vadd.f32 %v2660, %v2834
      %v2929 = vadd.f32 %v2661, %v2839
      %v2930 = vadd.f32 %v2662, %v2844
      %v2931 = vadd.f32 %v2663, %v2849
      %v2932 = vadd.f32 %v2664, %v2854
      %v2933 = vadd.f32 %v2665, %v2859
      %v2934 = vadd.f32 %v2666, %v2864
      %v2935 = vadd.f32 %v2667, %v2869
      %v2936 = vadd.f32 %v2668, %v2874
      %v2937 = vadd.f32 %v2669, %v2879
      %v2938 = vadd.f32 %v2670, %v2884
      %v2939 = vadd.f32 %v2671, %v2889
      %v2940 = vadd.f32 %v2672, %v2894
      %v2941 = vadd.f32 %v2673, %v2899
      %v2942 = vadd.f32 %v2674, %v2904
      %v2943 = vadd.f32 %v2675, %v2909
      %vm2944 = vcmask 64512
      %2945 = vst.msk [vmem:[%s208] sm:$0xff] %vm2944, %v2912
      %2946 = vst.msk [vmem:[%s208 + $0x8] sm:$0xff] %vm2944, %v2913
      %2947 = vst.msk [vmem:[%s208 + $0x10] sm:$0xff] %vm2944, %v2914
      %2948 = vst.msk [vmem:[%s208 + $0x18] sm:$0xff] %vm2944, %v2915
      %2949 = vst.msk [vmem:[%s208 + $0x20] sm:$0xff] %vm2944, %v2916
      %2950 = vst.msk [vmem:[%s208 + $0x28] sm:$0xff] %vm2944, %v2917
      %2951 = vst.msk [vmem:[%s208 + $0x30] sm:$0xff] %vm2944, %v2918
      %2952 = vst.msk [vmem:[%s208 + $0x38] sm:$0xff] %vm2944, %v2919
      %2953 = vst.msk [vmem:[%s208 + $0x40] sm:$0xff] %vm2944, %v2920
      %2954 = vst.msk [vmem:[%s208 + $0x48] sm:$0xff] %vm2944, %v2921
      %2955 = vst.msk [vmem:[%s208 + $0x50] sm:$0xff] %vm2944, %v2922
      %2956 = vst.msk [vmem:[%s208 + $0x58] sm:$0xff] %vm2944, %v2923
      %2957 = vst.msk [vmem:[%s208 + $0x60] sm:$0xff] %vm2944, %v2924
      %2958 = vst.msk [vmem:[%s208 + $0x68] sm:$0xff] %vm2944, %v2925
      %2959 = vst.msk [vmem:[%s208 + $0x70] sm:$0xff] %vm2944, %v2926
      %2960 = vst.msk [vmem:[%s208 + $0x78] sm:$0xff] %vm2944, %v2927
      %2961 = vst.msk [vmem:[%s208 + $0x80] sm:$0xff] %vm2944, %v2928
      %2962 = vst.msk [vmem:[%s208 + $0x88] sm:$0xff] %vm2944, %v2929
      %2963 = vst.msk [vmem:[%s208 + $0x90] sm:$0xff] %vm2944, %v2930
      %2964 = vst.msk [vmem:[%s208 + $0x98] sm:$0xff] %vm2944, %v2931
      %2965 = vst.msk [vmem:[%s208 + $0xa0] sm:$0xff] %vm2944, %v2932
      %2966 = vst.msk [vmem:[%s208 + $0xa8] sm:$0xff] %vm2944, %v2933
      %2967 = vst.msk [vmem:[%s208 + $0xb0] sm:$0xff] %vm2944, %v2934
      %2968 = vst.msk [vmem:[%s208 + $0xb8] sm:$0xff] %vm2944, %v2935
      %2969 = vst.msk [vmem:[%s208 + $0xc0] sm:$0xff] %vm2944, %v2936
      %2970 = vst.msk [vmem:[%s208 + $0xc8] sm:$0xff] %vm2944, %v2937
      %2971 = vst.msk [vmem:[%s208 + $0xd0] sm:$0xff] %vm2944, %v2938
      %2972 = vst.msk [vmem:[%s208 + $0xd8] sm:$0xff] %vm2944, %v2939
      %2973 = vst.msk [vmem:[%s208 + $0xe0] sm:$0xff] %vm2944, %v2940
      %2974 = vst.msk [vmem:[%s208 + $0xe8] sm:$0xff] %vm2944, %v2941
      %2975 = vst.msk [vmem:[%s208 + $0xf0] sm:$0xff] %vm2944, %v2942
      %2976 = vst.msk [vmem:[%s208 + $0xf8] sm:$0xff] %vm2944, %v2943
      %v2977 = vsel %vm2944, %v2912, 0.0
      %v2978 = vsel %vm2944, %v2913, 0.0
      %v2979 = vadd.f32 %v2977, %v2978
      %v2980 = vsel %vm2944, %v2914, 0.0
      %v2981 = vadd.f32 %v2979, %v2980
      %v2982 = vsel %vm2944, %v2915, 0.0
      %v2983 = vadd.f32 %v2981, %v2982
      %v2984 = vsel %vm2944, %v2916, 0.0
      %v2985 = vadd.f32 %v2983, %v2984
      %v2986 = vsel %vm2944, %v2917, 0.0
      %v2987 = vadd.f32 %v2985, %v2986
      %v2988 = vsel %vm2944, %v2918, 0.0
      %v2989 = vadd.f32 %v2987, %v2988
      %v2990 = vsel %vm2944, %v2919, 0.0
      %v2991 = vadd.f32 %v2989, %v2990
      %v2992 = vsel %vm2944, %v2920, 0.0
      %v2993 = vadd.f32 %v2991, %v2992
      %v2994 = vsel %vm2944, %v2921, 0.0
      %v2995 = vadd.f32 %v2993, %v2994
      %v2996 = vsel %vm2944, %v2922, 0.0
      %v2997 = vadd.f32 %v2995, %v2996
      %v2998 = vsel %vm2944, %v2923, 0.0
      %v2999 = vadd.f32 %v2997, %v2998
      %v3000 = vsel %vm2944, %v2924, 0.0
      %v3001 = vadd.f32 %v2999, %v3000
      %v3002 = vsel %vm2944, %v2925, 0.0
      %v3003 = vadd.f32 %v3001, %v3002
      %v3004 = vsel %vm2944, %v2926, 0.0
      %v3005 = vadd.f32 %v3003, %v3004
      %v3006 = vsel %vm2944, %v2927, 0.0
      %v3007 = vadd.f32 %v3005, %v3006
      %v3008 = vsel %vm2944, %v2928, 0.0
      %v3009 = vadd.f32 %v3007, %v3008
      %v3010 = vsel %vm2944, %v2929, 0.0
      %v3011 = vadd.f32 %v3009, %v3010
      %v3012 = vsel %vm2944, %v2930, 0.0
      %v3013 = vadd.f32 %v3011, %v3012
      %v3014 = vsel %vm2944, %v2931, 0.0
      %v3015 = vadd.f32 %v3013, %v3014
      %v3016 = vsel %vm2944, %v2932, 0.0
      %v3017 = vadd.f32 %v3015, %v3016
      %v3018 = vsel %vm2944, %v2933, 0.0
      %v3019 = vadd.f32 %v3017, %v3018
      %v3020 = vsel %vm2944, %v2934, 0.0
      %v3021 = vadd.f32 %v3019, %v3020
      %v3022 = vsel %vm2944, %v2935, 0.0
      %v3023 = vadd.f32 %v3021, %v3022
      %v3024 = vsel %vm2944, %v2936, 0.0
      %v3025 = vadd.f32 %v3023, %v3024
      %v3026 = vsel %vm2944, %v2937, 0.0
      %v3027 = vadd.f32 %v3025, %v3026
      %v3028 = vsel %vm2944, %v2938, 0.0
      %v3029 = vadd.f32 %v3027, %v3028
      %v3030 = vsel %vm2944, %v2939, 0.0
      %v3031 = vadd.f32 %v3029, %v3030
      %v3032 = vsel %vm2944, %v2940, 0.0
      %v3033 = vadd.f32 %v3031, %v3032
      %v3034 = vsel %vm2944, %v2941, 0.0
      %v3035 = vadd.f32 %v3033, %v3034
      %v3036 = vsel %vm2944, %v2942, 0.0
      %v3037 = vadd.f32 %v3035, %v3036
      %v3038 = vsel %vm2944, %v2943, 0.0
      %v3039 = vadd.f32 %v3037, %v3038
      %v3040 = vrot.slane %v3039, 4
      %v3041 = vadd.f32 %v3039, %v3040
      %v3042 = vrot.slane %v3041, 2
      %v3043 = vadd.f32 %v3041, %v3042
      %v3044 = vrot.slane %v3043, 1
      %v3045 = vadd.f32 %v3043, %v3044
      %vm3046 = vcmask 57344
      %3047 = vst.msk [vmem:[%s211] sm:$0x1] %vm3046, %v3045
      %v3048 = vmul.f32 %v2912, %v2912
      %v3049 = vmul.f32 %v2913, %v2913
      %v3050 = vmul.f32 %v2914, %v2914
      %v3051 = vmul.f32 %v2915, %v2915
      %v3052 = vmul.f32 %v2916, %v2916
      %v3053 = vmul.f32 %v2917, %v2917
      %v3054 = vmul.f32 %v2918, %v2918
      %v3055 = vmul.f32 %v2919, %v2919
      %v3056 = vmul.f32 %v2920, %v2920
      %v3057 = vmul.f32 %v2921, %v2921
      %v3058 = vmul.f32 %v2922, %v2922
      %v3059 = vmul.f32 %v2923, %v2923
      %v3060 = vmul.f32 %v2924, %v2924
      %v3061 = vmul.f32 %v2925, %v2925
      %v3062 = vmul.f32 %v2926, %v2926
      %v3063 = vmul.f32 %v2927, %v2927
      %v3064 = vmul.f32 %v2928, %v2928
      %v3065 = vmul.f32 %v2929, %v2929
      %v3066 = vmul.f32 %v2930, %v2930
      %v3067 = vmul.f32 %v2931, %v2931
      %v3068 = vmul.f32 %v2932, %v2932
      %v3069 = vmul.f32 %v2933, %v2933
      %v3070 = vmul.f32 %v2934, %v2934
      %v3071 = vmul.f32 %v2935, %v2935
      %v3072 = vmul.f32 %v2936, %v2936
      %v3073 = vmul.f32 %v2937, %v2937
      %v3074 = vmul.f32 %v2938, %v2938
      %v3075 = vmul.f32 %v2939, %v2939
      %v3076 = vmul.f32 %v2940, %v2940
      %v3077 = vmul.f32 %v2941, %v2941
      %v3078 = vmul.f32 %v2942, %v2942
      %v3079 = vmul.f32 %v2943, %v2943
      %v3080 = vsel %vm2944, %v3048, 0.0
      %v3081 = vsel %vm2944, %v3049, 0.0
      %v3082 = vadd.f32 %v3080, %v3081
      %v3083 = vsel %vm2944, %v3050, 0.0
      %v3084 = vadd.f32 %v3082, %v3083
      %v3085 = vsel %vm2944, %v3051, 0.0
      %v3086 = vadd.f32 %v3084, %v3085
      %v3087 = vsel %vm2944, %v3052, 0.0
      %v3088 = vadd.f32 %v3086, %v3087
      %v3089 = vsel %vm2944, %v3053, 0.0
      %v3090 = vadd.f32 %v3088, %v3089
      %v3091 = vsel %vm2944, %v3054, 0.0
      %v3092 = vadd.f32 %v3090, %v3091
      %v3093 = vsel %vm2944, %v3055, 0.0
      %v3094 = vadd.f32 %v3092, %v3093
      %v3095 = vsel %vm2944, %v3056, 0.0
      %v3096 = vadd.f32 %v3094, %v3095
      %v3097 = vsel %vm2944, %v3057, 0.0
      %v3098 = vadd.f32 %v3096, %v3097
      %v3099 = vsel %vm2944, %v3058, 0.0
      %v3100 = vadd.f32 %v3098, %v3099
      %v3101 = vsel %vm2944, %v3059, 0.0
      %v3102 = vadd.f32 %v3100, %v3101
      %v3103 = vsel %vm2944, %v3060, 0.0
      %v3104 = vadd.f32 %v3102, %v3103
      %v3105 = vsel %vm2944, %v3061, 0.0
      %v3106 = vadd.f32 %v3104, %v3105
      %v3107 = vsel %vm2944, %v3062, 0.0
      %v3108 = vadd.f32 %v3106, %v3107
      %v3109 = vsel %vm2944, %v3063, 0.0
      %v3110 = vadd.f32 %v3108, %v3109
      %v3111 = vsel %vm2944, %v3064, 0.0
      %v3112 = vadd.f32 %v3110, %v3111
      %v3113 = vsel %vm2944, %v3065, 0.0
      %v3114 = vadd.f32 %v3112, %v3113
      %v3115 = vsel %vm2944, %v3066, 0.0
      %v3116 = vadd.f32 %v3114, %v3115
      %v3117 = vsel %vm2944, %v3067, 0.0
      %v3118 = vadd.f32 %v3116, %v3117
      %v3119 = vsel %vm2944, %v3068, 0.0
      %v3120 = vadd.f32 %v3118, %v3119
      %v3121 = vsel %vm2944, %v3069, 0.0
      %v3122 = vadd.f32 %v3120, %v3121
      %v3123 = vsel %vm2944, %v3070, 0.0
      %v3124 = vadd.f32 %v3122, %v3123
      %v3125 = vsel %vm2944, %v3071, 0.0
      %v3126 = vadd.f32 %v3124, %v3125
      %v3127 = vsel %vm2944, %v3072, 0.0
      %v3128 = vadd.f32 %v3126, %v3127
      %v3129 = vsel %vm2944, %v3073, 0.0
      %v3130 = vadd.f32 %v3128, %v3129
      %v3131 = vsel %vm2944, %v3074, 0.0
      %v3132 = vadd.f32 %v3130, %v3131
      %v3133 = vsel %vm2944, %v3075, 0.0
      %v3134 = vadd.f32 %v3132, %v3133
      %v3135 = vsel %vm2944, %v3076, 0.0
      %v3136 = vadd.f32 %v3134, %v3135
      %v3137 = vsel %vm2944, %v3077, 0.0
      %v3138 = vadd.f32 %v3136, %v3137
      %v3139 = vsel %vm2944, %v3078, 0.0
      %v3140 = vadd.f32 %v3138, %v3139
      %v3141 = vsel %vm2944, %v3079, 0.0
      %v3142 = vadd.f32 %v3140, %v3141
      %v3143 = vrot.slane %v3142, 4
      %v3144 = vadd.f32 %v3142, %v3143
      %v3145 = vrot.slane %v3144, 2
      %v3146 = vadd.f32 %v3144, %v3145
      %v3147 = vrot.slane %v3146, 1
      %v3148 = vadd.f32 %v3146, %v3147
      %3149 = vst.msk [vmem:[%s214] sm:$0x1] %vm3046, %v3148
      %p3150 = scmp.lt.s32.totalorder %s16, 1
      %s3151 = scalar_select %p3150, %s16, 1
      %s3152 = smul.addr %s3151, 32
      %s3153 = smul.addr %s3152, 8
      %s3154 = scalar_lea.vmem %s2, %s3153
      %p3155 = scmp.lt.s32.totalorder %s16, 1
      %s3156 = scalar_select %p3155, %s16, 1
      %s3157 = scalar_lea.vmem %s3, %s3156
      %p3158 = scmp.lt.s32.totalorder %s16, 1
      %s3159 = scalar_select %p3158, %s16, 1
      %s3160 = scalar_lea.vmem %s4, %s3159
      // Predicated region
      $region29: #{double_conv_forward.3} parent=27 // pred_check
        %p3161 = pneg %p81
      $region30: #{double_conv_forward.3} parent=27 // pred_check_branch
        %3163 = sbr.rel (%p3161) target = $region32
      $region31: #{double_conv_forward.3} parent=27 // pred_region
        _
      $region32: #{double_conv_forward.3} parent=27 // pred_fallthru
        _
      // Predicated region
      $region33: #{double_conv_forward.3} parent=27 // pred_check
        %p3164 = pneg %p107
      $region34: #{double_conv_forward.3} parent=27 // pred_check_branch
        %3166 = sbr.rel (%p3164) target = $region36
      $region35: #{double_conv_forward.3} parent=27 // pred_region
        _
      $region36: #{double_conv_forward.3} parent=27 // pred_fallthru
        _
      // Predicated region
      $region37: #{double_conv_forward.3} parent=27 // pred_check
        %p3167 = pneg %p133
      $region38: #{double_conv_forward.3} parent=27 // pred_check_branch
        %3169 = sbr.rel (%p3167) target = $region40
      $region39: #{double_conv_forward.3} parent=27 // pred_region
        _
      $region40: #{double_conv_forward.3} parent=27 // pred_fallthru
        _
    $region28: #{double_conv_forward.3} parent=5 // pred_fallthru
      _
    %p3170 = scmp.le.s32.totalorder 2, %s11
    // Predicated region
    $region41: #{double_conv_forward.3} parent=5 // pred_check
      %p3171 = pneg %p3170
    $region42: #{double_conv_forward.3} parent=5 // pred_check_branch
      %3173 = sbr.rel (%p3171) target = $region44
    $region43: #{double_conv_forward.3} parent=5 // pred_region
      %s3174 = ssub.s32 %s11, 2
      // Predicated region
      $region45: #{double_conv_forward.3} parent=43 // pred_check
        %p3175 = pneg %p87
      $region46: #{double_conv_forward.3} parent=43 // pred_check_branch
        %3177 = sbr.rel (%p3175) target = $region48
      $region47: #{double_conv_forward.3} parent=43 // pred_region
        %p3178 = scmp.lt.s32.totalorder %s17, 1
        %s3179 = scalar_select %p3178, %s17, 1
        %s3180 = smul.addr %s3179, 32
        %s3181 = smul.addr %s3180, 8
        %s3182 = scalar_lea.vmem %s2, %s3181
      $region48: #{double_conv_forward.3} parent=43 // pred_fallthru
        _
      // Predicated region
      $region49: #{double_conv_forward.3} parent=43 // pred_check
        %p3183 = pneg %p113
      $region50: #{double_conv_forward.3} parent=43 // pred_check_branch
        %3185 = sbr.rel (%p3183) target = $region52
      $region51: #{double_conv_forward.3} parent=43 // pred_region
        %p3186 = scmp.lt.s32.totalorder %s17, 1
        %s3187 = scalar_select %p3186, %s17, 1
        %s3188 = scalar_lea.vmem %s3, %s3187
      $region52: #{double_conv_forward.3} parent=43 // pred_fallthru
        _
      // Predicated region
      $region53: #{double_conv_forward.3} parent=43 // pred_check
        %p3189 = pneg %p139
      $region54: #{double_conv_forward.3} parent=43 // pred_check_branch
        %3191 = sbr.rel (%p3189) target = $region56
      $region55: #{double_conv_forward.3} parent=43 // pred_region
        %p3192 = scmp.lt.s32.totalorder %s17, 1
        %s3193 = scalar_select %p3192, %s17, 1
        %s3194 = scalar_lea.vmem %s4, %s3193
      $region56: #{double_conv_forward.3} parent=43 // pred_fallthru
        _
    $region44: #{double_conv_forward.3} parent=5 // pred_fallthru
      _
  $region6: #{double_conv_forward.3} parent=0 // loop_footer
    %s15 = sadd.s32 1, %s11
  $region7: #{double_conv_forward.3} parent=0 // loop_footer_branch
    %10 = sbr.rel target = $region3
  $region8: #{double_conv_forward.3} parent=0 // loop_exit
    _

// kernel: double_conv_forward.5
$region0: #{double_conv_forward.5}
  #allocation0 [shape = 'u32[]', space=smem, size = 0x4, offset = 0x4, fixed_abs, tag = 'smem constant byte address 0x4 - core index']
  #allocation1 [shape = 'u32[144,128]{1,0:T(1,128)}', space=vmem, size = 0x12000, scoped, tag = 'internal scratch']
  %s0 = inlined_call_operand.vmem [shape: f32[32,128], index: 0, kind: input, shape index: {}]
  %s1 = inlined_call_operand.vmem [shape: f32[1,128], index: 1, kind: input, shape index: {}]
  %s2 = inlined_call_operand.vmem [shape: f32[1,128], index: 2, kind: input, shape index: {}]
  %s3 = inlined_call_operand.vmem [shape: f32[32,128], index: 3, kind: output, shape index: {}]
  %s4 = sld [smem:[#allocation0]]
  $region22: #{double_conv_forward.5} parent=0
    _
  %s6 = ssub.s32 1, %s4
  %s7 = scalar_select 0, %s6, %s4
  // Predicated region
  $region2: #{double_conv_forward.5} parent=0 // pred_check
    _
  $region3: #{double_conv_forward.5} parent=0 // pred_check_branch
    %9 = sbr.rel (0) target = $region5
  $region4: #{double_conv_forward.5} parent=0 // pred_region
    _
  $region5: #{double_conv_forward.5} parent=0 // pred_fallthru
    _
  // Predicated region
  $region6: #{double_conv_forward.5} parent=0 // pred_check
    _
  $region7: #{double_conv_forward.5} parent=0 // pred_check_branch
    %11 = sbr.rel (0) target = $region9
  $region8: #{double_conv_forward.5} parent=0 // pred_region
    _
  $region9: #{double_conv_forward.5} parent=0 // pred_fallthru
    _
  // Predicated region
  $region10: #{double_conv_forward.5} parent=0 // pred_check
    _
  $region11: #{double_conv_forward.5} parent=0 // pred_check_branch
    %13 = sbr.rel (0) target = $region13
  $region12: #{double_conv_forward.5} parent=0 // pred_region
    _
  $region13: #{double_conv_forward.5} parent=0 // pred_fallthru
    _
  %v14 = vld [vmem:[%s0] sm:$0xff]
  %v15 = vld [vmem:[%s0 + $0x8] sm:$0xff]
  %v16 = vld [vmem:[%s0 + $0x10] sm:$0xff]
  %v17 = vld [vmem:[%s0 + $0x18] sm:$0xff]
  %v18 = vld [vmem:[%s1] sm:$0x1]
  %v20 = vlaneseq
  %v21 = vshrl.u32 %v20, 7
  %v22 = vsub.s32 0, %v21
  %v23 = vrot.slane %v18, %v22
  %v25 = vmul.f32 %v14, %v23
  %v26 = vmul.f32 %v15, %v23
  %v27 = vmul.f32 %v16, %v23
  %v28 = vmul.f32 %v17, %v23
  %v29 = vld [vmem:[%s2] sm:$0x1]
  %v31 = vlaneseq
  %v32 = vshrl.u32 %v31, 7
  %v33 = vsub.s32 0, %v32
  %v34 = vrot.slane %v29, %v33
  %v36 = vadd.f32 %v25, %v34
  %v37 = vadd.f32 %v26, %v34
  %v38 = vadd.f32 %v27, %v34
  %v39 = vadd.f32 %v28, %v34
  %v40 = vmax.f32 %v36, 0.0
  %v41 = vmax.f32 %v37, 0.0
  %v42 = vmax.f32 %v38, 0.0
  %v43 = vmax.f32 %v39, 0.0
  %44 = vst [vmem:[%s3] sm:$0xff] %v40
  %45 = vst [vmem:[%s3 + $0x8] sm:$0xff] %v41
  %46 = vst [vmem:[%s3 + $0x10] sm:$0xff] %v42
  %47 = vst [vmem:[%s3 + $0x18] sm:$0xff] %v43
  // Predicated region
  $region14: #{double_conv_forward.5} parent=0 // pred_check
    _
  $region15: #{double_conv_forward.5} parent=0 // pred_check_branch
    %49 = sbr.rel (0) target = $region17
  $region16: #{double_conv_forward.5} parent=0 // pred_region
    _
  $region17: #{double_conv_forward.5} parent=0 // pred_fallthru
    _
  // Predicated region
  $region18: #{double_conv_forward.5} parent=0 // pred_check
    _
  $region19: #{double_conv_forward.5} parent=0 // pred_check_branch
    %51 = sbr.rel (0) target = $region21
  $region20: #{double_conv_forward.5} parent=0 // pred_region
    _
  $region21: #{double_conv_forward.5} parent=0 // pred_fallthru
    _

// kernel: double_conv_forward.4
$region0: #{double_conv_forward.4}
  #allocation0 [shape = 'u32[]', space=smem, size = 0x4, offset = 0x4, fixed_abs, tag = 'smem constant byte address 0x4 - core index']
  #allocation1 [shape = 'u32[144,128]{1,0:T(1,128)}', space=vmem, size = 0x12000, scoped, tag = 'internal scratch']
  %s0 = inlined_call_operand.vmem [shape: f32[2,3,288,8], index: 0, kind: input, shape index: {}]
  %s1 = inlined_call_operand.vmem [shape: f32[9,8,8], index: 1, kind: input, shape index: {}]
  %s2 = inlined_call_operand.vmem [shape: f32[1,8], index: 2, kind: input, shape index: {}]
  %s3 = inlined_call_operand.vmem [shape: f32[1,8], index: 3, kind: input, shape index: {}]
  %s4 = inlined_call_operand.vmem [shape: f32[3,288,1], index: 4, kind: input, shape index: {}]
  %s5 = inlined_call_operand.vmem [shape: f32[2,256,8], index: 5, kind: output, shape index: {0}]
  %s6 = inlined_call_operand.vmem [shape: f32[2,1,8], index: 6, kind: output, shape index: {1}]
  %s7 = inlined_call_operand.vmem [shape: f32[2,1,8], index: 7, kind: output, shape index: {2}]
  %8 = xla_tuple %s5, %s6, %s7
  %s9 = sld [smem:[#allocation0]]
  $region69: #{double_conv_forward.4} parent=0
    _
  %s11 = ssub.s32 1, %s9
  %s12 = scalar_select 0, %s11, %s9
  loop: start=0, step=1, limit=4
  $region2: #{double_conv_forward.4} parent=0 // loop_pre_header
    _
  $region3: #{double_conv_forward.4} parent=0 // loop_header
    %s14 = sphi 0, %s18
    %p15 = scmp.ge.s32.totalorder %s14, 4
    %s24 = sphi 0, %s26
    %s27 = sphi 0, %s24
    %s28 = sphi 0, %s27
    %s44 = sphi 0, %s28
    %s48 = sphi 0, %s48
    %s50 = sphi 0, %s48
    %s51 = sphi 0, %s50
    %s65 = sphi 0, %s51
    %s69 = sphi 0, %s69
    %s71 = sphi 0, %s69
    %s72 = sphi 0, %s71
    %s86 = sphi 0, %s72
    %s90 = sphi 0, %s90
    %s92 = sphi 0, %s90
    %s93 = sphi 0, %s92
    %s107 = sphi 0, %s93
    %s111 = sphi 0, %s111
    %s113 = sphi 0, %s111
    %s114 = sphi 0, %s113
    %s128 = sphi 0, %s114
    %s134 = sphi 0, %s136
    %s137 = sphi 0, %s134
    %s138 = sphi 0, %s137
    %s154 = sphi 0, %s138
    %s160 = sphi 0, %s162
    %s163 = sphi 0, %s160
    %s164 = sphi 0, %s163
    %s180 = sphi 0, %s164
    %s186 = sphi 0, %s188
    %s189 = sphi 0, %s186
    %s190 = sphi 0, %s189
    %s206 = sphi 0, %s190
  $region4: #{double_conv_forward.4} parent=0 // loop_header_branch
    %17 = sbr.rel (%p15) target = $region8
  $region5: #{double_conv_forward.4} parent=0 // loop_body
    %s19 = ssub.s32 %s14, 1
    %s20 = ssub.s32 %s14, 2
    %s21 = sadd.s32 %s14, 1
    %s22 = ssub.s32 %s14, %s21
    %p23 = scmp.eq.s32.totalorder %s22, 0
    %s25 = sadd.s32 %s24, 1
    %s26 = scalar_select %p23, %s24, %s25
    %p29 = pneg %p23
    %p30 = scmp.eq.s32.totalorder %s14, 1
    %p31 = por %p29, %p30
    %p32 = scmp.ne.s32.totalorder %s24, %s27
    %p33 = scmp.eq.s32.totalorder %s14, 0
    %p34 = por %p32, %p33
    %p35 = scmp.ne.s32.totalorder %s24, %s27
    %p36 = scmp.eq.s32.totalorder %s19, 1
    %p37 = por %p35, %p36
    %p38 = scmp.ne.s32.totalorder %s27, %s28
    %p39 = scmp.eq.s32.totalorder %s19, 0
    %p40 = por %p38, %p39
    %p41 = scmp.ne.s32.totalorder %s27, %s28
    %p42 = scmp.eq.s32.totalorder %s20, 1
    %p43 = por %p41, %p42
    %p45 = scmp.ne.s32.totalorder %s28, %s44
    %p46 = scmp.eq.s32.totalorder %s20, 0
    %p47 = por %p45, %p46
    %s49 = sadd.s32 %s48, 1
    %p52 = scmp.eq.s32.totalorder %s14, 1
    %p53 = scmp.ne.s32.totalorder %s48, %s50
    %p54 = scmp.eq.s32.totalorder %s14, 0
    %p55 = por %p53, %p54
    %p56 = scmp.ne.s32.totalorder %s48, %s50
    %p57 = scmp.eq.s32.totalorder %s19, 1
    %p58 = por %p56, %p57
    %p59 = scmp.ne.s32.totalorder %s50, %s51
    %p60 = scmp.eq.s32.totalorder %s19, 0
    %p61 = por %p59, %p60
    %p62 = scmp.ne.s32.totalorder %s50, %s51
    %p63 = scmp.eq.s32.totalorder %s20, 1
    %p64 = por %p62, %p63
    %p66 = scmp.ne.s32.totalorder %s51, %s65
    %p67 = scmp.eq.s32.totalorder %s20, 0
    %p68 = por %p66, %p67
    %s70 = sadd.s32 %s69, 1
    %p73 = scmp.eq.s32.totalorder %s14, 1
    %p74 = scmp.ne.s32.totalorder %s69, %s71
    %p75 = scmp.eq.s32.totalorder %s14, 0
    %p76 = por %p74, %p75
    %p77 = scmp.ne.s32.totalorder %s69, %s71
    %p78 = scmp.eq.s32.totalorder %s19, 1
    %p79 = por %p77, %p78
    %p80 = scmp.ne.s32.totalorder %s71, %s72
    %p81 = scmp.eq.s32.totalorder %s19, 0
    %p82 = por %p80, %p81
    %p83 = scmp.ne.s32.totalorder %s71, %s72
    %p84 = scmp.eq.s32.totalorder %s20, 1
    %p85 = por %p83, %p84
    %p87 = scmp.ne.s32.totalorder %s72, %s86
    %p88 = scmp.eq.s32.totalorder %s20, 0
    %p89 = por %p87, %p88
    %s91 = sadd.s32 %s90, 1
    %p94 = scmp.eq.s32.totalorder %s14, 1
    %p95 = scmp.ne.s32.totalorder %s90, %s92
    %p96 = scmp.eq.s32.totalorder %s14, 0
    %p97 = por %p95, %p96
    %p98 = scmp.ne.s32.totalorder %s90, %s92
    %p99 = scmp.eq.s32.totalorder %s19, 1
    %p100 = por %p98, %p99
    %p101 = scmp.ne.s32.totalorder %s92, %s93
    %p102 = scmp.eq.s32.totalorder %s19, 0
    %p103 = por %p101, %p102
    %p104 = scmp.ne.s32.totalorder %s92, %s93
    %p105 = scmp.eq.s32.totalorder %s20, 1
    %p106 = por %p104, %p105
    %p108 = scmp.ne.s32.totalorder %s93, %s107
    %p109 = scmp.eq.s32.totalorder %s20, 0
    %p110 = por %p108, %p109
    %s112 = sadd.s32 %s111, 1
    %p115 = scmp.eq.s32.totalorder %s14, 1
    %p116 = scmp.ne.s32.totalorder %s111, %s113
    %p117 = scmp.eq.s32.totalorder %s14, 0
    %p118 = por %p116, %p117
    %p119 = scmp.ne.s32.totalorder %s111, %s113
    %p120 = scmp.eq.s32.totalorder %s19, 1
    %p121 = por %p119, %p120
    %p122 = scmp.ne.s32.totalorder %s113, %s114
    %p123 = scmp.eq.s32.totalorder %s19, 0
    %p124 = por %p122, %p123
    %p125 = scmp.ne.s32.totalorder %s113, %s114
    %p126 = scmp.eq.s32.totalorder %s20, 1
    %p127 = por %p125, %p126
    %p129 = scmp.ne.s32.totalorder %s114, %s128
    %p130 = scmp.eq.s32.totalorder %s20, 0
    %p131 = por %p129, %p130
    %s132 = ssub.s32 %s14, %s21
    %p133 = scmp.eq.s32.totalorder %s132, 0
    %s135 = sadd.s32 %s134, 1
    %s136 = scalar_select %p133, %s134, %s135
    %p139 = pneg %p133
    %p140 = scmp.eq.s32.totalorder %s14, 1
    %p141 = por %p139, %p140
    %p142 = scmp.ne.s32.totalorder %s134, %s137
    %p143 = scmp.eq.s32.totalorder %s14, 0
    %p144 = por %p142, %p143
    %p145 = scmp.ne.s32.totalorder %s134, %s137
    %p146 = scmp.eq.s32.totalorder %s19, 1
    %p147 = por %p145, %p146
    %p148 = scmp.ne.s32.totalorder %s137, %s138
    %p149 = scmp.eq.s32.totalorder %s19, 0
    %p150 = por %p148, %p149
    %p151 = scmp.ne.s32.totalorder %s137, %s138
    %p152 = scmp.eq.s32.totalorder %s20, 1
    %p153 = por %p151, %p152
    %p155 = scmp.ne.s32.totalorder %s138, %s154
    %p156 = scmp.eq.s32.totalorder %s20, 0
    %p157 = por %p155, %p156
    %s158 = ssub.s32 %s14, %s21
    %p159 = scmp.eq.s32.totalorder %s158, 0
    %s161 = sadd.s32 %s160, 1
    %s162 = scalar_select %p159, %s160, %s161
    %p165 = pneg %p159
    %p166 = scmp.eq.s32.totalorder %s14, 1
    %p167 = por %p165, %p166
    %p168 = scmp.ne.s32.totalorder %s160, %s163
    %p169 = scmp.eq.s32.totalorder %s14, 0
    %p170 = por %p168, %p169
    %p171 = scmp.ne.s32.totalorder %s160, %s163
    %p172 = scmp.eq.s32.totalorder %s19, 1
    %p173 = por %p171, %p172
    %p174 = scmp.ne.s32.totalorder %s163, %s164
    %p175 = scmp.eq.s32.totalorder %s19, 0
    %p176 = por %p174, %p175
    %p177 = scmp.ne.s32.totalorder %s163, %s164
    %p178 = scmp.eq.s32.totalorder %s20, 1
    %p179 = por %p177, %p178
    %p181 = scmp.ne.s32.totalorder %s164, %s180
    %p182 = scmp.eq.s32.totalorder %s20, 0
    %p183 = por %p181, %p182
    %s184 = ssub.s32 %s14, %s21
    %p185 = scmp.eq.s32.totalorder %s184, 0
    %s187 = sadd.s32 %s186, 1
    %s188 = scalar_select %p185, %s186, %s187
    %p191 = pneg %p185
    %p192 = scmp.eq.s32.totalorder %s14, 1
    %p193 = por %p191, %p192
    %p194 = scmp.ne.s32.totalorder %s186, %s189
    %p195 = scmp.eq.s32.totalorder %s14, 0
    %p196 = por %p194, %p195
    %p197 = scmp.ne.s32.totalorder %s186, %s189
    %p198 = scmp.eq.s32.totalorder %s19, 1
    %p199 = por %p197, %p198
    %p200 = scmp.ne.s32.totalorder %s189, %s190
    %p201 = scmp.eq.s32.totalorder %s19, 0
    %p202 = por %p200, %p201
    %p203 = scmp.ne.s32.totalorder %s189, %s190
    %p204 = scmp.eq.s32.totalorder %s20, 1
    %p205 = por %p203, %p204
    %p207 = scmp.ne.s32.totalorder %s190, %s206
    %p208 = scmp.eq.s32.totalorder %s20, 0
    %p209 = por %p207, %p208
    %p210 = scmp.le.s32.totalorder 1, %s14
    %p211 = scmp.lt.s32.totalorder %s14, 3
    %p212 = pnand %p210, %p211
    %p213 = pneg %p212
    // Predicated region
    $region9: #{double_conv_forward.4} parent=5 // pred_check
      _
    $region10: #{double_conv_forward.4} parent=5 // pred_check_branch
      %215 = sbr.rel (%p212) target = $region12
    $region11: #{double_conv_forward.4} parent=5 // pred_region
      %s216 = ssub.s32 %s14, 1
      // Predicated region
      $region13: #{double_conv_forward.4} parent=11 // pred_check
        %p217 = pneg %p61
      $region14: #{double_conv_forward.4} parent=11 // pred_check_branch
        %219 = sbr.rel (%p217) target = $region16
      $region15: #{double_conv_forward.4} parent=11 // pred_region
        _
      $region16: #{double_conv_forward.4} parent=11 // pred_fallthru
        _
      // Predicated region
      $region17: #{double_conv_forward.4} parent=11 // pred_check
        %p220 = pneg %p82
      $region18: #{double_conv_forward.4} parent=11 // pred_check_branch
        %222 = sbr.rel (%p220) target = $region20
      $region19: #{double_conv_forward.4} parent=11 // pred_region
        _
      $region20: #{double_conv_forward.4} parent=11 // pred_fallthru
        _
      // Predicated region
      $region21: #{double_conv_forward.4} parent=11 // pred_check
        %p223 = pneg %p103
      $region22: #{double_conv_forward.4} parent=11 // pred_check_branch
        %225 = sbr.rel (%p223) target = $region24
      $region23: #{double_conv_forward.4} parent=11 // pred_region
        _
      $region24: #{double_conv_forward.4} parent=11 // pred_fallthru
        _
      // Predicated region
      $region25: #{double_conv_forward.4} parent=11 // pred_check
        %p226 = pneg %p124
      $region26: #{double_conv_forward.4} parent=11 // pred_check_branch
        %228 = sbr.rel (%p226) target = $region28
      $region27: #{double_conv_forward.4} parent=11 // pred_region
        _
      $region28: #{double_conv_forward.4} parent=11 // pred_fallthru
        _
    $region12: #{double_conv_forward.4} parent=5 // pred_fallthru
      _
    %p229 = scmp.lt.s32.totalorder %s14, 2
    // Predicated region
    $region29: #{double_conv_forward.4} parent=5 // pred_check
      %p230 = pneg %p229
    $region30: #{double_conv_forward.4} parent=5 // pred_check_branch
      %232 = sbr.rel (%p230) target = $region32
    $region31: #{double_conv_forward.4} parent=5 // pred_region
      // Predicated region
      $region33: #{double_conv_forward.4} parent=31 // pred_check
        %p233 = pneg %p34
      $region34: #{double_conv_forward.4} parent=31 // pred_check_branch
        %235 = sbr.rel (%p233) target = $region36
      $region35: #{double_conv_forward.4} parent=31 // pred_region
        %p236 = scmp.lt.s32.totalorder %s14, 1
        %s237 = scalar_select %p236, %s14, 1
        %s238 = smul.addr %s237, 108
        %s239 = smul.addr %s238, 8
        %s240 = scalar_lea.vmem %s0, %s239
      $region36: #{double_conv_forward.4} parent=31 // pred_fallthru
        _
    $region32: #{double_conv_forward.4} parent=5 // pred_fallthru
      _
    %p241 = scmp.le.s32.totalorder 1, %s14
    %p242 = scmp.lt.s32.totalorder %s14, 3
    %p243 = pnand %p241, %p242
    %p244 = pneg %p243
    // Predicated region
    $region37: #{double_conv_forward.4} parent=5 // pred_check
      _
    $region38: #{double_conv_forward.4} parent=5 // pred_check_branch
      %246 = sbr.rel (%p243) target = $region40
    $region39: #{double_conv_forward.4} parent=5 // pred_region
      %s247 = ssub.s32 %s14, 1
      %p248 = scmp.lt.s32.totalorder %s19, 1
      %s249 = scalar_select %p248, %s19, 1
      %s250 = smul.addr %s249, 108
      %s251 = smul.addr %s250, 8
      %s252 = scalar_lea.vmem %s0, %s251
      %p253 = pneg %p40
      %p254 = pneg %p37
      %p255 = pneg %p61
      %p256 = pneg %p58
      %p257 = pneg %p82
      %p258 = pneg %p79
      %p259 = pneg %p103
      %p260 = pneg %p100
      %p261 = pneg %p124
      %p262 = pneg %p121
      %p263 = pneg %p150
      %p264 = pneg %p147
      %p265 = scmp.lt.s32.totalorder %s19, 1
      %s266 = scalar_select %p265, %s19, 1
      %s267 = smul.addr %s266, 32
      %s268 = smul.addr %s267, 8
      %s269 = scalar_lea.vmem %s5, %s268
      %p270 = pneg %p176
      %p271 = pneg %p173
      %p272 = scmp.lt.s32.totalorder %s19, 1
      %s273 = scalar_select %p272, %s19, 1
      %s274 = scalar_lea.vmem %s6, %s273
      %p275 = pneg %p202
      %p276 = pneg %p199
      %p277 = scmp.lt.s32.totalorder %s19, 1
      %s278 = scalar_select %p277, %s19, 1
      %s279 = scalar_lea.vmem %s7, %s278
      %p280 = scmp.lt.s32.totalorder %s19, 1
      %s281 = scalar_select %p280, %s19, 1
      %s282 = smul.addr %s281, 108
      %s283 = smul.addr %s282, 8
      %s284 = scalar_lea.vmem %s0, %s283
      %p285 = scmp.lt.s32.totalorder %s19, 1
      %s286 = scalar_select %p285, %s19, 1
      %s287 = smul.addr %s286, 32
      %s288 = smul.addr %s287, 8
      %s289 = scalar_lea.vmem %s5, %s288
      %p290 = scmp.lt.s32.totalorder %s19, 1
      %s291 = scalar_select %p290, %s19, 1
      %s292 = scalar_lea.vmem %s6, %s291
      %p293 = scmp.lt.s32.totalorder %s19, 1
      %s294 = scalar_select %p293, %s19, 1
      %s295 = scalar_lea.vmem %s7, %s294
      %v296 = vld [vmem:[%s284] sm:$0xff]
      %v297 = vld [vmem:[%s284 + $0x8] sm:$0xff]
      %v298 = vld [vmem:[%s284 + $0x10] sm:$0xff]
      %v299 = vld [vmem:[%s284 + $0x18] sm:$0xff]
      %v300 = vld [vmem:[%s284 + $0x20] sm:$0xff]
      %v301 = vld [vmem:[%s284 + $0x28] sm:$0xff]
      %v302 = vld [vmem:[%s284 + $0x30] sm:$0xff]
      %v303 = vld [vmem:[%s284 + $0x38] sm:$0xff]
      %v304 = vld [vmem:[%s284 + $0x40] sm:$0xff]
      %v305 = vld [vmem:[%s284 + $0x48] sm:$0xff]
      %v306 = vld [vmem:[%s284 + $0x50] sm:$0xff]
      %v307 = vld [vmem:[%s284 + $0x58] sm:$0xff]
      %v308 = vld [vmem:[%s284 + $0x60] sm:$0xff]
      %v309 = vld [vmem:[%s284 + $0x68] sm:$0xff]
      %v310 = vld [vmem:[%s284 + $0x70] sm:$0xff]
      %v311 = vld [vmem:[%s284 + $0x78] sm:$0xff]
      %v312 = vld [vmem:[%s284 + $0x80] sm:$0xff]
      %v313 = vld [vmem:[%s284 + $0x88] sm:$0xff]
      %v314 = vld [vmem:[%s284 + $0x90] sm:$0xff]
      %v315 = vld [vmem:[%s284 + $0x98] sm:$0xff]
      %v316 = vld [vmem:[%s284 + $0xa0] sm:$0xff]
      %v317 = vld [vmem:[%s284 + $0xa8] sm:$0xff]
      %v318 = vld [vmem:[%s284 + $0xb0] sm:$0xff]
      %v319 = vld [vmem:[%s284 + $0xb8] sm:$0xff]
      %v320 = vld [vmem:[%s284 + $0xc0] sm:$0xff]
      %v321 = vld [vmem:[%s284 + $0xc8] sm:$0xff]
      %v322 = vld [vmem:[%s284 + $0xd0] sm:$0xff]
      %v323 = vld [vmem:[%s284 + $0xd8] sm:$0xff]
      %v324 = vld [vmem:[%s284 + $0xe0] sm:$0xff]
      %v325 = vld [vmem:[%s284 + $0xe8] sm:$0xff]
      %v326 = vld [vmem:[%s284 + $0xf0] sm:$0xff]
      %v327 = vld [vmem:[%s284 + $0xf8] sm:$0xff]
      %v328 = vld [vmem:[%s284 + $0x100] sm:$0xff]
      %v329 = vld [vmem:[%s284 + $0x108] sm:$0xff]
      %v330 = vld [vmem:[%s284 + $0x110] sm:$0xff]
      %v331 = vld [vmem:[%s284 + $0x118] sm:$0xff]
      %v332 = vld [vmem:[%s2] sm:$0x1]
      %v334 = vlaneseq
      %v335 = vshrl.u32 %v334, 7
      %v336 = vsub.s32 0, %v335
      %v337 = vrot.slane %v332, %v336
      %v339 = vmul.f32 %v296, %v337
      %v340 = vmul.f32 %v297, %v337
      %v341 = vmul.f32 %v298, %v337
      %v342 = vmul.f32 %v299, %v337
      %v343 = vmul.f32 %v300, %v337
      %v344 = vmul.f32 %v301, %v337
      %v345 = vmul.f32 %v302, %v337
      %v346 = vmul.f32 %v303, %v337
      %v347 = vmul.f32 %v304, %v337
      %v348 = vmul.f32 %v305, %v337
      %v349 = vmul.f32 %v306, %v337
      %v350 = vmul.f32 %v307, %v337
      %v351 = vmul.f32 %v308, %v337
      %v352 = vmul.f32 %v309, %v337
      %v353 = vmul.f32 %v310, %v337
      %v354 = vmul.f32 %v311, %v337
      %v355 = vmul.f32 %v312, %v337
      %v356 = vmul.f32 %v313, %v337
      %v357 = vmul.f32 %v314, %v337
      %v358 = vmul.f32 %v315, %v337
      %v359 = vmul.f32 %v316, %v337
      %v360 = vmul.f32 %v317, %v337
      %v361 = vmul.f32 %v318, %v337
      %v362 = vmul.f32 %v319, %v337
      %v363 = vmul.f32 %v320, %v337
      %v364 = vmul.f32 %v321, %v337
      %v365 = vmul.f32 %v322, %v337
      %v366 = vmul.f32 %v323, %v337
      %v367 = vmul.f32 %v324, %v337
      %v368 = vmul.f32 %v325, %v337
      %v369 = vmul.f32 %v326, %v337
      %v370 = vmul.f32 %v327, %v337
      %v371 = vmul.f32 %v328, %v337
      %v372 = vmul.f32 %v329, %v337
      %v373 = vmul.f32 %v330, %v337
      %v374 = vmul.f32 %v331, %v337
      %v375 = vld [vmem:[%s3] sm:$0x1]
      %v377 = vlaneseq
      %v378 = vshrl.u32 %v377, 7
      %v379 = vsub.s32 0, %v378
      %v380 = vrot.slane %v375, %v379
      %v382 = vadd.f32 %v339, %v380
      %v383 = vadd.f32 %v340, %v380
      %v384 = vadd.f32 %v341, %v380
      %v385 = vadd.f32 %v342, %v380
      %v386 = vadd.f32 %v343, %v380
      %v387 = vadd.f32 %v344, %v380
      %v388 = vadd.f32 %v345, %v380
      %v389 = vadd.f32 %v346, %v380
      %v390 = vadd.f32 %v347, %v380
      %v391 = vadd.f32 %v348, %v380
      %v392 = vadd.f32 %v349, %v380
      %v393 = vadd.f32 %v350, %v380
      %v394 = vadd.f32 %v351, %v380
      %v395 = vadd.f32 %v352, %v380
      %v396 = vadd.f32 %v353, %v380
      %v397 = vadd.f32 %v354, %v380
      %v398 = vadd.f32 %v355, %v380
      %v399 = vadd.f32 %v356, %v380
      %v400 = vadd.f32 %v357, %v380
      %v401 = vadd.f32 %v358, %v380
      %v402 = vadd.f32 %v359, %v380
      %v403 = vadd.f32 %v360, %v380
      %v404 = vadd.f32 %v361, %v380
      %v405 = vadd.f32 %v362, %v380
      %v406 = vadd.f32 %v363, %v380
      %v407 = vadd.f32 %v364, %v380
      %v408 = vadd.f32 %v365, %v380
      %v409 = vadd.f32 %v366, %v380
      %v410 = vadd.f32 %v367, %v380
      %v411 = vadd.f32 %v368, %v380
      %v412 = vadd.f32 %v369, %v380
      %v413 = vadd.f32 %v370, %v380
      %v414 = vadd.f32 %v371, %v380
      %v415 = vadd.f32 %v372, %v380
      %v416 = vadd.f32 %v373, %v380
      %v417 = vadd.f32 %v374, %v380
      %v418 = vmax.f32 %v382, 0.0
      %v419 = vmax.f32 %v383, 0.0
      %v420 = vmax.f32 %v384, 0.0
      %v421 = vmax.f32 %v385, 0.0
      %v422 = vmax.f32 %v386, 0.0
      %v423 = vmax.f32 %v387, 0.0
      %v424 = vmax.f32 %v388, 0.0
      %v425 = vmax.f32 %v389, 0.0
      %v426 = vmax.f32 %v390, 0.0
      %v427 = vmax.f32 %v391, 0.0
      %v428 = vmax.f32 %v392, 0.0
      %v429 = vmax.f32 %v393, 0.0
      %v430 = vmax.f32 %v394, 0.0
      %v431 = vmax.f32 %v395, 0.0
      %v432 = vmax.f32 %v396, 0.0
      %v433 = vmax.f32 %v397, 0.0
      %v434 = vmax.f32 %v398, 0.0
      %v435 = vmax.f32 %v399, 0.0
      %v436 = vmax.f32 %v400, 0.0
      %v437 = vmax.f32 %v401, 0.0
      %v438 = vmax.f32 %v402, 0.0
      %v439 = vmax.f32 %v403, 0.0
      %v440 = vmax.f32 %v404, 0.0
      %v441 = vmax.f32 %v405, 0.0
      %v442 = vmax.f32 %v406, 0.0
      %v443 = vmax.f32 %v407, 0.0
      %v444 = vmax.f32 %v408, 0.0
      %v445 = vmax.f32 %v409, 0.0
      %v446 = vmax.f32 %v410, 0.0
      %v447 = vmax.f32 %v411, 0.0
      %v448 = vmax.f32 %v412, 0.0
      %v449 = vmax.f32 %v413, 0.0
      %v450 = vmax.f32 %v414, 0.0
      %v451 = vmax.f32 %v415, 0.0
      %v452 = vmax.f32 %v416, 0.0
      %v453 = vmax.f32 %v417, 0.0
      %v454 = vld [vmem:[%s4] sm:$0xff]
      %v455 = vld [vmem:[%s4 + $0x8] sm:$0xff]
      %v456 = vld [vmem:[%s4 + $0x10] sm:$0xff]
      %v457 = vld [vmem:[%s4 + $0x18] sm:$0xff]
      %v458 = vld [vmem:[%s4 + $0x20] sm:$0xff]
      %v459 = vld [vmem:[%s4 + $0x28] sm:$0xff]
      %v460 = vld [vmem:[%s4 + $0x30] sm:$0xff]
      %v461 = vld [vmem:[%s4 + $0x38] sm:$0xff]
      %v462 = vld [vmem:[%s4 + $0x40] sm:$0xff]
      %v463 = vld [vmem:[%s4 + $0x48] sm:$0xff]
      %v464 = vld [vmem:[%s4 + $0x50] sm:$0xff]
      %v465 = vld [vmem:[%s4 + $0x58] sm:$0xff]
      %v466 = vld [vmem:[%s4 + $0x60] sm:$0xff]
      %v467 = vld [vmem:[%s4 + $0x68] sm:$0xff]
      %v468 = vld [vmem:[%s4 + $0x70] sm:$0xff]
      %v469 = vld [vmem:[%s4 + $0x78] sm:$0xff]
      %v470 = vld [vmem:[%s4 + $0x80] sm:$0xff]
      %v471 = vld [vmem:[%s4 + $0x88] sm:$0xff]
      %v472 = vld [vmem:[%s4 + $0x90] sm:$0xff]
      %v473 = vld [vmem:[%s4 + $0x98] sm:$0xff]
      %v474 = vld [vmem:[%s4 + $0xa0] sm:$0xff]
      %v475 = vld [vmem:[%s4 + $0xa8] sm:$0xff]
      %v476 = vld [vmem:[%s4 + $0xb0] sm:$0xff]
      %v477 = vld [vmem:[%s4 + $0xb8] sm:$0xff]
      %v478 = vld [vmem:[%s4 + $0xc0] sm:$0xff]
      %v479 = vld [vmem:[%s4 + $0xc8] sm:$0xff]
      %v480 = vld [vmem:[%s4 + $0xd0] sm:$0xff]
      %v481 = vld [vmem:[%s4 + $0xd8] sm:$0xff]
      %v482 = vld [vmem:[%s4 + $0xe0] sm:$0xff]
      %v483 = vld [vmem:[%s4 + $0xe8] sm:$0xff]
      %v484 = vld [vmem:[%s4 + $0xf0] sm:$0xff]
      %v485 = vld [vmem:[%s4 + $0xf8] sm:$0xff]
      %v486 = vld [vmem:[%s4 + $0x100] sm:$0xff]
      %v487 = vld [vmem:[%s4 + $0x108] sm:$0xff]
      %v488 = vld [vmem:[%s4 + $0x110] sm:$0xff]
      %v489 = vld [vmem:[%s4 + $0x118] sm:$0xff]
      %491 = vset.pattern.permute.xlu0 0
      %492 = vperm.xlu0 %491, %v454
      %v493 = vpop.permute.xlu0 %492
      %496 = vset.pattern.permute.xlu0 0
      %497 = vperm.xlu0 %496, %v455
      %v498 = vpop.permute.xlu0 %497
      %501 = vset.pattern.permute.xlu0 0
      %502 = vperm.xlu0 %501, %v456
      %v503 = vpop.permute.xlu0 %502
      %506 = vset.pattern.permute.xlu0 0
      %507 = vperm.xlu0 %506, %v457
      %v508 = vpop.permute.xlu0 %507
      %511 = vset.pattern.permute.xlu0 0
      %512 = vperm.xlu0 %511, %v458
      %v513 = vpop.permute.xlu0 %512
      %516 = vset.pattern.permute.xlu0 0
      %517 = vperm.xlu0 %516, %v459
      %v518 = vpop.permute.xlu0 %517
      %521 = vset.pattern.permute.xlu0 0
      %522 = vperm.xlu0 %521, %v460
      %v523 = vpop.permute.xlu0 %522
      %526 = vset.pattern.permute.xlu0 0
      %527 = vperm.xlu0 %526, %v461
      %v528 = vpop.permute.xlu0 %527
      %531 = vset.pattern.permute.xlu0 0
      %532 = vperm.xlu0 %531, %v462
      %v533 = vpop.permute.xlu0 %532
      %536 = vset.pattern.permute.xlu0 0
      %537 = vperm.xlu0 %536, %v463
      %v538 = vpop.permute.xlu0 %537
      %541 = vset.pattern.permute.xlu0 0
      %542 = vperm.xlu0 %541, %v464
      %v543 = vpop.permute.xlu0 %542
      %546 = vset.pattern.permute.xlu0 0
      %547 = vperm.xlu0 %546, %v465
      %v548 = vpop.permute.xlu0 %547
      %551 = vset.pattern.permute.xlu0 0
      %552 = vperm.xlu0 %551, %v466
      %v553 = vpop.permute.xlu0 %552
      %556 = vset.pattern.permute.xlu0 0
      %557 = vperm.xlu0 %556, %v467
      %v558 = vpop.permute.xlu0 %557
      %561 = vset.pattern.permute.xlu0 0
      %562 = vperm.xlu0 %561, %v468
      %v563 = vpop.permute.xlu0 %562
      %566 = vset.pattern.permute.xlu0 0
      %567 = vperm.xlu0 %566, %v469
      %v568 = vpop.permute.xlu0 %567
      %571 = vset.pattern.permute.xlu0 0
      %572 = vperm.xlu0 %571, %v470
      %v573 = vpop.permute.xlu0 %572
      %576 = vset.pattern.permute.xlu0 0
      %577 = vperm.xlu0 %576, %v471
      %v578 = vpop.permute.xlu0 %577
      %581 = vset.pattern.permute.xlu0 0
      %582 = vperm.xlu0 %581, %v472
      %v583 = vpop.permute.xlu0 %582
      %586 = vset.pattern.permute.xlu0 0
      %587 = vperm.xlu0 %586, %v473
      %v588 = vpop.permute.xlu0 %587
      %591 = vset.pattern.permute.xlu0 0
      %592 = vperm.xlu0 %591, %v474
      %v593 = vpop.permute.xlu0 %592
      %596 = vset.pattern.permute.xlu0 0
      %597 = vperm.xlu0 %596, %v475
      %v598 = vpop.permute.xlu0 %597
      %601 = vset.pattern.permute.xlu0 0
      %602 = vperm.xlu0 %601, %v476
      %v603 = vpop.permute.xlu0 %602
      %606 = vset.pattern.permute.xlu0 0
      %607 = vperm.xlu0 %606, %v477
      %v608 = vpop.permute.xlu0 %607
      %611 = vset.pattern.permute.xlu0 0
      %612 = vperm.xlu0 %611, %v478
      %v613 = vpop.permute.xlu0 %612
      %616 = vset.pattern.permute.xlu0 0
      %617 = vperm.xlu0 %616, %v479
      %v618 = vpop.permute.xlu0 %617
      %621 = vset.pattern.permute.xlu0 0
      %622 = vperm.xlu0 %621, %v480
      %v623 = vpop.permute.xlu0 %622
      %626 = vset.pattern.permute.xlu0 0
      %627 = vperm.xlu0 %626, %v481
      %v628 = vpop.permute.xlu0 %627
      %631 = vset.pattern.permute.xlu0 0
      %632 = vperm.xlu0 %631, %v482
      %v633 = vpop.permute.xlu0 %632
      %636 = vset.pattern.permute.xlu0 0
      %637 = vperm.xlu0 %636, %v483
      %v638 = vpop.permute.xlu0 %637
      %641 = vset.pattern.permute.xlu0 0
      %642 = vperm.xlu0 %641, %v484
      %v643 = vpop.permute.xlu0 %642
      %646 = vset.pattern.permute.xlu0 0
      %647 = vperm.xlu0 %646, %v485
      %v648 = vpop.permute.xlu0 %647
      %651 = vset.pattern.permute.xlu0 0
      %652 = vperm.xlu0 %651, %v486
      %v653 = vpop.permute.xlu0 %652
      %656 = vset.pattern.permute.xlu0 0
      %657 = vperm.xlu0 %656, %v487
      %v658 = vpop.permute.xlu0 %657
      %661 = vset.pattern.permute.xlu0 0
      %662 = vperm.xlu0 %661, %v488
      %v663 = vpop.permute.xlu0 %662
      %666 = vset.pattern.permute.xlu0 0
      %667 = vperm.xlu0 %666, %v489
      %v668 = vpop.permute.xlu0 %667
      %v670 = vmul.f32 %v418, %v493
      %v671 = vmul.f32 %v419, %v498
      %v672 = vmul.f32 %v420, %v503
      %v673 = vmul.f32 %v421, %v508
      %v674 = vmul.f32 %v422, %v513
      %v675 = vmul.f32 %v423, %v518
      %v676 = vmul.f32 %v424, %v523
      %v677 = vmul.f32 %v425, %v528
      %v678 = vmul.f32 %v426, %v533
      %v679 = vmul.f32 %v427, %v538
      %v680 = vmul.f32 %v428, %v543
      %v681 = vmul.f32 %v429, %v548
      %v682 = vmul.f32 %v430, %v553
      %v683 = vmul.f32 %v431, %v558
      %v684 = vmul.f32 %v432, %v563
      %v685 = vmul.f32 %v433, %v568
      %v686 = vmul.f32 %v434, %v573
      %v687 = vmul.f32 %v435, %v578
      %v688 = vmul.f32 %v436, %v583
      %v689 = vmul.f32 %v437, %v588
      %v690 = vmul.f32 %v438, %v593
      %v691 = vmul.f32 %v439, %v598
      %v692 = vmul.f32 %v440, %v603
      %v693 = vmul.f32 %v441, %v608
      %v694 = vmul.f32 %v442, %v613
      %v695 = vmul.f32 %v443, %v618
      %v696 = vmul.f32 %v444, %v623
      %v697 = vmul.f32 %v445, %v628
      %v698 = vmul.f32 %v446, %v633
      %v699 = vmul.f32 %v447, %v638
      %v700 = vmul.f32 %v448, %v643
      %v701 = vmul.f32 %v449, %v648
      %v702 = vmul.f32 %v450, %v653
      %v703 = vmul.f32 %v451, %v658
      %v704 = vmul.f32 %v452, %v663
      %v705 = vmul.f32 %v453, %v668
      %v706 = vld [vmem:[%s1] sm:$0xff]
      %s707 = scalar_lea.vmem %s1, 24
      %v708 = vld [vmem:[%s707] sm:$0xff]
      %vm709 = vcmask 64512
      %v711 = vsel %vm709, %v672, 0
      %v714 = vsel %vm709, %v673, 0
      %v717 = vsel %vm709, %v674, 0
      %v720 = vsel %vm709, %v675, 0
      %v723 = vsel %vm709, %v676, 0
      %v726 = vsel %vm709, %v677, 0
      %v729 = vsel %vm709, %v678, 0
      %v732 = vsel %vm709, %v679, 0
      %v735 = vsel %vm709, %v680, 0
      %v738 = vsel %vm709, %v681, 0
      %v741 = vsel %vm709, %v682, 0
      %v744 = vsel %vm709, %v683, 0
      %v747 = vsel %vm709, %v684, 0
      %v750 = vsel %vm709, %v685, 0
      %v753 = vsel %vm709, %v686, 0
      %v756 = vsel %vm709, %v687, 0
      %v759 = vsel %vm709, %v688, 0
      %v762 = vsel %vm709, %v689, 0
      %v765 = vsel %vm709, %v690, 0
      %v768 = vsel %vm709, %v691, 0
      %v771 = vsel %vm709, %v692, 0
      %v774 = vsel %vm709, %v693, 0
      %v777 = vsel %vm709, %v694, 0
      %v780 = vsel %vm709, %v695, 0
      %v783 = vsel %vm709, %v696, 0
      %v786 = vsel %vm709, %v697, 0
      %v789 = vsel %vm709, %v698, 0
      %v792 = vsel %vm709, %v699, 0
      %v795 = vsel %vm709, %v700, 0
      %v798 = vsel %vm709, %v701, 0
      %v801 = vsel %vm709, %v702, 0
      %v804 = vsel %vm709, %v703, 0
      %806 = vmatprep.subr.mxu0 0.0
      %807 = vmatpush1.msra.mxu0 0.0
      %808 = vmatprep.subr.mxu0 0.0
      %809 = vmatpush1.msra.mxu0 0.0
      %810 = vmatprep.subr.mxu0 0.0
      %811 = vmatpush1.msra.mxu0 0.0
      %812 = vmatprep.subr.mxu0 0.0
      %813 = vmatpush1.msra.mxu0 0.0
      %814 = vmatprep.subr.mxu0 0.0
      %815 = vmatpush1.msra.mxu0 0.0
      %816 = vmatprep.subr.mxu0 0.0
      %817 = vmatpush1.msra.mxu0 0.0
      %818 = vmatprep.subr.mxu0 0.0
      %819 = vmatpush1.msra.mxu0 0.0
      %820 = vmatprep.subr.mxu0 0.0
      %821 = vmatpush1.msra.mxu0 0.0
      %822 = vmatprep.subr.mxu0 0.0
      %823 = vmatpush1.msra.mxu0 0.0
      %824 = vmatprep.subr.mxu0 0.0
      %825 = vmatpush1.msra.mxu0 0.0
      %826 = vmatprep.subr.mxu0 0.0
      %827 = vmatpush1.msra.mxu0 0.0
      %828 = vmatprep.subr.mxu0 0.0
      %829 = vmatpush1.msra.mxu0 0.0
      %830 = vmatprep.subr.mxu0 0.0
      %831 = vmatpush1.msra.mxu0 0.0
      %832 = vmatprep.subr.mxu0 0.0
      %833 = vmatpush1.msra.mxu0 0.0
      %834 = vmatprep.subr.mxu0 0.0
      %835 = vmatpush1.msra.mxu0 0.0
      %836 = vmatprep.subr.mxu0 0.0
      %837 = vmatpush1.msra.mxu0 %v708
      %838 = vmatprep.subr.mxu0 0.0
      %839 = vmatpush2.msra.mxu0 0.0
      %840 = vmatprep.subr.mxu0 0.0
      %841 = vmatpush2.msra.mxu0 0.0
      %842 = vmatprep.subr.mxu0 0.0
      %843 = vmatpush2.msra.mxu0 0.0
      %844 = vmatprep.subr.mxu0 0.0
      %845 = vmatpush2.msra.mxu0 0.0
      %846 = vmatprep.subr.mxu0 0.0
      %847 = vmatpush2.msra.mxu0 0.0
      %848 = vmatprep.subr.mxu0 0.0
      %849 = vmatpush2.msra.mxu0 0.0
      %850 = vmatprep.subr.mxu0 0.0
      %851 = vmatpush2.msra.mxu0 0.0
      %852 = vmatprep.subr.mxu0 0.0
      %853 = vmatpush2.msra.mxu0 0.0
      %854 = vmatprep.subr.mxu0 0.0
      %855 = vmatpush2.msra.mxu0 0.0
      %856 = vmatprep.subr.mxu0 0.0
      %857 = vmatpush2.msra.mxu0 0.0
      %858 = vmatprep.subr.mxu0 0.0
      %859 = vmatpush2.msra.mxu0 0.0
      %860 = vmatprep.subr.mxu0 0.0
      %861 = vmatpush2.msra.mxu0 0.0
      %862 = vmatprep.subr.mxu0 0.0
      %863 = vmatpush2.msra.mxu0 0.0
      %864 = vmatprep.subr.mxu0 0.0
      %865 = vmatpush2.msra.mxu0 0.0
      %866 = vmatprep.subr.mxu0 0.0
      %867 = vmatpush2.msra.mxu0 0.0
      %868 = vmatprep.subr.mxu0 0.0
      %869 = vmatpush2.msra.mxu0 0.0
      %870 = vmatprep.mubr.f32.mxu0 0.0
      %871 = vmatmul.mubr.f32.gmra.mxu0 %v711
      %v872 = vpop.f32.mrf.mxu0
      %v873 = vadd.f32 0.0, %v872
      %v874 = vpop.f32.mrf.mxu0
      %875 = vmatprep.mubr.f32.mxu0 0.0
      %876 = vmatmul.mubr.f32.gmra.mxu0 %v714
      %v877 = vpop.f32.mrf.mxu0
      %v878 = vadd.f32 0.0, %v877
      %v879 = vpop.f32.mrf.mxu0
      %880 = vmatprep.mubr.f32.mxu0 0.0
      %881 = vmatmul.mubr.f32.gmra.mxu0 %v717
      %v882 = vpop.f32.mrf.mxu0
      %v883 = vadd.f32 0.0, %v882
      %v884 = vpop.f32.mrf.mxu0
      %885 = vmatprep.mubr.f32.mxu0 0.0
      %886 = vmatmul.mubr.f32.gmra.mxu0 %v720
      %v887 = vpop.f32.mrf.mxu0
      %v888 = vadd.f32 0.0, %v887
      %v889 = vpop.f32.mrf.mxu0
      %890 = vmatprep.mubr.f32.mxu0 0.0
      %891 = vmatmul.mubr.f32.gmra.mxu0 %v723
      %v892 = vpop.f32.mrf.mxu0
      %v893 = vadd.f32 0.0, %v892
      %v894 = vpop.f32.mrf.mxu0
      %895 = vmatprep.mubr.f32.mxu0 0.0
      %896 = vmatmul.mubr.f32.gmra.mxu0 %v726
      %v897 = vpop.f32.mrf.mxu0
      %v898 = vadd.f32 0.0, %v897
      %v899 = vpop.f32.mrf.mxu0
      %900 = vmatprep.mubr.f32.mxu0 0.0
      %901 = vmatmul.mubr.f32.gmra.mxu0 %v729
      %v902 = vpop.f32.mrf.mxu0
      %v903 = vadd.f32 0.0, %v902
      %v904 = vpop.f32.mrf.mxu0
      %905 = vmatprep.mubr.f32.mxu0 0.0
      %906 = vmatmul.mubr.f32.gmra.mxu0 %v732
      %v907 = vpop.f32.mrf.mxu0
      %v908 = vadd.f32 0.0, %v907
      %v909 = vpop.f32.mrf.mxu0
      %910 = vmatprep.mubr.f32.mxu0 0.0
      %911 = vmatmul.mubr.f32.gmra.mxu0 %v735
      %v912 = vpop.f32.mrf.mxu0
      %v913 = vadd.f32 0.0, %v912
      %v914 = vpop.f32.mrf.mxu0
      %915 = vmatprep.mubr.f32.mxu0 0.0
      %916 = vmatmul.mubr.f32.gmra.mxu0 %v738
      %v917 = vpop.f32.mrf.mxu0
      %v918 = vadd.f32 0.0, %v917
      %v919 = vpop.f32.mrf.mxu0
      %920 = vmatprep.mubr.f32.mxu0 0.0
      %921 = vmatmul.mubr.f32.gmra.mxu0 %v741
      %v922 = vpop.f32.mrf.mxu0
      %v923 = vadd.f32 0.0, %v922
      %v924 = vpop.f32.mrf.mxu0
      %925 = vmatprep.mubr.f32.mxu0 0.0
      %926 = vmatmul.mubr.f32.gmra.mxu0 %v744
      %v927 = vpop.f32.mrf.mxu0
      %v928 = vadd.f32 0.0, %v927
      %v929 = vpop.f32.mrf.mxu0
      %930 = vmatprep.mubr.f32.mxu0 0.0
      %931 = vmatmul.mubr.f32.gmra.mxu0 %v747
      %v932 = vpop.f32.mrf.mxu0
      %v933 = vadd.f32 0.0, %v932
      %v934 = vpop.f32.mrf.mxu0
      %935 = vmatprep.mubr.f32.mxu0 0.0
      %936 = vmatmul.mubr.f32.gmra.mxu0 %v750
      %v937 = vpop.f32.mrf.mxu0
      %v938 = vadd.f32 0.0, %v937
      %v939 = vpop.f32.mrf.mxu0
      %940 = vmatprep.mubr.f32.mxu0 0.0
      %941 = vmatmul.mubr.f32.gmra.mxu0 %v753
      %v942 = vpop.f32.mrf.mxu0
      %v943 = vadd.f32 0.0, %v942
      %v944 = vpop.f32.mrf.mxu0
      %945 = vmatprep.mubr.f32.mxu0 0.0
      %946 = vmatmul.mubr.f32.gmra.mxu0 %v756
      %v947 = vpop.f32.mrf.mxu0
      %v948 = vadd.f32 0.0, %v947
      %v949 = vpop.f32.mrf.mxu0
      %950 = vmatprep.mubr.f32.mxu0 0.0
      %951 = vmatmul.mubr.f32.gmra.mxu0 %v759
      %v952 = vpop.f32.mrf.mxu0
      %v953 = vadd.f32 0.0, %v952
      %v954 = vpop.f32.mrf.mxu0
      %955 = vmatprep.mubr.f32.mxu0 0.0
      %956 = vmatmul.mubr.f32.gmra.mxu0 %v762
      %v957 = vpop.f32.mrf.mxu0
      %v958 = vadd.f32 0.0, %v957
      %v959 = vpop.f32.mrf.mxu0
      %960 = vmatprep.mubr.f32.mxu0 0.0
      %961 = vmatmul.mubr.f32.gmra.mxu0 %v765
      %v962 = vpop.f32.mrf.mxu0
      %v963 = vadd.f32 0.0, %v962
      %v964 = vpop.f32.mrf.mxu0
      %965 = vmatprep.mubr.f32.mxu0 0.0
      %966 = vmatmul.mubr.f32.gmra.mxu0 %v768
      %v967 = vpop.f32.mrf.mxu0
      %v968 = vadd.f32 0.0, %v967
      %v969 = vpop.f32.mrf.mxu0
      %970 = vmatprep.mubr.f32.mxu0 0.0
      %971 = vmatmul.mubr.f32.gmra.mxu0 %v771
      %v972 = vpop.f32.mrf.mxu0
      %v973 = vadd.f32 0.0, %v972
      %v974 = vpop.f32.mrf.mxu0
      %975 = vmatprep.mubr.f32.mxu0 0.0
      %976 = vmatmul.mubr.f32.gmra.mxu0 %v774
      %v977 = vpop.f32.mrf.mxu0
      %v978 = vadd.f32 0.0, %v977
      %v979 = vpop.f32.mrf.mxu0
      %980 = vmatprep.mubr.f32.mxu0 0.0
      %981 = vmatmul.mubr.f32.gmra.mxu0 %v777
      %v982 = vpop.f32.mrf.mxu0
      %v983 = vadd.f32 0.0, %v982
      %v984 = vpop.f32.mrf.mxu0
      %985 = vmatprep.mubr.f32.mxu0 0.0
      %986 = vmatmul.mubr.f32.gmra.mxu0 %v780
      %v987 = vpop.f32.mrf.mxu0
      %v988 = vadd.f32 0.0, %v987
      %v989 = vpop.f32.mrf.mxu0
      %990 = vmatprep.mubr.f32.mxu0 0.0
      %991 = vmatmul.mubr.f32.gmra.mxu0 %v783
      %v992 = vpop.f32.mrf.mxu0
      %v993 = vadd.f32 0.0, %v992
      %v994 = vpop.f32.mrf.mxu0
      %995 = vmatprep.mubr.f32.mxu0 0.0
      %996 = vmatmul.mubr.f32.gmra.mxu0 %v786
      %v997 = vpop.f32.mrf.mxu0
      %v998 = vadd.f32 0.0, %v997
      %v999 = vpop.f32.mrf.mxu0
      %1000 = vmatprep.mubr.f32.mxu0 0.0
      %1001 = vmatmul.mubr.f32.gmra.mxu0 %v789
      %v1002 = vpop.f32.mrf.mxu0
      %v1003 = vadd.f32 0.0, %v1002
      %v1004 = vpop.f32.mrf.mxu0
      %1005 = vmatprep.mubr.f32.mxu0 0.0
      %1006 = vmatmul.mubr.f32.gmra.mxu0 %v792
      %v1007 = vpop.f32.mrf.mxu0
      %v1008 = vadd.f32 0.0, %v1007
      %v1009 = vpop.f32.mrf.mxu0
      %1010 = vmatprep.mubr.f32.mxu0 0.0
      %1011 = vmatmul.mubr.f32.gmra.mxu0 %v795
      %v1012 = vpop.f32.mrf.mxu0
      %v1013 = vadd.f32 0.0, %v1012
      %v1014 = vpop.f32.mrf.mxu0
      %1015 = vmatprep.mubr.f32.mxu0 0.0
      %1016 = vmatmul.mubr.f32.gmra.mxu0 %v798
      %v1017 = vpop.f32.mrf.mxu0
      %v1018 = vadd.f32 0.0, %v1017
      %v1019 = vpop.f32.mrf.mxu0
      %1020 = vmatprep.mubr.f32.mxu0 0.0
      %1021 = vmatmul.mubr.f32.gmra.mxu0 %v801
      %v1022 = vpop.f32.mrf.mxu0
      %v1023 = vadd.f32 0.0, %v1022
      %v1024 = vpop.f32.mrf.mxu0
      %1025 = vmatprep.mubr.f32.mxu0 0.0
      %1026 = vmatmul.mubr.f32.gmra.mxu0 %v804
      %v1027 = vpop.f32.mrf.mxu0
      %v1028 = vadd.f32 0.0, %v1027
      %v1029 = vpop.f32.mrf.mxu0
      %1030 = vdwg.mxu0
      %v1032 = vsel %vm709, %v670, 0
      %v1035 = vsel %vm709, %v671, 0
      %1037 = vmatprep.subr.mxu0 0.0
      %1038 = vmatpush1.msra.mxu0 0.0
      %1039 = vmatprep.subr.mxu0 0.0
      %1040 = vmatpush1.msra.mxu0 0.0
      %1041 = vmatprep.subr.mxu0 0.0
      %1042 = vmatpush1.msra.mxu0 0.0
      %1043 = vmatprep.subr.mxu0 0.0
      %1044 = vmatpush1.msra.mxu0 0.0
      %1045 = vmatprep.subr.mxu0 0.0
      %1046 = vmatpush1.msra.mxu0 0.0
      %1047 = vmatprep.subr.mxu0 0.0
      %1048 = vmatpush1.msra.mxu0 0.0
      %1049 = vmatprep.subr.mxu0 0.0
      %1050 = vmatpush1.msra.mxu0 0.0
      %1051 = vmatprep.subr.mxu0 0.0
      %1052 = vmatpush1.msra.mxu0 0.0
      %1053 = vmatprep.subr.mxu0 0.0
      %1054 = vmatpush1.msra.mxu0 0.0
      %1055 = vmatprep.subr.mxu0 0.0
      %1056 = vmatpush1.msra.mxu0 0.0
      %1057 = vmatprep.subr.mxu0 0.0
      %1058 = vmatpush1.msra.mxu0 0.0
      %1059 = vmatprep.subr.mxu0 0.0
      %1060 = vmatpush1.msra.mxu0 0.0
      %1061 = vmatprep.subr.mxu0 0.0
      %1062 = vmatpush1.msra.mxu0 0.0
      %1063 = vmatprep.subr.mxu0 0.0
      %1064 = vmatpush1.msra.mxu0 0.0
      %1065 = vmatprep.subr.mxu0 0.0
      %1066 = vmatpush1.msra.mxu0 0.0
      %1067 = vmatprep.subr.mxu0 0.0
      %1068 = vmatpush1.msra.mxu0 %v706
      %1069 = vmatprep.subr.mxu0 0.0
      %1070 = vmatpush2.msra.mxu0 0.0
      %1071 = vmatprep.subr.mxu0 0.0
      %1072 = vmatpush2.msra.mxu0 0.0
      %1073 = vmatprep.subr.mxu0 0.0
      %1074 = vmatpush2.msra.mxu0 0.0
      %1075 = vmatprep.subr.mxu0 0.0
      %1076 = vmatpush2.msra.mxu0 0.0
      %1077 = vmatprep.subr.mxu0 0.0
      %1078 = vmatpush2.msra.mxu0 0.0
      %1079 = vmatprep.subr.mxu0 0.0
      %1080 = vmatpush2.msra.mxu0 0.0
      %1081 = vmatprep.subr.mxu0 0.0
      %1082 = vmatpush2.msra.mxu0 0.0
      %1083 = vmatprep.subr.mxu0 0.0
      %1084 = vmatpush2.msra.mxu0 0.0
      %1085 = vmatprep.subr.mxu0 0.0
      %1086 = vmatpush2.msra.mxu0 0.0
      %1087 = vmatprep.subr.mxu0 0.0
      %1088 = vmatpush2.msra.mxu0 0.0
      %1089 = vmatprep.subr.mxu0 0.0
      %1090 = vmatpush2.msra.mxu0 0.0
      %1091 = vmatprep.subr.mxu0 0.0
      %1092 = vmatpush2.msra.mxu0 0.0
      %1093 = vmatprep.subr.mxu0 0.0
      %1094 = vmatpush2.msra.mxu0 0.0
      %1095 = vmatprep.subr.mxu0 0.0
      %1096 = vmatpush2.msra.mxu0 0.0
      %1097 = vmatprep.subr.mxu0 0.0
      %1098 = vmatpush2.msra.mxu0 0.0
      %1099 = vmatprep.subr.mxu0 0.0
      %1100 = vmatpush2.msra.mxu0 0.0
      %1101 = vmatprep.mubr.f32.mxu0 0.0
      %1102 = vmatmul.mubr.f32.gmra.mxu0 %v1032
      %v1103 = vpop.f32.mrf.mxu0
      %v1104 = vadd.f32 %v873, %v1103
      %v1105 = vpop.f32.mrf.mxu0
      %1106 = vmatprep.mubr.f32.mxu0 0.0
      %1107 = vmatmul.mubr.f32.gmra.mxu0 %v1035
      %v1108 = vpop.f32.mrf.mxu0
      %v1109 = vadd.f32 %v878, %v1108
      %v1110 = vpop.f32.mrf.mxu0
      %1111 = vmatprep.mubr.f32.mxu0 0.0
      %1112 = vmatmul.mubr.f32.gmra.mxu0 %v711
      %v1113 = vpop.f32.mrf.mxu0
      %v1114 = vadd.f32 %v883, %v1113
      %v1115 = vpop.f32.mrf.mxu0
      %1116 = vmatprep.mubr.f32.mxu0 0.0
      %1117 = vmatmul.mubr.f32.gmra.mxu0 %v714
      %v1118 = vpop.f32.mrf.mxu0
      %v1119 = vadd.f32 %v888, %v1118
      %v1120 = vpop.f32.mrf.mxu0
      %1121 = vmatprep.mubr.f32.mxu0 0.0
      %1122 = vmatmul.mubr.f32.gmra.mxu0 %v717
      %v1123 = vpop.f32.mrf.mxu0
      %v1124 = vadd.f32 %v893, %v1123
      %v1125 = vpop.f32.mrf.mxu0
      %1126 = vmatprep.mubr.f32.mxu0 0.0
      %1127 = vmatmul.mubr.f32.gmra.mxu0 %v720
      %v1128 = vpop.f32.mrf.mxu0
      %v1129 = vadd.f32 %v898, %v1128
      %v1130 = vpop.f32.mrf.mxu0
      %1131 = vmatprep.mubr.f32.mxu0 0.0
      %1132 = vmatmul.mubr.f32.gmra.mxu0 %v723
      %v1133 = vpop.f32.mrf.mxu0
      %v1134 = vadd.f32 %v903, %v1133
      %v1135 = vpop.f32.mrf.mxu0
      %1136 = vmatprep.mubr.f32.mxu0 0.0
      %1137 = vmatmul.mubr.f32.gmra.mxu0 %v726
      %v1138 = vpop.f32.mrf.mxu0
      %v1139 = vadd.f32 %v908, %v1138
      %v1140 = vpop.f32.mrf.mxu0
      %1141 = vmatprep.mubr.f32.mxu0 0.0
      %1142 = vmatmul.mubr.f32.gmra.mxu0 %v729
      %v1143 = vpop.f32.mrf.mxu0
      %v1144 = vadd.f32 %v913, %v1143
      %v1145 = vpop.f32.mrf.mxu0
      %1146 = vmatprep.mubr.f32.mxu0 0.0
      %1147 = vmatmul.mubr.f32.gmra.mxu0 %v732
      %v1148 = vpop.f32.mrf.mxu0
      %v1149 = vadd.f32 %v918, %v1148
      %v1150 = vpop.f32.mrf.mxu0
      %1151 = vmatprep.mubr.f32.mxu0 0.0
      %1152 = vmatmul.mubr.f32.gmra.mxu0 %v735
      %v1153 = vpop.f32.mrf.mxu0
      %v1154 = vadd.f32 %v923, %v1153
      %v1155 = vpop.f32.mrf.mxu0
      %1156 = vmatprep.mubr.f32.mxu0 0.0
      %1157 = vmatmul.mubr.f32.gmra.mxu0 %v738
      %v1158 = vpop.f32.mrf.mxu0
      %v1159 = vadd.f32 %v928, %v1158
      %v1160 = vpop.f32.mrf.mxu0
      %1161 = vmatprep.mubr.f32.mxu0 0.0
      %1162 = vmatmul.mubr.f32.gmra.mxu0 %v741
      %v1163 = vpop.f32.mrf.mxu0
      %v1164 = vadd.f32 %v933, %v1163
      %v1165 = vpop.f32.mrf.mxu0
      %1166 = vmatprep.mubr.f32.mxu0 0.0
      %1167 = vmatmul.mubr.f32.gmra.mxu0 %v744
      %v1168 = vpop.f32.mrf.mxu0
      %v1169 = vadd.f32 %v938, %v1168
      %v1170 = vpop.f32.mrf.mxu0
      %1171 = vmatprep.mubr.f32.mxu0 0.0
      %1172 = vmatmul.mubr.f32.gmra.mxu0 %v747
      %v1173 = vpop.f32.mrf.mxu0
      %v1174 = vadd.f32 %v943, %v1173
      %v1175 = vpop.f32.mrf.mxu0
      %1176 = vmatprep.mubr.f32.mxu0 0.0
      %1177 = vmatmul.mubr.f32.gmra.mxu0 %v750
      %v1178 = vpop.f32.mrf.mxu0
      %v1179 = vadd.f32 %v948, %v1178
      %v1180 = vpop.f32.mrf.mxu0
      %1181 = vmatprep.mubr.f32.mxu0 0.0
      %1182 = vmatmul.mubr.f32.gmra.mxu0 %v753
      %v1183 = vpop.f32.mrf.mxu0
      %v1184 = vadd.f32 %v953, %v1183
      %v1185 = vpop.f32.mrf.mxu0
      %1186 = vmatprep.mubr.f32.mxu0 0.0
      %1187 = vmatmul.mubr.f32.gmra.mxu0 %v756
      %v1188 = vpop.f32.mrf.mxu0
      %v1189 = vadd.f32 %v958, %v1188
      %v1190 = vpop.f32.mrf.mxu0
      %1191 = vmatprep.mubr.f32.mxu0 0.0
      %1192 = vmatmul.mubr.f32.gmra.mxu0 %v759
      %v1193 = vpop.f32.mrf.mxu0
      %v1194 = vadd.f32 %v963, %v1193
      %v1195 = vpop.f32.mrf.mxu0
      %1196 = vmatprep.mubr.f32.mxu0 0.0
      %1197 = vmatmul.mubr.f32.gmra.mxu0 %v762
      %v1198 = vpop.f32.mrf.mxu0
      %v1199 = vadd.f32 %v968, %v1198
      %v1200 = vpop.f32.mrf.mxu0
      %1201 = vmatprep.mubr.f32.mxu0 0.0
      %1202 = vmatmul.mubr.f32.gmra.mxu0 %v765
      %v1203 = vpop.f32.mrf.mxu0
      %v1204 = vadd.f32 %v973, %v1203
      %v1205 = vpop.f32.mrf.mxu0
      %1206 = vmatprep.mubr.f32.mxu0 0.0
      %1207 = vmatmul.mubr.f32.gmra.mxu0 %v768
      %v1208 = vpop.f32.mrf.mxu0
      %v1209 = vadd.f32 %v978, %v1208
      %v1210 = vpop.f32.mrf.mxu0
      %1211 = vmatprep.mubr.f32.mxu0 0.0
      %1212 = vmatmul.mubr.f32.gmra.mxu0 %v771
      %v1213 = vpop.f32.mrf.mxu0
      %v1214 = vadd.f32 %v983, %v1213
      %v1215 = vpop.f32.mrf.mxu0
      %1216 = vmatprep.mubr.f32.mxu0 0.0
      %1217 = vmatmul.mubr.f32.gmra.mxu0 %v774
      %v1218 = vpop.f32.mrf.mxu0
      %v1219 = vadd.f32 %v988, %v1218
      %v1220 = vpop.f32.mrf.mxu0
      %1221 = vmatprep.mubr.f32.mxu0 0.0
      %1222 = vmatmul.mubr.f32.gmra.mxu0 %v777
      %v1223 = vpop.f32.mrf.mxu0
      %v1224 = vadd.f32 %v993, %v1223
      %v1225 = vpop.f32.mrf.mxu0
      %1226 = vmatprep.mubr.f32.mxu0 0.0
      %1227 = vmatmul.mubr.f32.gmra.mxu0 %v780
      %v1228 = vpop.f32.mrf.mxu0
      %v1229 = vadd.f32 %v998, %v1228
      %v1230 = vpop.f32.mrf.mxu0
      %1231 = vmatprep.mubr.f32.mxu0 0.0
      %1232 = vmatmul.mubr.f32.gmra.mxu0 %v783
      %v1233 = vpop.f32.mrf.mxu0
      %v1234 = vadd.f32 %v1003, %v1233
      %v1235 = vpop.f32.mrf.mxu0
      %1236 = vmatprep.mubr.f32.mxu0 0.0
      %1237 = vmatmul.mubr.f32.gmra.mxu0 %v786
      %v1238 = vpop.f32.mrf.mxu0
      %v1239 = vadd.f32 %v1008, %v1238
      %v1240 = vpop.f32.mrf.mxu0
      %1241 = vmatprep.mubr.f32.mxu0 0.0
      %1242 = vmatmul.mubr.f32.gmra.mxu0 %v789
      %v1243 = vpop.f32.mrf.mxu0
      %v1244 = vadd.f32 %v1013, %v1243
      %v1245 = vpop.f32.mrf.mxu0
      %1246 = vmatprep.mubr.f32.mxu0 0.0
      %1247 = vmatmul.mubr.f32.gmra.mxu0 %v792
      %v1248 = vpop.f32.mrf.mxu0
      %v1249 = vadd.f32 %v1018, %v1248
      %v1250 = vpop.f32.mrf.mxu0
      %1251 = vmatprep.mubr.f32.mxu0 0.0
      %1252 = vmatmul.mubr.f32.gmra.mxu0 %v795
      %v1253 = vpop.f32.mrf.mxu0
      %v1254 = vadd.f32 %v1023, %v1253
      %v1255 = vpop.f32.mrf.mxu0
      %1256 = vmatprep.mubr.f32.mxu0 0.0
      %1257 = vmatmul.mubr.f32.gmra.mxu0 %v798
      %v1258 = vpop.f32.mrf.mxu0
      %v1259 = vadd.f32 %v1028, %v1258
      %v1260 = vpop.f32.mrf.mxu0
      %1261 = vdwg.mxu0
      %s1262 = scalar_lea.vmem %s1, 48
      %v1263 = vld [vmem:[%s1262] sm:$0xff]
      %v1265 = vsel %vm709, %v704, 0
      %v1268 = vsel %vm709, %v705, 0
      %1270 = vmatprep.subr.mxu0 0.0
      %1271 = vmatpush1.msra.mxu0 0.0
      %1272 = vmatprep.subr.mxu0 0.0
      %1273 = vmatpush1.msra.mxu0 0.0
      %1274 = vmatprep.subr.mxu0 0.0
      %1275 = vmatpush1.msra.mxu0 0.0
      %1276 = vmatprep.subr.mxu0 0.0
      %1277 = vmatpush1.msra.mxu0 0.0
      %1278 = vmatprep.subr.mxu0 0.0
      %1279 = vmatpush1.msra.mxu0 0.0
      %1280 = vmatprep.subr.mxu0 0.0
      %1281 = vmatpush1.msra.mxu0 0.0
      %1282 = vmatprep.subr.mxu0 0.0
      %1283 = vmatpush1.msra.mxu0 0.0
      %1284 = vmatprep.subr.mxu0 0.0
      %1285 = vmatpush1.msra.mxu0 0.0
      %1286 = vmatprep.subr.mxu0 0.0
      %1287 = vmatpush1.msra.mxu0 0.0
      %1288 = vmatprep.subr.mxu0 0.0
      %1289 = vmatpush1.msra.mxu0 0.0
      %1290 = vmatprep.subr.mxu0 0.0
      %1291 = vmatpush1.msra.mxu0 0.0
      %1292 = vmatprep.subr.mxu0 0.0
      %1293 = vmatpush1.msra.mxu0 0.0
      %1294 = vmatprep.subr.mxu0 0.0
      %1295 = vmatpush1.msra.mxu0 0.0
      %1296 = vmatprep.subr.mxu0 0.0
      %1297 = vmatpush1.msra.mxu0 0.0
      %1298 = vmatprep.subr.mxu0 0.0
      %1299 = vmatpush1.msra.mxu0 0.0
      %1300 = vmatprep.subr.mxu0 0.0
      %1301 = vmatpush1.msra.mxu0 %v1263
      %1302 = vmatprep.subr.mxu0 0.0
      %1303 = vmatpush2.msra.mxu0 0.0
      %1304 = vmatprep.subr.mxu0 0.0
      %1305 = vmatpush2.msra.mxu0 0.0
      %1306 = vmatprep.subr.mxu0 0.0
      %1307 = vmatpush2.msra.mxu0 0.0
      %1308 = vmatprep.subr.mxu0 0.0
      %1309 = vmatpush2.msra.mxu0 0.0
      %1310 = vmatprep.subr.mxu0 0.0
      %1311 = vmatpush2.msra.mxu0 0.0
      %1312 = vmatprep.subr.mxu0 0.0
      %1313 = vmatpush2.msra.mxu0 0.0
      %1314 = vmatprep.subr.mxu0 0.0
      %1315 = vmatpush2.msra.mxu0 0.0
      %1316 = vmatprep.subr.mxu0 0.0
      %1317 = vmatpush2.msra.mxu0 0.0
      %1318 = vmatprep.subr.mxu0 0.0
      %1319 = vmatpush2.msra.mxu0 0.0
      %1320 = vmatprep.subr.mxu0 0.0
      %1321 = vmatpush2.msra.mxu0 0.0
      %1322 = vmatprep.subr.mxu0 0.0
      %1323 = vmatpush2.msra.mxu0 0.0
      %1324 = vmatprep.subr.mxu0 0.0
      %1325 = vmatpush2.msra.mxu0 0.0
      %1326 = vmatprep.subr.mxu0 0.0
      %1327 = vmatpush2.msra.mxu0 0.0
      %1328 = vmatprep.subr.mxu0 0.0
      %1329 = vmatpush2.msra.mxu0 0.0
      %1330 = vmatprep.subr.mxu0 0.0
      %1331 = vmatpush2.msra.mxu0 0.0
      %1332 = vmatprep.subr.mxu0 0.0
      %1333 = vmatpush2.msra.mxu0 0.0
      %1334 = vmatprep.mubr.f32.mxu0 0.0
      %1335 = vmatmul.mubr.f32.gmra.mxu0 %v717
      %v1336 = vpop.f32.mrf.mxu0
      %v1337 = vadd.f32 0.0, %v1336
      %v1338 = vpop.f32.mrf.mxu0
      %1339 = vmatprep.mubr.f32.mxu0 0.0
      %1340 = vmatmul.mubr.f32.gmra.mxu0 %v720
      %v1341 = vpop.f32.mrf.mxu0
      %v1342 = vadd.f32 0.0, %v1341
      %v1343 = vpop.f32.mrf.mxu0
      %1344 = vmatprep.mubr.f32.mxu0 0.0
      %1345 = vmatmul.mubr.f32.gmra.mxu0 %v723
      %v1346 = vpop.f32.mrf.mxu0
      %v1347 = vadd.f32 0.0, %v1346
      %v1348 = vpop.f32.mrf.mxu0
      %1349 = vmatprep.mubr.f32.mxu0 0.0
      %1350 = vmatmul.mubr.f32.gmra.mxu0 %v726
      %v1351 = vpop.f32.mrf.mxu0
      %v1352 = vadd.f32 0.0, %v1351
      %v1353 = vpop.f32.mrf.mxu0
      %1354 = vmatprep.mubr.f32.mxu0 0.0
      %1355 = vmatmul.mubr.f32.gmra.mxu0 %v729
      %v1356 = vpop.f32.mrf.mxu0
      %v1357 = vadd.f32 0.0, %v1356
      %v1358 = vpop.f32.mrf.mxu0
      %1359 = vmatprep.mubr.f32.mxu0 0.0
      %1360 = vmatmul.mubr.f32.gmra.mxu0 %v732
      %v1361 = vpop.f32.mrf.mxu0
      %v1362 = vadd.f32 0.0, %v1361
      %v1363 = vpop.f32.mrf.mxu0
      %1364 = vmatprep.mubr.f32.mxu0 0.0
      %1365 = vmatmul.mubr.f32.gmra.mxu0 %v735
      %v1366 = vpop.f32.mrf.mxu0
      %v1367 = vadd.f32 0.0, %v1366
      %v1368 = vpop.f32.mrf.mxu0
      %1369 = vmatprep.mubr.f32.mxu0 0.0
      %1370 = vmatmul.mubr.f32.gmra.mxu0 %v738
      %v1371 = vpop.f32.mrf.mxu0
      %v1372 = vadd.f32 0.0, %v1371
      %v1373 = vpop.f32.mrf.mxu0
      %1374 = vmatprep.mubr.f32.mxu0 0.0
      %1375 = vmatmul.mubr.f32.gmra.mxu0 %v741
      %v1376 = vpop.f32.mrf.mxu0
      %v1377 = vadd.f32 0.0, %v1376
      %v1378 = vpop.f32.mrf.mxu0
      %1379 = vmatprep.mubr.f32.mxu0 0.0
      %1380 = vmatmul.mubr.f32.gmra.mxu0 %v744
      %v1381 = vpop.f32.mrf.mxu0
      %v1382 = vadd.f32 0.0, %v1381
      %v1383 = vpop.f32.mrf.mxu0
      %1384 = vmatprep.mubr.f32.mxu0 0.0
      %1385 = vmatmul.mubr.f32.gmra.mxu0 %v747
      %v1386 = vpop.f32.mrf.mxu0
      %v1387 = vadd.f32 0.0, %v1386
      %v1388 = vpop.f32.mrf.mxu0
      %1389 = vmatprep.mubr.f32.mxu0 0.0
      %1390 = vmatmul.mubr.f32.gmra.mxu0 %v750
      %v1391 = vpop.f32.mrf.mxu0
      %v1392 = vadd.f32 0.0, %v1391
      %v1393 = vpop.f32.mrf.mxu0
      %1394 = vmatprep.mubr.f32.mxu0 0.0
      %1395 = vmatmul.mubr.f32.gmra.mxu0 %v753
      %v1396 = vpop.f32.mrf.mxu0
      %v1397 = vadd.f32 0.0, %v1396
      %v1398 = vpop.f32.mrf.mxu0
      %1399 = vmatprep.mubr.f32.mxu0 0.0
      %1400 = vmatmul.mubr.f32.gmra.mxu0 %v756
      %v1401 = vpop.f32.mrf.mxu0
      %v1402 = vadd.f32 0.0, %v1401
      %v1403 = vpop.f32.mrf.mxu0
      %1404 = vmatprep.mubr.f32.mxu0 0.0
      %1405 = vmatmul.mubr.f32.gmra.mxu0 %v759
      %v1406 = vpop.f32.mrf.mxu0
      %v1407 = vadd.f32 0.0, %v1406
      %v1408 = vpop.f32.mrf.mxu0
      %1409 = vmatprep.mubr.f32.mxu0 0.0
      %1410 = vmatmul.mubr.f32.gmra.mxu0 %v762
      %v1411 = vpop.f32.mrf.mxu0
      %v1412 = vadd.f32 0.0, %v1411
      %v1413 = vpop.f32.mrf.mxu0
      %1414 = vmatprep.mubr.f32.mxu0 0.0
      %1415 = vmatmul.mubr.f32.gmra.mxu0 %v765
      %v1416 = vpop.f32.mrf.mxu0
      %v1417 = vadd.f32 0.0, %v1416
      %v1418 = vpop.f32.mrf.mxu0
      %1419 = vmatprep.mubr.f32.mxu0 0.0
      %1420 = vmatmul.mubr.f32.gmra.mxu0 %v768
      %v1421 = vpop.f32.mrf.mxu0
      %v1422 = vadd.f32 0.0, %v1421
      %v1423 = vpop.f32.mrf.mxu0
      %1424 = vmatprep.mubr.f32.mxu0 0.0
      %1425 = vmatmul.mubr.f32.gmra.mxu0 %v771
      %v1426 = vpop.f32.mrf.mxu0
      %v1427 = vadd.f32 0.0, %v1426
      %v1428 = vpop.f32.mrf.mxu0
      %1429 = vmatprep.mubr.f32.mxu0 0.0
      %1430 = vmatmul.mubr.f32.gmra.mxu0 %v774
      %v1431 = vpop.f32.mrf.mxu0
      %v1432 = vadd.f32 0.0, %v1431
      %v1433 = vpop.f32.mrf.mxu0
      %1434 = vmatprep.mubr.f32.mxu0 0.0
      %1435 = vmatmul.mubr.f32.gmra.mxu0 %v777
      %v1436 = vpop.f32.mrf.mxu0
      %v1437 = vadd.f32 0.0, %v1436
      %v1438 = vpop.f32.mrf.mxu0
      %1439 = vmatprep.mubr.f32.mxu0 0.0
      %1440 = vmatmul.mubr.f32.gmra.mxu0 %v780
      %v1441 = vpop.f32.mrf.mxu0
      %v1442 = vadd.f32 0.0, %v1441
      %v1443 = vpop.f32.mrf.mxu0
      %1444 = vmatprep.mubr.f32.mxu0 0.0
      %1445 = vmatmul.mubr.f32.gmra.mxu0 %v783
      %v1446 = vpop.f32.mrf.mxu0
      %v1447 = vadd.f32 0.0, %v1446
      %v1448 = vpop.f32.mrf.mxu0
      %1449 = vmatprep.mubr.f32.mxu0 0.0
      %1450 = vmatmul.mubr.f32.gmra.mxu0 %v786
      %v1451 = vpop.f32.mrf.mxu0
      %v1452 = vadd.f32 0.0, %v1451
      %v1453 = vpop.f32.mrf.mxu0
      %1454 = vmatprep.mubr.f32.mxu0 0.0
      %1455 = vmatmul.mubr.f32.gmra.mxu0 %v789
      %v1456 = vpop.f32.mrf.mxu0
      %v1457 = vadd.f32 0.0, %v1456
      %v1458 = vpop.f32.mrf.mxu0
      %1459 = vmatprep.mubr.f32.mxu0 0.0
      %1460 = vmatmul.mubr.f32.gmra.mxu0 %v792
      %v1461 = vpop.f32.mrf.mxu0
      %v1462 = vadd.f32 0.0, %v1461
      %v1463 = vpop.f32.mrf.mxu0
      %1464 = vmatprep.mubr.f32.mxu0 0.0
      %1465 = vmatmul.mubr.f32.gmra.mxu0 %v795
      %v1466 = vpop.f32.mrf.mxu0
      %v1467 = vadd.f32 0.0, %v1466
      %v1468 = vpop.f32.mrf.mxu0
      %1469 = vmatprep.mubr.f32.mxu0 0.0
      %1470 = vmatmul.mubr.f32.gmra.mxu0 %v798
      %v1471 = vpop.f32.mrf.mxu0
      %v1472 = vadd.f32 0.0, %v1471
      %v1473 = vpop.f32.mrf.mxu0
      %1474 = vmatprep.mubr.f32.mxu0 0.0
      %1475 = vmatmul.mubr.f32.gmra.mxu0 %v801
      %v1476 = vpop.f32.mrf.mxu0
      %v1477 = vadd.f32 0.0, %v1476
      %v1478 = vpop.f32.mrf.mxu0
      %1479 = vmatprep.mubr.f32.mxu0 0.0
      %1480 = vmatmul.mubr.f32.gmra.mxu0 %v804
      %v1481 = vpop.f32.mrf.mxu0
      %v1482 = vadd.f32 0.0, %v1481
      %v1483 = vpop.f32.mrf.mxu0
      %1484 = vmatprep.mubr.f32.mxu0 0.0
      %1485 = vmatmul.mubr.f32.gmra.mxu0 %v1265
      %v1486 = vpop.f32.mrf.mxu0
      %v1487 = vadd.f32 0.0, %v1486
      %v1488 = vpop.f32.mrf.mxu0
      %1489 = vmatprep.mubr.f32.mxu0 0.0
      %1490 = vmatmul.mubr.f32.gmra.mxu0 %v1268
      %v1491 = vpop.f32.mrf.mxu0
      %v1492 = vadd.f32 0.0, %v1491
      %v1493 = vpop.f32.mrf.mxu0
      %1494 = vdwg.mxu0
      %v1495 = vadd.f32 %v1104, %v1337
      %v1496 = vadd.f32 %v1109, %v1342
      %v1497 = vadd.f32 %v1114, %v1347
      %v1498 = vadd.f32 %v1119, %v1352
      %v1499 = vadd.f32 %v1124, %v1357
      %v1500 = vadd.f32 %v1129, %v1362
      %v1501 = vadd.f32 %v1134, %v1367
      %v1502 = vadd.f32 %v1139, %v1372
      %v1503 = vadd.f32 %v1144, %v1377
      %v1504 = vadd.f32 %v1149, %v1382
      %v1505 = vadd.f32 %v1154, %v1387
      %v1506 = vadd.f32 %v1159, %v1392
      %v1507 = vadd.f32 %v1164, %v1397
      %v1508 = vadd.f32 %v1169, %v1402
      %v1509 = vadd.f32 %v1174, %v1407
      %v1510 = vadd.f32 %v1179, %v1412
      %v1511 = vadd.f32 %v1184, %v1417
      %v1512 = vadd.f32 %v1189, %v1422
      %v1513 = vadd.f32 %v1194, %v1427
      %v1514 = vadd.f32 %v1199, %v1432
      %v1515 = vadd.f32 %v1204, %v1437
      %v1516 = vadd.f32 %v1209, %v1442
      %v1517 = vadd.f32 %v1214, %v1447
      %v1518 = vadd.f32 %v1219, %v1452
      %v1519 = vadd.f32 %v1224, %v1457
      %v1520 = vadd.f32 %v1229, %v1462
      %v1521 = vadd.f32 %v1234, %v1467
      %v1522 = vadd.f32 %v1239, %v1472
      %v1523 = vadd.f32 %v1244, %v1477
      %v1524 = vadd.f32 %v1249, %v1482
      %v1525 = vadd.f32 %v1254, %v1487
      %v1526 = vadd.f32 %v1259, %v1492
      %s1527 = scalar_lea.vmem %s284, 288
      %v1528 = vld [vmem:[%s1527] sm:$0xff]
      %v1529 = vld [vmem:[%s1527 + $0x8] sm:$0xff]
      %v1530 = vld [vmem:[%s1527 + $0x10] sm:$0xff]
      %v1531 = vld [vmem:[%s1527 + $0x18] sm:$0xff]
      %v1532 = vld [vmem:[%s1527 + $0x20] sm:$0xff]
      %v1533 = vld [vmem:[%s1527 + $0x28] sm:$0xff]
      %v1534 = vld [vmem:[%s1527 + $0x30] sm:$0xff]
      %v1535 = vld [vmem:[%s1527 + $0x38] sm:$0xff]
      %v1536 = vld [vmem:[%s1527 + $0x40] sm:$0xff]
      %v1537 = vld [vmem:[%s1527 + $0x48] sm:$0xff]
      %v1538 = vld [vmem:[%s1527 + $0x50] sm:$0xff]
      %v1539 = vld [vmem:[%s1527 + $0x58] sm:$0xff]
      %v1540 = vld [vmem:[%s1527 + $0x60] sm:$0xff]
      %v1541 = vld [vmem:[%s1527 + $0x68] sm:$0xff]
      %v1542 = vld [vmem:[%s1527 + $0x70] sm:$0xff]
      %v1543 = vld [vmem:[%s1527 + $0x78] sm:$0xff]
      %v1544 = vld [vmem:[%s1527 + $0x80] sm:$0xff]
      %v1545 = vld [vmem:[%s1527 + $0x88] sm:$0xff]
      %v1546 = vld [vmem:[%s1527 + $0x90] sm:$0xff]
      %v1547 = vld [vmem:[%s1527 + $0x98] sm:$0xff]
      %v1548 = vld [vmem:[%s1527 + $0xa0] sm:$0xff]
      %v1549 = vld [vmem:[%s1527 + $0xa8] sm:$0xff]
      %v1550 = vld [vmem:[%s1527 + $0xb0] sm:$0xff]
      %v1551 = vld [vmem:[%s1527 + $0xb8] sm:$0xff]
      %v1552 = vld [vmem:[%s1527 + $0xc0] sm:$0xff]
      %v1553 = vld [vmem:[%s1527 + $0xc8] sm:$0xff]
      %v1554 = vld [vmem:[%s1527 + $0xd0] sm:$0xff]
      %v1555 = vld [vmem:[%s1527 + $0xd8] sm:$0xff]
      %v1556 = vld [vmem:[%s1527 + $0xe0] sm:$0xff]
      %v1557 = vld [vmem:[%s1527 + $0xe8] sm:$0xff]
      %v1558 = vld [vmem:[%s1527 + $0xf0] sm:$0xff]
      %v1559 = vld [vmem:[%s1527 + $0xf8] sm:$0xff]
      %v1560 = vld [vmem:[%s1527 + $0x100] sm:$0xff]
      %v1561 = vld [vmem:[%s1527 + $0x108] sm:$0xff]
      %v1562 = vld [vmem:[%s1527 + $0x110] sm:$0xff]
      %v1563 = vld [vmem:[%s1527 + $0x118] sm:$0xff]
      %v1564 = vmul.f32 %v1528, %v337
      %v1565 = vmul.f32 %v1529, %v337
      %v1566 = vmul.f32 %v1530, %v337
      %v1567 = vmul.f32 %v1531, %v337
      %v1568 = vmul.f32 %v1532, %v337
      %v1569 = vmul.f32 %v1533, %v337
      %v1570 = vmul.f32 %v1534, %v337
      %v1571 = vmul.f32 %v1535, %v337
      %v1572 = vmul.f32 %v1536, %v337
      %v1573 = vmul.f32 %v1537, %v337
      %v1574 = vmul.f32 %v1538, %v337
      %v1575 = vmul.f32 %v1539, %v337
      %v1576 = vmul.f32 %v1540, %v337
      %v1577 = vmul.f32 %v1541, %v337
      %v1578 = vmul.f32 %v1542, %v337
      %v1579 = vmul.f32 %v1543, %v337
      %v1580 = vmul.f32 %v1544, %v337
      %v1581 = vmul.f32 %v1545, %v337
      %v1582 = vmul.f32 %v1546, %v337
      %v1583 = vmul.f32 %v1547, %v337
      %v1584 = vmul.f32 %v1548, %v337
      %v1585 = vmul.f32 %v1549, %v337
      %v1586 = vmul.f32 %v1550, %v337
      %v1587 = vmul.f32 %v1551, %v337
      %v1588 = vmul.f32 %v1552, %v337
      %v1589 = vmul.f32 %v1553, %v337
      %v1590 = vmul.f32 %v1554, %v337
      %v1591 = vmul.f32 %v1555, %v337
      %v1592 = vmul.f32 %v1556, %v337
      %v1593 = vmul.f32 %v1557, %v337
      %v1594 = vmul.f32 %v1558, %v337
      %v1595 = vmul.f32 %v1559, %v337
      %v1596 = vmul.f32 %v1560, %v337
      %v1597 = vmul.f32 %v1561, %v337
      %v1598 = vmul.f32 %v1562, %v337
      %v1599 = vmul.f32 %v1563, %v337
      %v1600 = vadd.f32 %v1564, %v380
      %v1601 = vadd.f32 %v1565, %v380
      %v1602 = vadd.f32 %v1566, %v380
      %v1603 = vadd.f32 %v1567, %v380
      %v1604 = vadd.f32 %v1568, %v380
      %v1605 = vadd.f32 %v1569, %v380
      %v1606 = vadd.f32 %v1570, %v380
      %v1607 = vadd.f32 %v1571, %v380
      %v1608 = vadd.f32 %v1572, %v380
      %v1609 = vadd.f32 %v1573, %v380
      %v1610 = vadd.f32 %v1574, %v380
      %v1611 = vadd.f32 %v1575, %v380
      %v1612 = vadd.f32 %v1576, %v380
      %v1613 = vadd.f32 %v1577, %v380
      %v1614 = vadd.f32 %v1578, %v380
      %v1615 = vadd.f32 %v1579, %v380
      %v1616 = vadd.f32 %v1580, %v380
      %v1617 = vadd.f32 %v1581, %v380
      %v1618 = vadd.f32 %v1582, %v380
      %v1619 = vadd.f32 %v1583, %v380
      %v1620 = vadd.f32 %v1584, %v380
      %v1621 = vadd.f32 %v1585, %v380
      %v1622 = vadd.f32 %v1586, %v380
      %v1623 = vadd.f32 %v1587, %v380
      %v1624 = vadd.f32 %v1588, %v380
      %v1625 = vadd.f32 %v1589, %v380
      %v1626 = vadd.f32 %v1590, %v380
      %v1627 = vadd.f32 %v1591, %v380
      %v1628 = vadd.f32 %v1592, %v380
      %v1629 = vadd.f32 %v1593, %v380
      %v1630 = vadd.f32 %v1594, %v380
      %v1631 = vadd.f32 %v1595, %v380
      %v1632 = vadd.f32 %v1596, %v380
      %v1633 = vadd.f32 %v1597, %v380
      %v1634 = vadd.f32 %v1598, %v380
      %v1635 = vadd.f32 %v1599, %v380
      %v1636 = vmax.f32 %v1600, 0.0
      %v1637 = vmax.f32 %v1601, 0.0
      %v1638 = vmax.f32 %v1602, 0.0
      %v1639 = vmax.f32 %v1603, 0.0
      %v1640 = vmax.f32 %v1604, 0.0
      %v1641 = vmax.f32 %v1605, 0.0
      %v1642 = vmax.f32 %v1606, 0.0
      %v1643 = vmax.f32 %v1607, 0.0
      %v1644 = vmax.f32 %v1608, 0.0
      %v1645 = vmax.f32 %v1609, 0.0
      %v1646 = vmax.f32 %v1610, 0.0
      %v1647 = vmax.f32 %v1611, 0.0
      %v1648 = vmax.f32 %v1612, 0.0
      %v1649 = vmax.f32 %v1613, 0.0
      %v1650 = vmax.f32 %v1614, 0.0
      %v1651 = vmax.f32 %v1615, 0.0
      %v1652 = vmax.f32 %v1616, 0.0
      %v1653 = vmax.f32 %v1617, 0.0
      %v1654 = vmax.f32 %v1618, 0.0
      %v1655 = vmax.f32 %v1619, 0.0
      %v1656 = vmax.f32 %v1620, 0.0
      %v1657 = vmax.f32 %v1621, 0.0
      %v1658 = vmax.f32 %v1622, 0.0
      %v1659 = vmax.f32 %v1623, 0.0
      %v1660 = vmax.f32 %v1624, 0.0
      %v1661 = vmax.f32 %v1625, 0.0
      %v1662 = vmax.f32 %v1626, 0.0
      %v1663 = vmax.f32 %v1627, 0.0
      %v1664 = vmax.f32 %v1628, 0.0
      %v1665 = vmax.f32 %v1629, 0.0
      %v1666 = vmax.f32 %v1630, 0.0
      %v1667 = vmax.f32 %v1631, 0.0
      %v1668 = vmax.f32 %v1632, 0.0
      %v1669 = vmax.f32 %v1633, 0.0
      %v1670 = vmax.f32 %v1634, 0.0
      %v1671 = vmax.f32 %v1635, 0.0
      %s1672 = scalar_lea.vmem %s4, 288
      %v1673 = vld [vmem:[%s1672] sm:$0xff]
      %v1674 = vld [vmem:[%s1672 + $0x8] sm:$0xff]
      %v1675 = vld [vmem:[%s1672 + $0x10] sm:$0xff]
      %v1676 = vld [vmem:[%s1672 + $0x18] sm:$0xff]
      %v1677 = vld [vmem:[%s1672 + $0x20] sm:$0xff]
      %v1678 = vld [vmem:[%s1672 + $0x28] sm:$0xff]
      %v1679 = vld [vmem:[%s1672 + $0x30] sm:$0xff]
      %v1680 = vld [vmem:[%s1672 + $0x38] sm:$0xff]
      %v1681 = vld [vmem:[%s1672 + $0x40] sm:$0xff]
      %v1682 = vld [vmem:[%s1672 + $0x48] sm:$0xff]
      %v1683 = vld [vmem:[%s1672 + $0x50] sm:$0xff]
      %v1684 = vld [vmem:[%s1672 + $0x58] sm:$0xff]
      %v1685 = vld [vmem:[%s1672 + $0x60] sm:$0xff]
      %v1686 = vld [vmem:[%s1672 + $0x68] sm:$0xff]
      %v1687 = vld [vmem:[%s1672 + $0x70] sm:$0xff]
      %v1688 = vld [vmem:[%s1672 + $0x78] sm:$0xff]
      %v1689 = vld [vmem:[%s1672 + $0x80] sm:$0xff]
      %v1690 = vld [vmem:[%s1672 + $0x88] sm:$0xff]
      %v1691 = vld [vmem:[%s1672 + $0x90] sm:$0xff]
      %v1692 = vld [vmem:[%s1672 + $0x98] sm:$0xff]
      %v1693 = vld [vmem:[%s1672 + $0xa0] sm:$0xff]
      %v1694 = vld [vmem:[%s1672 + $0xa8] sm:$0xff]
      %v1695 = vld [vmem:[%s1672 + $0xb0] sm:$0xff]
      %v1696 = vld [vmem:[%s1672 + $0xb8] sm:$0xff]
      %v1697 = vld [vmem:[%s1672 + $0xc0] sm:$0xff]
      %v1698 = vld [vmem:[%s1672 + $0xc8] sm:$0xff]
      %v1699 = vld [vmem:[%s1672 + $0xd0] sm:$0xff]
      %v1700 = vld [vmem:[%s1672 + $0xd8] sm:$0xff]
      %v1701 = vld [vmem:[%s1672 + $0xe0] sm:$0xff]
      %v1702 = vld [vmem:[%s1672 + $0xe8] sm:$0xff]
      %v1703 = vld [vmem:[%s1672 + $0xf0] sm:$0xff]
      %v1704 = vld [vmem:[%s1672 + $0xf8] sm:$0xff]
      %v1705 = vld [vmem:[%s1672 + $0x100] sm:$0xff]
      %v1706 = vld [vmem:[%s1672 + $0x108] sm:$0xff]
      %v1707 = vld [vmem:[%s1672 + $0x110] sm:$0xff]
      %v1708 = vld [vmem:[%s1672 + $0x118] sm:$0xff]
      %1710 = vset.pattern.permute.xlu0 0
      %1711 = vperm.xlu0 %1710, %v1673
      %v1712 = vpop.permute.xlu0 %1711
      %1715 = vset.pattern.permute.xlu0 0
      %1716 = vperm.xlu0 %1715, %v1674
      %v1717 = vpop.permute.xlu0 %1716
      %1720 = vset.pattern.permute.xlu0 0
      %1721 = vperm.xlu0 %1720, %v1675
      %v1722 = vpop.permute.xlu0 %1721
      %1725 = vset.pattern.permute.xlu0 0
      %1726 = vperm.xlu0 %1725, %v1676
      %v1727 = vpop.permute.xlu0 %1726
      %1730 = vset.pattern.permute.xlu0 0
      %1731 = vperm.xlu0 %1730, %v1677
      %v1732 = vpop.permute.xlu0 %1731
      %1735 = vset.pattern.permute.xlu0 0
      %1736 = vperm.xlu0 %1735, %v1678
      %v1737 = vpop.permute.xlu0 %1736
      %1740 = vset.pattern.permute.xlu0 0
      %1741 = vperm.xlu0 %1740, %v1679
      %v1742 = vpop.permute.xlu0 %1741
      %1745 = vset.pattern.permute.xlu0 0
      %1746 = vperm.xlu0 %1745, %v1680
      %v1747 = vpop.permute.xlu0 %1746
      %1750 = vset.pattern.permute.xlu0 0
      %1751 = vperm.xlu0 %1750, %v1681
      %v1752 = vpop.permute.xlu0 %1751
      %1755 = vset.pattern.permute.xlu0 0
      %1756 = vperm.xlu0 %1755, %v1682
      %v1757 = vpop.permute.xlu0 %1756
      %1760 = vset.pattern.permute.xlu0 0
      %1761 = vperm.xlu0 %1760, %v1683
      %v1762 = vpop.permute.xlu0 %1761
      %1765 = vset.pattern.permute.xlu0 0
      %1766 = vperm.xlu0 %1765, %v1684
      %v1767 = vpop.permute.xlu0 %1766
      %1770 = vset.pattern.permute.xlu0 0
      %1771 = vperm.xlu0 %1770, %v1685
      %v1772 = vpop.permute.xlu0 %1771
      %1775 = vset.pattern.permute.xlu0 0
      %1776 = vperm.xlu0 %1775, %v1686
      %v1777 = vpop.permute.xlu0 %1776
      %1780 = vset.pattern.permute.xlu0 0
      %1781 = vperm.xlu0 %1780, %v1687
      %v1782 = vpop.permute.xlu0 %1781
      %1785 = vset.pattern.permute.xlu0 0
      %1786 = vperm.xlu0 %1785, %v1688
      %v1787 = vpop.permute.xlu0 %1786
      %1790 = vset.pattern.permute.xlu0 0
      %1791 = vperm.xlu0 %1790, %v1689
      %v1792 = vpop.permute.xlu0 %1791
      %1795 = vset.pattern.permute.xlu0 0
      %1796 = vperm.xlu0 %1795, %v1690
      %v1797 = vpop.permute.xlu0 %1796
      %1800 = vset.pattern.permute.xlu0 0
      %1801 = vperm.xlu0 %1800, %v1691
      %v1802 = vpop.permute.xlu0 %1801
      %1805 = vset.pattern.permute.xlu0 0
      %1806 = vperm.xlu0 %1805, %v1692
      %v1807 = vpop.permute.xlu0 %1806
      %1810 = vset.pattern.permute.xlu0 0
      %1811 = vperm.xlu0 %1810, %v1693
      %v1812 = vpop.permute.xlu0 %1811
      %1815 = vset.pattern.permute.xlu0 0
      %1816 = vperm.xlu0 %1815, %v1694
      %v1817 = vpop.permute.xlu0 %1816
      %1820 = vset.pattern.permute.xlu0 0
      %1821 = vperm.xlu0 %1820, %v1695
      %v1822 = vpop.permute.xlu0 %1821
      %1825 = vset.pattern.permute.xlu0 0
      %1826 = vperm.xlu0 %1825, %v1696
      %v1827 = vpop.permute.xlu0 %1826
      %1830 = vset.pattern.permute.xlu0 0
      %1831 = vperm.xlu0 %1830, %v1697
      %v1832 = vpop.permute.xlu0 %1831
      %1835 = vset.pattern.permute.xlu0 0
      %1836 = vperm.xlu0 %1835, %v1698
      %v1837 = vpop.permute.xlu0 %1836
      %1840 = vset.pattern.permute.xlu0 0
      %1841 = vperm.xlu0 %1840, %v1699
      %v1842 = vpop.permute.xlu0 %1841
      %1845 = vset.pattern.permute.xlu0 0
      %1846 = vperm.xlu0 %1845, %v1700
      %v1847 = vpop.permute.xlu0 %1846
      %1850 = vset.pattern.permute.xlu0 0
      %1851 = vperm.xlu0 %1850, %v1701
      %v1852 = vpop.permute.xlu0 %1851
      %1855 = vset.pattern.permute.xlu0 0
      %1856 = vperm.xlu0 %1855, %v1702
      %v1857 = vpop.permute.xlu0 %1856
      %1860 = vset.pattern.permute.xlu0 0
      %1861 = vperm.xlu0 %1860, %v1703
      %v1862 = vpop.permute.xlu0 %1861
      %1865 = vset.pattern.permute.xlu0 0
      %1866 = vperm.xlu0 %1865, %v1704
      %v1867 = vpop.permute.xlu0 %1866
      %1870 = vset.pattern.permute.xlu0 0
      %1871 = vperm.xlu0 %1870, %v1705
      %v1872 = vpop.permute.xlu0 %1871
      %1875 = vset.pattern.permute.xlu0 0
      %1876 = vperm.xlu0 %1875, %v1706
      %v1877 = vpop.permute.xlu0 %1876
      %1880 = vset.pattern.permute.xlu0 0
      %1881 = vperm.xlu0 %1880, %v1707
      %v1882 = vpop.permute.xlu0 %1881
      %1885 = vset.pattern.permute.xlu0 0
      %1886 = vperm.xlu0 %1885, %v1708
      %v1887 = vpop.permute.xlu0 %1886
      %v1889 = vmul.f32 %v1636, %v1712
      %v1890 = vmul.f32 %v1637, %v1717
      %v1891 = vmul.f32 %v1638, %v1722
      %v1892 = vmul.f32 %v1639, %v1727
      %v1893 = vmul.f32 %v1640, %v1732
      %v1894 = vmul.f32 %v1641, %v1737
      %v1895 = vmul.f32 %v1642, %v1742
      %v1896 = vmul.f32 %v1643, %v1747
      %v1897 = vmul.f32 %v1644, %v1752
      %v1898 = vmul.f32 %v1645, %v1757
      %v1899 = vmul.f32 %v1646, %v1762
      %v1900 = vmul.f32 %v1647, %v1767
      %v1901 = vmul.f32 %v1648, %v1772
      %v1902 = vmul.f32 %v1649, %v1777
      %v1903 = vmul.f32 %v1650, %v1782
      %v1904 = vmul.f32 %v1651, %v1787
      %v1905 = vmul.f32 %v1652, %v1792
      %v1906 = vmul.f32 %v1653, %v1797
      %v1907 = vmul.f32 %v1654, %v1802
      %v1908 = vmul.f32 %v1655, %v1807
      %v1909 = vmul.f32 %v1656, %v1812
      %v1910 = vmul.f32 %v1657, %v1817
      %v1911 = vmul.f32 %v1658, %v1822
      %v1912 = vmul.f32 %v1659, %v1827
      %v1913 = vmul.f32 %v1660, %v1832
      %v1914 = vmul.f32 %v1661, %v1837
      %v1915 = vmul.f32 %v1662, %v1842
      %v1916 = vmul.f32 %v1663, %v1847
      %v1917 = vmul.f32 %v1664, %v1852
      %v1918 = vmul.f32 %v1665, %v1857
      %v1919 = vmul.f32 %v1666, %v1862
      %v1920 = vmul.f32 %v1667, %v1867
      %v1921 = vmul.f32 %v1668, %v1872
      %v1922 = vmul.f32 %v1669, %v1877
      %v1923 = vmul.f32 %v1670, %v1882
      %v1924 = vmul.f32 %v1671, %v1887
      %s1925 = scalar_lea.vmem %s1, 8
      %v1926 = vld [vmem:[%s1925] sm:$0xff]
      %v1928 = vsel %vm709, %v1889, 0
      %v1931 = vsel %vm709, %v1890, 0
      %v1934 = vsel %vm709, %v1891, 0
      %v1937 = vsel %vm709, %v1892, 0
      %v1940 = vsel %vm709, %v1893, 0
      %v1943 = vsel %vm709, %v1894, 0
      %v1946 = vsel %vm709, %v1895, 0
      %v1949 = vsel %vm709, %v1896, 0
      %v1952 = vsel %vm709, %v1897, 0
      %v1955 = vsel %vm709, %v1898, 0
      %v1958 = vsel %vm709, %v1899, 0
      %v1961 = vsel %vm709, %v1900, 0
      %v1964 = vsel %vm709, %v1901, 0
      %v1967 = vsel %vm709, %v1902, 0
      %v1970 = vsel %vm709, %v1903, 0
      %v1973 = vsel %vm709, %v1904, 0
      %v1976 = vsel %vm709, %v1905, 0
      %v1979 = vsel %vm709, %v1906, 0
      %v1982 = vsel %vm709, %v1907, 0
      %v1985 = vsel %vm709, %v1908, 0
      %v1988 = vsel %vm709, %v1909, 0
      %v1991 = vsel %vm709, %v1910, 0
      %v1994 = vsel %vm709, %v1911, 0
      %v1997 = vsel %vm709, %v1912, 0
      %v2000 = vsel %vm709, %v1913, 0
      %v2003 = vsel %vm709, %v1914, 0
      %v2006 = vsel %vm709, %v1915, 0
      %v2009 = vsel %vm709, %v1916, 0
      %v2012 = vsel %vm709, %v1917, 0
      %v2015 = vsel %vm709, %v1918, 0
      %v2018 = vsel %vm709, %v1919, 0
      %v2021 = vsel %vm709, %v1920, 0
      %2023 = vmatprep.subr.mxu0 0.0
      %2024 = vmatpush1.msra.mxu0 0.0
      %2025 = vmatprep.subr.mxu0 0.0
      %2026 = vmatpush1.msra.mxu0 0.0
      %2027 = vmatprep.subr.mxu0 0.0
      %2028 = vmatpush1.msra.mxu0 0.0
      %2029 = vmatprep.subr.mxu0 0.0
      %2030 = vmatpush1.msra.mxu0 0.0
      %2031 = vmatprep.subr.mxu0 0.0
      %2032 = vmatpush1.msra.mxu0 0.0
      %2033 = vmatprep.subr.mxu0 0.0
      %2034 = vmatpush1.msra.mxu0 0.0
      %2035 = vmatprep.subr.mxu0 0.0
      %2036 = vmatpush1.msra.mxu0 0.0
      %2037 = vmatprep.subr.mxu0 0.0
      %2038 = vmatpush1.msra.mxu0 0.0
      %2039 = vmatprep.subr.mxu0 0.0
      %2040 = vmatpush1.msra.mxu0 0.0
      %2041 = vmatprep.subr.mxu0 0.0
      %2042 = vmatpush1.msra.mxu0 0.0
      %2043 = vmatprep.subr.mxu0 0.0
      %2044 = vmatpush1.msra.mxu0 0.0
      %2045 = vmatprep.subr.mxu0 0.0
      %2046 = vmatpush1.msra.mxu0 0.0
      %2047 = vmatprep.subr.mxu0 0.0
      %2048 = vmatpush1.msra.mxu0 0.0
      %2049 = vmatprep.subr.mxu0 0.0
      %2050 = vmatpush1.msra.mxu0 0.0
      %2051 = vmatprep.subr.mxu0 0.0
      %2052 = vmatpush1.msra.mxu0 0.0
      %2053 = vmatprep.subr.mxu0 0.0
      %2054 = vmatpush1.msra.mxu0 %v1926
      %2055 = vmatprep.subr.mxu0 0.0
      %2056 = vmatpush2.msra.mxu0 0.0
      %2057 = vmatprep.subr.mxu0 0.0
      %2058 = vmatpush2.msra.mxu0 0.0
      %2059 = vmatprep.subr.mxu0 0.0
      %2060 = vmatpush2.msra.mxu0 0.0
      %2061 = vmatprep.subr.mxu0 0.0
      %2062 = vmatpush2.msra.mxu0 0.0
      %2063 = vmatprep.subr.mxu0 0.0
      %2064 = vmatpush2.msra.mxu0 0.0
      %2065 = vmatprep.subr.mxu0 0.0
      %2066 = vmatpush2.msra.mxu0 0.0
      %2067 = vmatprep.subr.mxu0 0.0
      %2068 = vmatpush2.msra.mxu0 0.0
      %2069 = vmatprep.subr.mxu0 0.0
      %2070 = vmatpush2.msra.mxu0 0.0
      %2071 = vmatprep.subr.mxu0 0.0
      %2072 = vmatpush2.msra.mxu0 0.0
      %2073 = vmatprep.subr.mxu0 0.0
      %2074 = vmatpush2.msra.mxu0 0.0
      %2075 = vmatprep.subr.mxu0 0.0
      %2076 = vmatpush2.msra.mxu0 0.0
      %2077 = vmatprep.subr.mxu0 0.0
      %2078 = vmatpush2.msra.mxu0 0.0
      %2079 = vmatprep.subr.mxu0 0.0
      %2080 = vmatpush2.msra.mxu0 0.0
      %2081 = vmatprep.subr.mxu0 0.0
      %2082 = vmatpush2.msra.mxu0 0.0
      %2083 = vmatprep.subr.mxu0 0.0
      %2084 = vmatpush2.msra.mxu0 0.0
      %2085 = vmatprep.subr.mxu0 0.0
      %2086 = vmatpush2.msra.mxu0 0.0
      %2087 = vmatprep.mubr.f32.mxu0 0.0
      %2088 = vmatmul.mubr.f32.gmra.mxu0 %v1928
      %v2089 = vpop.f32.mrf.mxu0
      %v2090 = vadd.f32 0.0, %v2089
      %v2091 = vpop.f32.mrf.mxu0
      %2092 = vmatprep.mubr.f32.mxu0 0.0
      %2093 = vmatmul.mubr.f32.gmra.mxu0 %v1931
      %v2094 = vpop.f32.mrf.mxu0
      %v2095 = vadd.f32 0.0, %v2094
      %v2096 = vpop.f32.mrf.mxu0
      %2097 = vmatprep.mubr.f32.mxu0 0.0
      %2098 = vmatmul.mubr.f32.gmra.mxu0 %v1934
      %v2099 = vpop.f32.mrf.mxu0
      %v2100 = vadd.f32 0.0, %v2099
      %v2101 = vpop.f32.mrf.mxu0
      %2102 = vmatprep.mubr.f32.mxu0 0.0
      %2103 = vmatmul.mubr.f32.gmra.mxu0 %v1937
      %v2104 = vpop.f32.mrf.mxu0
      %v2105 = vadd.f32 0.0, %v2104
      %v2106 = vpop.f32.mrf.mxu0
      %2107 = vmatprep.mubr.f32.mxu0 0.0
      %2108 = vmatmul.mubr.f32.gmra.mxu0 %v1940
      %v2109 = vpop.f32.mrf.mxu0
      %v2110 = vadd.f32 0.0, %v2109
      %v2111 = vpop.f32.mrf.mxu0
      %2112 = vmatprep.mubr.f32.mxu0 0.0
      %2113 = vmatmul.mubr.f32.gmra.mxu0 %v1943
      %v2114 = vpop.f32.mrf.mxu0
      %v2115 = vadd.f32 0.0, %v2114
      %v2116 = vpop.f32.mrf.mxu0
      %2117 = vmatprep.mubr.f32.mxu0 0.0
      %2118 = vmatmul.mubr.f32.gmra.mxu0 %v1946
      %v2119 = vpop.f32.mrf.mxu0
      %v2120 = vadd.f32 0.0, %v2119
      %v2121 = vpop.f32.mrf.mxu0
      %2122 = vmatprep.mubr.f32.mxu0 0.0
      %2123 = vmatmul.mubr.f32.gmra.mxu0 %v1949
      %v2124 = vpop.f32.mrf.mxu0
      %v2125 = vadd.f32 0.0, %v2124
      %v2126 = vpop.f32.mrf.mxu0
      %2127 = vmatprep.mubr.f32.mxu0 0.0
      %2128 = vmatmul.mubr.f32.gmra.mxu0 %v1952
      %v2129 = vpop.f32.mrf.mxu0
      %v2130 = vadd.f32 0.0, %v2129
      %v2131 = vpop.f32.mrf.mxu0
      %2132 = vmatprep.mubr.f32.mxu0 0.0
      %2133 = vmatmul.mubr.f32.gmra.mxu0 %v1955
      %v2134 = vpop.f32.mrf.mxu0
      %v2135 = vadd.f32 0.0, %v2134
      %v2136 = vpop.f32.mrf.mxu0
      %2137 = vmatprep.mubr.f32.mxu0 0.0
      %2138 = vmatmul.mubr.f32.gmra.mxu0 %v1958
      %v2139 = vpop.f32.mrf.mxu0
      %v2140 = vadd.f32 0.0, %v2139
      %v2141 = vpop.f32.mrf.mxu0
      %2142 = vmatprep.mubr.f32.mxu0 0.0
      %2143 = vmatmul.mubr.f32.gmra.mxu0 %v1961
      %v2144 = vpop.f32.mrf.mxu0
      %v2145 = vadd.f32 0.0, %v2144
      %v2146 = vpop.f32.mrf.mxu0
      %2147 = vmatprep.mubr.f32.mxu0 0.0
      %2148 = vmatmul.mubr.f32.gmra.mxu0 %v1964
      %v2149 = vpop.f32.mrf.mxu0
      %v2150 = vadd.f32 0.0, %v2149
      %v2151 = vpop.f32.mrf.mxu0
      %2152 = vmatprep.mubr.f32.mxu0 0.0
      %2153 = vmatmul.mubr.f32.gmra.mxu0 %v1967
      %v2154 = vpop.f32.mrf.mxu0
      %v2155 = vadd.f32 0.0, %v2154
      %v2156 = vpop.f32.mrf.mxu0
      %2157 = vmatprep.mubr.f32.mxu0 0.0
      %2158 = vmatmul.mubr.f32.gmra.mxu0 %v1970
      %v2159 = vpop.f32.mrf.mxu0
      %v2160 = vadd.f32 0.0, %v2159
      %v2161 = vpop.f32.mrf.mxu0
      %2162 = vmatprep.mubr.f32.mxu0 0.0
      %2163 = vmatmul.mubr.f32.gmra.mxu0 %v1973
      %v2164 = vpop.f32.mrf.mxu0
      %v2165 = vadd.f32 0.0, %v2164
      %v2166 = vpop.f32.mrf.mxu0
      %2167 = vmatprep.mubr.f32.mxu0 0.0
      %2168 = vmatmul.mubr.f32.gmra.mxu0 %v1976
      %v2169 = vpop.f32.mrf.mxu0
      %v2170 = vadd.f32 0.0, %v2169
      %v2171 = vpop.f32.mrf.mxu0
      %2172 = vmatprep.mubr.f32.mxu0 0.0
      %2173 = vmatmul.mubr.f32.gmra.mxu0 %v1979
      %v2174 = vpop.f32.mrf.mxu0
      %v2175 = vadd.f32 0.0, %v2174
      %v2176 = vpop.f32.mrf.mxu0
      %2177 = vmatprep.mubr.f32.mxu0 0.0
      %2178 = vmatmul.mubr.f32.gmra.mxu0 %v1982
      %v2179 = vpop.f32.mrf.mxu0
      %v2180 = vadd.f32 0.0, %v2179
      %v2181 = vpop.f32.mrf.mxu0
      %2182 = vmatprep.mubr.f32.mxu0 0.0
      %2183 = vmatmul.mubr.f32.gmra.mxu0 %v1985
      %v2184 = vpop.f32.mrf.mxu0
      %v2185 = vadd.f32 0.0, %v2184
      %v2186 = vpop.f32.mrf.mxu0
      %2187 = vmatprep.mubr.f32.mxu0 0.0
      %2188 = vmatmul.mubr.f32.gmra.mxu0 %v1988
      %v2189 = vpop.f32.mrf.mxu0
      %v2190 = vadd.f32 0.0, %v2189
      %v2191 = vpop.f32.mrf.mxu0
      %2192 = vmatprep.mubr.f32.mxu0 0.0
      %2193 = vmatmul.mubr.f32.gmra.mxu0 %v1991
      %v2194 = vpop.f32.mrf.mxu0
      %v2195 = vadd.f32 0.0, %v2194
      %v2196 = vpop.f32.mrf.mxu0
      %2197 = vmatprep.mubr.f32.mxu0 0.0
      %2198 = vmatmul.mubr.f32.gmra.mxu0 %v1994
      %v2199 = vpop.f32.mrf.mxu0
      %v2200 = vadd.f32 0.0, %v2199
      %v2201 = vpop.f32.mrf.mxu0
      %2202 = vmatprep.mubr.f32.mxu0 0.0
      %2203 = vmatmul.mubr.f32.gmra.mxu0 %v1997
      %v2204 = vpop.f32.mrf.mxu0
      %v2205 = vadd.f32 0.0, %v2204
      %v2206 = vpop.f32.mrf.mxu0
      %2207 = vmatprep.mubr.f32.mxu0 0.0
      %2208 = vmatmul.mubr.f32.gmra.mxu0 %v2000
      %v2209 = vpop.f32.mrf.mxu0
      %v2210 = vadd.f32 0.0, %v2209
      %v2211 = vpop.f32.mrf.mxu0
      %2212 = vmatprep.mubr.f32.mxu0 0.0
      %2213 = vmatmul.mubr.f32.gmra.mxu0 %v2003
      %v2214 = vpop.f32.mrf.mxu0
      %v2215 = vadd.f32 0.0, %v2214
      %v2216 = vpop.f32.mrf.mxu0
      %2217 = vmatprep.mubr.f32.mxu0 0.0
      %2218 = vmatmul.mubr.f32.gmra.mxu0 %v2006
      %v2219 = vpop.f32.mrf.mxu0
      %v2220 = vadd.f32 0.0, %v2219
      %v2221 = vpop.f32.mrf.mxu0
      %2222 = vmatprep.mubr.f32.mxu0 0.0
      %2223 = vmatmul.mubr.f32.gmra.mxu0 %v2009
      %v2224 = vpop.f32.mrf.mxu0
      %v2225 = vadd.f32 0.0, %v2224
      %v2226 = vpop.f32.mrf.mxu0
      %2227 = vmatprep.mubr.f32.mxu0 0.0
      %2228 = vmatmul.mubr.f32.gmra.mxu0 %v2012
      %v2229 = vpop.f32.mrf.mxu0
      %v2230 = vadd.f32 0.0, %v2229
      %v2231 = vpop.f32.mrf.mxu0
      %2232 = vmatprep.mubr.f32.mxu0 0.0
      %2233 = vmatmul.mubr.f32.gmra.mxu0 %v2015
      %v2234 = vpop.f32.mrf.mxu0
      %v2235 = vadd.f32 0.0, %v2234
      %v2236 = vpop.f32.mrf.mxu0
      %2237 = vmatprep.mubr.f32.mxu0 0.0
      %2238 = vmatmul.mubr.f32.gmra.mxu0 %v2018
      %v2239 = vpop.f32.mrf.mxu0
      %v2240 = vadd.f32 0.0, %v2239
      %v2241 = vpop.f32.mrf.mxu0
      %2242 = vmatprep.mubr.f32.mxu0 0.0
      %2243 = vmatmul.mubr.f32.gmra.mxu0 %v2021
      %v2244 = vpop.f32.mrf.mxu0
      %v2245 = vadd.f32 0.0, %v2244
      %v2246 = vpop.f32.mrf.mxu0
      %2247 = vdwg.mxu0
      %v2248 = vadd.f32 %v1495, %v2090
      %v2249 = vadd.f32 %v1496, %v2095
      %v2250 = vadd.f32 %v1497, %v2100
      %v2251 = vadd.f32 %v1498, %v2105
      %v2252 = vadd.f32 %v1499, %v2110
      %v2253 = vadd.f32 %v1500, %v2115
      %v2254 = vadd.f32 %v1501, %v2120
      %v2255 = vadd.f32 %v1502, %v2125
      %v2256 = vadd.f32 %v1503, %v2130
      %v2257 = vadd.f32 %v1504, %v2135
      %v2258 = vadd.f32 %v1505, %v2140
      %v2259 = vadd.f32 %v1506, %v2145
      %v2260 = vadd.f32 %v1507, %v2150
      %v2261 = vadd.f32 %v1508, %v2155
      %v2262 = vadd.f32 %v1509, %v2160
      %v2263 = vadd.f32 %v1510, %v2165
      %v2264 = vadd.f32 %v1511, %v2170
      %v2265 = vadd.f32 %v1512, %v2175
      %v2266 = vadd.f32 %v1513, %v2180
      %v2267 = vadd.f32 %v1514, %v2185
      %v2268 = vadd.f32 %v1515, %v2190
      %v2269 = vadd.f32 %v1516, %v2195
      %v2270 = vadd.f32 %v1517, %v2200
      %v2271 = vadd.f32 %v1518, %v2205
      %v2272 = vadd.f32 %v1519, %v2210
      %v2273 = vadd.f32 %v1520, %v2215
      %v2274 = vadd.f32 %v1521, %v2220
      %v2275 = vadd.f32 %v1522, %v2225
      %v2276 = vadd.f32 %v1523, %v2230
      %v2277 = vadd.f32 %v1524, %v2235
      %v2278 = vadd.f32 %v1525, %v2240
      %v2279 = vadd.f32 %v1526, %v2245
      %s2280 = scalar_lea.vmem %s1, 32
      %v2281 = vld [vmem:[%s2280] sm:$0xff]
      %v2283 = vsel %vm709, %v1921, 0
      %v2286 = vsel %vm709, %v1922, 0
      %2288 = vmatprep.subr.mxu0 0.0
      %2289 = vmatpush1.msra.mxu0 0.0
      %2290 = vmatprep.subr.mxu0 0.0
      %2291 = vmatpush1.msra.mxu0 0.0
      %2292 = vmatprep.subr.mxu0 0.0
      %2293 = vmatpush1.msra.mxu0 0.0
      %2294 = vmatprep.subr.mxu0 0.0
      %2295 = vmatpush1.msra.mxu0 0.0
      %2296 = vmatprep.subr.mxu0 0.0
      %2297 = vmatpush1.msra.mxu0 0.0
      %2298 = vmatprep.subr.mxu0 0.0
      %2299 = vmatpush1.msra.mxu0 0.0
      %2300 = vmatprep.subr.mxu0 0.0
      %2301 = vmatpush1.msra.mxu0 0.0
      %2302 = vmatprep.subr.mxu0 0.0
      %2303 = vmatpush1.msra.mxu0 0.0
      %2304 = vmatprep.subr.mxu0 0.0
      %2305 = vmatpush1.msra.mxu0 0.0
      %2306 = vmatprep.subr.mxu0 0.0
      %2307 = vmatpush1.msra.mxu0 0.0
      %2308 = vmatprep.subr.mxu0 0.0
      %2309 = vmatpush1.msra.mxu0 0.0
      %2310 = vmatprep.subr.mxu0 0.0
      %2311 = vmatpush1.msra.mxu0 0.0
      %2312 = vmatprep.subr.mxu0 0.0
      %2313 = vmatpush1.msra.mxu0 0.0
      %2314 = vmatprep.subr.mxu0 0.0
      %2315 = vmatpush1.msra.mxu0 0.0
      %2316 = vmatprep.subr.mxu0 0.0
      %2317 = vmatpush1.msra.mxu0 0.0
      %2318 = vmatprep.subr.mxu0 0.0
      %2319 = vmatpush1.msra.mxu0 %v2281
      %2320 = vmatprep.subr.mxu0 0.0
      %2321 = vmatpush2.msra.mxu0 0.0
      %2322 = vmatprep.subr.mxu0 0.0
      %2323 = vmatpush2.msra.mxu0 0.0
      %2324 = vmatprep.subr.mxu0 0.0
      %2325 = vmatpush2.msra.mxu0 0.0
      %2326 = vmatprep.subr.mxu0 0.0
      %2327 = vmatpush2.msra.mxu0 0.0
      %2328 = vmatprep.subr.mxu0 0.0
      %2329 = vmatpush2.msra.mxu0 0.0
      %2330 = vmatprep.subr.mxu0 0.0
      %2331 = vmatpush2.msra.mxu0 0.0
      %2332 = vmatprep.subr.mxu0 0.0
      %2333 = vmatpush2.msra.mxu0 0.0
      %2334 = vmatprep.subr.mxu0 0.0
      %2335 = vmatpush2.msra.mxu0 0.0
      %2336 = vmatprep.subr.mxu0 0.0
      %2337 = vmatpush2.msra.mxu0 0.0
      %2338 = vmatprep.subr.mxu0 0.0
      %2339 = vmatpush2.msra.mxu0 0.0
      %2340 = vmatprep.subr.mxu0 0.0
      %2341 = vmatpush2.msra.mxu0 0.0
      %2342 = vmatprep.subr.mxu0 0.0
      %2343 = vmatpush2.msra.mxu0 0.0
      %2344 = vmatprep.subr.mxu0 0.0
      %2345 = vmatpush2.msra.mxu0 0.0
      %2346 = vmatprep.subr.mxu0 0.0
      %2347 = vmatpush2.msra.mxu0 0.0
      %2348 = vmatprep.subr.mxu0 0.0
      %2349 = vmatpush2.msra.mxu0 0.0
      %2350 = vmatprep.subr.mxu0 0.0
      %2351 = vmatpush2.msra.mxu0 0.0
      %2352 = vmatprep.mubr.f32.mxu0 0.0
      %2353 = vmatmul.mubr.f32.gmra.mxu0 %v1934
      %v2354 = vpop.f32.mrf.mxu0
      %v2355 = vadd.f32 0.0, %v2354
      %v2356 = vpop.f32.mrf.mxu0
      %2357 = vmatprep.mubr.f32.mxu0 0.0
      %2358 = vmatmul.mubr.f32.gmra.mxu0 %v1937
      %v2359 = vpop.f32.mrf.mxu0
      %v2360 = vadd.f32 0.0, %v2359
      %v2361 = vpop.f32.mrf.mxu0
      %2362 = vmatprep.mubr.f32.mxu0 0.0
      %2363 = vmatmul.mubr.f32.gmra.mxu0 %v1940
      %v2364 = vpop.f32.mrf.mxu0
      %v2365 = vadd.f32 0.0, %v2364
      %v2366 = vpop.f32.mrf.mxu0
      %2367 = vmatprep.mubr.f32.mxu0 0.0
      %2368 = vmatmul.mubr.f32.gmra.mxu0 %v1943
      %v2369 = vpop.f32.mrf.mxu0
      %v2370 = vadd.f32 0.0, %v2369
      %v2371 = vpop.f32.mrf.mxu0
      %2372 = vmatprep.mubr.f32.mxu0 0.0
      %2373 = vmatmul.mubr.f32.gmra.mxu0 %v1946
      %v2374 = vpop.f32.mrf.mxu0
      %v2375 = vadd.f32 0.0, %v2374
      %v2376 = vpop.f32.mrf.mxu0
      %2377 = vmatprep.mubr.f32.mxu0 0.0
      %2378 = vmatmul.mubr.f32.gmra.mxu0 %v1949
      %v2379 = vpop.f32.mrf.mxu0
      %v2380 = vadd.f32 0.0, %v2379
      %v2381 = vpop.f32.mrf.mxu0
      %2382 = vmatprep.mubr.f32.mxu0 0.0
      %2383 = vmatmul.mubr.f32.gmra.mxu0 %v1952
      %v2384 = vpop.f32.mrf.mxu0
      %v2385 = vadd.f32 0.0, %v2384
      %v2386 = vpop.f32.mrf.mxu0
      %2387 = vmatprep.mubr.f32.mxu0 0.0
      %2388 = vmatmul.mubr.f32.gmra.mxu0 %v1955
      %v2389 = vpop.f32.mrf.mxu0
      %v2390 = vadd.f32 0.0, %v2389
      %v2391 = vpop.f32.mrf.mxu0
      %2392 = vmatprep.mubr.f32.mxu0 0.0
      %2393 = vmatmul.mubr.f32.gmra.mxu0 %v1958
      %v2394 = vpop.f32.mrf.mxu0
      %v2395 = vadd.f32 0.0, %v2394
      %v2396 = vpop.f32.mrf.mxu0
      %2397 = vmatprep.mubr.f32.mxu0 0.0
      %2398 = vmatmul.mubr.f32.gmra.mxu0 %v1961
      %v2399 = vpop.f32.mrf.mxu0
      %v2400 = vadd.f32 0.0, %v2399
      %v2401 = vpop.f32.mrf.mxu0
      %2402 = vmatprep.mubr.f32.mxu0 0.0
      %2403 = vmatmul.mubr.f32.gmra.mxu0 %v1964
      %v2404 = vpop.f32.mrf.mxu0
      %v2405 = vadd.f32 0.0, %v2404
      %v2406 = vpop.f32.mrf.mxu0
      %2407 = vmatprep.mubr.f32.mxu0 0.0
      %2408 = vmatmul.mubr.f32.gmra.mxu0 %v1967
      %v2409 = vpop.f32.mrf.mxu0
      %v2410 = vadd.f32 0.0, %v2409
      %v2411 = vpop.f32.mrf.mxu0
      %2412 = vmatprep.mubr.f32.mxu0 0.0
      %2413 = vmatmul.mubr.f32.gmra.mxu0 %v1970
      %v2414 = vpop.f32.mrf.mxu0
      %v2415 = vadd.f32 0.0, %v2414
      %v2416 = vpop.f32.mrf.mxu0
      %2417 = vmatprep.mubr.f32.mxu0 0.0
      %2418 = vmatmul.mubr.f32.gmra.mxu0 %v1973
      %v2419 = vpop.f32.mrf.mxu0
      %v2420 = vadd.f32 0.0, %v2419
      %v2421 = vpop.f32.mrf.mxu0
      %2422 = vmatprep.mubr.f32.mxu0 0.0
      %2423 = vmatmul.mubr.f32.gmra.mxu0 %v1976
      %v2424 = vpop.f32.mrf.mxu0
      %v2425 = vadd.f32 0.0, %v2424
      %v2426 = vpop.f32.mrf.mxu0
      %2427 = vmatprep.mubr.f32.mxu0 0.0
      %2428 = vmatmul.mubr.f32.gmra.mxu0 %v1979
      %v2429 = vpop.f32.mrf.mxu0
      %v2430 = vadd.f32 0.0, %v2429
      %v2431 = vpop.f32.mrf.mxu0
      %2432 = vmatprep.mubr.f32.mxu0 0.0
      %2433 = vmatmul.mubr.f32.gmra.mxu0 %v1982
      %v2434 = vpop.f32.mrf.mxu0
      %v2435 = vadd.f32 0.0, %v2434
      %v2436 = vpop.f32.mrf.mxu0
      %2437 = vmatprep.mubr.f32.mxu0 0.0
      %2438 = vmatmul.mubr.f32.gmra.mxu0 %v1985
      %v2439 = vpop.f32.mrf.mxu0
      %v2440 = vadd.f32 0.0, %v2439
      %v2441 = vpop.f32.mrf.mxu0
      %2442 = vmatprep.mubr.f32.mxu0 0.0
      %2443 = vmatmul.mubr.f32.gmra.mxu0 %v1988
      %v2444 = vpop.f32.mrf.mxu0
      %v2445 = vadd.f32 0.0, %v2444
      %v2446 = vpop.f32.mrf.mxu0
      %2447 = vmatprep.mubr.f32.mxu0 0.0
      %2448 = vmatmul.mubr.f32.gmra.mxu0 %v1991
      %v2449 = vpop.f32.mrf.mxu0
      %v2450 = vadd.f32 0.0, %v2449
      %v2451 = vpop.f32.mrf.mxu0
      %2452 = vmatprep.mubr.f32.mxu0 0.0
      %2453 = vmatmul.mubr.f32.gmra.mxu0 %v1994
      %v2454 = vpop.f32.mrf.mxu0
      %v2455 = vadd.f32 0.0, %v2454
      %v2456 = vpop.f32.mrf.mxu0
      %2457 = vmatprep.mubr.f32.mxu0 0.0
      %2458 = vmatmul.mubr.f32.gmra.mxu0 %v1997
      %v2459 = vpop.f32.mrf.mxu0
      %v2460 = vadd.f32 0.0, %v2459
      %v2461 = vpop.f32.mrf.mxu0
      %2462 = vmatprep.mubr.f32.mxu0 0.0
      %2463 = vmatmul.mubr.f32.gmra.mxu0 %v2000
      %v2464 = vpop.f32.mrf.mxu0
      %v2465 = vadd.f32 0.0, %v2464
      %v2466 = vpop.f32.mrf.mxu0
      %2467 = vmatprep.mubr.f32.mxu0 0.0
      %2468 = vmatmul.mubr.f32.gmra.mxu0 %v2003
      %v2469 = vpop.f32.mrf.mxu0
      %v2470 = vadd.f32 0.0, %v2469
      %v2471 = vpop.f32.mrf.mxu0
      %2472 = vmatprep.mubr.f32.mxu0 0.0
      %2473 = vmatmul.mubr.f32.gmra.mxu0 %v2006
      %v2474 = vpop.f32.mrf.mxu0
      %v2475 = vadd.f32 0.0, %v2474
      %v2476 = vpop.f32.mrf.mxu0
      %2477 = vmatprep.mubr.f32.mxu0 0.0
      %2478 = vmatmul.mubr.f32.gmra.mxu0 %v2009
      %v2479 = vpop.f32.mrf.mxu0
      %v2480 = vadd.f32 0.0, %v2479
      %v2481 = vpop.f32.mrf.mxu0
      %2482 = vmatprep.mubr.f32.mxu0 0.0
      %2483 = vmatmul.mubr.f32.gmra.mxu0 %v2012
      %v2484 = vpop.f32.mrf.mxu0
      %v2485 = vadd.f32 0.0, %v2484
      %v2486 = vpop.f32.mrf.mxu0
      %2487 = vmatprep.mubr.f32.mxu0 0.0
      %2488 = vmatmul.mubr.f32.gmra.mxu0 %v2015
      %v2489 = vpop.f32.mrf.mxu0
      %v2490 = vadd.f32 0.0, %v2489
      %v2491 = vpop.f32.mrf.mxu0
      %2492 = vmatprep.mubr.f32.mxu0 0.0
      %2493 = vmatmul.mubr.f32.gmra.mxu0 %v2018
      %v2494 = vpop.f32.mrf.mxu0
      %v2495 = vadd.f32 0.0, %v2494
      %v2496 = vpop.f32.mrf.mxu0
      %2497 = vmatprep.mubr.f32.mxu0 0.0
      %2498 = vmatmul.mubr.f32.gmra.mxu0 %v2021
      %v2499 = vpop.f32.mrf.mxu0
      %v2500 = vadd.f32 0.0, %v2499
      %v2501 = vpop.f32.mrf.mxu0
      %2502 = vmatprep.mubr.f32.mxu0 0.0
      %2503 = vmatmul.mubr.f32.gmra.mxu0 %v2283
      %v2504 = vpop.f32.mrf.mxu0
      %v2505 = vadd.f32 0.0, %v2504
      %v2506 = vpop.f32.mrf.mxu0
      %2507 = vmatprep.mubr.f32.mxu0 0.0
      %2508 = vmatmul.mubr.f32.gmra.mxu0 %v2286
      %v2509 = vpop.f32.mrf.mxu0
      %v2510 = vadd.f32 0.0, %v2509
      %v2511 = vpop.f32.mrf.mxu0
      %2512 = vdwg.mxu0
      %v2513 = vadd.f32 %v2248, %v2355
      %v2514 = vadd.f32 %v2249, %v2360
      %v2515 = vadd.f32 %v2250, %v2365
      %v2516 = vadd.f32 %v2251, %v2370
      %v2517 = vadd.f32 %v2252, %v2375
      %v2518 = vadd.f32 %v2253, %v2380
      %v2519 = vadd.f32 %v2254, %v2385
      %v2520 = vadd.f32 %v2255, %v2390
      %v2521 = vadd.f32 %v2256, %v2395
      %v2522 = vadd.f32 %v2257, %v2400
      %v2523 = vadd.f32 %v2258, %v2405
      %v2524 = vadd.f32 %v2259, %v2410
      %v2525 = vadd.f32 %v2260, %v2415
      %v2526 = vadd.f32 %v2261, %v2420
      %v2527 = vadd.f32 %v2262, %v2425
      %v2528 = vadd.f32 %v2263, %v2430
      %v2529 = vadd.f32 %v2264, %v2435
      %v2530 = vadd.f32 %v2265, %v2440
      %v2531 = vadd.f32 %v2266, %v2445
      %v2532 = vadd.f32 %v2267, %v2450
      %v2533 = vadd.f32 %v2268, %v2455
      %v2534 = vadd.f32 %v2269, %v2460
      %v2535 = vadd.f32 %v2270, %v2465
      %v2536 = vadd.f32 %v2271, %v2470
      %v2537 = vadd.f32 %v2272, %v2475
      %v2538 = vadd.f32 %v2273, %v2480
      %v2539 = vadd.f32 %v2274, %v2485
      %v2540 = vadd.f32 %v2275, %v2490
      %v2541 = vadd.f32 %v2276, %v2495
      %v2542 = vadd.f32 %v2277, %v2500
      %v2543 = vadd.f32 %v2278, %v2505
      %v2544 = vadd.f32 %v2279, %v2510
      %s2545 = scalar_lea.vmem %s1, 56
      %v2546 = vld [vmem:[%s2545] sm:$0xff]
      %v2548 = vsel %vm709, %v1923, 0
      %v2551 = vsel %vm709, %v1924, 0
      %2553 = vmatprep.subr.mxu0 0.0
      %2554 = vmatpush1.msra.mxu0 0.0
      %2555 = vmatprep.subr.mxu0 0.0
      %2556 = vmatpush1.msra.mxu0 0.0
      %2557 = vmatprep.subr.mxu0 0.0
      %2558 = vmatpush1.msra.mxu0 0.0
      %2559 = vmatprep.subr.mxu0 0.0
      %2560 = vmatpush1.msra.mxu0 0.0
      %2561 = vmatprep.subr.mxu0 0.0
      %2562 = vmatpush1.msra.mxu0 0.0
      %2563 = vmatprep.subr.mxu0 0.0
      %2564 = vmatpush1.msra.mxu0 0.0
      %2565 = vmatprep.subr.mxu0 0.0
      %2566 = vmatpush1.msra.mxu0 0.0
      %2567 = vmatprep.subr.mxu0 0.0
      %2568 = vmatpush1.msra.mxu0 0.0
      %2569 = vmatprep.subr.mxu0 0.0
      %2570 = vmatpush1.msra.mxu0 0.0
      %2571 = vmatprep.subr.mxu0 0.0
      %2572 = vmatpush1.msra.mxu0 0.0
      %2573 = vmatprep.subr.mxu0 0.0
      %2574 = vmatpush1.msra.mxu0 0.0
      %2575 = vmatprep.subr.mxu0 0.0
      %2576 = vmatpush1.msra.mxu0 0.0
      %2577 = vmatprep.subr.mxu0 0.0
      %2578 = vmatpush1.msra.mxu0 0.0
      %2579 = vmatprep.subr.mxu0 0.0
      %2580 = vmatpush1.msra.mxu0 0.0
      %2581 = vmatprep.subr.mxu0 0.0
      %2582 = vmatpush1.msra.mxu0 0.0
      %2583 = vmatprep.subr.mxu0 0.0
      %2584 = vmatpush1.msra.mxu0 %v2546
      %2585 = vmatprep.subr.mxu0 0.0
      %2586 = vmatpush2.msra.mxu0 0.0
      %2587 = vmatprep.subr.mxu0 0.0
      %2588 = vmatpush2.msra.mxu0 0.0
      %2589 = vmatprep.subr.mxu0 0.0
      %2590 = vmatpush2.msra.mxu0 0.0
      %2591 = vmatprep.subr.mxu0 0.0
      %2592 = vmatpush2.msra.mxu0 0.0
      %2593 = vmatprep.subr.mxu0 0.0
      %2594 = vmatpush2.msra.mxu0 0.0
      %2595 = vmatprep.subr.mxu0 0.0
      %2596 = vmatpush2.msra.mxu0 0.0
      %2597 = vmatprep.subr.mxu0 0.0
      %2598 = vmatpush2.msra.mxu0 0.0
      %2599 = vmatprep.subr.mxu0 0.0
      %2600 = vmatpush2.msra.mxu0 0.0
      %2601 = vmatprep.subr.mxu0 0.0
      %2602 = vmatpush2.msra.mxu0 0.0
      %2603 = vmatprep.subr.mxu0 0.0
      %2604 = vmatpush2.msra.mxu0 0.0
      %2605 = vmatprep.subr.mxu0 0.0
      %2606 = vmatpush2.msra.mxu0 0.0
      %2607 = vmatprep.subr.mxu0 0.0
      %2608 = vmatpush2.msra.mxu0 0.0
      %2609 = vmatprep.subr.mxu0 0.0
      %2610 = vmatpush2.msra.mxu0 0.0
      %2611 = vmatprep.subr.mxu0 0.0
      %2612 = vmatpush2.msra.mxu0 0.0
      %2613 = vmatprep.subr.mxu0 0.0
      %2614 = vmatpush2.msra.mxu0 0.0
      %2615 = vmatprep.subr.mxu0 0.0
      %2616 = vmatpush2.msra.mxu0 0.0
      %2617 = vmatprep.mubr.f32.mxu0 0.0
      %2618 = vmatmul.mubr.f32.gmra.mxu0 %v1940
      %v2619 = vpop.f32.mrf.mxu0
      %v2620 = vadd.f32 0.0, %v2619
      %v2621 = vpop.f32.mrf.mxu0
      %2622 = vmatprep.mubr.f32.mxu0 0.0
      %2623 = vmatmul.mubr.f32.gmra.mxu0 %v1943
      %v2624 = vpop.f32.mrf.mxu0
      %v2625 = vadd.f32 0.0, %v2624
      %v2626 = vpop.f32.mrf.mxu0
      %2627 = vmatprep.mubr.f32.mxu0 0.0
      %2628 = vmatmul.mubr.f32.gmra.mxu0 %v1946
      %v2629 = vpop.f32.mrf.mxu0
      %v2630 = vadd.f32 0.0, %v2629
      %v2631 = vpop.f32.mrf.mxu0
      %2632 = vmatprep.mubr.f32.mxu0 0.0
      %2633 = vmatmul.mubr.f32.gmra.mxu0 %v1949
      %v2634 = vpop.f32.mrf.mxu0
      %v2635 = vadd.f32 0.0, %v2634
      %v2636 = vpop.f32.mrf.mxu0
      %2637 = vmatprep.mubr.f32.mxu0 0.0
      %2638 = vmatmul.mubr.f32.gmra.mxu0 %v1952
      %v2639 = vpop.f32.mrf.mxu0
      %v2640 = vadd.f32 0.0, %v2639
      %v2641 = vpop.f32.mrf.mxu0
      %2642 = vmatprep.mubr.f32.mxu0 0.0
      %2643 = vmatmul.mubr.f32.gmra.mxu0 %v1955
      %v2644 = vpop.f32.mrf.mxu0
      %v2645 = vadd.f32 0.0, %v2644
      %v2646 = vpop.f32.mrf.mxu0
      %2647 = vmatprep.mubr.f32.mxu0 0.0
      %2648 = vmatmul.mubr.f32.gmra.mxu0 %v1958
      %v2649 = vpop.f32.mrf.mxu0
      %v2650 = vadd.f32 0.0, %v2649
      %v2651 = vpop.f32.mrf.mxu0
      %2652 = vmatprep.mubr.f32.mxu0 0.0
      %2653 = vmatmul.mubr.f32.gmra.mxu0 %v1961
      %v2654 = vpop.f32.mrf.mxu0
      %v2655 = vadd.f32 0.0, %v2654
      %v2656 = vpop.f32.mrf.mxu0
      %2657 = vmatprep.mubr.f32.mxu0 0.0
      %2658 = vmatmul.mubr.f32.gmra.mxu0 %v1964
      %v2659 = vpop.f32.mrf.mxu0
      %v2660 = vadd.f32 0.0, %v2659
      %v2661 = vpop.f32.mrf.mxu0
      %2662 = vmatprep.mubr.f32.mxu0 0.0
      %2663 = vmatmul.mubr.f32.gmra.mxu0 %v1967
      %v2664 = vpop.f32.mrf.mxu0
      %v2665 = vadd.f32 0.0, %v2664
      %v2666 = vpop.f32.mrf.mxu0
      %2667 = vmatprep.mubr.f32.mxu0 0.0
      %2668 = vmatmul.mubr.f32.gmra.mxu0 %v1970
      %v2669 = vpop.f32.mrf.mxu0
      %v2670 = vadd.f32 0.0, %v2669
      %v2671 = vpop.f32.mrf.mxu0
      %2672 = vmatprep.mubr.f32.mxu0 0.0
      %2673 = vmatmul.mubr.f32.gmra.mxu0 %v1973
      %v2674 = vpop.f32.mrf.mxu0
      %v2675 = vadd.f32 0.0, %v2674
      %v2676 = vpop.f32.mrf.mxu0
      %2677 = vmatprep.mubr.f32.mxu0 0.0
      %2678 = vmatmul.mubr.f32.gmra.mxu0 %v1976
      %v2679 = vpop.f32.mrf.mxu0
      %v2680 = vadd.f32 0.0, %v2679
      %v2681 = vpop.f32.mrf.mxu0
      %2682 = vmatprep.mubr.f32.mxu0 0.0
      %2683 = vmatmul.mubr.f32.gmra.mxu0 %v1979
      %v2684 = vpop.f32.mrf.mxu0
      %v2685 = vadd.f32 0.0, %v2684
      %v2686 = vpop.f32.mrf.mxu0
      %2687 = vmatprep.mubr.f32.mxu0 0.0
      %2688 = vmatmul.mubr.f32.gmra.mxu0 %v1982
      %v2689 = vpop.f32.mrf.mxu0
      %v2690 = vadd.f32 0.0, %v2689
      %v2691 = vpop.f32.mrf.mxu0
      %2692 = vmatprep.mubr.f32.mxu0 0.0
      %2693 = vmatmul.mubr.f32.gmra.mxu0 %v1985
      %v2694 = vpop.f32.mrf.mxu0
      %v2695 = vadd.f32 0.0, %v2694
      %v2696 = vpop.f32.mrf.mxu0
      %2697 = vmatprep.mubr.f32.mxu0 0.0
      %2698 = vmatmul.mubr.f32.gmra.mxu0 %v1988
      %v2699 = vpop.f32.mrf.mxu0
      %v2700 = vadd.f32 0.0, %v2699
      %v2701 = vpop.f32.mrf.mxu0
      %2702 = vmatprep.mubr.f32.mxu0 0.0
      %2703 = vmatmul.mubr.f32.gmra.mxu0 %v1991
      %v2704 = vpop.f32.mrf.mxu0
      %v2705 = vadd.f32 0.0, %v2704
      %v2706 = vpop.f32.mrf.mxu0
      %2707 = vmatprep.mubr.f32.mxu0 0.0
      %2708 = vmatmul.mubr.f32.gmra.mxu0 %v1994
      %v2709 = vpop.f32.mrf.mxu0
      %v2710 = vadd.f32 0.0, %v2709
      %v2711 = vpop.f32.mrf.mxu0
      %2712 = vmatprep.mubr.f32.mxu0 0.0
      %2713 = vmatmul.mubr.f32.gmra.mxu0 %v1997
      %v2714 = vpop.f32.mrf.mxu0
      %v2715 = vadd.f32 0.0, %v2714
      %v2716 = vpop.f32.mrf.mxu0
      %2717 = vmatprep.mubr.f32.mxu0 0.0
      %2718 = vmatmul.mubr.f32.gmra.mxu0 %v2000
      %v2719 = vpop.f32.mrf.mxu0
      %v2720 = vadd.f32 0.0, %v2719
      %v2721 = vpop.f32.mrf.mxu0
      %2722 = vmatprep.mubr.f32.mxu0 0.0
      %2723 = vmatmul.mubr.f32.gmra.mxu0 %v2003
      %v2724 = vpop.f32.mrf.mxu0
      %v2725 = vadd.f32 0.0, %v2724
      %v2726 = vpop.f32.mrf.mxu0
      %2727 = vmatprep.mubr.f32.mxu0 0.0
      %2728 = vmatmul.mubr.f32.gmra.mxu0 %v2006
      %v2729 = vpop.f32.mrf.mxu0
      %v2730 = vadd.f32 0.0, %v2729
      %v2731 = vpop.f32.mrf.mxu0
      %2732 = vmatprep.mubr.f32.mxu0 0.0
      %2733 = vmatmul.mubr.f32.gmra.mxu0 %v2009
      %v2734 = vpop.f32.mrf.mxu0
      %v2735 = vadd.f32 0.0, %v2734
      %v2736 = vpop.f32.mrf.mxu0
      %2737 = vmatprep.mubr.f32.mxu0 0.0
      %2738 = vmatmul.mubr.f32.gmra.mxu0 %v2012
      %v2739 = vpop.f32.mrf.mxu0
      %v2740 = vadd.f32 0.0, %v2739
      %v2741 = vpop.f32.mrf.mxu0
      %2742 = vmatprep.mubr.f32.mxu0 0.0
      %2743 = vmatmul.mubr.f32.gmra.mxu0 %v2015
      %v2744 = vpop.f32.mrf.mxu0
      %v2745 = vadd.f32 0.0, %v2744
      %v2746 = vpop.f32.mrf.mxu0
      %2747 = vmatprep.mubr.f32.mxu0 0.0
      %2748 = vmatmul.mubr.f32.gmra.mxu0 %v2018
      %v2749 = vpop.f32.mrf.mxu0
      %v2750 = vadd.f32 0.0, %v2749
      %v2751 = vpop.f32.mrf.mxu0
      %2752 = vmatprep.mubr.f32.mxu0 0.0
      %2753 = vmatmul.mubr.f32.gmra.mxu0 %v2021
      %v2754 = vpop.f32.mrf.mxu0
      %v2755 = vadd.f32 0.0, %v2754
      %v2756 = vpop.f32.mrf.mxu0
      %2757 = vmatprep.mubr.f32.mxu0 0.0
      %2758 = vmatmul.mubr.f32.gmra.mxu0 %v2283
      %v2759 = vpop.f32.mrf.mxu0
      %v2760 = vadd.f32 0.0, %v2759
      %v2761 = vpop.f32.mrf.mxu0
      %2762 = vmatprep.mubr.f32.mxu0 0.0
      %2763 = vmatmul.mubr.f32.gmra.mxu0 %v2286
      %v2764 = vpop.f32.mrf.mxu0
      %v2765 = vadd.f32 0.0, %v2764
      %v2766 = vpop.f32.mrf.mxu0
      %2767 = vmatprep.mubr.f32.mxu0 0.0
      %2768 = vmatmul.mubr.f32.gmra.mxu0 %v2548
      %v2769 = vpop.f32.mrf.mxu0
      %v2770 = vadd.f32 0.0, %v2769
      %v2771 = vpop.f32.mrf.mxu0
      %2772 = vmatprep.mubr.f32.mxu0 0.0
      %2773 = vmatmul.mubr.f32.gmra.mxu0 %v2551
      %v2774 = vpop.f32.mrf.mxu0
      %v2775 = vadd.f32 0.0, %v2774
      %v2776 = vpop.f32.mrf.mxu0
      %2777 = vdwg.mxu0
      %v2778 = vadd.f32 %v2513, %v2620
      %v2779 = vadd.f32 %v2514, %v2625
      %v2780 = vadd.f32 %v2515, %v2630
      %v2781 = vadd.f32 %v2516, %v2635
      %v2782 = vadd.f32 %v2517, %v2640
      %v2783 = vadd.f32 %v2518, %v2645
      %v2784 = vadd.f32 %v2519, %v2650
      %v2785 = vadd.f32 %v2520, %v2655
      %v2786 = vadd.f32 %v2521, %v2660
      %v2787 = vadd.f32 %v2522, %v2665
      %v2788 = vadd.f32 %v2523, %v2670
      %v2789 = vadd.f32 %v2524, %v2675
      %v2790 = vadd.f32 %v2525, %v2680
      %v2791 = vadd.f32 %v2526, %v2685
      %v2792 = vadd.f32 %v2527, %v2690
      %v2793 = vadd.f32 %v2528, %v2695
      %v2794 = vadd.f32 %v2529, %v2700
      %v2795 = vadd.f32 %v2530, %v2705
      %v2796 = vadd.f32 %v2531, %v2710
      %v2797 = vadd.f32 %v2532, %v2715
      %v2798 = vadd.f32 %v2533, %v2720
      %v2799 = vadd.f32 %v2534, %v2725
      %v2800 = vadd.f32 %v2535, %v2730
      %v2801 = vadd.f32 %v2536, %v2735
      %v2802 = vadd.f32 %v2537, %v2740
      %v2803 = vadd.f32 %v2538, %v2745
      %v2804 = vadd.f32 %v2539, %v2750
      %v2805 = vadd.f32 %v2540, %v2755
      %v2806 = vadd.f32 %v2541, %v2760
      %v2807 = vadd.f32 %v2542, %v2765
      %v2808 = vadd.f32 %v2543, %v2770
      %v2809 = vadd.f32 %v2544, %v2775
      %s2810 = scalar_lea.vmem %s284, 576
      %v2811 = vld [vmem:[%s2810] sm:$0xff]
      %v2812 = vld [vmem:[%s2810 + $0x8] sm:$0xff]
      %v2813 = vld [vmem:[%s2810 + $0x10] sm:$0xff]
      %v2814 = vld [vmem:[%s2810 + $0x18] sm:$0xff]
      %v2815 = vld [vmem:[%s2810 + $0x20] sm:$0xff]
      %v2816 = vld [vmem:[%s2810 + $0x28] sm:$0xff]
      %v2817 = vld [vmem:[%s2810 + $0x30] sm:$0xff]
      %v2818 = vld [vmem:[%s2810 + $0x38] sm:$0xff]
      %v2819 = vld [vmem:[%s2810 + $0x40] sm:$0xff]
      %v2820 = vld [vmem:[%s2810 + $0x48] sm:$0xff]
      %v2821 = vld [vmem:[%s2810 + $0x50] sm:$0xff]
      %v2822 = vld [vmem:[%s2810 + $0x58] sm:$0xff]
      %v2823 = vld [vmem:[%s2810 + $0x60] sm:$0xff]
      %v2824 = vld [vmem:[%s2810 + $0x68] sm:$0xff]
      %v2825 = vld [vmem:[%s2810 + $0x70] sm:$0xff]
      %v2826 = vld [vmem:[%s2810 + $0x78] sm:$0xff]
      %v2827 = vld [vmem:[%s2810 + $0x80] sm:$0xff]
      %v2828 = vld [vmem:[%s2810 + $0x88] sm:$0xff]
      %v2829 = vld [vmem:[%s2810 + $0x90] sm:$0xff]
      %v2830 = vld [vmem:[%s2810 + $0x98] sm:$0xff]
      %v2831 = vld [vmem:[%s2810 + $0xa0] sm:$0xff]
      %v2832 = vld [vmem:[%s2810 + $0xa8] sm:$0xff]
      %v2833 = vld [vmem:[%s2810 + $0xb0] sm:$0xff]
      %v2834 = vld [vmem:[%s2810 + $0xb8] sm:$0xff]
      %v2835 = vld [vmem:[%s2810 + $0xc0] sm:$0xff]
      %v2836 = vld [vmem:[%s2810 + $0xc8] sm:$0xff]
      %v2837 = vld [vmem:[%s2810 + $0xd0] sm:$0xff]
      %v2838 = vld [vmem:[%s2810 + $0xd8] sm:$0xff]
      %v2839 = vld [vmem:[%s2810 + $0xe0] sm:$0xff]
      %v2840 = vld [vmem:[%s2810 + $0xe8] sm:$0xff]
      %v2841 = vld [vmem:[%s2810 + $0xf0] sm:$0xff]
      %v2842 = vld [vmem:[%s2810 + $0xf8] sm:$0xff]
      %v2843 = vld [vmem:[%s2810 + $0x100] sm:$0xff]
      %v2844 = vld [vmem:[%s2810 + $0x108] sm:$0xff]
      %v2845 = vld [vmem:[%s2810 + $0x110] sm:$0xff]
      %v2846 = vld [vmem:[%s2810 + $0x118] sm:$0xff]
      %v2847 = vmul.f32 %v2811, %v337
      %v2848 = vmul.f32 %v2812, %v337
      %v2849 = vmul.f32 %v2813, %v337
      %v2850 = vmul.f32 %v2814, %v337
      %v2851 = vmul.f32 %v2815, %v337
      %v2852 = vmul.f32 %v2816, %v337
      %v2853 = vmul.f32 %v2817, %v337
      %v2854 = vmul.f32 %v2818, %v337
      %v2855 = vmul.f32 %v2819, %v337
      %v2856 = vmul.f32 %v2820, %v337
      %v2857 = vmul.f32 %v2821, %v337
      %v2858 = vmul.f32 %v2822, %v337
      %v2859 = vmul.f32 %v2823, %v337
      %v2860 = vmul.f32 %v2824, %v337
      %v2861 = vmul.f32 %v2825, %v337
      %v2862 = vmul.f32 %v2826, %v337
      %v2863 = vmul.f32 %v2827, %v337
      %v2864 = vmul.f32 %v2828, %v337
      %v2865 = vmul.f32 %v2829, %v337
      %v2866 = vmul.f32 %v2830, %v337
      %v2867 = vmul.f32 %v2831, %v337
      %v2868 = vmul.f32 %v2832, %v337
      %v2869 = vmul.f32 %v2833, %v337
      %v2870 = vmul.f32 %v2834, %v337
      %v2871 = vmul.f32 %v2835, %v337
      %v2872 = vmul.f32 %v2836, %v337
      %v2873 = vmul.f32 %v2837, %v337
      %v2874 = vmul.f32 %v2838, %v337
      %v2875 = vmul.f32 %v2839, %v337
      %v2876 = vmul.f32 %v2840, %v337
      %v2877 = vmul.f32 %v2841, %v337
      %v2878 = vmul.f32 %v2842, %v337
      %v2879 = vmul.f32 %v2843, %v337
      %v2880 = vmul.f32 %v2844, %v337
      %v2881 = vmul.f32 %v2845, %v337
      %v2882 = vmul.f32 %v2846, %v337
      %v2883 = vadd.f32 %v2847, %v380
      %v2884 = vadd.f32 %v2848, %v380
      %v2885 = vadd.f32 %v2849, %v380
      %v2886 = vadd.f32 %v2850, %v380
      %v2887 = vadd.f32 %v2851, %v380
      %v2888 = vadd.f32 %v2852, %v380
      %v2889 = vadd.f32 %v2853, %v380
      %v2890 = vadd.f32 %v2854, %v380
      %v2891 = vadd.f32 %v2855, %v380
      %v2892 = vadd.f32 %v2856, %v380
      %v2893 = vadd.f32 %v2857, %v380
      %v2894 = vadd.f32 %v2858, %v380
      %v2895 = vadd.f32 %v2859, %v380
      %v2896 = vadd.f32 %v2860, %v380
      %v2897 = vadd.f32 %v2861, %v380
      %v2898 = vadd.f32 %v2862, %v380
      %v2899 = vadd.f32 %v2863, %v380
      %v2900 = vadd.f32 %v2864, %v380
      %v2901 = vadd.f32 %v2865, %v380
      %v2902 = vadd.f32 %v2866, %v380
      %v2903 = vadd.f32 %v2867, %v380
      %v2904 = vadd.f32 %v2868, %v380
      %v2905 = vadd.f32 %v2869, %v380
      %v2906 = vadd.f32 %v2870, %v380
      %v2907 = vadd.f32 %v2871, %v380
      %v2908 = vadd.f32 %v2872, %v380
      %v2909 = vadd.f32 %v2873, %v380
      %v2910 = vadd.f32 %v2874, %v380
      %v2911 = vadd.f32 %v2875, %v380
      %v2912 = vadd.f32 %v2876, %v380
      %v2913 = vadd.f32 %v2877, %v380
      %v2914 = vadd.f32 %v2878, %v380
      %v2915 = vadd.f32 %v2879, %v380
      %v2916 = vadd.f32 %v2880, %v380
      %v2917 = vadd.f32 %v2881, %v380
      %v2918 = vadd.f32 %v2882, %v380
      %v2919 = vmax.f32 %v2883, 0.0
      %v2920 = vmax.f32 %v2884, 0.0
      %v2921 = vmax.f32 %v2885, 0.0
      %v2922 = vmax.f32 %v2886, 0.0
      %v2923 = vmax.f32 %v2887, 0.0
      %v2924 = vmax.f32 %v2888, 0.0
      %v2925 = vmax.f32 %v2889, 0.0
      %v2926 = vmax.f32 %v2890, 0.0
      %v2927 = vmax.f32 %v2891, 0.0
      %v2928 = vmax.f32 %v2892, 0.0
      %v2929 = vmax.f32 %v2893, 0.0
      %v2930 = vmax.f32 %v2894, 0.0
      %v2931 = vmax.f32 %v2895, 0.0
      %v2932 = vmax.f32 %v2896, 0.0
      %v2933 = vmax.f32 %v2897, 0.0
      %v2934 = vmax.f32 %v2898, 0.0
      %v2935 = vmax.f32 %v2899, 0.0
      %v2936 = vmax.f32 %v2900, 0.0
      %v2937 = vmax.f32 %v2901, 0.0
      %v2938 = vmax.f32 %v2902, 0.0
      %v2939 = vmax.f32 %v2903, 0.0
      %v2940 = vmax.f32 %v2904, 0.0
      %v2941 = vmax.f32 %v2905, 0.0
      %v2942 = vmax.f32 %v2906, 0.0
      %v2943 = vmax.f32 %v2907, 0.0
      %v2944 = vmax.f32 %v2908, 0.0
      %v2945 = vmax.f32 %v2909, 0.0
      %v2946 = vmax.f32 %v2910, 0.0
      %v2947 = vmax.f32 %v2911, 0.0
      %v2948 = vmax.f32 %v2912, 0.0
      %v2949 = vmax.f32 %v2913, 0.0
      %v2950 = vmax.f32 %v2914, 0.0
      %v2951 = vmax.f32 %v2915, 0.0
      %v2952 = vmax.f32 %v2916, 0.0
      %v2953 = vmax.f32 %v2917, 0.0
      %v2954 = vmax.f32 %v2918, 0.0
      %s2955 = scalar_lea.vmem %s4, 576
      %v2956 = vld [vmem:[%s2955] sm:$0xff]
      %v2957 = vld [vmem:[%s2955 + $0x8] sm:$0xff]
      %v2958 = vld [vmem:[%s2955 + $0x10] sm:$0xff]
      %v2959 = vld [vmem:[%s2955 + $0x18] sm:$0xff]
      %v2960 = vld [vmem:[%s2955 + $0x20] sm:$0xff]
      %v2961 = vld [vmem:[%s2955 + $0x28] sm:$0xff]
      %v2962 = vld [vmem:[%s2955 + $0x30] sm:$0xff]
      %v2963 = vld [vmem:[%s2955 + $0x38] sm:$0xff]
      %v2964 = vld [vmem:[%s2955 + $0x40] sm:$0xff]
      %v2965 = vld [vmem:[%s2955 + $0x48] sm:$0xff]
      %v2966 = vld [vmem:[%s2955 + $0x50] sm:$0xff]
      %v2967 = vld [vmem:[%s2955 + $0x58] sm:$0xff]
      %v2968 = vld [vmem:[%s2955 + $0x60] sm:$0xff]
      %v2969 = vld [vmem:[%s2955 + $0x68] sm:$0xff]
      %v2970 = vld [vmem:[%s2955 + $0x70] sm:$0xff]
      %v2971 = vld [vmem:[%s2955 + $0x78] sm:$0xff]
      %v2972 = vld [vmem:[%s2955 + $0x80] sm:$0xff]
      %v2973 = vld [vmem:[%s2955 + $0x88] sm:$0xff]
      %v2974 = vld [vmem:[%s2955 + $0x90] sm:$0xff]
      %v2975 = vld [vmem:[%s2955 + $0x98] sm:$0xff]
      %v2976 = vld [vmem:[%s2955 + $0xa0] sm:$0xff]
      %v2977 = vld [vmem:[%s2955 + $0xa8] sm:$0xff]
      %v2978 = vld [vmem:[%s2955 + $0xb0] sm:$0xff]
      %v2979 = vld [vmem:[%s2955 + $0xb8] sm:$0xff]
      %v2980 = vld [vmem:[%s2955 + $0xc0] sm:$0xff]
      %v2981 = vld [vmem:[%s2955 + $0xc8] sm:$0xff]
      %v2982 = vld [vmem:[%s2955 + $0xd0] sm:$0xff]
      %v2983 = vld [vmem:[%s2955 + $0xd8] sm:$0xff]
      %v2984 = vld [vmem:[%s2955 + $0xe0] sm:$0xff]
      %v2985 = vld [vmem:[%s2955 + $0xe8] sm:$0xff]
      %v2986 = vld [vmem:[%s2955 + $0xf0] sm:$0xff]
      %v2987 = vld [vmem:[%s2955 + $0xf8] sm:$0xff]
      %v2988 = vld [vmem:[%s2955 + $0x100] sm:$0xff]
      %v2989 = vld [vmem:[%s2955 + $0x108] sm:$0xff]
      %v2990 = vld [vmem:[%s2955 + $0x110] sm:$0xff]
      %v2991 = vld [vmem:[%s2955 + $0x118] sm:$0xff]
      %2993 = vset.pattern.permute.xlu0 0
      %2994 = vperm.xlu0 %2993, %v2956
      %v2995 = vpop.permute.xlu0 %2994
      %2998 = vset.pattern.permute.xlu0 0
      %2999 = vperm.xlu0 %2998, %v2957
      %v3000 = vpop.permute.xlu0 %2999
      %3003 = vset.pattern.permute.xlu0 0
      %3004 = vperm.xlu0 %3003, %v2958
      %v3005 = vpop.permute.xlu0 %3004
      %3008 = vset.pattern.permute.xlu0 0
      %3009 = vperm.xlu0 %3008, %v2959
      %v3010 = vpop.permute.xlu0 %3009
      %3013 = vset.pattern.permute.xlu0 0
      %3014 = vperm.xlu0 %3013, %v2960
      %v3015 = vpop.permute.xlu0 %3014
      %3018 = vset.pattern.permute.xlu0 0
      %3019 = vperm.xlu0 %3018, %v2961
      %v3020 = vpop.permute.xlu0 %3019
      %3023 = vset.pattern.permute.xlu0 0
      %3024 = vperm.xlu0 %3023, %v2962
      %v3025 = vpop.permute.xlu0 %3024
      %3028 = vset.pattern.permute.xlu0 0
      %3029 = vperm.xlu0 %3028, %v2963
      %v3030 = vpop.permute.xlu0 %3029
      %3033 = vset.pattern.permute.xlu0 0
      %3034 = vperm.xlu0 %3033, %v2964
      %v3035 = vpop.permute.xlu0 %3034
      %3038 = vset.pattern.permute.xlu0 0
      %3039 = vperm.xlu0 %3038, %v2965
      %v3040 = vpop.permute.xlu0 %3039
      %3043 = vset.pattern.permute.xlu0 0
      %3044 = vperm.xlu0 %3043, %v2966
      %v3045 = vpop.permute.xlu0 %3044
      %3048 = vset.pattern.permute.xlu0 0
      %3049 = vperm.xlu0 %3048, %v2967
      %v3050 = vpop.permute.xlu0 %3049
      %3053 = vset.pattern.permute.xlu0 0
      %3054 = vperm.xlu0 %3053, %v2968
      %v3055 = vpop.permute.xlu0 %3054
      %3058 = vset.pattern.permute.xlu0 0
      %3059 = vperm.xlu0 %3058, %v2969
      %v3060 = vpop.permute.xlu0 %3059
      %3063 = vset.pattern.permute.xlu0 0
      %3064 = vperm.xlu0 %3063, %v2970
      %v3065 = vpop.permute.xlu0 %3064
      %3068 = vset.pattern.permute.xlu0 0
      %3069 = vperm.xlu0 %3068, %v2971
      %v3070 = vpop.permute.xlu0 %3069
      %3073 = vset.pattern.permute.xlu0 0
      %3074 = vperm.xlu0 %3073, %v2972
      %v3075 = vpop.permute.xlu0 %3074
      %3078 = vset.pattern.permute.xlu0 0
      %3079 = vperm.xlu0 %3078, %v2973
      %v3080 = vpop.permute.xlu0 %3079
      %3083 = vset.pattern.permute.xlu0 0
      %3084 = vperm.xlu0 %3083, %v2974
      %v3085 = vpop.permute.xlu0 %3084
      %3088 = vset.pattern.permute.xlu0 0
      %3089 = vperm.xlu0 %3088, %v2975
      %v3090 = vpop.permute.xlu0 %3089
      %3093 = vset.pattern.permute.xlu0 0
      %3094 = vperm.xlu0 %3093, %v2976
      %v3095 = vpop.permute.xlu0 %3094
      %3098 = vset.pattern.permute.xlu0 0
      %3099 = vperm.xlu0 %3098, %v2977
      %v3100 = vpop.permute.xlu0 %3099
      %3103 = vset.pattern.permute.xlu0 0
      %3104 = vperm.xlu0 %3103, %v2978
      %v3105 = vpop.permute.xlu0 %3104
      %3108 = vset.pattern.permute.xlu0 0
      %3109 = vperm.xlu0 %3108, %v2979
      %v3110 = vpop.permute.xlu0 %3109
      %3113 = vset.pattern.permute.xlu0 0
      %3114 = vperm.xlu0 %3113, %v2980
      %v3115 = vpop.permute.xlu0 %3114
      %3118 = vset.pattern.permute.xlu0 0
      %3119 = vperm.xlu0 %3118, %v2981
      %v3120 = vpop.permute.xlu0 %3119
      %3123 = vset.pattern.permute.xlu0 0
      %3124 = vperm.xlu0 %3123, %v2982
      %v3125 = vpop.permute.xlu0 %3124
      %3128 = vset.pattern.permute.xlu0 0
      %3129 = vperm.xlu0 %3128, %v2983
      %v3130 = vpop.permute.xlu0 %3129
      %3133 = vset.pattern.permute.xlu0 0
      %3134 = vperm.xlu0 %3133, %v2984
      %v3135 = vpop.permute.xlu0 %3134
      %3138 = vset.pattern.permute.xlu0 0
      %3139 = vperm.xlu0 %3138, %v2985
      %v3140 = vpop.permute.xlu0 %3139
      %3143 = vset.pattern.permute.xlu0 0
      %3144 = vperm.xlu0 %3143, %v2986
      %v3145 = vpop.permute.xlu0 %3144
      %3148 = vset.pattern.permute.xlu0 0
      %3149 = vperm.xlu0 %3148, %v2987
      %v3150 = vpop.permute.xlu0 %3149
      %3153 = vset.pattern.permute.xlu0 0
      %3154 = vperm.xlu0 %3153, %v2988
      %v3155 = vpop.permute.xlu0 %3154
      %3158 = vset.pattern.permute.xlu0 0
      %3159 = vperm.xlu0 %3158, %v2989
      %v3160 = vpop.permute.xlu0 %3159
      %3163 = vset.pattern.permute.xlu0 0
      %3164 = vperm.xlu0 %3163, %v2990
      %v3165 = vpop.permute.xlu0 %3164
      %3168 = vset.pattern.permute.xlu0 0
      %3169 = vperm.xlu0 %3168, %v2991
      %v3170 = vpop.permute.xlu0 %3169
      %v3172 = vmul.f32 %v2919, %v2995
      %v3173 = vmul.f32 %v2920, %v3000
      %v3174 = vmul.f32 %v2921, %v3005
      %v3175 = vmul.f32 %v2922, %v3010
      %v3176 = vmul.f32 %v2923, %v3015
      %v3177 = vmul.f32 %v2924, %v3020
      %v3178 = vmul.f32 %v2925, %v3025
      %v3179 = vmul.f32 %v2926, %v3030
      %v3180 = vmul.f32 %v2927, %v3035
      %v3181 = vmul.f32 %v2928, %v3040
      %v3182 = vmul.f32 %v2929, %v3045
      %v3183 = vmul.f32 %v2930, %v3050
      %v3184 = vmul.f32 %v2931, %v3055
      %v3185 = vmul.f32 %v2932, %v3060
      %v3186 = vmul.f32 %v2933, %v3065
      %v3187 = vmul.f32 %v2934, %v3070
      %v3188 = vmul.f32 %v2935, %v3075
      %v3189 = vmul.f32 %v2936, %v3080
      %v3190 = vmul.f32 %v2937, %v3085
      %v3191 = vmul.f32 %v2938, %v3090
      %v3192 = vmul.f32 %v2939, %v3095
      %v3193 = vmul.f32 %v2940, %v3100
      %v3194 = vmul.f32 %v2941, %v3105
      %v3195 = vmul.f32 %v2942, %v3110
      %v3196 = vmul.f32 %v2943, %v3115
      %v3197 = vmul.f32 %v2944, %v3120
      %v3198 = vmul.f32 %v2945, %v3125
      %v3199 = vmul.f32 %v2946, %v3130
      %v3200 = vmul.f32 %v2947, %v3135
      %v3201 = vmul.f32 %v2948, %v3140
      %v3202 = vmul.f32 %v2949, %v3145
      %v3203 = vmul.f32 %v2950, %v3150
      %v3204 = vmul.f32 %v2951, %v3155
      %v3205 = vmul.f32 %v2952, %v3160
      %v3206 = vmul.f32 %v2953, %v3165
      %v3207 = vmul.f32 %v2954, %v3170
      %s3208 = scalar_lea.vmem %s1, 16
      %v3209 = vld [vmem:[%s3208] sm:$0xff]
      %v3211 = vsel %vm709, %v3172, 0
      %v3214 = vsel %vm709, %v3173, 0
      %v3217 = vsel %vm709, %v3174, 0
      %v3220 = vsel %vm709, %v3175, 0
      %v3223 = vsel %vm709, %v3176, 0
      %v3226 = vsel %vm709, %v3177, 0
      %v3229 = vsel %vm709, %v3178, 0
      %v3232 = vsel %vm709, %v3179, 0
      %v3235 = vsel %vm709, %v3180, 0
      %v3238 = vsel %vm709, %v3181, 0
      %v3241 = vsel %vm709, %v3182, 0
      %v3244 = vsel %vm709, %v3183, 0
      %v3247 = vsel %vm709, %v3184, 0
      %v3250 = vsel %vm709, %v3185, 0
      %v3253 = vsel %vm709, %v3186, 0
      %v3256 = vsel %vm709, %v3187, 0
      %v3259 = vsel %vm709, %v3188, 0
      %v3262 = vsel %vm709, %v3189, 0
      %v3265 = vsel %vm709, %v3190, 0
      %v3268 = vsel %vm709, %v3191, 0
      %v3271 = vsel %vm709, %v3192, 0
      %v3274 = vsel %vm709, %v3193, 0
      %v3277 = vsel %vm709, %v3194, 0
      %v3280 = vsel %vm709, %v3195, 0
      %v3283 = vsel %vm709, %v3196, 0
      %v3286 = vsel %vm709, %v3197, 0
      %v3289 = vsel %vm709, %v3198, 0
      %v3292 = vsel %vm709, %v3199, 0
      %v3295 = vsel %vm709, %v3200, 0
      %v3298 = vsel %vm709, %v3201, 0
      %v3301 = vsel %vm709, %v3202, 0
      %v3304 = vsel %vm709, %v3203, 0
      %3306 = vmatprep.subr.mxu0 0.0
      %3307 = vmatpush1.msra.mxu0 0.0
      %3308 = vmatprep.subr.mxu0 0.0
      %3309 = vmatpush1.msra.mxu0 0.0
      %3310 = vmatprep.subr.mxu0 0.0
      %3311 = vmatpush1.msra.mxu0 0.0
      %3312 = vmatprep.subr.mxu0 0.0
      %3313 = vmatpush1.msra.mxu0 0.0
      %3314 = vmatprep.subr.mxu0 0.0
      %3315 = vmatpush1.msra.mxu0 0.0
      %3316 = vmatprep.subr.mxu0 0.0
      %3317 = vmatpush1.msra.mxu0 0.0
      %3318 = vmatprep.subr.mxu0 0.0
      %3319 = vmatpush1.msra.mxu0 0.0
      %3320 = vmatprep.subr.mxu0 0.0
      %3321 = vmatpush1.msra.mxu0 0.0
      %3322 = vmatprep.subr.mxu0 0.0
      %3323 = vmatpush1.msra.mxu0 0.0
      %3324 = vmatprep.subr.mxu0 0.0
      %3325 = vmatpush1.msra.mxu0 0.0
      %3326 = vmatprep.subr.mxu0 0.0
      %3327 = vmatpush1.msra.mxu0 0.0
      %3328 = vmatprep.subr.mxu0 0.0
      %3329 = vmatpush1.msra.mxu0 0.0
      %3330 = vmatprep.subr.mxu0 0.0
      %3331 = vmatpush1.msra.mxu0 0.0
      %3332 = vmatprep.subr.mxu0 0.0
      %3333 = vmatpush1.msra.mxu0 0.0
      %3334 = vmatprep.subr.mxu0 0.0
      %3335 = vmatpush1.msra.mxu0 0.0
      %3336 = vmatprep.subr.mxu0 0.0
      %3337 = vmatpush1.msra.mxu0 %v3209
      %3338 = vmatprep.subr.mxu0 0.0
      %3339 = vmatpush2.msra.mxu0 0.0
      %3340 = vmatprep.subr.mxu0 0.0
      %3341 = vmatpush2.msra.mxu0 0.0
      %3342 = vmatprep.subr.mxu0 0.0
      %3343 = vmatpush2.msra.mxu0 0.0
      %3344 = vmatprep.subr.mxu0 0.0
      %3345 = vmatpush2.msra.mxu0 0.0
      %3346 = vmatprep.subr.mxu0 0.0
      %3347 = vmatpush2.msra.mxu0 0.0
      %3348 = vmatprep.subr.mxu0 0.0
      %3349 = vmatpush2.msra.mxu0 0.0
      %3350 = vmatprep.subr.mxu0 0.0
      %3351 = vmatpush2.msra.mxu0 0.0
      %3352 = vmatprep.subr.mxu0 0.0
      %3353 = vmatpush2.msra.mxu0 0.0
      %3354 = vmatprep.subr.mxu0 0.0
      %3355 = vmatpush2.msra.mxu0 0.0
      %3356 = vmatprep.subr.mxu0 0.0
      %3357 = vmatpush2.msra.mxu0 0.0
      %3358 = vmatprep.subr.mxu0 0.0
      %3359 = vmatpush2.msra.mxu0 0.0
      %3360 = vmatprep.subr.mxu0 0.0
      %3361 = vmatpush2.msra.mxu0 0.0
      %3362 = vmatprep.subr.mxu0 0.0
      %3363 = vmatpush2.msra.mxu0 0.0
      %3364 = vmatprep.subr.mxu0 0.0
      %3365 = vmatpush2.msra.mxu0 0.0
      %3366 = vmatprep.subr.mxu0 0.0
      %3367 = vmatpush2.msra.mxu0 0.0
      %3368 = vmatprep.subr.mxu0 0.0
      %3369 = vmatpush2.msra.mxu0 0.0
      %3370 = vmatprep.mubr.f32.mxu0 0.0
      %3371 = vmatmul.mubr.f32.gmra.mxu0 %v3211
      %v3372 = vpop.f32.mrf.mxu0
      %v3373 = vadd.f32 0.0, %v3372
      %v3374 = vpop.f32.mrf.mxu0
      %3375 = vmatprep.mubr.f32.mxu0 0.0
      %3376 = vmatmul.mubr.f32.gmra.mxu0 %v3214
      %v3377 = vpop.f32.mrf.mxu0
      %v3378 = vadd.f32 0.0, %v3377
      %v3379 = vpop.f32.mrf.mxu0
      %3380 = vmatprep.mubr.f32.mxu0 0.0
      %3381 = vmatmul.mubr.f32.gmra.mxu0 %v3217
      %v3382 = vpop.f32.mrf.mxu0
      %v3383 = vadd.f32 0.0, %v3382
      %v3384 = vpop.f32.mrf.mxu0
      %3385 = vmatprep.mubr.f32.mxu0 0.0
      %3386 = vmatmul.mubr.f32.gmra.mxu0 %v3220
      %v3387 = vpop.f32.mrf.mxu0
      %v3388 = vadd.f32 0.0, %v3387
      %v3389 = vpop.f32.mrf.mxu0
      %3390 = vmatprep.mubr.f32.mxu0 0.0
      %3391 = vmatmul.mubr.f32.gmra.mxu0 %v3223
      %v3392 = vpop.f32.mrf.mxu0
      %v3393 = vadd.f32 0.0, %v3392
      %v3394 = vpop.f32.mrf.mxu0
      %3395 = vmatprep.mubr.f32.mxu0 0.0
      %3396 = vmatmul.mubr.f32.gmra.mxu0 %v3226
      %v3397 = vpop.f32.mrf.mxu0
      %v3398 = vadd.f32 0.0, %v3397
      %v3399 = vpop.f32.mrf.mxu0
      %3400 = vmatprep.mubr.f32.mxu0 0.0
      %3401 = vmatmul.mubr.f32.gmra.mxu0 %v3229
      %v3402 = vpop.f32.mrf.mxu0
      %v3403 = vadd.f32 0.0, %v3402
      %v3404 = vpop.f32.mrf.mxu0
      %3405 = vmatprep.mubr.f32.mxu0 0.0
      %3406 = vmatmul.mubr.f32.gmra.mxu0 %v3232
      %v3407 = vpop.f32.mrf.mxu0
      %v3408 = vadd.f32 0.0, %v3407
      %v3409 = vpop.f32.mrf.mxu0
      %3410 = vmatprep.mubr.f32.mxu0 0.0
      %3411 = vmatmul.mubr.f32.gmra.mxu0 %v3235
      %v3412 = vpop.f32.mrf.mxu0
      %v3413 = vadd.f32 0.0, %v3412
      %v3414 = vpop.f32.mrf.mxu0
      %3415 = vmatprep.mubr.f32.mxu0 0.0
      %3416 = vmatmul.mubr.f32.gmra.mxu0 %v3238
      %v3417 = vpop.f32.mrf.mxu0
      %v3418 = vadd.f32 0.0, %v3417
      %v3419 = vpop.f32.mrf.mxu0
      %3420 = vmatprep.mubr.f32.mxu0 0.0
      %3421 = vmatmul.mubr.f32.gmra.mxu0 %v3241
      %v3422 = vpop.f32.mrf.mxu0
      %v3423 = vadd.f32 0.0, %v3422
      %v3424 = vpop.f32.mrf.mxu0
      %3425 = vmatprep.mubr.f32.mxu0 0.0
      %3426 = vmatmul.mubr.f32.gmra.mxu0 %v3244
      %v3427 = vpop.f32.mrf.mxu0
      %v3428 = vadd.f32 0.0, %v3427
      %v3429 = vpop.f32.mrf.mxu0
      %3430 = vmatprep.mubr.f32.mxu0 0.0
      %3431 = vmatmul.mubr.f32.gmra.mxu0 %v3247
      %v3432 = vpop.f32.mrf.mxu0
      %v3433 = vadd.f32 0.0, %v3432
      %v3434 = vpop.f32.mrf.mxu0
      %3435 = vmatprep.mubr.f32.mxu0 0.0
      %3436 = vmatmul.mubr.f32.gmra.mxu0 %v3250
      %v3437 = vpop.f32.mrf.mxu0
      %v3438 = vadd.f32 0.0, %v3437
      %v3439 = vpop.f32.mrf.mxu0
      %3440 = vmatprep.mubr.f32.mxu0 0.0
      %3441 = vmatmul.mubr.f32.gmra.mxu0 %v3253
      %v3442 = vpop.f32.mrf.mxu0
      %v3443 = vadd.f32 0.0, %v3442
      %v3444 = vpop.f32.mrf.mxu0
      %3445 = vmatprep.mubr.f32.mxu0 0.0
      %3446 = vmatmul.mubr.f32.gmra.mxu0 %v3256
      %v3447 = vpop.f32.mrf.mxu0
      %v3448 = vadd.f32 0.0, %v3447
      %v3449 = vpop.f32.mrf.mxu0
      %3450 = vmatprep.mubr.f32.mxu0 0.0
      %3451 = vmatmul.mubr.f32.gmra.mxu0 %v3259
      %v3452 = vpop.f32.mrf.mxu0
      %v3453 = vadd.f32 0.0, %v3452
      %v3454 = vpop.f32.mrf.mxu0
      %3455 = vmatprep.mubr.f32.mxu0 0.0
      %3456 = vmatmul.mubr.f32.gmra.mxu0 %v3262
      %v3457 = vpop.f32.mrf.mxu0
      %v3458 = vadd.f32 0.0, %v3457
      %v3459 = vpop.f32.mrf.mxu0
      %3460 = vmatprep.mubr.f32.mxu0 0.0
      %3461 = vmatmul.mubr.f32.gmra.mxu0 %v3265
      %v3462 = vpop.f32.mrf.mxu0
      %v3463 = vadd.f32 0.0, %v3462
      %v3464 = vpop.f32.mrf.mxu0
      %3465 = vmatprep.mubr.f32.mxu0 0.0
      %3466 = vmatmul.mubr.f32.gmra.mxu0 %v3268
      %v3467 = vpop.f32.mrf.mxu0
      %v3468 = vadd.f32 0.0, %v3467
      %v3469 = vpop.f32.mrf.mxu0
      %3470 = vmatprep.mubr.f32.mxu0 0.0
      %3471 = vmatmul.mubr.f32.gmra.mxu0 %v3271
      %v3472 = vpop.f32.mrf.mxu0
      %v3473 = vadd.f32 0.0, %v3472
      %v3474 = vpop.f32.mrf.mxu0
      %3475 = vmatprep.mubr.f32.mxu0 0.0
      %3476 = vmatmul.mubr.f32.gmra.mxu0 %v3274
      %v3477 = vpop.f32.mrf.mxu0
      %v3478 = vadd.f32 0.0, %v3477
      %v3479 = vpop.f32.mrf.mxu0
      %3480 = vmatprep.mubr.f32.mxu0 0.0
      %3481 = vmatmul.mubr.f32.gmra.mxu0 %v3277
      %v3482 = vpop.f32.mrf.mxu0
      %v3483 = vadd.f32 0.0, %v3482
      %v3484 = vpop.f32.mrf.mxu0
      %3485 = vmatprep.mubr.f32.mxu0 0.0
      %3486 = vmatmul.mubr.f32.gmra.mxu0 %v3280
      %v3487 = vpop.f32.mrf.mxu0
      %v3488 = vadd.f32 0.0, %v3487
      %v3489 = vpop.f32.mrf.mxu0
      %3490 = vmatprep.mubr.f32.mxu0 0.0
      %3491 = vmatmul.mubr.f32.gmra.mxu0 %v3283
      %v3492 = vpop.f32.mrf.mxu0
      %v3493 = vadd.f32 0.0, %v3492
      %v3494 = vpop.f32.mrf.mxu0
      %3495 = vmatprep.mubr.f32.mxu0 0.0
      %3496 = vmatmul.mubr.f32.gmra.mxu0 %v3286
      %v3497 = vpop.f32.mrf.mxu0
      %v3498 = vadd.f32 0.0, %v3497
      %v3499 = vpop.f32.mrf.mxu0
      %3500 = vmatprep.mubr.f32.mxu0 0.0
      %3501 = vmatmul.mubr.f32.gmra.mxu0 %v3289
      %v3502 = vpop.f32.mrf.mxu0
      %v3503 = vadd.f32 0.0, %v3502
      %v3504 = vpop.f32.mrf.mxu0
      %3505 = vmatprep.mubr.f32.mxu0 0.0
      %3506 = vmatmul.mubr.f32.gmra.mxu0 %v3292
      %v3507 = vpop.f32.mrf.mxu0
      %v3508 = vadd.f32 0.0, %v3507
      %v3509 = vpop.f32.mrf.mxu0
      %3510 = vmatprep.mubr.f32.mxu0 0.0
      %3511 = vmatmul.mubr.f32.gmra.mxu0 %v3295
      %v3512 = vpop.f32.mrf.mxu0
      %v3513 = vadd.f32 0.0, %v3512
      %v3514 = vpop.f32.mrf.mxu0
      %3515 = vmatprep.mubr.f32.mxu0 0.0
      %3516 = vmatmul.mubr.f32.gmra.mxu0 %v3298
      %v3517 = vpop.f32.mrf.mxu0
      %v3518 = vadd.f32 0.0, %v3517
      %v3519 = vpop.f32.mrf.mxu0
      %3520 = vmatprep.mubr.f32.mxu0 0.0
      %3521 = vmatmul.mubr.f32.gmra.mxu0 %v3301
      %v3522 = vpop.f32.mrf.mxu0
      %v3523 = vadd.f32 0.0, %v3522
      %v3524 = vpop.f32.mrf.mxu0
      %3525 = vmatprep.mubr.f32.mxu0 0.0
      %3526 = vmatmul.mubr.f32.gmra.mxu0 %v3304
      %v3527 = vpop.f32.mrf.mxu0
      %v3528 = vadd.f32 0.0, %v3527
      %v3529 = vpop.f32.mrf.mxu0
      %3530 = vdwg.mxu0
      %v3531 = vadd.f32 %v2778, %v3373
      %v3532 = vadd.f32 %v2779, %v3378
      %v3533 = vadd.f32 %v2780, %v3383
      %v3534 = vadd.f32 %v2781, %v3388
      %v3535 = vadd.f32 %v2782, %v3393
      %v3536 = vadd.f32 %v2783, %v3398
      %v3537 = vadd.f32 %v2784, %v3403
      %v3538 = vadd.f32 %v2785, %v3408
      %v3539 = vadd.f32 %v2786, %v3413
      %v3540 = vadd.f32 %v2787, %v3418
      %v3541 = vadd.f32 %v2788, %v3423
      %v3542 = vadd.f32 %v2789, %v3428
      %v3543 = vadd.f32 %v2790, %v3433
      %v3544 = vadd.f32 %v2791, %v3438
      %v3545 = vadd.f32 %v2792, %v3443
      %v3546 = vadd.f32 %v2793, %v3448
      %v3547 = vadd.f32 %v2794, %v3453
      %v3548 = vadd.f32 %v2795, %v3458
      %v3549 = vadd.f32 %v2796, %v3463
      %v3550 = vadd.f32 %v2797, %v3468
      %v3551 = vadd.f32 %v2798, %v3473
      %v3552 = vadd.f32 %v2799, %v3478
      %v3553 = vadd.f32 %v2800, %v3483
      %v3554 = vadd.f32 %v2801, %v3488
      %v3555 = vadd.f32 %v2802, %v3493
      %v3556 = vadd.f32 %v2803, %v3498
      %v3557 = vadd.f32 %v2804, %v3503
      %v3558 = vadd.f32 %v2805, %v3508
      %v3559 = vadd.f32 %v2806, %v3513
      %v3560 = vadd.f32 %v2807, %v3518
      %v3561 = vadd.f32 %v2808, %v3523
      %v3562 = vadd.f32 %v2809, %v3528
      %s3563 = scalar_lea.vmem %s1, 40
      %v3564 = vld [vmem:[%s3563] sm:$0xff]
      %v3566 = vsel %vm709, %v3204, 0
      %v3569 = vsel %vm709, %v3205, 0
      %3571 = vmatprep.subr.mxu0 0.0
      %3572 = vmatpush1.msra.mxu0 0.0
      %3573 = vmatprep.subr.mxu0 0.0
      %3574 = vmatpush1.msra.mxu0 0.0
      %3575 = vmatprep.subr.mxu0 0.0
      %3576 = vmatpush1.msra.mxu0 0.0
      %3577 = vmatprep.subr.mxu0 0.0
      %3578 = vmatpush1.msra.mxu0 0.0
      %3579 = vmatprep.subr.mxu0 0.0
      %3580 = vmatpush1.msra.mxu0 0.0
      %3581 = vmatprep.subr.mxu0 0.0
      %3582 = vmatpush1.msra.mxu0 0.0
      %3583 = vmatprep.subr.mxu0 0.0
      %3584 = vmatpush1.msra.mxu0 0.0
      %3585 = vmatprep.subr.mxu0 0.0
      %3586 = vmatpush1.msra.mxu0 0.0
      %3587 = vmatprep.subr.mxu0 0.0
      %3588 = vmatpush1.msra.mxu0 0.0
      %3589 = vmatprep.subr.mxu0 0.0
      %3590 = vmatpush1.msra.mxu0 0.0
      %3591 = vmatprep.subr.mxu0 0.0
      %3592 = vmatpush1.msra.mxu0 0.0
      %3593 = vmatprep.subr.mxu0 0.0
      %3594 = vmatpush1.msra.mxu0 0.0
      %3595 = vmatprep.subr.mxu0 0.0
      %3596 = vmatpush1.msra.mxu0 0.0
      %3597 = vmatprep.subr.mxu0 0.0
      %3598 = vmatpush1.msra.mxu0 0.0
      %3599 = vmatprep.subr.mxu0 0.0
      %3600 = vmatpush1.msra.mxu0 0.0
      %3601 = vmatprep.subr.mxu0 0.0
      %3602 = vmatpush1.msra.mxu0 %v3564
      %3603 = vmatprep.subr.mxu0 0.0
      %3604 = vmatpush2.msra.mxu0 0.0
      %3605 = vmatprep.subr.mxu0 0.0
      %3606 = vmatpush2.msra.mxu0 0.0
      %3607 = vmatprep.subr.mxu0 0.0
      %3608 = vmatpush2.msra.mxu0 0.0
      %3609 = vmatprep.subr.mxu0 0.0
      %3610 = vmatpush2.msra.mxu0 0.0
      %3611 = vmatprep.subr.mxu0 0.0
      %3612 = vmatpush2.msra.mxu0 0.0
      %3613 = vmatprep.subr.mxu0 0.0
      %3614 = vmatpush2.msra.mxu0 0.0
      %3615 = vmatprep.subr.mxu0 0.0
      %3616 = vmatpush2.msra.mxu0 0.0
      %3617 = vmatprep.subr.mxu0 0.0
      %3618 = vmatpush2.msra.mxu0 0.0
      %3619 = vmatprep.subr.mxu0 0.0
      %3620 = vmatpush2.msra.mxu0 0.0
      %3621 = vmatprep.subr.mxu0 0.0
      %3622 = vmatpush2.msra.mxu0 0.0
      %3623 = vmatprep.subr.mxu0 0.0
      %3624 = vmatpush2.msra.mxu0 0.0
      %3625 = vmatprep.subr.mxu0 0.0
      %3626 = vmatpush2.msra.mxu0 0.0
      %3627 = vmatprep.subr.mxu0 0.0
      %3628 = vmatpush2.msra.mxu0 0.0
      %3629 = vmatprep.subr.mxu0 0.0
      %3630 = vmatpush2.msra.mxu0 0.0
      %3631 = vmatprep.subr.mxu0 0.0
      %3632 = vmatpush2.msra.mxu0 0.0
      %3633 = vmatprep.subr.mxu0 0.0
      %3634 = vmatpush2.msra.mxu0 0.0
      %3635 = vmatprep.mubr.f32.mxu0 0.0
      %3636 = vmatmul.mubr.f32.gmra.mxu0 %v3217
      %v3637 = vpop.f32.mrf.mxu0
      %v3638 = vadd.f32 0.0, %v3637
      %v3639 = vpop.f32.mrf.mxu0
      %3640 = vmatprep.mubr.f32.mxu0 0.0
      %3641 = vmatmul.mubr.f32.gmra.mxu0 %v3220
      %v3642 = vpop.f32.mrf.mxu0
      %v3643 = vadd.f32 0.0, %v3642
      %v3644 = vpop.f32.mrf.mxu0
      %3645 = vmatprep.mubr.f32.mxu0 0.0
      %3646 = vmatmul.mubr.f32.gmra.mxu0 %v3223
      %v3647 = vpop.f32.mrf.mxu0
      %v3648 = vadd.f32 0.0, %v3647
      %v3649 = vpop.f32.mrf.mxu0
      %3650 = vmatprep.mubr.f32.mxu0 0.0
      %3651 = vmatmul.mubr.f32.gmra.mxu0 %v3226
      %v3652 = vpop.f32.mrf.mxu0
      %v3653 = vadd.f32 0.0, %v3652
      %v3654 = vpop.f32.mrf.mxu0
      %3655 = vmatprep.mubr.f32.mxu0 0.0
      %3656 = vmatmul.mubr.f32.gmra.mxu0 %v3229
      %v3657 = vpop.f32.mrf.mxu0
      %v3658 = vadd.f32 0.0, %v3657
      %v3659 = vpop.f32.mrf.mxu0
      %3660 = vmatprep.mubr.f32.mxu0 0.0
      %3661 = vmatmul.mubr.f32.gmra.mxu0 %v3232
      %v3662 = vpop.f32.mrf.mxu0
      %v3663 = vadd.f32 0.0, %v3662
      %v3664 = vpop.f32.mrf.mxu0
      %3665 = vmatprep.mubr.f32.mxu0 0.0
      %3666 = vmatmul.mubr.f32.gmra.mxu0 %v3235
      %v3667 = vpop.f32.mrf.mxu0
      %v3668 = vadd.f32 0.0, %v3667
      %v3669 = vpop.f32.mrf.mxu0
      %3670 = vmatprep.mubr.f32.mxu0 0.0
      %3671 = vmatmul.mubr.f32.gmra.mxu0 %v3238
      %v3672 = vpop.f32.mrf.mxu0
      %v3673 = vadd.f32 0.0, %v3672
      %v3674 = vpop.f32.mrf.mxu0
      %3675 = vmatprep.mubr.f32.mxu0 0.0
      %3676 = vmatmul.mubr.f32.gmra.mxu0 %v3241
      %v3677 = vpop.f32.mrf.mxu0
      %v3678 = vadd.f32 0.0, %v3677
      %v3679 = vpop.f32.mrf.mxu0
      %3680 = vmatprep.mubr.f32.mxu0 0.0
      %3681 = vmatmul.mubr.f32.gmra.mxu0 %v3244
      %v3682 = vpop.f32.mrf.mxu0
      %v3683 = vadd.f32 0.0, %v3682
      %v3684 = vpop.f32.mrf.mxu0
      %3685 = vmatprep.mubr.f32.mxu0 0.0
      %3686 = vmatmul.mubr.f32.gmra.mxu0 %v3247
      %v3687 = vpop.f32.mrf.mxu0
      %v3688 = vadd.f32 0.0, %v3687
      %v3689 = vpop.f32.mrf.mxu0
      %3690 = vmatprep.mubr.f32.mxu0 0.0
      %3691 = vmatmul.mubr.f32.gmra.mxu0 %v3250
      %v3692 = vpop.f32.mrf.mxu0
      %v3693 = vadd.f32 0.0, %v3692
      %v3694 = vpop.f32.mrf.mxu0
      %3695 = vmatprep.mubr.f32.mxu0 0.0
      %3696 = vmatmul.mubr.f32.gmra.mxu0 %v3253
      %v3697 = vpop.f32.mrf.mxu0
      %v3698 = vadd.f32 0.0, %v3697
      %v3699 = vpop.f32.mrf.mxu0
      %3700 = vmatprep.mubr.f32.mxu0 0.0
      %3701 = vmatmul.mubr.f32.gmra.mxu0 %v3256
      %v3702 = vpop.f32.mrf.mxu0
      %v3703 = vadd.f32 0.0, %v3702
      %v3704 = vpop.f32.mrf.mxu0
      %3705 = vmatprep.mubr.f32.mxu0 0.0
      %3706 = vmatmul.mubr.f32.gmra.mxu0 %v3259
      %v3707 = vpop.f32.mrf.mxu0
      %v3708 = vadd.f32 0.0, %v3707
      %v3709 = vpop.f32.mrf.mxu0
      %3710 = vmatprep.mubr.f32.mxu0 0.0
      %3711 = vmatmul.mubr.f32.gmra.mxu0 %v3262
      %v3712 = vpop.f32.mrf.mxu0
      %v3713 = vadd.f32 0.0, %v3712
      %v3714 = vpop.f32.mrf.mxu0
      %3715 = vmatprep.mubr.f32.mxu0 0.0
      %3716 = vmatmul.mubr.f32.gmra.mxu0 %v3265
      %v3717 = vpop.f32.mrf.mxu0
      %v3718 = vadd.f32 0.0, %v3717
      %v3719 = vpop.f32.mrf.mxu0
      %3720 = vmatprep.mubr.f32.mxu0 0.0
      %3721 = vmatmul.mubr.f32.gmra.mxu0 %v3268
      %v3722 = vpop.f32.mrf.mxu0
      %v3723 = vadd.f32 0.0, %v3722
      %v3724 = vpop.f32.mrf.mxu0
      %3725 = vmatprep.mubr.f32.mxu0 0.0
      %3726 = vmatmul.mubr.f32.gmra.mxu0 %v3271
      %v3727 = vpop.f32.mrf.mxu0
      %v3728 = vadd.f32 0.0, %v3727
      %v3729 = vpop.f32.mrf.mxu0
      %3730 = vmatprep.mubr.f32.mxu0 0.0
      %3731 = vmatmul.mubr.f32.gmra.mxu0 %v3274
      %v3732 = vpop.f32.mrf.mxu0
      %v3733 = vadd.f32 0.0, %v3732
      %v3734 = vpop.f32.mrf.mxu0
      %3735 = vmatprep.mubr.f32.mxu0 0.0
      %3736 = vmatmul.mubr.f32.gmra.mxu0 %v3277
      %v3737 = vpop.f32.mrf.mxu0
      %v3738 = vadd.f32 0.0, %v3737
      %v3739 = vpop.f32.mrf.mxu0
      %3740 = vmatprep.mubr.f32.mxu0 0.0
      %3741 = vmatmul.mubr.f32.gmra.mxu0 %v3280
      %v3742 = vpop.f32.mrf.mxu0
      %v3743 = vadd.f32 0.0, %v3742
      %v3744 = vpop.f32.mrf.mxu0
      %3745 = vmatprep.mubr.f32.mxu0 0.0
      %3746 = vmatmul.mubr.f32.gmra.mxu0 %v3283
      %v3747 = vpop.f32.mrf.mxu0
      %v3748 = vadd.f32 0.0, %v3747
      %v3749 = vpop.f32.mrf.mxu0
      %3750 = vmatprep.mubr.f32.mxu0 0.0
      %3751 = vmatmul.mubr.f32.gmra.mxu0 %v3286
      %v3752 = vpop.f32.mrf.mxu0
      %v3753 = vadd.f32 0.0, %v3752
      %v3754 = vpop.f32.mrf.mxu0
      %3755 = vmatprep.mubr.f32.mxu0 0.0
      %3756 = vmatmul.mubr.f32.gmra.mxu0 %v3289
      %v3757 = vpop.f32.mrf.mxu0
      %v3758 = vadd.f32 0.0, %v3757
      %v3759 = vpop.f32.mrf.mxu0
      %3760 = vmatprep.mubr.f32.mxu0 0.0
      %3761 = vmatmul.mubr.f32.gmra.mxu0 %v3292
      %v3762 = vpop.f32.mrf.mxu0
      %v3763 = vadd.f32 0.0, %v3762
      %v3764 = vpop.f32.mrf.mxu0
      %3765 = vmatprep.mubr.f32.mxu0 0.0
      %3766 = vmatmul.mubr.f32.gmra.mxu0 %v3295
      %v3767 = vpop.f32.mrf.mxu0
      %v3768 = vadd.f32 0.0, %v3767
      %v3769 = vpop.f32.mrf.mxu0
      %3770 = vmatprep.mubr.f32.mxu0 0.0
      %3771 = vmatmul.mubr.f32.gmra.mxu0 %v3298
      %v3772 = vpop.f32.mrf.mxu0
      %v3773 = vadd.f32 0.0, %v3772
      %v3774 = vpop.f32.mrf.mxu0
      %3775 = vmatprep.mubr.f32.mxu0 0.0
      %3776 = vmatmul.mubr.f32.gmra.mxu0 %v3301
      %v3777 = vpop.f32.mrf.mxu0
      %v3778 = vadd.f32 0.0, %v3777
      %v3779 = vpop.f32.mrf.mxu0
      %3780 = vmatprep.mubr.f32.mxu0 0.0
      %3781 = vmatmul.mubr.f32.gmra.mxu0 %v3304
      %v3782 = vpop.f32.mrf.mxu0
      %v3783 = vadd.f32 0.0, %v3782
      %v3784 = vpop.f32.mrf.mxu0
      %3785 = vmatprep.mubr.f32.mxu0 0.0
      %3786 = vmatmul.mubr.f32.gmra.mxu0 %v3566
      %v3787 = vpop.f32.mrf.mxu0
      %v3788 = vadd.f32 0.0, %v3787
      %v3789 = vpop.f32.mrf.mxu0
      %3790 = vmatprep.mubr.f32.mxu0 0.0
      %3791 = vmatmul.mubr.f32.gmra.mxu0 %v3569
      %v3792 = vpop.f32.mrf.mxu0
      %v3793 = vadd.f32 0.0, %v3792
      %v3794 = vpop.f32.mrf.mxu0
      %3795 = vdwg.mxu0
      %v3796 = vadd.f32 %v3531, %v3638
      %v3797 = vadd.f32 %v3532, %v3643
      %v3798 = vadd.f32 %v3533, %v3648
      %v3799 = vadd.f32 %v3534, %v3653
      %v3800 = vadd.f32 %v3535, %v3658
      %v3801 = vadd.f32 %v3536, %v3663
      %v3802 = vadd.f32 %v3537, %v3668
      %v3803 = vadd.f32 %v3538, %v3673
      %v3804 = vadd.f32 %v3539, %v3678
      %v3805 = vadd.f32 %v3540, %v3683
      %v3806 = vadd.f32 %v3541, %v3688
      %v3807 = vadd.f32 %v3542, %v3693
      %v3808 = vadd.f32 %v3543, %v3698
      %v3809 = vadd.f32 %v3544, %v3703
      %v3810 = vadd.f32 %v3545, %v3708
      %v3811 = vadd.f32 %v3546, %v3713
      %v3812 = vadd.f32 %v3547, %v3718
      %v3813 = vadd.f32 %v3548, %v3723
      %v3814 = vadd.f32 %v3549, %v3728
      %v3815 = vadd.f32 %v3550, %v3733
      %v3816 = vadd.f32 %v3551, %v3738
      %v3817 = vadd.f32 %v3552, %v3743
      %v3818 = vadd.f32 %v3553, %v3748
      %v3819 = vadd.f32 %v3554, %v3753
      %v3820 = vadd.f32 %v3555, %v3758
      %v3821 = vadd.f32 %v3556, %v3763
      %v3822 = vadd.f32 %v3557, %v3768
      %v3823 = vadd.f32 %v3558, %v3773
      %v3824 = vadd.f32 %v3559, %v3778
      %v3825 = vadd.f32 %v3560, %v3783
      %v3826 = vadd.f32 %v3561, %v3788
      %v3827 = vadd.f32 %v3562, %v3793
      %s3828 = scalar_lea.vmem %s1, 64
      %v3829 = vld [vmem:[%s3828] sm:$0xff]
      %v3831 = vsel %vm709, %v3206, 0
      %v3834 = vsel %vm709, %v3207, 0
      %3836 = vmatprep.subr.mxu0 0.0
      %3837 = vmatpush1.msra.mxu0 0.0
      %3838 = vmatprep.subr.mxu0 0.0
      %3839 = vmatpush1.msra.mxu0 0.0
      %3840 = vmatprep.subr.mxu0 0.0
      %3841 = vmatpush1.msra.mxu0 0.0
      %3842 = vmatprep.subr.mxu0 0.0
      %3843 = vmatpush1.msra.mxu0 0.0
      %3844 = vmatprep.subr.mxu0 0.0
      %3845 = vmatpush1.msra.mxu0 0.0
      %3846 = vmatprep.subr.mxu0 0.0
      %3847 = vmatpush1.msra.mxu0 0.0
      %3848 = vmatprep.subr.mxu0 0.0
      %3849 = vmatpush1.msra.mxu0 0.0
      %3850 = vmatprep.subr.mxu0 0.0
      %3851 = vmatpush1.msra.mxu0 0.0
      %3852 = vmatprep.subr.mxu0 0.0
      %3853 = vmatpush1.msra.mxu0 0.0
      %3854 = vmatprep.subr.mxu0 0.0
      %3855 = vmatpush1.msra.mxu0 0.0
      %3856 = vmatprep.subr.mxu0 0.0
      %3857 = vmatpush1.msra.mxu0 0.0
      %3858 = vmatprep.subr.mxu0 0.0
      %3859 = vmatpush1.msra.mxu0 0.0
      %3860 = vmatprep.subr.mxu0 0.0
      %3861 = vmatpush1.msra.mxu0 0.0
      %3862 = vmatprep.subr.mxu0 0.0
      %3863 = vmatpush1.msra.mxu0 0.0
      %3864 = vmatprep.subr.mxu0 0.0
      %3865 = vmatpush1.msra.mxu0 0.0
      %3866 = vmatprep.subr.mxu0 0.0
      %3867 = vmatpush1.msra.mxu0 %v3829
      %3868 = vmatprep.subr.mxu0 0.0
      %3869 = vmatpush2.msra.mxu0 0.0
      %3870 = vmatprep.subr.mxu0 0.0
      %3871 = vmatpush2.msra.mxu0 0.0
      %3872 = vmatprep.subr.mxu0 0.0
      %3873 = vmatpush2.msra.mxu0 0.0
      %3874 = vmatprep.subr.mxu0 0.0
      %3875 = vmatpush2.msra.mxu0 0.0
      %3876 = vmatprep.subr.mxu0 0.0
      %3877 = vmatpush2.msra.mxu0 0.0
      %3878 = vmatprep.subr.mxu0 0.0
      %3879 = vmatpush2.msra.mxu0 0.0
      %3880 = vmatprep.subr.mxu0 0.0
      %3881 = vmatpush2.msra.mxu0 0.0
      %3882 = vmatprep.subr.mxu0 0.0
      %3883 = vmatpush2.msra.mxu0 0.0
      %3884 = vmatprep.subr.mxu0 0.0
      %3885 = vmatpush2.msra.mxu0 0.0
      %3886 = vmatprep.subr.mxu0 0.0
      %3887 = vmatpush2.msra.mxu0 0.0
      %3888 = vmatprep.subr.mxu0 0.0
      %3889 = vmatpush2.msra.mxu0 0.0
      %3890 = vmatprep.subr.mxu0 0.0
      %3891 = vmatpush2.msra.mxu0 0.0
      %3892 = vmatprep.subr.mxu0 0.0
      %3893 = vmatpush2.msra.mxu0 0.0
      %3894 = vmatprep.subr.mxu0 0.0
      %3895 = vmatpush2.msra.mxu0 0.0
      %3896 = vmatprep.subr.mxu0 0.0
      %3897 = vmatpush2.msra.mxu0 0.0
      %3898 = vmatprep.subr.mxu0 0.0
      %3899 = vmatpush2.msra.mxu0 0.0
      %3900 = vmatprep.mubr.f32.mxu0 0.0
      %3901 = vmatmul.mubr.f32.gmra.mxu0 %v3223
      %v3902 = vpop.f32.mrf.mxu0
      %v3903 = vadd.f32 0.0, %v3902
      %v3904 = vpop.f32.mrf.mxu0
      %3905 = vmatprep.mubr.f32.mxu0 0.0
      %3906 = vmatmul.mubr.f32.gmra.mxu0 %v3226
      %v3907 = vpop.f32.mrf.mxu0
      %v3908 = vadd.f32 0.0, %v3907
      %v3909 = vpop.f32.mrf.mxu0
      %3910 = vmatprep.mubr.f32.mxu0 0.0
      %3911 = vmatmul.mubr.f32.gmra.mxu0 %v3229
      %v3912 = vpop.f32.mrf.mxu0
      %v3913 = vadd.f32 0.0, %v3912
      %v3914 = vpop.f32.mrf.mxu0
      %3915 = vmatprep.mubr.f32.mxu0 0.0
      %3916 = vmatmul.mubr.f32.gmra.mxu0 %v3232
      %v3917 = vpop.f32.mrf.mxu0
      %v3918 = vadd.f32 0.0, %v3917
      %v3919 = vpop.f32.mrf.mxu0
      %3920 = vmatprep.mubr.f32.mxu0 0.0
      %3921 = vmatmul.mubr.f32.gmra.mxu0 %v3235
      %v3922 = vpop.f32.mrf.mxu0
      %v3923 = vadd.f32 0.0, %v3922
      %v3924 = vpop.f32.mrf.mxu0
      %3925 = vmatprep.mubr.f32.mxu0 0.0
      %3926 = vmatmul.mubr.f32.gmra.mxu0 %v3238
      %v3927 = vpop.f32.mrf.mxu0
      %v3928 = vadd.f32 0.0, %v3927
      %v3929 = vpop.f32.mrf.mxu0
      %3930 = vmatprep.mubr.f32.mxu0 0.0
      %3931 = vmatmul.mubr.f32.gmra.mxu0 %v3241
      %v3932 = vpop.f32.mrf.mxu0
      %v3933 = vadd.f32 0.0, %v3932
      %v3934 = vpop.f32.mrf.mxu0
      %3935 = vmatprep.mubr.f32.mxu0 0.0
      %3936 = vmatmul.mubr.f32.gmra.mxu0 %v3244
      %v3937 = vpop.f32.mrf.mxu0
      %v3938 = vadd.f32 0.0, %v3937
      %v3939 = vpop.f32.mrf.mxu0
      %3940 = vmatprep.mubr.f32.mxu0 0.0
      %3941 = vmatmul.mubr.f32.gmra.mxu0 %v3247
      %v3942 = vpop.f32.mrf.mxu0
      %v3943 = vadd.f32 0.0, %v3942
      %v3944 = vpop.f32.mrf.mxu0
      %3945 = vmatprep.mubr.f32.mxu0 0.0
      %3946 = vmatmul.mubr.f32.gmra.mxu0 %v3250
      %v3947 = vpop.f32.mrf.mxu0
      %v3948 = vadd.f32 0.0, %v3947
      %v3949 = vpop.f32.mrf.mxu0
      %3950 = vmatprep.mubr.f32.mxu0 0.0
      %3951 = vmatmul.mubr.f32.gmra.mxu0 %v3253
      %v3952 = vpop.f32.mrf.mxu0
      %v3953 = vadd.f32 0.0, %v3952
      %v3954 = vpop.f32.mrf.mxu0
      %3955 = vmatprep.mubr.f32.mxu0 0.0
      %3956 = vmatmul.mubr.f32.gmra.mxu0 %v3256
      %v3957 = vpop.f32.mrf.mxu0
      %v3958 = vadd.f32 0.0, %v3957
      %v3959 = vpop.f32.mrf.mxu0
      %3960 = vmatprep.mubr.f32.mxu0 0.0
      %3961 = vmatmul.mubr.f32.gmra.mxu0 %v3259
      %v3962 = vpop.f32.mrf.mxu0
      %v3963 = vadd.f32 0.0, %v3962
      %v3964 = vpop.f32.mrf.mxu0
      %3965 = vmatprep.mubr.f32.mxu0 0.0
      %3966 = vmatmul.mubr.f32.gmra.mxu0 %v3262
      %v3967 = vpop.f32.mrf.mxu0
      %v3968 = vadd.f32 0.0, %v3967
      %v3969 = vpop.f32.mrf.mxu0
      %3970 = vmatprep.mubr.f32.mxu0 0.0
      %3971 = vmatmul.mubr.f32.gmra.mxu0 %v3265
      %v3972 = vpop.f32.mrf.mxu0
      %v3973 = vadd.f32 0.0, %v3972
      %v3974 = vpop.f32.mrf.mxu0
      %3975 = vmatprep.mubr.f32.mxu0 0.0
      %3976 = vmatmul.mubr.f32.gmra.mxu0 %v3268
      %v3977 = vpop.f32.mrf.mxu0
      %v3978 = vadd.f32 0.0, %v3977
      %v3979 = vpop.f32.mrf.mxu0
      %3980 = vmatprep.mubr.f32.mxu0 0.0
      %3981 = vmatmul.mubr.f32.gmra.mxu0 %v3271
      %v3982 = vpop.f32.mrf.mxu0
      %v3983 = vadd.f32 0.0, %v3982
      %v3984 = vpop.f32.mrf.mxu0
      %3985 = vmatprep.mubr.f32.mxu0 0.0
      %3986 = vmatmul.mubr.f32.gmra.mxu0 %v3274
      %v3987 = vpop.f32.mrf.mxu0
      %v3988 = vadd.f32 0.0, %v3987
      %v3989 = vpop.f32.mrf.mxu0
      %3990 = vmatprep.mubr.f32.mxu0 0.0
      %3991 = vmatmul.mubr.f32.gmra.mxu0 %v3277
      %v3992 = vpop.f32.mrf.mxu0
      %v3993 = vadd.f32 0.0, %v3992
      %v3994 = vpop.f32.mrf.mxu0
      %3995 = vmatprep.mubr.f32.mxu0 0.0
      %3996 = vmatmul.mubr.f32.gmra.mxu0 %v3280
      %v3997 = vpop.f32.mrf.mxu0
      %v3998 = vadd.f32 0.0, %v3997
      %v3999 = vpop.f32.mrf.mxu0
      %4000 = vmatprep.mubr.f32.mxu0 0.0
      %4001 = vmatmul.mubr.f32.gmra.mxu0 %v3283
      %v4002 = vpop.f32.mrf.mxu0
      %v4003 = vadd.f32 0.0, %v4002
      %v4004 = vpop.f32.mrf.mxu0
      %4005 = vmatprep.mubr.f32.mxu0 0.0
      %4006 = vmatmul.mubr.f32.gmra.mxu0 %v3286
      %v4007 = vpop.f32.mrf.mxu0
      %v4008 = vadd.f32 0.0, %v4007
      %v4009 = vpop.f32.mrf.mxu0
      %4010 = vmatprep.mubr.f32.mxu0 0.0
      %4011 = vmatmul.mubr.f32.gmra.mxu0 %v3289
      %v4012 = vpop.f32.mrf.mxu0
      %v4013 = vadd.f32 0.0, %v4012
      %v4014 = vpop.f32.mrf.mxu0
      %4015 = vmatprep.mubr.f32.mxu0 0.0
      %4016 = vmatmul.mubr.f32.gmra.mxu0 %v3292
      %v4017 = vpop.f32.mrf.mxu0
      %v4018 = vadd.f32 0.0, %v4017
      %v4019 = vpop.f32.mrf.mxu0
      %4020 = vmatprep.mubr.f32.mxu0 0.0
      %4021 = vmatmul.mubr.f32.gmra.mxu0 %v3295
      %v4022 = vpop.f32.mrf.mxu0
      %v4023 = vadd.f32 0.0, %v4022
      %v4024 = vpop.f32.mrf.mxu0
      %4025 = vmatprep.mubr.f32.mxu0 0.0
      %4026 = vmatmul.mubr.f32.gmra.mxu0 %v3298
      %v4027 = vpop.f32.mrf.mxu0
      %v4028 = vadd.f32 0.0, %v4027
      %v4029 = vpop.f32.mrf.mxu0
      %4030 = vmatprep.mubr.f32.mxu0 0.0
      %4031 = vmatmul.mubr.f32.gmra.mxu0 %v3301
      %v4032 = vpop.f32.mrf.mxu0
      %v4033 = vadd.f32 0.0, %v4032
      %v4034 = vpop.f32.mrf.mxu0
      %4035 = vmatprep.mubr.f32.mxu0 0.0
      %4036 = vmatmul.mubr.f32.gmra.mxu0 %v3304
      %v4037 = vpop.f32.mrf.mxu0
      %v4038 = vadd.f32 0.0, %v4037
      %v4039 = vpop.f32.mrf.mxu0
      %4040 = vmatprep.mubr.f32.mxu0 0.0
      %4041 = vmatmul.mubr.f32.gmra.mxu0 %v3566
      %v4042 = vpop.f32.mrf.mxu0
      %v4043 = vadd.f32 0.0, %v4042
      %v4044 = vpop.f32.mrf.mxu0
      %4045 = vmatprep.mubr.f32.mxu0 0.0
      %4046 = vmatmul.mubr.f32.gmra.mxu0 %v3569
      %v4047 = vpop.f32.mrf.mxu0
      %v4048 = vadd.f32 0.0, %v4047
      %v4049 = vpop.f32.mrf.mxu0
      %4050 = vmatprep.mubr.f32.mxu0 0.0
      %4051 = vmatmul.mubr.f32.gmra.mxu0 %v3831
      %v4052 = vpop.f32.mrf.mxu0
      %v4053 = vadd.f32 0.0, %v4052
      %v4054 = vpop.f32.mrf.mxu0
      %4055 = vmatprep.mubr.f32.mxu0 0.0
      %4056 = vmatmul.mubr.f32.gmra.mxu0 %v3834
      %v4057 = vpop.f32.mrf.mxu0
      %v4058 = vadd.f32 0.0, %v4057
      %v4059 = vpop.f32.mrf.mxu0
      %4060 = vdwg.mxu0
      %v4061 = vadd.f32 %v3796, %v3903
      %v4062 = vadd.f32 %v3797, %v3908
      %v4063 = vadd.f32 %v3798, %v3913
      %v4064 = vadd.f32 %v3799, %v3918
      %v4065 = vadd.f32 %v3800, %v3923
      %v4066 = vadd.f32 %v3801, %v3928
      %v4067 = vadd.f32 %v3802, %v3933
      %v4068 = vadd.f32 %v3803, %v3938
      %v4069 = vadd.f32 %v3804, %v3943
      %v4070 = vadd.f32 %v3805, %v3948
      %v4071 = vadd.f32 %v3806, %v3953
      %v4072 = vadd.f32 %v3807, %v3958
      %v4073 = vadd.f32 %v3808, %v3963
      %v4074 = vadd.f32 %v3809, %v3968
      %v4075 = vadd.f32 %v3810, %v3973
      %v4076 = vadd.f32 %v3811, %v3978
      %v4077 = vadd.f32 %v3812, %v3983
      %v4078 = vadd.f32 %v3813, %v3988
      %v4079 = vadd.f32 %v3814, %v3993
      %v4080 = vadd.f32 %v3815, %v3998
      %v4081 = vadd.f32 %v3816, %v4003
      %v4082 = vadd.f32 %v3817, %v4008
      %v4083 = vadd.f32 %v3818, %v4013
      %v4084 = vadd.f32 %v3819, %v4018
      %v4085 = vadd.f32 %v3820, %v4023
      %v4086 = vadd.f32 %v3821, %v4028
      %v4087 = vadd.f32 %v3822, %v4033
      %v4088 = vadd.f32 %v3823, %v4038
      %v4089 = vadd.f32 %v3824, %v4043
      %v4090 = vadd.f32 %v3825, %v4048
      %v4091 = vadd.f32 %v3826, %v4053
      %v4092 = vadd.f32 %v3827, %v4058
      %4093 = vst.msk [vmem:[%s289] sm:$0xff] %vm709, %v4061
      %4094 = vst.msk [vmem:[%s289 + $0x8] sm:$0xff] %vm709, %v4062
      %4095 = vst.msk [vmem:[%s289 + $0x10] sm:$0xff] %vm709, %v4063
      %4096 = vst.msk [vmem:[%s289 + $0x18] sm:$0xff] %vm709, %v4064
      %4097 = vst.msk [vmem:[%s289 + $0x20] sm:$0xff] %vm709, %v4065
      %4098 = vst.msk [vmem:[%s289 + $0x28] sm:$0xff] %vm709, %v4066
      %4099 = vst.msk [vmem:[%s289 + $0x30] sm:$0xff] %vm709, %v4067
      %4100 = vst.msk [vmem:[%s289 + $0x38] sm:$0xff] %vm709, %v4068
      %4101 = vst.msk [vmem:[%s289 + $0x40] sm:$0xff] %vm709, %v4069
      %4102 = vst.msk [vmem:[%s289 + $0x48] sm:$0xff] %vm709, %v4070
      %4103 = vst.msk [vmem:[%s289 + $0x50] sm:$0xff] %vm709, %v4071
      %4104 = vst.msk [vmem:[%s289 + $0x58] sm:$0xff] %vm709, %v4072
      %4105 = vst.msk [vmem:[%s289 + $0x60] sm:$0xff] %vm709, %v4073
      %4106 = vst.msk [vmem:[%s289 + $0x68] sm:$0xff] %vm709, %v4074
      %4107 = vst.msk [vmem:[%s289 + $0x70] sm:$0xff] %vm709, %v4075
      %4108 = vst.msk [vmem:[%s289 + $0x78] sm:$0xff] %vm709, %v4076
      %4109 = vst.msk [vmem:[%s289 + $0x80] sm:$0xff] %vm709, %v4077
      %4110 = vst.msk [vmem:[%s289 + $0x88] sm:$0xff] %vm709, %v4078
      %4111 = vst.msk [vmem:[%s289 + $0x90] sm:$0xff] %vm709, %v4079
      %4112 = vst.msk [vmem:[%s289 + $0x98] sm:$0xff] %vm709, %v4080
      %4113 = vst.msk [vmem:[%s289 + $0xa0] sm:$0xff] %vm709, %v4081
      %4114 = vst.msk [vmem:[%s289 + $0xa8] sm:$0xff] %vm709, %v4082
      %4115 = vst.msk [vmem:[%s289 + $0xb0] sm:$0xff] %vm709, %v4083
      %4116 = vst.msk [vmem:[%s289 + $0xb8] sm:$0xff] %vm709, %v4084
      %4117 = vst.msk [vmem:[%s289 + $0xc0] sm:$0xff] %vm709, %v4085
      %4118 = vst.msk [vmem:[%s289 + $0xc8] sm:$0xff] %vm709, %v4086
      %4119 = vst.msk [vmem:[%s289 + $0xd0] sm:$0xff] %vm709, %v4087
      %4120 = vst.msk [vmem:[%s289 + $0xd8] sm:$0xff] %vm709, %v4088
      %4121 = vst.msk [vmem:[%s289 + $0xe0] sm:$0xff] %vm709, %v4089
      %4122 = vst.msk [vmem:[%s289 + $0xe8] sm:$0xff] %vm709, %v4090
      %4123 = vst.msk [vmem:[%s289 + $0xf0] sm:$0xff] %vm709, %v4091
      %4124 = vst.msk [vmem:[%s289 + $0xf8] sm:$0xff] %vm709, %v4092
      %v4125 = vsel %vm709, %v4061, 0.0
      %v4126 = vsel %vm709, %v4062, 0.0
      %v4127 = vadd.f32 %v4125, %v4126
      %v4128 = vsel %vm709, %v4063, 0.0
      %v4129 = vadd.f32 %v4127, %v4128
      %v4130 = vsel %vm709, %v4064, 0.0
      %v4131 = vadd.f32 %v4129, %v4130
      %v4132 = vsel %vm709, %v4065, 0.0
      %v4133 = vadd.f32 %v4131, %v4132
      %v4134 = vsel %vm709, %v4066, 0.0
      %v4135 = vadd.f32 %v4133, %v4134
      %v4136 = vsel %vm709, %v4067, 0.0
      %v4137 = vadd.f32 %v4135, %v4136
      %v4138 = vsel %vm709, %v4068, 0.0
      %v4139 = vadd.f32 %v4137, %v4138
      %v4140 = vsel %vm709, %v4069, 0.0
      %v4141 = vadd.f32 %v4139, %v4140
      %v4142 = vsel %vm709, %v4070, 0.0
      %v4143 = vadd.f32 %v4141, %v4142
      %v4144 = vsel %vm709, %v4071, 0.0
      %v4145 = vadd.f32 %v4143, %v4144
      %v4146 = vsel %vm709, %v4072, 0.0
      %v4147 = vadd.f32 %v4145, %v4146
      %v4148 = vsel %vm709, %v4073, 0.0
      %v4149 = vadd.f32 %v4147, %v4148
      %v4150 = vsel %vm709, %v4074, 0.0
      %v4151 = vadd.f32 %v4149, %v4150
      %v4152 = vsel %vm709, %v4075, 0.0
      %v4153 = vadd.f32 %v4151, %v4152
      %v4154 = vsel %vm709, %v4076, 0.0
      %v4155 = vadd.f32 %v4153, %v4154
      %v4156 = vsel %vm709, %v4077, 0.0
      %v4157 = vadd.f32 %v4155, %v4156
      %v4158 = vsel %vm709, %v4078, 0.0
      %v4159 = vadd.f32 %v4157, %v4158
      %v4160 = vsel %vm709, %v4079, 0.0
      %v4161 = vadd.f32 %v4159, %v4160
      %v4162 = vsel %vm709, %v4080, 0.0
      %v4163 = vadd.f32 %v4161, %v4162
      %v4164 = vsel %vm709, %v4081, 0.0
      %v4165 = vadd.f32 %v4163, %v4164
      %v4166 = vsel %vm709, %v4082, 0.0
      %v4167 = vadd.f32 %v4165, %v4166
      %v4168 = vsel %vm709, %v4083, 0.0
      %v4169 = vadd.f32 %v4167, %v4168
      %v4170 = vsel %vm709, %v4084, 0.0
      %v4171 = vadd.f32 %v4169, %v4170
      %v4172 = vsel %vm709, %v4085, 0.0
      %v4173 = vadd.f32 %v4171, %v4172
      %v4174 = vsel %vm709, %v4086, 0.0
      %v4175 = vadd.f32 %v4173, %v4174
      %v4176 = vsel %vm709, %v4087, 0.0
      %v4177 = vadd.f32 %v4175, %v4176
      %v4178 = vsel %vm709, %v4088, 0.0
      %v4179 = vadd.f32 %v4177, %v4178
      %v4180 = vsel %vm709, %v4089, 0.0
      %v4181 = vadd.f32 %v4179, %v4180
      %v4182 = vsel %vm709, %v4090, 0.0
      %v4183 = vadd.f32 %v4181, %v4182
      %v4184 = vsel %vm709, %v4091, 0.0
      %v4185 = vadd.f32 %v4183, %v4184
      %v4186 = vsel %vm709, %v4092, 0.0
      %v4187 = vadd.f32 %v4185, %v4186
      %v4188 = vrot.slane %v4187, 4
      %v4189 = vadd.f32 %v4187, %v4188
      %v4190 = vrot.slane %v4189, 2
      %v4191 = vadd.f32 %v4189, %v4190
      %v4192 = vrot.slane %v4191, 1
      %v4193 = vadd.f32 %v4191, %v4192
      %vm4194 = vcmask 57344
      %4195 = vst.msk [vmem:[%s292] sm:$0x1] %vm4194, %v4193
      %v4196 = vmul.f32 %v4061, %v4061
      %v4197 = vmul.f32 %v4062, %v4062
      %v4198 = vmul.f32 %v4063, %v4063
      %v4199 = vmul.f32 %v4064, %v4064
      %v4200 = vmul.f32 %v4065, %v4065
      %v4201 = vmul.f32 %v4066, %v4066
      %v4202 = vmul.f32 %v4067, %v4067
      %v4203 = vmul.f32 %v4068, %v4068
      %v4204 = vmul.f32 %v4069, %v4069
      %v4205 = vmul.f32 %v4070, %v4070
      %v4206 = vmul.f32 %v4071, %v4071
      %v4207 = vmul.f32 %v4072, %v4072
      %v4208 = vmul.f32 %v4073, %v4073
      %v4209 = vmul.f32 %v4074, %v4074
      %v4210 = vmul.f32 %v4075, %v4075
      %v4211 = vmul.f32 %v4076, %v4076
      %v4212 = vmul.f32 %v4077, %v4077
      %v4213 = vmul.f32 %v4078, %v4078
      %v4214 = vmul.f32 %v4079, %v4079
      %v4215 = vmul.f32 %v4080, %v4080
      %v4216 = vmul.f32 %v4081, %v4081
      %v4217 = vmul.f32 %v4082, %v4082
      %v4218 = vmul.f32 %v4083, %v4083
      %v4219 = vmul.f32 %v4084, %v4084
      %v4220 = vmul.f32 %v4085, %v4085
      %v4221 = vmul.f32 %v4086, %v4086
      %v4222 = vmul.f32 %v4087, %v4087
      %v4223 = vmul.f32 %v4088, %v4088
      %v4224 = vmul.f32 %v4089, %v4089
      %v4225 = vmul.f32 %v4090, %v4090
      %v4226 = vmul.f32 %v4091, %v4091
      %v4227 = vmul.f32 %v4092, %v4092
      %v4228 = vsel %vm709, %v4196, 0.0
      %v4229 = vsel %vm709, %v4197, 0.0
      %v4230 = vadd.f32 %v4228, %v4229
      %v4231 = vsel %vm709, %v4198, 0.0
      %v4232 = vadd.f32 %v4230, %v4231
      %v4233 = vsel %vm709, %v4199, 0.0
      %v4234 = vadd.f32 %v4232, %v4233
      %v4235 = vsel %vm709, %v4200, 0.0
      %v4236 = vadd.f32 %v4234, %v4235
      %v4237 = vsel %vm709, %v4201, 0.0
      %v4238 = vadd.f32 %v4236, %v4237
      %v4239 = vsel %vm709, %v4202, 0.0
      %v4240 = vadd.f32 %v4238, %v4239
      %v4241 = vsel %vm709, %v4203, 0.0
      %v4242 = vadd.f32 %v4240, %v4241
      %v4243 = vsel %vm709, %v4204, 0.0
      %v4244 = vadd.f32 %v4242, %v4243
      %v4245 = vsel %vm709, %v4205, 0.0
      %v4246 = vadd.f32 %v4244, %v4245
      %v4247 = vsel %vm709, %v4206, 0.0
      %v4248 = vadd.f32 %v4246, %v4247
      %v4249 = vsel %vm709, %v4207, 0.0
      %v4250 = vadd.f32 %v4248, %v4249
      %v4251 = vsel %vm709, %v4208, 0.0
      %v4252 = vadd.f32 %v4250, %v4251
      %v4253 = vsel %vm709, %v4209, 0.0
      %v4254 = vadd.f32 %v4252, %v4253
      %v4255 = vsel %vm709, %v4210, 0.0
      %v4256 = vadd.f32 %v4254, %v4255
      %v4257 = vsel %vm709, %v4211, 0.0
      %v4258 = vadd.f32 %v4256, %v4257
      %v4259 = vsel %vm709, %v4212, 0.0
      %v4260 = vadd.f32 %v4258, %v4259
      %v4261 = vsel %vm709, %v4213, 0.0
      %v4262 = vadd.f32 %v4260, %v4261
      %v4263 = vsel %vm709, %v4214, 0.0
      %v4264 = vadd.f32 %v4262, %v4263
      %v4265 = vsel %vm709, %v4215, 0.0
      %v4266 = vadd.f32 %v4264, %v4265
      %v4267 = vsel %vm709, %v4216, 0.0
      %v4268 = vadd.f32 %v4266, %v4267
      %v4269 = vsel %vm709, %v4217, 0.0
      %v4270 = vadd.f32 %v4268, %v4269
      %v4271 = vsel %vm709, %v4218, 0.0
      %v4272 = vadd.f32 %v4270, %v4271
      %v4273 = vsel %vm709, %v4219, 0.0
      %v4274 = vadd.f32 %v4272, %v4273
      %v4275 = vsel %vm709, %v4220, 0.0
      %v4276 = vadd.f32 %v4274, %v4275
      %v4277 = vsel %vm709, %v4221, 0.0
      %v4278 = vadd.f32 %v4276, %v4277
      %v4279 = vsel %vm709, %v4222, 0.0
      %v4280 = vadd.f32 %v4278, %v4279
      %v4281 = vsel %vm709, %v4223, 0.0
      %v4282 = vadd.f32 %v4280, %v4281
      %v4283 = vsel %vm709, %v4224, 0.0
      %v4284 = vadd.f32 %v4282, %v4283
      %v4285 = vsel %vm709, %v4225, 0.0
      %v4286 = vadd.f32 %v4284, %v4285
      %v4287 = vsel %vm709, %v4226, 0.0
      %v4288 = vadd.f32 %v4286, %v4287
      %v4289 = vsel %vm709, %v4227, 0.0
      %v4290 = vadd.f32 %v4288, %v4289
      %v4291 = vrot.slane %v4290, 4
      %v4292 = vadd.f32 %v4290, %v4291
      %v4293 = vrot.slane %v4292, 2
      %v4294 = vadd.f32 %v4292, %v4293
      %v4295 = vrot.slane %v4294, 1
      %v4296 = vadd.f32 %v4294, %v4295
      %4297 = vst.msk [vmem:[%s295] sm:$0x1] %vm4194, %v4296
      %p4298 = scmp.lt.s32.totalorder %s19, 1
      %s4299 = scalar_select %p4298, %s19, 1
      %s4300 = smul.addr %s4299, 32
      %s4301 = smul.addr %s4300, 8
      %s4302 = scalar_lea.vmem %s5, %s4301
      %p4303 = scmp.lt.s32.totalorder %s19, 1
      %s4304 = scalar_select %p4303, %s19, 1
      %s4305 = scalar_lea.vmem %s6, %s4304
      %p4306 = scmp.lt.s32.totalorder %s19, 1
      %s4307 = scalar_select %p4306, %s19, 1
      %s4308 = scalar_lea.vmem %s7, %s4307
      // Predicated region
      $region41: #{double_conv_forward.4} parent=39 // pred_check
        %p4309 = pneg %p147
      $region42: #{double_conv_forward.4} parent=39 // pred_check_branch
        %4311 = sbr.rel (%p4309) target = $region44
      $region43: #{double_conv_forward.4} parent=39 // pred_region
        _
      $region44: #{double_conv_forward.4} parent=39 // pred_fallthru
        _
      // Predicated region
      $region45: #{double_conv_forward.4} parent=39 // pred_check
        %p4312 = pneg %p173
      $region46: #{double_conv_forward.4} parent=39 // pred_check_branch
        %4314 = sbr.rel (%p4312) target = $region48
      $region47: #{double_conv_forward.4} parent=39 // pred_region
        _
      $region48: #{double_conv_forward.4} parent=39 // pred_fallthru
        _
      // Predicated region
      $region49: #{double_conv_forward.4} parent=39 // pred_check
        %p4315 = pneg %p199
      $region50: #{double_conv_forward.4} parent=39 // pred_check_branch
        %4317 = sbr.rel (%p4315) target = $region52
      $region51: #{double_conv_forward.4} parent=39 // pred_region
        _
      $region52: #{double_conv_forward.4} parent=39 // pred_fallthru
        _
    $region40: #{double_conv_forward.4} parent=5 // pred_fallthru
      _
    %p4318 = scmp.le.s32.totalorder 2, %s14
    // Predicated region
    $region53: #{double_conv_forward.4} parent=5 // pred_check
      %p4319 = pneg %p4318
    $region54: #{double_conv_forward.4} parent=5 // pred_check_branch
      %4321 = sbr.rel (%p4319) target = $region56
    $region55: #{double_conv_forward.4} parent=5 // pred_region
      %s4322 = ssub.s32 %s14, 2
      // Predicated region
      $region57: #{double_conv_forward.4} parent=55 // pred_check
        %p4323 = pneg %p153
      $region58: #{double_conv_forward.4} parent=55 // pred_check_branch
        %4325 = sbr.rel (%p4323) target = $region60
      $region59: #{double_conv_forward.4} parent=55 // pred_region
        %p4326 = scmp.lt.s32.totalorder %s20, 1
        %s4327 = scalar_select %p4326, %s20, 1
        %s4328 = smul.addr %s4327, 32
        %s4329 = smul.addr %s4328, 8
        %s4330 = scalar_lea.vmem %s5, %s4329
      $region60: #{double_conv_forward.4} parent=55 // pred_fallthru
        _
      // Predicated region
      $region61: #{double_conv_forward.4} parent=55 // pred_check
        %p4331 = pneg %p179
      $region62: #{double_conv_forward.4} parent=55 // pred_check_branch
        %4333 = sbr.rel (%p4331) target = $region64
      $region63: #{double_conv_forward.4} parent=55 // pred_region
        %p4334 = scmp.lt.s32.totalorder %s20, 1
        %s4335 = scalar_select %p4334, %s20, 1
        %s4336 = scalar_lea.vmem %s6, %s4335
      $region64: #{double_conv_forward.4} parent=55 // pred_fallthru
        _
      // Predicated region
      $region65: #{double_conv_forward.4} parent=55 // pred_check
        %p4337 = pneg %p205
      $region66: #{double_conv_forward.4} parent=55 // pred_check_branch
        %4339 = sbr.rel (%p4337) target = $region68
      $region67: #{double_conv_forward.4} parent=55 // pred_region
        %p4340 = scmp.lt.s32.totalorder %s20, 1
        %s4341 = scalar_select %p4340, %s20, 1
        %s4342 = scalar_lea.vmem %s7, %s4341
      $region68: #{double_conv_forward.4} parent=55 // pred_fallthru
        _
    $region56: #{double_conv_forward.4} parent=5 // pred_fallthru
      _
  $region6: #{double_conv_forward.4} parent=0 // loop_footer
    %s18 = sadd.s32 1, %s14
  $region7: #{double_conv_forward.4} parent=0 // loop_footer_branch
    %13 = sbr.rel target = $region3
  $region8: #{double_conv_forward.4} parent=0 // loop_exit
    _

</llo_original>
